<compile_context>
chip_gen: v7x
topology: tpu7x:2x2x1
jax: 0.10.0
libtpu: 0.0.40
codegen_flags: <defaults>
</compile_context>

<pallas_src>
import jax
import jax.numpy as jnp
from jax.experimental import pallas as pl
from jax.experimental.pallas import tpu as pltpu

# tap order matches the (3,3,I,O) -> (9*CP, CP) weight reshape (ky major, kx minor)
_TAPS = tuple((dy, dx) for dy in (-1, 0, 1) for dx in (-1, 0, 1))


def _round_up(v, m):
    return ((v + m - 1) // m) * m


def _silu(v):
    # sigmoid lowers to the EUP exp path; keeps the VALU slot free.
    return v * jax.nn.sigmoid(v)


def _make_kernel(H, W, CP, CF):
    """Returns (kernel, padded-scratch-rows)."""
    HW = H * W
    # Halo rows on each side of the flattened image inside the VMEM scratch:
    # >= W+1 (largest tap shift) and 16-aligned so the bf16 halo / centre
    # stores land on full (16,128) bf16 tiles (all pl.ds offsets are static).
    G = _round_up(W + 1, 16)
    PADHW = HW + 2 * G
    f32, bf16 = jnp.float32, jnp.bfloat16

    def kernel(x_ref, feat_ref, embo_ref,
               wtb_ref, btb_ref, win_ref, bin_ref, wout_ref, bout_ref,
               o_ref, pad_ref):
        x = x_ref[0]              # (HW, CP) f32
        feat = feat_ref[0]        # (HW, CF) bf16
        emb_out = embo_ref[0]     # (1, CP)  f32

        # Horizontal-border masks rebuilt from iota (replaces the old HBM mask
        # tensor).  col == x coordinate of each flattened output position.
        # Hoisted once and reused by both convs (JAX does not CSE broadcasts).
        col = jax.lax.broadcasted_iota(jnp.int32, (HW, CP), 0) % W
        not_left = col > 0            # tap dx = -1 invalid at x == 0
        not_right = col < (W - 1)     # tap dx = +1 invalid at x == W-1

        # Zero the halo strips once (static, tile-aligned bf16 stores).  The
        # centre region is rewritten before every tap read, and the halo is
        # never written afterwards, so it stays clean for both convs.
        zeros_halo = jnp.zeros((G, CP), bf16)
        pad_ref[pl.ds(0, G), :] = zeros_halo
        pad_ref[pl.ds(G + HW, G), :] = zeros_halo

        def conv3x3(h, w_ref, b_ref):
            # h: (HW, CP) f32.  Cast once to bf16, write into the haloed
            # scratch, read the 9 taps back as statically shifted windows
            # (vertical zero padding via the halo, horizontal via the iota
            # masks), and accumulate tap-PAIR matmuls (K=256) into f32.
            h_bf = h.astype(bf16)
            pad_ref[pl.ds(G, HW), :] = h_bf
            taps = []
            for dy, dx in _TAPS:
                s = dy * W + dx
                if s == 0:
                    t = h_bf                      # centre tap: reuse live value
                else:
                    t = pad_ref[pl.ds(G + s, HW), :]
                    if dx == -1:
                        t = jnp.where(not_left, t, 0)
                    elif dx == 1:
                        t = jnp.where(not_right, t, 0)
                taps.append(t)
            acc = None
            for k0 in range(0, 9, 2):             # pairs (0,1)(2,3)(4,5)(6,7)(8,)
                if k0 + 1 < 9:
                    lhs = jnp.concatenate([taps[k0], taps[k0 + 1]], axis=-1)
                    rhs = w_ref[pl.ds(k0 * CP, 2 * CP), :]
                else:
                    lhs = taps[k0]
                    rhs = w_ref[pl.ds(k0 * CP, CP), :]
                d = jnp.dot(lhs, rhs, preferred_element_type=f32)
                acc = d if acc is None else acc + d
            return acc + b_ref[...]

        # Fused 1x1 injection convs: feature @ [wtop | wbot] -> (HW, 2*CP)
        tb = jnp.dot(feat, wtb_ref[...],
                     preferred_element_type=f32) + btb_ref[...]
        top, bottom = tb[:, :CP], tb[:, CP:]

        # in_layers: SiLU -> conv3x3
        h = _silu(x + top)
        h = conv3x3(h, win_ref, bin_ref)

        # h = h + emb_out + bottom_feature ; out_layers: SiLU -> conv3x3
        h = _silu(h + emb_out + bottom)
        h = conv3x3(h, wout_ref, bout_ref)

        # skip connection is Identity (out_channels == channels)
        o_ref[0] = (x + h).astype(o_ref.dtype)

    return kernel, PADHW


def _pad_to(a, axis, size):
    pad = [(0, 0)] * a.ndim
    pad[axis] = (0, size - a.shape[axis])
    return jnp.pad(a, pad)


def _pick_vmem_limit(HW, CP, CF, PADHW):
    """Per-generation VMEM budget instead of a hard-coded 32 MiB."""
    w_bytes = ((CF * 2 * CP + 2 * 9 * CP * CP) * 2      # bf16 weights
               + (2 * CP + 2 * CP) * 4)                 # f32 biases
    per_step = (2 * HW * CP * 4        # x (f32), double buffered
                + 2 * HW * CF * 2      # feature (bf16), double buffered
                + 2 * HW * CP * 4      # output (f32), double buffered
                + 2 * w_bytes          # grid-invariant weights, double buffered
                + PADHW * CP * 2       # haloed bf16 scratch
                + 6 * HW * CP * 4)     # live transients (taps / pair concat / acc)
    try:
        cap = pltpu.get_tpu_info().vmem_capacity_bytes
    except Exception:                  # interpret mode / older runtimes
        cap = 64 * 1024 * 1024         # v7x-conservative fallback
    return int(min(0.75 * cap, max(16 * 1024 * 1024, 2 * per_step)))


def guided_resblock_forward(x, emb, feature, params, *, nhwc_out=False):
    """x: (N, C, H, W) NCHW; emb: (N, E); feature: (N, 4*guidance_ch, H, W)."""
    N, C, H, W = x.shape
    F = feature.shape[1]
    Cout = params["win"].shape[-1]
    assert Cout == C, "identity-skip configuration (out_channels == channels)"
    HW = H * W
    CP = _round_up(max(C, Cout), 128)   # x / h / out lane width
    CF = _round_up(F, 128)              # feature lane width

    def to_flat(a, width, dtype):       # NCHW -> (N, HW, width)
        a = jnp.transpose(a, (0, 2, 3, 1)).reshape(a.shape[0], HW, a.shape[1])
        return _pad_to(a, 2, width).astype(dtype)

    x_p = to_flat(x, CP, jnp.float32)
    feat_p = to_flat(feature, CF, jnp.bfloat16)   # only feeds MXU matmuls

    # emb_layers (SiLU -> Linear) hoisted out of the kernel: an M=1 matmul per
    # batch element is cheaper as a plain XLA op; only its result is shipped.
    emb_out = jnp.dot(jax.nn.silu(emb), params["wemb"],
                      precision=jax.lax.Precision.HIGHEST) + params["bemb"]
    emb_p = _pad_to(emb_out, 1, CP).reshape(N, 1, CP).astype(jnp.float32)

    def pad2(w, rows, cols):            # (I, O) -> (rows, cols)
        return _pad_to(_pad_to(w, 0, rows), 1, cols)

    # Fused (top | bottom) 1x1 injection weights / biases.
    wtb = jnp.concatenate([pad2(params["wtop"], CF, CP),
                           pad2(params["wbot"], CF, CP)],
                          axis=1).astype(jnp.bfloat16)            # (CF, 2CP)
    btb = jnp.concatenate([_pad_to(params["btop"], 0, CP),
                           _pad_to(params["bbot"], 0, CP)]).reshape(1, 2 * CP)

    def padconv(w):                     # (3,3,I,O) -> (9*CP, CP), tap-major, bf16
        w = _pad_to(_pad_to(w, 2, CP), 3, CP)
        return w.reshape(9 * CP, CP).astype(jnp.bfloat16)

    def padb(b):                        # (O,) -> (1, CP) f32
        return _pad_to(b, 0, CP).reshape(1, CP)

    kernel, PADHW = _make_kernel(H, W, CP, CF)

    args = (
        x_p, feat_p, emb_p,
        wtb, btb,
        padconv(params["win"]), padb(params["bin"]),
        padconv(params["wout"]), padb(params["bout"]),
    )

    def full(shape):                    # grid-invariant operand
        nd = len(shape)
        return pl.BlockSpec(shape, lambda n: (0,) * nd)

    in_specs = [
        pl.BlockSpec((1, HW, CP), lambda n: (n, 0, 0)),   # x (f32)
        pl.BlockSpec((1, HW, CF), lambda n: (n, 0, 0)),   # feature (bf16)
        pl.BlockSpec((1, 1, CP), lambda n: (n, 0, 0)),    # precomputed emb_out
        full((CF, 2 * CP)), full((1, 2 * CP)),            # fused 1x1 injections
        full((9 * CP, CP)), full((1, CP)),                # in_layers conv3x3
        full((9 * CP, CP)), full((1, CP)),                # out_layers conv3x3
    ]
    out_specs = pl.BlockSpec((1, HW, CP), lambda n: (n, 0, 0))

    out = pl.pallas_call(
        kernel,
        out_shape=jax.ShapeDtypeStruct((N, HW, CP), jnp.float32),
        grid=(N,),
        in_specs=in_specs,
        out_specs=out_specs,
        scratch_shapes=[pltpu.VMEM((PADHW, CP), jnp.bfloat16)],
        compiler_params=pltpu.CompilerParams(
            dimension_semantics=("parallel",),
            vmem_limit_bytes=_pick_vmem_limit(HW, CP, CF, PADHW)),
    )(*args)

    # NHWC consumers can take `nhwc_out=True` and skip the extra HBM round
    # trip of the transpose below; NCHW is kept as the default to match the
    # PyTorch module's interface.
    out = out[:, :, :Cout].reshape(N, H, W, Cout)
    if nhwc_out:
        return out
    return jnp.transpose(out, (0, 3, 1, 2))  # back to NCHW


def init_params(key, C, E, G, Cout=None):
    """Deterministic synthetic parameters; shapes follow Guided_ResBlock.__init__."""
    Cout = Cout or C
    F = 4 * G
    ks = jax.random.split(key, 10)

    def n(k, s, scale=0.05):
        return (scale * jax.random.normal(k, s)).astype(jnp.float32)

    return dict(
        wtop=n(ks[0], (F, C)),          btop=n(ks[1], (C,), 0.02),
        wbot=n(ks[2], (F, Cout)),       bbot=n(ks[3], (Cout,), 0.02),
        win=n(ks[4], (3, 3, C, Cout)),  bin=n(ks[5], (Cout,), 0.02),
        wemb=n(ks[6], (E, Cout)),       bemb=n(ks[7], (Cout,), 0.02),
        wout=n(ks[8], (3, 3, Cout, Cout)), bout=n(ks[9], (Cout,), 0.02),
    )


def reference_forward(x, emb, feature, p):
    """Plain-JAX reference (matches the PyTorch forward with default flags)."""
    hi = jax.lax.Precision.HIGHEST
    xh = jnp.transpose(x, (0, 2, 3, 1))
    fh = jnp.transpose(feature, (0, 2, 3, 1))
    silu = jax.nn.silu

    def conv(h, w, b, padding):
        return jax.lax.conv_general_dilated(
            h, w, (1, 1), padding,
            dimension_numbers=("NHWC", "HWIO", "NHWC"),
            precision=hi) + b

    top = conv(fh, p["wtop"][None, None], p["btop"], "VALID")
    bottom = conv(fh, p["wbot"][None, None], p["bbot"], "VALID")
    h = silu(xh + top)
    h = conv(h, p["win"], p["bin"], "SAME")
    e = jnp.dot(silu(emb), p["wemb"], precision=hi) + p["bemb"]
    h = silu(h + e[:, None, None, :] + bottom)
    h = conv(h, p["wout"], p["bout"], "SAME")
    out = xh + h  # identity skip
    return jnp.transpose(out, (0, 3, 1, 2))


if __name__ == "__main__":
    N, C, E, G, H, W = 2, 4, 32, 2, 16, 16   # channels=out_channels=4, guidance_ch=2
    key = jax.random.PRNGKey(0)
    kx, ke, kf, kp = jax.random.split(key, 4)
    x = jax.random.normal(kx, (N, C, H, W), jnp.float32)
    emb = jax.random.normal(ke, (N, E), jnp.float32)
    feature = jax.random.normal(kf, (N, 4 * G, H, W), jnp.float32)
    params = init_params(kp, C, E, G)

    out = jax.block_until_ready(guided_resblock_forward(x, emb, feature, params))
    assert out.shape == (N, C, H, W)

    ref = jax.block_until_ready(reference_forward(x, emb, feature, params))
    err = float(jnp.max(jnp.abs(out - ref)))
    # Kernel feeds the MXU bf16 operands (f32 accumulation) while the reference
    # runs f32 at HIGHEST precision; allow ~1 bf16 ulp of the O(1) activations.
    assert err < 1e-2, f"max abs err {err}"
    print("KERNEL_OK")
</pallas_src>

<mosaic_0001>
module attributes {stable_mosaic.version = 11 : i64} {
  func.func @kernel(%arg0: i32, %arg1: memref<1x256x128xf32, #tpu.memory_space<vmem>>, %arg2: memref<1x256x128xbf16, #tpu.memory_space<vmem>>, %arg3: memref<1x1x128xf32, #tpu.memory_space<vmem>>, %arg4: memref<128x256xbf16, #tpu.memory_space<vmem>>, %arg5: memref<1x256xf32, #tpu.memory_space<vmem>>, %arg6: memref<1152x128xbf16, #tpu.memory_space<vmem>>, %arg7: memref<1x128xf32, #tpu.memory_space<vmem>>, %arg8: memref<1152x128xbf16, #tpu.memory_space<vmem>>, %arg9: memref<1x128xf32, #tpu.memory_space<vmem>>, %arg10: memref<1x256x128xf32, #tpu.memory_space<vmem>>, %arg11: memref<320x128xbf16, #tpu.memory_space<vmem>>) attributes {dimension_semantics = [#tpu.dimension_semantics<parallel>], iteration_bounds = array<i64: 2>, scalar_prefetch = 0 : i64, scratch_operands = 1 : i64, tpu.core_type = #tpu.core_type<tc>, window_params = [{transform_indices = @transform_0, window_bounds = array<i64: 1, 256, 128>}, {transform_indices = @transform_1, window_bounds = array<i64: 1, 256, 128>}, {transform_indices = @transform_2, window_bounds = array<i64: 1, 1, 128>}, {pipeline_mode = #tpu.pipeline_mode<synchronous>, transform_indices = @transform_3, window_bounds = array<i64: 128, 256>}, {pipeline_mode = #tpu.pipeline_mode<synchronous>, transform_indices = @transform_4, window_bounds = array<i64: 1, 256>}, {pipeline_mode = #tpu.pipeline_mode<synchronous>, transform_indices = @transform_5, window_bounds = array<i64: 1152, 128>}, {pipeline_mode = #tpu.pipeline_mode<synchronous>, transform_indices = @transform_6, window_bounds = array<i64: 1, 128>}, {pipeline_mode = #tpu.pipeline_mode<synchronous>, transform_indices = @transform_7, window_bounds = array<i64: 1152, 128>}, {pipeline_mode = #tpu.pipeline_mode<synchronous>, transform_indices = @transform_8, window_bounds = array<i64: 1, 128>}, {transform_indices = @transform_9, window_bounds = array<i64: 1, 256, 128>}]} {
    %c0 = arith.constant 0 : index
    %c0_0 = arith.constant 0 : index
    %c0_1 = arith.constant 0 : index
    %0 = vector.load %arg1[%c0, %c0_0, %c0_1] : memref<1x256x128xf32, #tpu.memory_space<vmem>>, vector<1x256x128xf32>
    %1 = vector.shape_cast %0 : vector<1x256x128xf32> to vector<256x128xf32>
    %c0_2 = arith.constant 0 : index
    %c0_3 = arith.constant 0 : index
    %c0_4 = arith.constant 0 : index
    %2 = vector.load %arg2[%c0_2, %c0_3, %c0_4] : memref<1x256x128xbf16, #tpu.memory_space<vmem>>, vector<1x256x128xbf16>
    %3 = vector.shape_cast %2 : vector<1x256x128xbf16> to vector<256x128xbf16>
    %c0_5 = arith.constant 0 : index
    %c0_6 = arith.constant 0 : index
    %c0_7 = arith.constant 0 : index
    %4 = vector.load %arg3[%c0_5, %c0_6, %c0_7] : memref<1x1x128xf32, #tpu.memory_space<vmem>>, vector<1x1x128xf32>
    %5 = vector.shape_cast %4 : vector<1x1x128xf32> to vector<1x128xf32>
    %6 = tpu.iota {dimensions = array<i32: 0>} : vector<256x128xi32>
    %c16_i32 = arith.constant 16 : i32
    %c0_i32 = arith.constant 0 : i32
    %7 = arith.cmpi eq, %c16_i32, %c0_i32 : i32
    %c1_i32 = arith.constant 1 : i32
    %8 = arith.select %7, %c1_i32, %c16_i32 : i32
    %9 = vector.broadcast %8 : i32 to vector<256x128xi32>
    %10 = arith.remsi %6, %9 : vector<256x128xi32>
    %c0_i32_8 = arith.constant 0 : i32
    %11 = vector.broadcast %c0_i32_8 : i32 to vector<256x128xi32>
    %12 = arith.cmpi ne, %10, %11 : vector<256x128xi32>
    %c0_i32_9 = arith.constant 0 : i32
    %13 = vector.broadcast %c0_i32_9 : i32 to vector<256x128xi32>
    %14 = arith.cmpi slt, %10, %13 : vector<256x128xi32>
    %c0_i32_10 = arith.constant 0 : i32
    %15 = arith.cmpi slt, %8, %c0_i32_10 : i32
    %16 = vector.broadcast %15 : i1 to vector<256x128xi1>
    %17 = vector.broadcast %16 : vector<256x128xi1> to vector<256x128xi1>
    %18 = arith.xori %14, %17 : vector<256x128xi1>
    %19 = arith.andi %18, %12 : vector<256x128xi1>
    %20 = vector.broadcast %8 : i32 to vector<256x128xi32>
    %21 = arith.addi %10, %20 : vector<256x128xi32>
    %22 = arith.select %19, %21, %10 : vector<256x128xi1>, vector<256x128xi32>
    %c0_i32_11 = arith.constant 0 : i32
    %23 = vector.broadcast %c0_i32_11 : i32 to vector<256x128xi32>
    %24 = arith.cmpi sgt, %22, %23 : vector<256x128xi32>
    %c15_i32 = arith.constant 15 : i32
    %25 = vector.broadcast %c15_i32 : i32 to vector<256x128xi32>
    %26 = arith.cmpi slt, %22, %25 : vector<256x128xi32>
    %cst = arith.constant 0.000000e+00 : bf16
    %27 = vector.broadcast %cst : bf16 to vector<32x128xbf16>
    %c0_12 = arith.constant 0 : index
    %c0_13 = arith.constant 0 : index
    %28 = vector.load %arg11[%c0_12, %c0_13] : memref<320x128xbf16, #tpu.memory_space<vmem>>, vector<32x128xbf16>
    tpu.vector_store %arg11[%c0_12, %c0_13], %27 {strides = array<i32>} : memref<320x128xbf16, #tpu.memory_space<vmem>>, vector<32x128xbf16>,
    %c288 = arith.constant 288 : index
    %c0_14 = arith.constant 0 : index
    %29 = vector.load %arg11[%c288, %c0_14] : memref<320x128xbf16, #tpu.memory_space<vmem>>, vector<32x128xbf16>
    tpu.vector_store %arg11[%c288, %c0_14], %27 {strides = array<i32>} : memref<320x128xbf16, #tpu.memory_space<vmem>>, vector<32x128xbf16>,
    %c0_15 = arith.constant 0 : index
    %c0_16 = arith.constant 0 : index
    %30 = vector.load %arg4[%c0_15, %c0_16] : memref<128x256xbf16, #tpu.memory_space<vmem>>, vector<128x256xbf16>
    %cst_17 = arith.constant dense<0.000000e+00> : vector<256x256xf32>
    %31 = tpu.matmul %3, %30, %cst_17 {dimension_numbers = #tpu.dot_dimension_numbers<[1], [0], [0], [1], [0, 0, 1, 1], [], []>} : vector<256x128xbf16>, vector<128x256xbf16>, vector<256x256xf32> -> vector<256x256xf32>
    %c0_18 = arith.constant 0 : index
    %c0_19 = arith.constant 0 : index
    %32 = vector.load %arg5[%c0_18, %c0_19] : memref<1x256xf32, #tpu.memory_space<vmem>>, vector<1x256xf32>
    %33 = vector.broadcast %32 : vector<1x256xf32> to vector<256x256xf32>
    %34 = arith.addf %31, %33 : vector<256x256xf32>
    %35 = vector.extract_strided_slice %34 {offsets = [0, 0], sizes = [256, 128], strides = [1, 1]} : vector<256x256xf32> to vector<256x128xf32>
    %36 = vector.extract_strided_slice %34 {offsets = [0, 128], sizes = [256, 128], strides = [1, 1]} : vector<256x256xf32> to vector<256x128xf32>
    %37 = arith.addf %1, %35 : vector<256x128xf32>
    %38 = arith.negf %37 : vector<256x128xf32>
    %39 = math.exp %38 : vector<256x128xf32>
    %cst_20 = arith.constant 1.000000e+00 : f32
    %40 = vector.broadcast %cst_20 : f32 to vector<256x128xf32>
    %41 = arith.addf %40, %39 : vector<256x128xf32>
    %42 = arith.divf %40, %41 : vector<256x128xf32>
    %43 = arith.mulf %37, %42 : vector<256x128xf32>
    %44 = arith.truncf %43 : vector<256x128xf32> to vector<256x128xbf16>
    %c32 = arith.constant 32 : index
    %c0_21 = arith.constant 0 : index
    %45 = vector.load %arg11[%c32, %c0_21] : memref<320x128xbf16, #tpu.memory_space<vmem>>, vector<256x128xbf16>
    tpu.vector_store %arg11[%c32, %c0_21], %44 {strides = array<i32>} : memref<320x128xbf16, #tpu.memory_space<vmem>>, vector<256x128xbf16>,
    %c15 = arith.constant 15 : index
    %c0_22 = arith.constant 0 : index
    %46 = vector.load %arg11[%c15, %c0_22] : memref<320x128xbf16, #tpu.memory_space<vmem>>, vector<256x128xbf16>
    %c0_i32_23 = arith.constant 0 : i32
    %47 = arith.sitofp %c0_i32_23 : i32 to bf16
    %48 = vector.broadcast %47 : bf16 to vector<256x128xbf16>
    %49 = arith.select %24, %46, %48 : vector<256x128xi1>, vector<256x128xbf16>
    %c16 = arith.constant 16 : index
    %c0_24 = arith.constant 0 : index
    %50 = vector.load %arg11[%c16, %c0_24] : memref<320x128xbf16, #tpu.memory_space<vmem>>, vector<256x128xbf16>
    %c17 = arith.constant 17 : index
    %c0_25 = arith.constant 0 : index
    %51 = vector.load %arg11[%c17, %c0_25] : memref<320x128xbf16, #tpu.memory_space<vmem>>, vector<256x128xbf16>
    %c0_i32_26 = arith.constant 0 : i32
    %52 = arith.sitofp %c0_i32_26 : i32 to bf16
    %53 = vector.broadcast %52 : bf16 to vector<256x128xbf16>
    %54 = arith.select %26, %51, %53 : vector<256x128xi1>, vector<256x128xbf16>
    %c31 = arith.constant 31 : index
    %c0_27 = arith.constant 0 : index
    %55 = vector.load %arg11[%c31, %c0_27] : memref<320x128xbf16, #tpu.memory_space<vmem>>, vector<256x128xbf16>
    %c0_i32_28 = arith.constant 0 : i32
    %56 = arith.sitofp %c0_i32_28 : i32 to bf16
    %57 = vector.broadcast %56 : bf16 to vector<256x128xbf16>
    %58 = arith.select %24, %55, %57 : vector<256x128xi1>, vector<256x128xbf16>
    %c33 = arith.constant 33 : index
    %c0_29 = arith.constant 0 : index
    %59 = vector.load %arg11[%c33, %c0_29] : memref<320x128xbf16, #tpu.memory_space<vmem>>, vector<256x128xbf16>
    %c0_i32_30 = arith.constant 0 : i32
    %60 = arith.sitofp %c0_i32_30 : i32 to bf16
    %61 = vector.broadcast %60 : bf16 to vector<256x128xbf16>
    %62 = arith.select %26, %59, %61 : vector<256x128xi1>, vector<256x128xbf16>
    %c47 = arith.constant 47 : index
    %c0_31 = arith.constant 0 : index
    %63 = vector.load %arg11[%c47, %c0_31] : memref<320x128xbf16, #tpu.memory_space<vmem>>, vector<256x128xbf16>
    %c0_i32_32 = arith.constant 0 : i32
    %64 = arith.sitofp %c0_i32_32 : i32 to bf16
    %65 = vector.broadcast %64 : bf16 to vector<256x128xbf16>
    %66 = arith.select %24, %63, %65 : vector<256x128xi1>, vector<256x128xbf16>
    %c48 = arith.constant 48 : index
    %c0_33 = arith.constant 0 : index
    %67 = vector.load %arg11[%c48, %c0_33] : memref<320x128xbf16, #tpu.memory_space<vmem>>, vector<256x128xbf16>
    %c49 = arith.constant 49 : index
    %c0_34 = arith.constant 0 : index
    %68 = vector.load %arg11[%c49, %c0_34] : memref<320x128xbf16, #tpu.memory_space<vmem>>, vector<256x128xbf16>
    %c0_i32_35 = arith.constant 0 : i32
    %69 = arith.sitofp %c0_i32_35 : i32 to bf16
    %70 = vector.broadcast %69 : bf16 to vector<256x128xbf16>
    %71 = arith.select %26, %68, %70 : vector<256x128xi1>, vector<256x128xbf16>
    %72 = tpu.concatenate %49, %50 in 1 : vector<256x128xbf16>, vector<256x128xbf16> -> vector<256x256xbf16>
    %c0_36 = arith.constant 0 : index
    %c0_37 = arith.constant 0 : index
    %73 = vector.load %arg6[%c0_36, %c0_37] : memref<1152x128xbf16, #tpu.memory_space<vmem>>, vector<256x128xbf16>
    %cst_38 = arith.constant dense<0.000000e+00> : vector<256x128xf32>
    %74 = tpu.matmul %72, %73, %cst_38 {dimension_numbers = #tpu.dot_dimension_numbers<[1], [0], [0], [1], [0, 0, 1, 1], [], []>} : vector<256x256xbf16>, vector<256x128xbf16>, vector<256x128xf32> -> vector<256x128xf32>
    %75 = tpu.concatenate %54, %58 in 1 : vector<256x128xbf16>, vector<256x128xbf16> -> vector<256x256xbf16>
    %c256 = arith.constant 256 : index
    %c0_39 = arith.constant 0 : index
    %76 = vector.load %arg6[%c256, %c0_39] : memref<1152x128xbf16, #tpu.memory_space<vmem>>, vector<256x128xbf16>
    %cst_40 = arith.constant dense<0.000000e+00> : vector<256x128xf32>
    %77 = tpu.matmul %75, %76, %cst_40 {dimension_numbers = #tpu.dot_dimension_numbers<[1], [0], [0], [1], [0, 0, 1, 1], [], []>} : vector<256x256xbf16>, vector<256x128xbf16>, vector<256x128xf32> -> vector<256x128xf32>
    %78 = arith.addf %74, %77 : vector<256x128xf32>
    %79 = tpu.concatenate %44, %62 in 1 : vector<256x128xbf16>, vector<256x128xbf16> -> vector<256x256xbf16>
    %c512 = arith.constant 512 : index
    %c0_41 = arith.constant 0 : index
    %80 = vector.load %arg6[%c512, %c0_41] : memref<1152x128xbf16, #tpu.memory_space<vmem>>, vector<256x128xbf16>
    %cst_42 = arith.constant dense<0.000000e+00> : vector<256x128xf32>
    %81 = tpu.matmul %79, %80, %cst_42 {dimension_numbers = #tpu.dot_dimension_numbers<[1], [0], [0], [1], [0, 0, 1, 1], [], []>} : vector<256x256xbf16>, vector<256x128xbf16>, vector<256x128xf32> -> vector<256x128xf32>
    %82 = arith.addf %78, %81 : vector<256x128xf32>
    %83 = tpu.concatenate %66, %67 in 1 : vector<256x128xbf16>, vector<256x128xbf16> -> vector<256x256xbf16>
    %c768 = arith.constant 768 : index
    %c0_43 = arith.constant 0 : index
    %84 = vector.load %arg6[%c768, %c0_43] : memref<1152x128xbf16, #tpu.memory_space<vmem>>, vector<256x128xbf16>
    %cst_44 = arith.constant dense<0.000000e+00> : vector<256x128xf32>
    %85 = tpu.matmul %83, %84, %cst_44 {dimension_numbers = #tpu.dot_dimension_numbers<[1], [0], [0], [1], [0, 0, 1, 1], [], []>} : vector<256x256xbf16>, vector<256x128xbf16>, vector<256x128xf32> -> vector<256x128xf32>
    %86 = arith.addf %82, %85 : vector<256x128xf32>
    %c1024 = arith.constant 1024 : index
    %c0_45 = arith.constant 0 : index
    %87 = vector.load %arg6[%c1024, %c0_45] : memref<1152x128xbf16, #tpu.memory_space<vmem>>, vector<128x128xbf16>
    %cst_46 = arith.constant dense<0.000000e+00> : vector<256x128xf32>
    %88 = tpu.matmul %71, %87, %cst_46 {dimension_numbers = #tpu.dot_dimension_numbers<[1], [0], [0], [1], [0, 0, 1, 1], [], []>} : vector<256x128xbf16>, vector<128x128xbf16>, vector<256x128xf32> -> vector<256x128xf32>
    %89 = arith.addf %86, %88 : vector<256x128xf32>
    %c0_47 = arith.constant 0 : index
    %c0_48 = arith.constant 0 : index
    %90 = vector.load %arg7[%c0_47, %c0_48] : memref<1x128xf32, #tpu.memory_space<vmem>>, vector<1x128xf32>
    %91 = vector.broadcast %90 : vector<1x128xf32> to vector<256x128xf32>
    %92 = arith.addf %89, %91 : vector<256x128xf32>
    %93 = vector.broadcast %5 : vector<1x128xf32> to vector<256x128xf32>
    %94 = arith.addf %92, %93 : vector<256x128xf32>
    %95 = arith.addf %94, %36 : vector<256x128xf32>
    %96 = arith.negf %95 : vector<256x128xf32>
    %97 = math.exp %96 : vector<256x128xf32>
    %cst_49 = arith.constant 1.000000e+00 : f32
    %98 = vector.broadcast %cst_49 : f32 to vector<256x128xf32>
    %99 = arith.addf %98, %97 : vector<256x128xf32>
    %100 = arith.divf %98, %99 : vector<256x128xf32>
    %101 = arith.mulf %95, %100 : vector<256x128xf32>
    %102 = arith.truncf %101 : vector<256x128xf32> to vector<256x128xbf16>
    %c32_50 = arith.constant 32 : index
    %c0_51 = arith.constant 0 : index
    %103 = vector.load %arg11[%c32_50, %c0_51] : memref<320x128xbf16, #tpu.memory_space<vmem>>, vector<256x128xbf16>
    tpu.vector_store %arg11[%c32_50, %c0_51], %102 {strides = array<i32>} : memref<320x128xbf16, #tpu.memory_space<vmem>>, vector<256x128xbf16>,
    %c15_52 = arith.constant 15 : index
    %c0_53 = arith.constant 0 : index
    %104 = vector.load %arg11[%c15_52, %c0_53] : memref<320x128xbf16, #tpu.memory_space<vmem>>, vector<256x128xbf16>
    %c0_i32_54 = arith.constant 0 : i32
    %105 = arith.sitofp %c0_i32_54 : i32 to bf16
    %106 = vector.broadcast %105 : bf16 to vector<256x128xbf16>
    %107 = arith.select %24, %104, %106 : vector<256x128xi1>, vector<256x128xbf16>
    %c16_55 = arith.constant 16 : index
    %c0_56 = arith.constant 0 : index
    %108 = vector.load %arg11[%c16_55, %c0_56] : memref<320x128xbf16, #tpu.memory_space<vmem>>, vector<256x128xbf16>
    %c17_57 = arith.constant 17 : index
    %c0_58 = arith.constant 0 : index
    %109 = vector.load %arg11[%c17_57, %c0_58] : memref<320x128xbf16, #tpu.memory_space<vmem>>, vector<256x128xbf16>
    %c0_i32_59 = arith.constant 0 : i32
    %110 = arith.sitofp %c0_i32_59 : i32 to bf16
    %111 = vector.broadcast %110 : bf16 to vector<256x128xbf16>
    %112 = arith.select %26, %109, %111 : vector<256x128xi1>, vector<256x128xbf16>
    %c31_60 = arith.constant 31 : index
    %c0_61 = arith.constant 0 : index
    %113 = vector.load %arg11[%c31_60, %c0_61] : memref<320x128xbf16, #tpu.memory_space<vmem>>, vector<256x128xbf16>
    %c0_i32_62 = arith.constant 0 : i32
    %114 = arith.sitofp %c0_i32_62 : i32 to bf16
    %115 = vector.broadcast %114 : bf16 to vector<256x128xbf16>
    %116 = arith.select %24, %113, %115 : vector<256x128xi1>, vector<256x128xbf16>
    %c33_63 = arith.constant 33 : index
    %c0_64 = arith.constant 0 : index
    %117 = vector.load %arg11[%c33_63, %c0_64] : memref<320x128xbf16, #tpu.memory_space<vmem>>, vector<256x128xbf16>
    %c0_i32_65 = arith.constant 0 : i32
    %118 = arith.sitofp %c0_i32_65 : i32 to bf16
    %119 = vector.broadcast %118 : bf16 to vector<256x128xbf16>
    %120 = arith.select %26, %117, %119 : vector<256x128xi1>, vector<256x128xbf16>
    %c47_66 = arith.constant 47 : index
    %c0_67 = arith.constant 0 : index
    %121 = vector.load %arg11[%c47_66, %c0_67] : memref<320x128xbf16, #tpu.memory_space<vmem>>, vector<256x128xbf16>
    %c0_i32_68 = arith.constant 0 : i32
    %122 = arith.sitofp %c0_i32_68 : i32 to bf16
    %123 = vector.broadcast %122 : bf16 to vector<256x128xbf16>
    %124 = arith.select %24, %121, %123 : vector<256x128xi1>, vector<256x128xbf16>
    %c48_69 = arith.constant 48 : index
    %c0_70 = arith.constant 0 : index
    %125 = vector.load %arg11[%c48_69, %c0_70] : memref<320x128xbf16, #tpu.memory_space<vmem>>, vector<256x128xbf16>
    %c49_71 = arith.constant 49 : index
    %c0_72 = arith.constant 0 : index
    %126 = vector.load %arg11[%c49_71, %c0_72] : memref<320x128xbf16, #tpu.memory_space<vmem>>, vector<256x128xbf16>
    %c0_i32_73 = arith.constant 0 : i32
    %127 = arith.sitofp %c0_i32_73 : i32 to bf16
    %128 = vector.broadcast %127 : bf16 to vector<256x128xbf16>
    %129 = arith.select %26, %126, %128 : vector<256x128xi1>, vector<256x128xbf16>
    %130 = tpu.concatenate %107, %108 in 1 : vector<256x128xbf16>, vector<256x128xbf16> -> vector<256x256xbf16>
    %c0_74 = arith.constant 0 : index
    %c0_75 = arith.constant 0 : index
    %131 = vector.load %arg8[%c0_74, %c0_75] : memref<1152x128xbf16, #tpu.memory_space<vmem>>, vector<256x128xbf16>
    %cst_76 = arith.constant dense<0.000000e+00> : vector<256x128xf32>
    %132 = tpu.matmul %130, %131, %cst_76 {dimension_numbers = #tpu.dot_dimension_numbers<[1], [0], [0], [1], [0, 0, 1, 1], [], []>} : vector<256x256xbf16>, vector<256x128xbf16>, vector<256x128xf32> -> vector<256x128xf32>
    %133 = tpu.concatenate %112, %116 in 1 : vector<256x128xbf16>, vector<256x128xbf16> -> vector<256x256xbf16>
    %c256_77 = arith.constant 256 : index
    %c0_78 = arith.constant 0 : index
    %134 = vector.load %arg8[%c256_77, %c0_78] : memref<1152x128xbf16, #tpu.memory_space<vmem>>, vector<256x128xbf16>
    %cst_79 = arith.constant dense<0.000000e+00> : vector<256x128xf32>
    %135 = tpu.matmul %133, %134, %cst_79 {dimension_numbers = #tpu.dot_dimension_numbers<[1], [0], [0], [1], [0, 0, 1, 1], [], []>} : vector<256x256xbf16>, vector<256x128xbf16>, vector<256x128xf32> -> vector<256x128xf32>
    %136 = arith.addf %132, %135 : vector<256x128xf32>
    %137 = tpu.concatenate %102, %120 in 1 : vector<256x128xbf16>, vector<256x128xbf16> -> vector<256x256xbf16>
    %c512_80 = arith.constant 512 : index
    %c0_81 = arith.constant 0 : index
    %138 = vector.load %arg8[%c512_80, %c0_81] : memref<1152x128xbf16, #tpu.memory_space<vmem>>, vector<256x128xbf16>
    %cst_82 = arith.constant dense<0.000000e+00> : vector<256x128xf32>
    %139 = tpu.matmul %137, %138, %cst_82 {dimension_numbers = #tpu.dot_dimension_numbers<[1], [0], [0], [1], [0, 0, 1, 1], [], []>} : vector<256x256xbf16>, vector<256x128xbf16>, vector<256x128xf32> -> vector<256x128xf32>
    %140 = arith.addf %136, %139 : vector<256x128xf32>
    %141 = tpu.concatenate %124, %125 in 1 : vector<256x128xbf16>, vector<256x128xbf16> -> vector<256x256xbf16>
    %c768_83 = arith.constant 768 : index
    %c0_84 = arith.constant 0 : index
    %142 = vector.load %arg8[%c768_83, %c0_84] : memref<1152x128xbf16, #tpu.memory_space<vmem>>, vector<256x128xbf16>
    %cst_85 = arith.constant dense<0.000000e+00> : vector<256x128xf32>
    %143 = tpu.matmul %141, %142, %cst_85 {dimension_numbers = #tpu.dot_dimension_numbers<[1], [0], [0], [1], [0, 0, 1, 1], [], []>} : vector<256x256xbf16>, vector<256x128xbf16>, vector<256x128xf32> -> vector<256x128xf32>
    %144 = arith.addf %140, %143 : vector<256x128xf32>
    %c1024_86 = arith.constant 1024 : index
    %c0_87 = arith.constant 0 : index
    %145 = vector.load %arg8[%c1024_86, %c0_87] : memref<1152x128xbf16, #tpu.memory_space<vmem>>, vector<128x128xbf16>
    %cst_88 = arith.constant dense<0.000000e+00> : vector<256x128xf32>
    %146 = tpu.matmul %129, %145, %cst_88 {dimension_numbers = #tpu.dot_dimension_numbers<[1], [0], [0], [1], [0, 0, 1, 1], [], []>} : vector<256x128xbf16>, vector<128x128xbf16>, vector<256x128xf32> -> vector<256x128xf32>
    %147 = arith.addf %144, %146 : vector<256x128xf32>
    %c0_89 = arith.constant 0 : index
    %c0_90 = arith.constant 0 : index
    %148 = vector.load %arg9[%c0_89, %c0_90] : memref<1x128xf32, #tpu.memory_space<vmem>>, vector<1x128xf32>
    %149 = vector.broadcast %148 : vector<1x128xf32> to vector<256x128xf32>
    %150 = arith.addf %147, %149 : vector<256x128xf32>
    %151 = arith.addf %1, %150 : vector<256x128xf32>
    %c0_91 = arith.constant 0 : index
    %c0_92 = arith.constant 0 : index
    %c0_93 = arith.constant 0 : index
    %152 = vector.load %arg10[%c0_91, %c0_92, %c0_93] : memref<1x256x128xf32, #tpu.memory_space<vmem>>, vector<1x256x128xf32>
    %153 = vector.shape_cast %152 : vector<1x256x128xf32> to vector<256x128xf32>
    %154 = vector.shape_cast %151 : vector<256x128xf32> to vector<1x256x128xf32>
    tpu.vector_store %arg10[%c0_91, %c0_92, %c0_93], %154 {strides = array<i32>} : memref<1x256x128xf32, #tpu.memory_space<vmem>>, vector<1x256x128xf32>,
    return
  }
  func.func @transform_0(%arg0: i32) -> (i32, i32, i32) {
    %c0_i32 = arith.constant 0 : i32
    %c0_i32_0 = arith.constant 0 : i32
    %c0_i32_1 = arith.constant 0 : i32
    return %arg0, %c0_i32, %c0_i32_0 : i32, i32, i32
  }
  func.func @transform_1(%arg0: i32) -> (i32, i32, i32) {
    %c0_i32 = arith.constant 0 : i32
    %c0_i32_0 = arith.constant 0 : i32
    %c0_i32_1 = arith.constant 0 : i32
    return %arg0, %c0_i32, %c0_i32_0 : i32, i32, i32
  }
  func.func @transform_2(%arg0: i32) -> (i32, i32, i32) {
    %c0_i32 = arith.constant 0 : i32
    %c0_i32_0 = arith.constant 0 : i32
    %c0_i32_1 = arith.constant 0 : i32
    return %arg0, %c0_i32, %c0_i32_0 : i32, i32, i32
  }
  func.func @transform_3(%arg0: i32) -> (i32, i32) {
    %c0_i32 = arith.constant 0 : i32
    %c0_i32_0 = arith.constant 0 : i32
    %c0_i32_1 = arith.constant 0 : i32
    return %c0_i32, %c0_i32_0 : i32, i32
  }
  func.func @transform_4(%arg0: i32) -> (i32, i32) {
    %c0_i32 = arith.constant 0 : i32
    %c0_i32_0 = arith.constant 0 : i32
    %c0_i32_1 = arith.constant 0 : i32
    return %c0_i32, %c0_i32_0 : i32, i32
  }
  func.func @transform_5(%arg0: i32) -> (i32, i32) {
    %c0_i32 = arith.constant 0 : i32
    %c0_i32_0 = arith.constant 0 : i32
    %c0_i32_1 = arith.constant 0 : i32
    return %c0_i32, %c0_i32_0 : i32, i32
  }
  func.func @transform_6(%arg0: i32) -> (i32, i32) {
    %c0_i32 = arith.constant 0 : i32
    %c0_i32_0 = arith.constant 0 : i32
    %c0_i32_1 = arith.constant 0 : i32
    return %c0_i32, %c0_i32_0 : i32, i32
  }
  func.func @transform_7(%arg0: i32) -> (i32, i32) {
    %c0_i32 = arith.constant 0 : i32
    %c0_i32_0 = arith.constant 0 : i32
    %c0_i32_1 = arith.constant 0 : i32
    return %c0_i32, %c0_i32_0 : i32, i32
  }
  func.func @transform_8(%arg0: i32) -> (i32, i32) {
    %c0_i32 = arith.constant 0 : i32
    %c0_i32_0 = arith.constant 0 : i32
    %c0_i32_1 = arith.constant 0 : i32
    return %c0_i32, %c0_i32_0 : i32, i32
  }
  func.func @transform_9(%arg0: i32) -> (i32, i32, i32) {
    %c0_i32 = arith.constant 0 : i32
    %c0_i32_0 = arith.constant 0 : i32
    %c0_i32_1 = arith.constant 0 : i32
    return %arg0, %c0_i32, %c0_i32_0 : i32, i32, i32
  }
}

</mosaic_0001>

<llo_original>
// kernel: tpu_custom_call.1
$region0: #{tpu_custom_call.1}
  #allocation0 [shape = 'u32[]', space=smem, size = 0x4, offset = 0x4, fixed_abs, tag = 'smem constant byte address 0x4 - core index']
  #allocation1 [shape = 'u32[144,128]{1,0:T(1,128)}', space=vmem, size = 0x12000, scoped, tag = 'internal scratch']
  #allocation2 [shape = 'bf16[320,128]{1,0:T(16,128)(2,1)}', space=vmem, size = 0x14000, scoped, tag = 'scratch operand']
  %s0 = inlined_call_operand.hbm [shape: f32[2,256,128], index: 0, kind: input, shape index: {}]
  %s1 = inlined_call_operand.hbm [shape: bf16[2,256,128], index: 1, kind: input, shape index: {}]
  %s2 = inlined_call_operand.vmem [shape: f32[2,1,128], index: 2, kind: input, shape index: {}]
  %s3 = inlined_call_operand.hbm [shape: bf16[128,256], index: 3, kind: input, shape index: {}]
  %s4 = inlined_call_operand.vmem [shape: f32[1,256], index: 4, kind: input, shape index: {}]
  %s5 = inlined_call_operand.hbm [shape: bf16[1152,128], index: 5, kind: input, shape index: {}]
  %s6 = inlined_call_operand.vmem [shape: f32[1,128], index: 6, kind: input, shape index: {}]
  %s7 = inlined_call_operand.hbm [shape: bf16[1152,128], index: 7, kind: input, shape index: {}]
  %s8 = inlined_call_operand.vmem [shape: f32[1,128], index: 8, kind: input, shape index: {}]
  %s9 = inlined_call_operand.hbm [shape: f32[2,256,128], index: 9, kind: output, shape index: {}]
  %s10 = sld [smem:[#allocation0]]
  $region89: #{tpu_custom_call.1} parent=0
    _
  %s12 = ssub.s32 1, %s10
  %s13 = scalar_select 0, %s12, %s10
  $region1: #{tpu_custom_call.1} parent=0
    #allocation3 [shape = 'u8[262144]{0}', space=vmem, size = 0x40000, scoped, tag = 'input window, operand 0']
    #allocation4 [shape = 's32[2]{0}', space=sflag, size = 0x8, scoped, tag = 'scoped memory for tpu_custom_call.1']
    #allocation5 [shape = 's32[2]{0}', space=sflag, size = 0x8, scoped, tag = 'scoped memory for tpu_custom_call.1']
    #allocation6 [shape = 'u8[131072]{0}', space=vmem, size = 0x20000, scoped, tag = 'input window, operand 1']
    #allocation7 [shape = 's32[2]{0}', space=sflag, size = 0x8, scoped, tag = 'scoped memory for tpu_custom_call.1']
    #allocation8 [shape = 'u8[65536]{0}', space=vmem, size = 0x10000, scoped, tag = 'input window, operand 3, single buffered']
    #allocation9 [shape = 'u8[294912]{0}', space=vmem, size = 0x48000, scoped, tag = 'input window, operand 5, single buffered']
    #allocation10 [shape = 's32[1]{0}', space=sflag, size = 0x4, scoped, tag = 'scoped memory for tpu_custom_call.1']
    #allocation11 [shape = 'u8[294912]{0}', space=vmem, size = 0x48000, scoped, tag = 'input window, operand 7, single buffered']
    #allocation12 [shape = 'u8[262144]{0}', space=vmem, size = 0x40000, scoped, tag = 'output window, operand 0']
    %14 = vsyncpa [#allocation4], 0
    %s15 = scalar_lea.sflag [#allocation4], 1
    %16 = vsyncpa %s15, 0
    %17 = vsyncpa [#allocation7], 0
    %s18 = scalar_lea.sflag [#allocation7], 1
    %19 = vsyncpa %s18, 0
    %20 = vsyncpa [#allocation10], 0
    %21 = vsyncpa [#allocation5], 0
    %s22 = scalar_lea.sflag [#allocation5], 1
    %23 = vsyncpa %s22, 0
    loop: start=0, step=1, limit=4
    $region2: #{tpu_custom_call.1} parent=1 // loop_pre_header
      _
    $region3: #{tpu_custom_call.1} parent=1 // loop_header
      %s25 = sphi 0, %s29
      %p26 = scmp.ge.s32.totalorder %s25, 4
      %s35 = sphi 0, %s37
      %s38 = sphi 0, %s35
      %s39 = sphi 0, %s38
      %s55 = sphi 0, %s39
      %s61 = sphi 0, %s63
      %s64 = sphi 0, %s61
      %s65 = sphi 0, %s64
      %s81 = sphi 0, %s65
      %s87 = sphi 0, %s89
      %s90 = sphi 0, %s87
      %s91 = sphi 0, %s90
      %s107 = sphi 0, %s91
      %s111 = sphi 0, %s111
      %s113 = sphi 0, %s111
      %s114 = sphi 0, %s113
      %s128 = sphi 0, %s114
      %s132 = sphi 0, %s132
      %s134 = sphi 0, %s132
      %s135 = sphi 0, %s134
      %s149 = sphi 0, %s135
      %s153 = sphi 0, %s153
      %s155 = sphi 0, %s153
      %s156 = sphi 0, %s155
      %s170 = sphi 0, %s156
      %s174 = sphi 0, %s174
      %s176 = sphi 0, %s174
      %s177 = sphi 0, %s176
      %s191 = sphi 0, %s177
      %s195 = sphi 0, %s195
      %s197 = sphi 0, %s195
      %s198 = sphi 0, %s197
      %s212 = sphi 0, %s198
      %s216 = sphi 0, %s216
      %s218 = sphi 0, %s216
      %s219 = sphi 0, %s218
      %s233 = sphi 0, %s219
      %s239 = sphi 0, %s241
      %s242 = sphi 0, %s239
      %s243 = sphi 0, %s242
      %s259 = sphi 0, %s243
    $region4: #{tpu_custom_call.1} parent=1 // loop_header_branch
      %28 = sbr.rel (%p26) target = $region8
    $region5: #{tpu_custom_call.1} parent=1 // loop_body
      %s30 = ssub.s32 %s25, 1
      %s31 = ssub.s32 %s25, 2
      %s32 = sadd.s32 %s25, 1
      %s33 = ssub.s32 %s25, %s32
      %p34 = scmp.eq.s32.totalorder %s33, 0
      %s36 = sadd.s32 %s35, 1
      %s37 = scalar_select %p34, %s35, %s36
      %p40 = pneg %p34
      %p41 = scmp.eq.s32.totalorder %s25, 1
      %p42 = por %p40, %p41
      %p43 = scmp.ne.s32.totalorder %s35, %s38
      %p44 = scmp.eq.s32.totalorder %s25, 0
      %p45 = por %p43, %p44
      %p46 = scmp.ne.s32.totalorder %s35, %s38
      %p47 = scmp.eq.s32.totalorder %s30, 1
      %p48 = por %p46, %p47
      %p49 = scmp.ne.s32.totalorder %s38, %s39
      %p50 = scmp.eq.s32.totalorder %s30, 0
      %p51 = por %p49, %p50
      %p52 = scmp.ne.s32.totalorder %s38, %s39
      %p53 = scmp.eq.s32.totalorder %s31, 1
      %p54 = por %p52, %p53
      %p56 = scmp.ne.s32.totalorder %s39, %s55
      %p57 = scmp.eq.s32.totalorder %s31, 0
      %p58 = por %p56, %p57
      %s59 = ssub.s32 %s25, %s32
      %p60 = scmp.eq.s32.totalorder %s59, 0
      %s62 = sadd.s32 %s61, 1
      %s63 = scalar_select %p60, %s61, %s62
      %p66 = pneg %p60
      %p67 = scmp.eq.s32.totalorder %s25, 1
      %p68 = por %p66, %p67
      %p69 = scmp.ne.s32.totalorder %s61, %s64
      %p70 = scmp.eq.s32.totalorder %s25, 0
      %p71 = por %p69, %p70
      %p72 = scmp.ne.s32.totalorder %s61, %s64
      %p73 = scmp.eq.s32.totalorder %s30, 1
      %p74 = por %p72, %p73
      %p75 = scmp.ne.s32.totalorder %s64, %s65
      %p76 = scmp.eq.s32.totalorder %s30, 0
      %p77 = por %p75, %p76
      %p78 = scmp.ne.s32.totalorder %s64, %s65
      %p79 = scmp.eq.s32.totalorder %s31, 1
      %p80 = por %p78, %p79
      %p82 = scmp.ne.s32.totalorder %s65, %s81
      %p83 = scmp.eq.s32.totalorder %s31, 0
      %p84 = por %p82, %p83
      %s85 = ssub.s32 %s25, %s32
      %p86 = scmp.eq.s32.totalorder %s85, 0
      %s88 = sadd.s32 %s87, 1
      %s89 = scalar_select %p86, %s87, %s88
      %p92 = pneg %p86
      %p93 = scmp.eq.s32.totalorder %s25, 1
      %p94 = por %p92, %p93
      %p95 = scmp.ne.s32.totalorder %s87, %s90
      %p96 = scmp.eq.s32.totalorder %s25, 0
      %p97 = por %p95, %p96
      %p98 = scmp.ne.s32.totalorder %s87, %s90
      %p99 = scmp.eq.s32.totalorder %s30, 1
      %p100 = por %p98, %p99
      %p101 = scmp.ne.s32.totalorder %s90, %s91
      %p102 = scmp.eq.s32.totalorder %s30, 0
      %p103 = por %p101, %p102
      %p104 = scmp.ne.s32.totalorder %s90, %s91
      %p105 = scmp.eq.s32.totalorder %s31, 1
      %p106 = por %p104, %p105
      %p108 = scmp.ne.s32.totalorder %s91, %s107
      %p109 = scmp.eq.s32.totalorder %s31, 0
      %p110 = por %p108, %p109
      %s112 = sadd.s32 %s111, 1
      %p115 = scmp.eq.s32.totalorder %s25, 1
      %p116 = scmp.ne.s32.totalorder %s111, %s113
      %p117 = scmp.eq.s32.totalorder %s25, 0
      %p118 = por %p116, %p117
      %p119 = scmp.ne.s32.totalorder %s111, %s113
      %p120 = scmp.eq.s32.totalorder %s30, 1
      %p121 = por %p119, %p120
      %p122 = scmp.ne.s32.totalorder %s113, %s114
      %p123 = scmp.eq.s32.totalorder %s30, 0
      %p124 = por %p122, %p123
      %p125 = scmp.ne.s32.totalorder %s113, %s114
      %p126 = scmp.eq.s32.totalorder %s31, 1
      %p127 = por %p125, %p126
      %p129 = scmp.ne.s32.totalorder %s114, %s128
      %p130 = scmp.eq.s32.totalorder %s31, 0
      %p131 = por %p129, %p130
      %s133 = sadd.s32 %s132, 1
      %p136 = scmp.eq.s32.totalorder %s25, 1
      %p137 = scmp.ne.s32.totalorder %s132, %s134
      %p138 = scmp.eq.s32.totalorder %s25, 0
      %p139 = por %p137, %p138
      %p140 = scmp.ne.s32.totalorder %s132, %s134
      %p141 = scmp.eq.s32.totalorder %s30, 1
      %p142 = por %p140, %p141
      %p143 = scmp.ne.s32.totalorder %s134, %s135
      %p144 = scmp.eq.s32.totalorder %s30, 0
      %p145 = por %p143, %p144
      %p146 = scmp.ne.s32.totalorder %s134, %s135
      %p147 = scmp.eq.s32.totalorder %s31, 1
      %p148 = por %p146, %p147
      %p150 = scmp.ne.s32.totalorder %s135, %s149
      %p151 = scmp.eq.s32.totalorder %s31, 0
      %p152 = por %p150, %p151
      %s154 = sadd.s32 %s153, 1
      %p157 = scmp.eq.s32.totalorder %s25, 1
      %p158 = scmp.ne.s32.totalorder %s153, %s155
      %p159 = scmp.eq.s32.totalorder %s25, 0
      %p160 = por %p158, %p159
      %p161 = scmp.ne.s32.totalorder %s153, %s155
      %p162 = scmp.eq.s32.totalorder %s30, 1
      %p163 = por %p161, %p162
      %p164 = scmp.ne.s32.totalorder %s155, %s156
      %p165 = scmp.eq.s32.totalorder %s30, 0
      %p166 = por %p164, %p165
      %p167 = scmp.ne.s32.totalorder %s155, %s156
      %p168 = scmp.eq.s32.totalorder %s31, 1
      %p169 = por %p167, %p168
      %p171 = scmp.ne.s32.totalorder %s156, %s170
      %p172 = scmp.eq.s32.totalorder %s31, 0
      %p173 = por %p171, %p172
      %s175 = sadd.s32 %s174, 1
      %p178 = scmp.eq.s32.totalorder %s25, 1
      %p179 = scmp.ne.s32.totalorder %s174, %s176
      %p180 = scmp.eq.s32.totalorder %s25, 0
      %p181 = por %p179, %p180
      %p182 = scmp.ne.s32.totalorder %s174, %s176
      %p183 = scmp.eq.s32.totalorder %s30, 1
      %p184 = por %p182, %p183
      %p185 = scmp.ne.s32.totalorder %s176, %s177
      %p186 = scmp.eq.s32.totalorder %s30, 0
      %p187 = por %p185, %p186
      %p188 = scmp.ne.s32.totalorder %s176, %s177
      %p189 = scmp.eq.s32.totalorder %s31, 1
      %p190 = por %p188, %p189
      %p192 = scmp.ne.s32.totalorder %s177, %s191
      %p193 = scmp.eq.s32.totalorder %s31, 0
      %p194 = por %p192, %p193
      %s196 = sadd.s32 %s195, 1
      %p199 = scmp.eq.s32.totalorder %s25, 1
      %p200 = scmp.ne.s32.totalorder %s195, %s197
      %p201 = scmp.eq.s32.totalorder %s25, 0
      %p202 = por %p200, %p201
      %p203 = scmp.ne.s32.totalorder %s195, %s197
      %p204 = scmp.eq.s32.totalorder %s30, 1
      %p205 = por %p203, %p204
      %p206 = scmp.ne.s32.totalorder %s197, %s198
      %p207 = scmp.eq.s32.totalorder %s30, 0
      %p208 = por %p206, %p207
      %p209 = scmp.ne.s32.totalorder %s197, %s198
      %p210 = scmp.eq.s32.totalorder %s31, 1
      %p211 = por %p209, %p210
      %p213 = scmp.ne.s32.totalorder %s198, %s212
      %p214 = scmp.eq.s32.totalorder %s31, 0
      %p215 = por %p213, %p214
      %s217 = sadd.s32 %s216, 1
      %p220 = scmp.eq.s32.totalorder %s25, 1
      %p221 = scmp.ne.s32.totalorder %s216, %s218
      %p222 = scmp.eq.s32.totalorder %s25, 0
      %p223 = por %p221, %p222
      %p224 = scmp.ne.s32.totalorder %s216, %s218
      %p225 = scmp.eq.s32.totalorder %s30, 1
      %p226 = por %p224, %p225
      %p227 = scmp.ne.s32.totalorder %s218, %s219
      %p228 = scmp.eq.s32.totalorder %s30, 0
      %p229 = por %p227, %p228
      %p230 = scmp.ne.s32.totalorder %s218, %s219
      %p231 = scmp.eq.s32.totalorder %s31, 1
      %p232 = por %p230, %p231
      %p234 = scmp.ne.s32.totalorder %s219, %s233
      %p235 = scmp.eq.s32.totalorder %s31, 0
      %p236 = por %p234, %p235
      %s237 = ssub.s32 %s25, %s32
      %p238 = scmp.eq.s32.totalorder %s237, 0
      %s240 = sadd.s32 %s239, 1
      %s241 = scalar_select %p238, %s239, %s240
      %p244 = pneg %p238
      %p245 = scmp.eq.s32.totalorder %s25, 1
      %p246 = por %p244, %p245
      %p247 = scmp.ne.s32.totalorder %s239, %s242
      %p248 = scmp.eq.s32.totalorder %s25, 0
      %p249 = por %p247, %p248
      %p250 = scmp.ne.s32.totalorder %s239, %s242
      %p251 = scmp.eq.s32.totalorder %s30, 1
      %p252 = por %p250, %p251
      %p253 = scmp.ne.s32.totalorder %s242, %s243
      %p254 = scmp.eq.s32.totalorder %s30, 0
      %p255 = por %p253, %p254
      %p256 = scmp.ne.s32.totalorder %s242, %s243
      %p257 = scmp.eq.s32.totalorder %s31, 1
      %p258 = por %p256, %p257
      %p260 = scmp.ne.s32.totalorder %s243, %s259
      %p261 = scmp.eq.s32.totalorder %s31, 0
      %p262 = por %p260, %p261
      %p263 = scmp.le.s32.totalorder 1, %s25
      %p264 = scmp.lt.s32.totalorder %s25, 3
      %p265 = pnand %p263, %p264
      %p266 = pneg %p265
      // Predicated region
      $region9: #{tpu_custom_call.1} parent=5 // pred_check
        _
      $region10: #{tpu_custom_call.1} parent=5 // pred_check_branch
        %268 = sbr.rel (%p265) target = $region12
      $region11: #{tpu_custom_call.1} parent=5 // pred_region
        %s269 = ssub.s32 %s25, 1
        // Predicated region
        $region13: #{tpu_custom_call.1} parent=11 // pred_check
          %p270 = pneg %p124
        $region14: #{tpu_custom_call.1} parent=11 // pred_check_branch
          %272 = sbr.rel (%p270) target = $region16
        $region15: #{tpu_custom_call.1} parent=11 // pred_region
          %s274 = ssub.s32 2048, 2048
          %275 = vsyncadd [#allocation7], %s274
          %s276 = sshll.u32 [#allocation8], 4
          %s277 = int_to_ptr.vmem [resolvable:$true] %s276
          %282 = dma.hbm_to_vmem [thread:$0]  %s3, 2048, %s277, [#allocation7], 128, 128, 8
        $region16: #{tpu_custom_call.1} parent=11 // pred_fallthru
          _
        // Predicated region
        $region17: #{tpu_custom_call.1} parent=11 // pred_check
          %p283 = pneg %p145
        $region18: #{tpu_custom_call.1} parent=11 // pred_check_branch
          %285 = sbr.rel (%p283) target = $region20
        $region19: #{tpu_custom_call.1} parent=11 // pred_region
          _
        $region20: #{tpu_custom_call.1} parent=11 // pred_fallthru
          _
        // Predicated region
        $region21: #{tpu_custom_call.1} parent=11 // pred_check
          %p286 = pneg %p166
        $region22: #{tpu_custom_call.1} parent=11 // pred_check_branch
          %288 = sbr.rel (%p286) target = $region24
        $region23: #{tpu_custom_call.1} parent=11 // pred_region
          %s290 = ssub.s32 9216, 9216
          %291 = vsyncadd [#allocation10], %s290
          %s292 = sshll.u32 [#allocation9], 4
          %s293 = int_to_ptr.vmem [resolvable:$true] %s292
          %298 = dma.hbm_to_vmem [thread:$0]  %s5, 9216, %s293, [#allocation10], 64, 64, 4
        $region24: #{tpu_custom_call.1} parent=11 // pred_fallthru
          _
        // Predicated region
        $region25: #{tpu_custom_call.1} parent=11 // pred_check
          %p299 = pneg %p187
        $region26: #{tpu_custom_call.1} parent=11 // pred_check_branch
          %301 = sbr.rel (%p299) target = $region28
        $region27: #{tpu_custom_call.1} parent=11 // pred_region
          _
        $region28: #{tpu_custom_call.1} parent=11 // pred_fallthru
          _
        // Predicated region
        $region29: #{tpu_custom_call.1} parent=11 // pred_check
          %p302 = pneg %p208
        $region30: #{tpu_custom_call.1} parent=11 // pred_check_branch
          %304 = sbr.rel (%p302) target = $region32
        $region31: #{tpu_custom_call.1} parent=11 // pred_region
          %s306 = ssub.s32 9216, 9216
          %307 = vsyncadd [#allocation10], %s306
          %s308 = sshll.u32 [#allocation11], 4
          %s309 = int_to_ptr.vmem [resolvable:$true] %s308
          %314 = dma.hbm_to_vmem [thread:$0]  %s7, 9216, %s309, [#allocation10], 64, 64, 4
        $region32: #{tpu_custom_call.1} parent=11 // pred_fallthru
          _
        // Predicated region
        $region33: #{tpu_custom_call.1} parent=11 // pred_check
          %p315 = pneg %p229
        $region34: #{tpu_custom_call.1} parent=11 // pred_check_branch
          %317 = sbr.rel (%p315) target = $region36
        $region35: #{tpu_custom_call.1} parent=11 // pred_region
          _
        $region36: #{tpu_custom_call.1} parent=11 // pred_fallthru
          _
      $region12: #{tpu_custom_call.1} parent=5 // pred_fallthru
        _
      %p318 = scmp.lt.s32.totalorder %s25, 2
      // Predicated region
      $region37: #{tpu_custom_call.1} parent=5 // pred_check
        %p319 = pneg %p318
      $region38: #{tpu_custom_call.1} parent=5 // pred_check_branch
        %321 = sbr.rel (%p319) target = $region40
      $region39: #{tpu_custom_call.1} parent=5 // pred_region
        // Predicated region
        $region41: #{tpu_custom_call.1} parent=39 // pred_check
          %p322 = pneg %p45
        $region42: #{tpu_custom_call.1} parent=39 // pred_check_branch
          %324 = sbr.rel (%p322) target = $region44
        $region43: #{tpu_custom_call.1} parent=39 // pred_region
          %s325 = sand.u32 %s35, 1
          %s326 = scalar_lea.sflag [#allocation4], %s325
          %s327 = sand.u32 %s35, 1
          %s328 = smul.addr %s327, 256
          %s329 = scalar_lea.vmem [#allocation3], %s328
          %s331 = ssub.s32 4096, 4096
          %332 = vsyncadd %s326, %s331
          %s333 = smul.addr %s25, 32
          %s334 = smul.addr %s333, 128
          %s335 = scalar_lea.hbm %s0, %s334
          %s336 = sshll.u32 %s329, 4
          %s337 = int_to_ptr.vmem [resolvable:$true] %s336
          %342 = dma.hbm_to_vmem [thread:$0]  %s335, 4096, %s337, %s326, 128, 128, 8
        $region44: #{tpu_custom_call.1} parent=39 // pred_fallthru
          _
        // Predicated region
        $region45: #{tpu_custom_call.1} parent=39 // pred_check
          %p343 = pneg %p71
        $region46: #{tpu_custom_call.1} parent=39 // pred_check_branch
          %345 = sbr.rel (%p343) target = $region48
        $region47: #{tpu_custom_call.1} parent=39 // pred_region
          %s346 = sand.u32 %s25, 1
          %s347 = scalar_lea.sflag [#allocation7], %s346
          %s348 = sand.u32 %s61, 1
          %s349 = smul.addr %s348, 128
          %s350 = scalar_lea.vmem [#allocation6], %s349
          %s352 = ssub.s32 2048, 2048
          %353 = vsyncadd %s347, %s352
          %s354 = smul.addr %s25, 32
          %s355 = smul.addr %s354, 64
          %s356 = scalar_lea.hbm %s1, %s355
          %s357 = sshll.u32 %s350, 4
          %s358 = int_to_ptr.vmem [resolvable:$true] %s357
          %363 = dma.hbm_to_vmem [thread:$0]  %s356, 2048, %s358, %s347, 64, 64, 4
        $region48: #{tpu_custom_call.1} parent=39 // pred_fallthru
          _
        // Predicated region
        $region49: #{tpu_custom_call.1} parent=39 // pred_check
          %p364 = pneg %p97
        $region50: #{tpu_custom_call.1} parent=39 // pred_check_branch
          %366 = sbr.rel (%p364) target = $region52
        $region51: #{tpu_custom_call.1} parent=39 // pred_region
          %p367 = scmp.lt.s32.totalorder %s25, 1
          %s368 = scalar_select %p367, %s25, 1
          %s369 = scalar_lea.vmem %s2, %s368
        $region52: #{tpu_custom_call.1} parent=39 // pred_fallthru
          _
      $region40: #{tpu_custom_call.1} parent=5 // pred_fallthru
        _
      %p370 = scmp.le.s32.totalorder 1, %s25
      %p371 = scmp.lt.s32.totalorder %s25, 3
      %p372 = pnand %p370, %p371
      %p373 = pneg %p372
      // Predicated region
      $region53: #{tpu_custom_call.1} parent=5 // pred_check
        _
      $region54: #{tpu_custom_call.1} parent=5 // pred_check_branch
        %375 = sbr.rel (%p372) target = $region56
      $region55: #{tpu_custom_call.1} parent=5 // pred_region
        %s376 = ssub.s32 %s25, 1
        %s377 = sand.u32 %s38, 1
        %s378 = scalar_lea.sflag [#allocation4], %s377
        %s379 = sand.u32 %s38, 1
        %s380 = smul.addr %s379, 256
        %s381 = scalar_lea.vmem [#allocation3], %s380
        // Predicated region
        $region57: #{tpu_custom_call.1} parent=55 // pred_check
          %p382 = pneg %p51
        $region58: #{tpu_custom_call.1} parent=55 // pred_check_branch
          %384 = sbr.rel (%p382) target = $region60
        $region59: #{tpu_custom_call.1} parent=55 // pred_region
          %385 = dma.done %s378, 4096
        $region60: #{tpu_custom_call.1} parent=55 // pred_fallthru
          _
        %s386 = sand.u32 %s30, 1
        %s387 = scalar_lea.sflag [#allocation7], %s386
        %s388 = sand.u32 %s64, 1
        %s389 = smul.addr %s388, 128
        %s390 = scalar_lea.vmem [#allocation6], %s389
        // Predicated region
        $region61: #{tpu_custom_call.1} parent=55 // pred_check
          %p391 = pneg %p77
        $region62: #{tpu_custom_call.1} parent=55 // pred_check_branch
          %393 = sbr.rel (%p391) target = $region64
        $region63: #{tpu_custom_call.1} parent=55 // pred_region
          %394 = dma.done %s387, 2048
        $region64: #{tpu_custom_call.1} parent=55 // pred_fallthru
          _
        // Predicated region
        $region65: #{tpu_custom_call.1} parent=55 // pred_check
          %p395 = pneg %p124
        $region66: #{tpu_custom_call.1} parent=55 // pred_check_branch
          %397 = sbr.rel (%p395) target = $region68
        $region67: #{tpu_custom_call.1} parent=55 // pred_region
          %398 = dma.done [#allocation7], 2048
        $region68: #{tpu_custom_call.1} parent=55 // pred_fallthru
          _
        // Predicated region
        $region69: #{tpu_custom_call.1} parent=55 // pred_check
          %p399 = pneg %p166
        $region70: #{tpu_custom_call.1} parent=55 // pred_check_branch
          %401 = sbr.rel (%p399) target = $region72
        $region71: #{tpu_custom_call.1} parent=55 // pred_region
          %402 = dma.done [#allocation10], 9216
        $region72: #{tpu_custom_call.1} parent=55 // pred_fallthru
          _
        // Predicated region
        $region73: #{tpu_custom_call.1} parent=55 // pred_check
          %p403 = pneg %p208
        $region74: #{tpu_custom_call.1} parent=55 // pred_check_branch
          %405 = sbr.rel (%p403) target = $region76
        $region75: #{tpu_custom_call.1} parent=55 // pred_region
          %406 = dma.done [#allocation10], 9216
        $region76: #{tpu_custom_call.1} parent=55 // pred_fallthru
          _
        %s407 = sand.u32 %s38, 1
        %s408 = scalar_lea.sflag [#allocation4], %s407
        %s409 = sand.u32 %s38, 1
        %s410 = smul.addr %s409, 256
        %s411 = scalar_lea.vmem [#allocation3], %s410
        %p412 = pneg %p51
        %p413 = pneg %p48
        %s414 = sand.u32 %s30, 1
        %s415 = scalar_lea.sflag [#allocation7], %s414
        %s416 = sand.u32 %s64, 1
        %s417 = smul.addr %s416, 128
        %s418 = scalar_lea.vmem [#allocation6], %s417
        %p419 = pneg %p77
        %p420 = pneg %p74
        %p421 = scmp.lt.s32.totalorder %s30, 1
        %s422 = scalar_select %p421, %s30, 1
        %s423 = scalar_lea.vmem %s2, %s422
        %p424 = pneg %p103
        %p425 = pneg %p100
        %p426 = pneg %p124
        %p427 = pneg %p121
        %p428 = pneg %p145
        %p429 = pneg %p142
        %p430 = pneg %p166
        %p431 = pneg %p163
        %p432 = pneg %p187
        %p433 = pneg %p184
        %p434 = pneg %p208
        %p435 = pneg %p205
        %p436 = pneg %p229
        %p437 = pneg %p226
        %p438 = pneg %p255
        %p439 = pneg %p252
        %s440 = sand.u32 %s242, 1
        %s441 = scalar_lea.sflag [#allocation5], %s440
        %s442 = sand.u32 %s242, 1
        %s443 = smul.addr %s442, 256
        %s444 = scalar_lea.vmem [#allocation12], %s443
        %p445 = scmp.lt.s32.totalorder %s30, 1
        %s446 = scalar_select %p445, %s30, 1
        %s447 = scalar_lea.vmem %s2, %s446
        %v451 = vld [vmem:[%s381] sm:$0xff]
        %v452 = vld [vmem:[%s381 + $0x8] sm:$0xff]
        %v453 = vld [vmem:[%s381 + $0x10] sm:$0xff]
        %v454 = vld [vmem:[%s381 + $0x18] sm:$0xff]
        %v455 = vld [vmem:[%s381 + $0x20] sm:$0xff]
        %v456 = vld [vmem:[%s381 + $0x28] sm:$0xff]
        %v457 = vld [vmem:[%s381 + $0x30] sm:$0xff]
        %v458 = vld [vmem:[%s381 + $0x38] sm:$0xff]
        %v459 = vld [vmem:[%s381 + $0x40] sm:$0xff]
        %v460 = vld [vmem:[%s381 + $0x48] sm:$0xff]
        %v461 = vld [vmem:[%s381 + $0x50] sm:$0xff]
        %v462 = vld [vmem:[%s381 + $0x58] sm:$0xff]
        %v463 = vld [vmem:[%s381 + $0x60] sm:$0xff]
        %v464 = vld [vmem:[%s381 + $0x68] sm:$0xff]
        %v465 = vld [vmem:[%s381 + $0x70] sm:$0xff]
        %v466 = vld [vmem:[%s381 + $0x78] sm:$0xff]
        %v467 = vld [vmem:[%s381 + $0x80] sm:$0xff]
        %v468 = vld [vmem:[%s381 + $0x88] sm:$0xff]
        %v469 = vld [vmem:[%s381 + $0x90] sm:$0xff]
        %v470 = vld [vmem:[%s381 + $0x98] sm:$0xff]
        %v471 = vld [vmem:[%s381 + $0xa0] sm:$0xff]
        %v472 = vld [vmem:[%s381 + $0xa8] sm:$0xff]
        %v473 = vld [vmem:[%s381 + $0xb0] sm:$0xff]
        %v474 = vld [vmem:[%s381 + $0xb8] sm:$0xff]
        %v475 = vld [vmem:[%s381 + $0xc0] sm:$0xff]
        %v476 = vld [vmem:[%s381 + $0xc8] sm:$0xff]
        %v477 = vld [vmem:[%s381 + $0xd0] sm:$0xff]
        %v478 = vld [vmem:[%s381 + $0xd8] sm:$0xff]
        %v479 = vld [vmem:[%s381 + $0xe0] sm:$0xff]
        %v480 = vld [vmem:[%s381 + $0xe8] sm:$0xff]
        %v481 = vld [vmem:[%s381 + $0xf0] sm:$0xff]
        %v482 = vld [vmem:[%s381 + $0xf8] sm:$0xff]
        %v483 = vld [vmem:[%s390] sm:$0xf]
        %v484 = vld [vmem:[%s390 + $0x4] sm:$0xf]
        %v485 = vld [vmem:[%s390 + $0x8] sm:$0xf]
        %v486 = vld [vmem:[%s390 + $0xc] sm:$0xf]
        %v487 = vld [vmem:[%s390 + $0x10] sm:$0xf]
        %v488 = vld [vmem:[%s390 + $0x14] sm:$0xf]
        %v489 = vld [vmem:[%s390 + $0x18] sm:$0xf]
        %v490 = vld [vmem:[%s390 + $0x1c] sm:$0xf]
        %v491 = vld [vmem:[%s390 + $0x20] sm:$0xf]
        %v492 = vld [vmem:[%s390 + $0x24] sm:$0xf]
        %v493 = vld [vmem:[%s390 + $0x28] sm:$0xf]
        %v494 = vld [vmem:[%s390 + $0x2c] sm:$0xf]
        %v495 = vld [vmem:[%s390 + $0x30] sm:$0xf]
        %v496 = vld [vmem:[%s390 + $0x34] sm:$0xf]
        %v497 = vld [vmem:[%s390 + $0x38] sm:$0xf]
        %v498 = vld [vmem:[%s390 + $0x3c] sm:$0xf]
        %v499 = vld [vmem:[%s390 + $0x40] sm:$0xf]
        %v500 = vld [vmem:[%s390 + $0x44] sm:$0xf]
        %v501 = vld [vmem:[%s390 + $0x48] sm:$0xf]
        %v502 = vld [vmem:[%s390 + $0x4c] sm:$0xf]
        %v503 = vld [vmem:[%s390 + $0x50] sm:$0xf]
        %v504 = vld [vmem:[%s390 + $0x54] sm:$0xf]
        %v505 = vld [vmem:[%s390 + $0x58] sm:$0xf]
        %v506 = vld [vmem:[%s390 + $0x5c] sm:$0xf]
        %v507 = vld [vmem:[%s390 + $0x60] sm:$0xf]
        %v508 = vld [vmem:[%s390 + $0x64] sm:$0xf]
        %v509 = vld [vmem:[%s390 + $0x68] sm:$0xf]
        %v510 = vld [vmem:[%s390 + $0x6c] sm:$0xf]
        %v511 = vld [vmem:[%s390 + $0x70] sm:$0xf]
        %v512 = vld [vmem:[%s390 + $0x74] sm:$0xf]
        %v513 = vld [vmem:[%s390 + $0x78] sm:$0xf]
        %v514 = vld [vmem:[%s390 + $0x7c] sm:$0xf]
        %v515 = vld [vmem:[%s447] sm:$0x1]
        %v516 = vlaneseq
        %v517 = vshrl.u32 %v516, 7
        %v518 = vadd.s32 %v517, 8
        %v519 = vadd.s32 %v517, 16
        %v520 = vadd.s32 %v517, 24
        %v521 = vadd.s32 %v517, 32
        %v522 = vadd.s32 %v517, 40
        %v523 = vadd.s32 %v517, 48
        %v524 = vadd.s32 %v517, 56
        %v525 = vadd.s32 %v517, 64
        %v526 = vadd.s32 %v517, 72
        %v527 = vadd.s32 %v517, 80
        %v528 = vadd.s32 %v517, 88
        %v529 = vadd.s32 %v517, 96
        %v530 = vadd.s32 %v517, 104
        %v531 = vadd.s32 %v517, 112
        %v532 = vadd.s32 %v517, 120
        %v533 = vadd.s32 %v517, 128
        %v534 = vadd.s32 %v517, 136
        %v535 = vadd.s32 %v517, 144
        %v536 = vadd.s32 %v517, 152
        %v537 = vadd.s32 %v517, 160
        %v538 = vadd.s32 %v517, 168
        %v539 = vadd.s32 %v517, 176
        %v540 = vadd.s32 %v517, 184
        %v541 = vadd.s32 %v517, 192
        %v542 = vadd.s32 %v517, 200
        %v543 = vadd.s32 %v517, 208
        %v544 = vadd.s32 %v517, 216
        %v545 = vadd.s32 %v517, 224
        %v546 = vadd.s32 %v517, 232
        %v547 = vadd.s32 %v517, 240
        %v548 = vadd.s32 %v517, 248
        %vm549 = vcmp.lt.s32.totalorder %v517, 0
        %v550 = vsub.s32 0, %v517
        %v551 = vsel %vm549, %v550, %v517
        %v552 = vshrl.u32 %v551, 4
        %v553 = vand.u32 %v551, 15
        %v554 = vsub.s32 0, %v553
        %v555 = vsel %vm549, %v554, %v553
        %vm556 = vcmp.lt.s32.totalorder %v518, 0
        %v557 = vsub.s32 0, %v518
        %v558 = vsel %vm556, %v557, %v518
        %v559 = vshrl.u32 %v558, 4
        %v560 = vand.u32 %v558, 15
        %v561 = vsub.s32 0, %v560
        %v562 = vsel %vm556, %v561, %v560
        %vm563 = vcmp.lt.s32.totalorder %v519, 0
        %v564 = vsub.s32 0, %v519
        %v565 = vsel %vm563, %v564, %v519
        %v566 = vshrl.u32 %v565, 4
        %v567 = vand.u32 %v565, 15
        %v568 = vsub.s32 0, %v567
        %v569 = vsel %vm563, %v568, %v567
        %vm570 = vcmp.lt.s32.totalorder %v520, 0
        %v571 = vsub.s32 0, %v520
        %v572 = vsel %vm570, %v571, %v520
        %v573 = vshrl.u32 %v572, 4
        %v574 = vand.u32 %v572, 15
        %v575 = vsub.s32 0, %v574
        %v576 = vsel %vm570, %v575, %v574
        %vm577 = vcmp.lt.s32.totalorder %v521, 0
        %v578 = vsub.s32 0, %v521
        %v579 = vsel %vm577, %v578, %v521
        %v580 = vshrl.u32 %v579, 4
        %v581 = vand.u32 %v579, 15
        %v582 = vsub.s32 0, %v581
        %v583 = vsel %vm577, %v582, %v581
        %vm584 = vcmp.lt.s32.totalorder %v522, 0
        %v585 = vsub.s32 0, %v522
        %v586 = vsel %vm584, %v585, %v522
        %v587 = vshrl.u32 %v586, 4
        %v588 = vand.u32 %v586, 15
        %v589 = vsub.s32 0, %v588
        %v590 = vsel %vm584, %v589, %v588
        %vm591 = vcmp.lt.s32.totalorder %v523, 0
        %v592 = vsub.s32 0, %v523
        %v593 = vsel %vm591, %v592, %v523
        %v594 = vshrl.u32 %v593, 4
        %v595 = vand.u32 %v593, 15
        %v596 = vsub.s32 0, %v595
        %v597 = vsel %vm591, %v596, %v595
        %vm598 = vcmp.lt.s32.totalorder %v524, 0
        %v599 = vsub.s32 0, %v524
        %v600 = vsel %vm598, %v599, %v524
        %v601 = vshrl.u32 %v600, 4
        %v602 = vand.u32 %v600, 15
        %v603 = vsub.s32 0, %v602
        %v604 = vsel %vm598, %v603, %v602
        %vm605 = vcmp.lt.s32.totalorder %v525, 0
        %v606 = vsub.s32 0, %v525
        %v607 = vsel %vm605, %v606, %v525
        %v608 = vshrl.u32 %v607, 4
        %v609 = vand.u32 %v607, 15
        %v610 = vsub.s32 0, %v609
        %v611 = vsel %vm605, %v610, %v609
        %vm612 = vcmp.lt.s32.totalorder %v526, 0
        %v613 = vsub.s32 0, %v526
        %v614 = vsel %vm612, %v613, %v526
        %v615 = vshrl.u32 %v614, 4
        %v616 = vand.u32 %v614, 15
        %v617 = vsub.s32 0, %v616
        %v618 = vsel %vm612, %v617, %v616
        %vm619 = vcmp.lt.s32.totalorder %v527, 0
        %v620 = vsub.s32 0, %v527
        %v621 = vsel %vm619, %v620, %v527
        %v622 = vshrl.u32 %v621, 4
        %v623 = vand.u32 %v621, 15
        %v624 = vsub.s32 0, %v623
        %v625 = vsel %vm619, %v624, %v623
        %vm626 = vcmp.lt.s32.totalorder %v528, 0
        %v627 = vsub.s32 0, %v528
        %v628 = vsel %vm626, %v627, %v528
        %v629 = vshrl.u32 %v628, 4
        %v630 = vand.u32 %v628, 15
        %v631 = vsub.s32 0, %v630
        %v632 = vsel %vm626, %v631, %v630
        %vm633 = vcmp.lt.s32.totalorder %v529, 0
        %v634 = vsub.s32 0, %v529
        %v635 = vsel %vm633, %v634, %v529
        %v636 = vshrl.u32 %v635, 4
        %v637 = vand.u32 %v635, 15
        %v638 = vsub.s32 0, %v637
        %v639 = vsel %vm633, %v638, %v637
        %vm640 = vcmp.lt.s32.totalorder %v530, 0
        %v641 = vsub.s32 0, %v530
        %v642 = vsel %vm640, %v641, %v530
        %v643 = vshrl.u32 %v642, 4
        %v644 = vand.u32 %v642, 15
        %v645 = vsub.s32 0, %v644
        %v646 = vsel %vm640, %v645, %v644
        %vm647 = vcmp.lt.s32.totalorder %v531, 0
        %v648 = vsub.s32 0, %v531
        %v649 = vsel %vm647, %v648, %v531
        %v650 = vshrl.u32 %v649, 4
        %v651 = vand.u32 %v649, 15
        %v652 = vsub.s32 0, %v651
        %v653 = vsel %vm647, %v652, %v651
        %vm654 = vcmp.lt.s32.totalorder %v532, 0
        %v655 = vsub.s32 0, %v532
        %v656 = vsel %vm654, %v655, %v532
        %v657 = vshrl.u32 %v656, 4
        %v658 = vand.u32 %v656, 15
        %v659 = vsub.s32 0, %v658
        %v660 = vsel %vm654, %v659, %v658
        %vm661 = vcmp.lt.s32.totalorder %v533, 0
        %v662 = vsub.s32 0, %v533
        %v663 = vsel %vm661, %v662, %v533
        %v664 = vshrl.u32 %v663, 4
        %v665 = vand.u32 %v663, 15
        %v666 = vsub.s32 0, %v665
        %v667 = vsel %vm661, %v666, %v665
        %vm668 = vcmp.lt.s32.totalorder %v534, 0
        %v669 = vsub.s32 0, %v534
        %v670 = vsel %vm668, %v669, %v534
        %v671 = vshrl.u32 %v670, 4
        %v672 = vand.u32 %v670, 15
        %v673 = vsub.s32 0, %v672
        %v674 = vsel %vm668, %v673, %v672
        %vm675 = vcmp.lt.s32.totalorder %v535, 0
        %v676 = vsub.s32 0, %v535
        %v677 = vsel %vm675, %v676, %v535
        %v678 = vshrl.u32 %v677, 4
        %v679 = vand.u32 %v677, 15
        %v680 = vsub.s32 0, %v679
        %v681 = vsel %vm675, %v680, %v679
        %vm682 = vcmp.lt.s32.totalorder %v536, 0
        %v683 = vsub.s32 0, %v536
        %v684 = vsel %vm682, %v683, %v536
        %v685 = vshrl.u32 %v684, 4
        %v686 = vand.u32 %v684, 15
        %v687 = vsub.s32 0, %v686
        %v688 = vsel %vm682, %v687, %v686
        %vm689 = vcmp.lt.s32.totalorder %v537, 0
        %v690 = vsub.s32 0, %v537
        %v691 = vsel %vm689, %v690, %v537
        %v692 = vshrl.u32 %v691, 4
        %v693 = vand.u32 %v691, 15
        %v694 = vsub.s32 0, %v693
        %v695 = vsel %vm689, %v694, %v693
        %vm696 = vcmp.lt.s32.totalorder %v538, 0
        %v697 = vsub.s32 0, %v538
        %v698 = vsel %vm696, %v697, %v538
        %v699 = vshrl.u32 %v698, 4
        %v700 = vand.u32 %v698, 15
        %v701 = vsub.s32 0, %v700
        %v702 = vsel %vm696, %v701, %v700
        %vm703 = vcmp.lt.s32.totalorder %v539, 0
        %v704 = vsub.s32 0, %v539
        %v705 = vsel %vm703, %v704, %v539
        %v706 = vshrl.u32 %v705, 4
        %v707 = vand.u32 %v705, 15
        %v708 = vsub.s32 0, %v707
        %v709 = vsel %vm703, %v708, %v707
        %vm710 = vcmp.lt.s32.totalorder %v540, 0
        %v711 = vsub.s32 0, %v540
        %v712 = vsel %vm710, %v711, %v540
        %v713 = vshrl.u32 %v712, 4
        %v714 = vand.u32 %v712, 15
        %v715 = vsub.s32 0, %v714
        %v716 = vsel %vm710, %v715, %v714
        %vm717 = vcmp.lt.s32.totalorder %v541, 0
        %v718 = vsub.s32 0, %v541
        %v719 = vsel %vm717, %v718, %v541
        %v720 = vshrl.u32 %v719, 4
        %v721 = vand.u32 %v719, 15
        %v722 = vsub.s32 0, %v721
        %v723 = vsel %vm717, %v722, %v721
        %vm724 = vcmp.lt.s32.totalorder %v542, 0
        %v725 = vsub.s32 0, %v542
        %v726 = vsel %vm724, %v725, %v542
        %v727 = vshrl.u32 %v726, 4
        %v728 = vand.u32 %v726, 15
        %v729 = vsub.s32 0, %v728
        %v730 = vsel %vm724, %v729, %v728
        %vm731 = vcmp.lt.s32.totalorder %v543, 0
        %v732 = vsub.s32 0, %v543
        %v733 = vsel %vm731, %v732, %v543
        %v734 = vshrl.u32 %v733, 4
        %v735 = vand.u32 %v733, 15
        %v736 = vsub.s32 0, %v735
        %v737 = vsel %vm731, %v736, %v735
        %vm738 = vcmp.lt.s32.totalorder %v544, 0
        %v739 = vsub.s32 0, %v544
        %v740 = vsel %vm738, %v739, %v544
        %v741 = vshrl.u32 %v740, 4
        %v742 = vand.u32 %v740, 15
        %v743 = vsub.s32 0, %v742
        %v744 = vsel %vm738, %v743, %v742
        %vm745 = vcmp.lt.s32.totalorder %v545, 0
        %v746 = vsub.s32 0, %v545
        %v747 = vsel %vm745, %v746, %v545
        %v748 = vshrl.u32 %v747, 4
        %v749 = vand.u32 %v747, 15
        %v750 = vsub.s32 0, %v749
        %v751 = vsel %vm745, %v750, %v749
        %vm752 = vcmp.lt.s32.totalorder %v546, 0
        %v753 = vsub.s32 0, %v546
        %v754 = vsel %vm752, %v753, %v546
        %v755 = vshrl.u32 %v754, 4
        %v756 = vand.u32 %v754, 15
        %v757 = vsub.s32 0, %v756
        %v758 = vsel %vm752, %v757, %v756
        %vm759 = vcmp.lt.s32.totalorder %v547, 0
        %v760 = vsub.s32 0, %v547
        %v761 = vsel %vm759, %v760, %v547
        %v762 = vshrl.u32 %v761, 4
        %v763 = vand.u32 %v761, 15
        %v764 = vsub.s32 0, %v763
        %v765 = vsel %vm759, %v764, %v763
        %vm766 = vcmp.lt.s32.totalorder %v548, 0
        %v767 = vsub.s32 0, %v548
        %v768 = vsel %vm766, %v767, %v548
        %v769 = vshrl.u32 %v768, 4
        %v770 = vand.u32 %v768, 15
        %v771 = vsub.s32 0, %v770
        %v772 = vsel %vm766, %v771, %v770
        %vm773 = vcmp.ne.s32.totalorder %v555, 0
        %vm774 = vcmp.ne.s32.totalorder %v562, 0
        %vm775 = vcmp.ne.s32.totalorder %v569, 0
        %vm776 = vcmp.ne.s32.totalorder %v576, 0
        %vm777 = vcmp.ne.s32.totalorder %v583, 0
        %vm778 = vcmp.ne.s32.totalorder %v590, 0
        %vm779 = vcmp.ne.s32.totalorder %v597, 0
        %vm780 = vcmp.ne.s32.totalorder %v604, 0
        %vm781 = vcmp.ne.s32.totalorder %v611, 0
        %vm782 = vcmp.ne.s32.totalorder %v618, 0
        %vm783 = vcmp.ne.s32.totalorder %v625, 0
        %vm784 = vcmp.ne.s32.totalorder %v632, 0
        %vm785 = vcmp.ne.s32.totalorder %v639, 0
        %vm786 = vcmp.ne.s32.totalorder %v646, 0
        %vm787 = vcmp.ne.s32.totalorder %v653, 0
        %vm788 = vcmp.ne.s32.totalorder %v660, 0
        %vm789 = vcmp.ne.s32.totalorder %v667, 0
        %vm790 = vcmp.ne.s32.totalorder %v674, 0
        %vm791 = vcmp.ne.s32.totalorder %v681, 0
        %vm792 = vcmp.ne.s32.totalorder %v688, 0
        %vm793 = vcmp.ne.s32.totalorder %v695, 0
        %vm794 = vcmp.ne.s32.totalorder %v702, 0
        %vm795 = vcmp.ne.s32.totalorder %v709, 0
        %vm796 = vcmp.ne.s32.totalorder %v716, 0
        %vm797 = vcmp.ne.s32.totalorder %v723, 0
        %vm798 = vcmp.ne.s32.totalorder %v730, 0
        %vm799 = vcmp.ne.s32.totalorder %v737, 0
        %vm800 = vcmp.ne.s32.totalorder %v744, 0
        %vm801 = vcmp.ne.s32.totalorder %v751, 0
        %vm802 = vcmp.ne.s32.totalorder %v758, 0
        %vm803 = vcmp.ne.s32.totalorder %v765, 0
        %vm804 = vcmp.ne.s32.totalorder %v772, 0
        %vm805 = vcmp.lt.s32.totalorder %v555, 0
        %vm806 = vcmp.lt.s32.totalorder %v562, 0
        %vm807 = vcmp.lt.s32.totalorder %v569, 0
        %vm808 = vcmp.lt.s32.totalorder %v576, 0
        %vm809 = vcmp.lt.s32.totalorder %v583, 0
        %vm810 = vcmp.lt.s32.totalorder %v590, 0
        %vm811 = vcmp.lt.s32.totalorder %v597, 0
        %vm812 = vcmp.lt.s32.totalorder %v604, 0
        %vm813 = vcmp.lt.s32.totalorder %v611, 0
        %vm814 = vcmp.lt.s32.totalorder %v618, 0
        %vm815 = vcmp.lt.s32.totalorder %v625, 0
        %vm816 = vcmp.lt.s32.totalorder %v632, 0
        %vm817 = vcmp.lt.s32.totalorder %v639, 0
        %vm818 = vcmp.lt.s32.totalorder %v646, 0
        %vm819 = vcmp.lt.s32.totalorder %v653, 0
        %vm820 = vcmp.lt.s32.totalorder %v660, 0
        %vm821 = vcmp.lt.s32.totalorder %v667, 0
        %vm822 = vcmp.lt.s32.totalorder %v674, 0
        %vm823 = vcmp.lt.s32.totalorder %v681, 0
        %vm824 = vcmp.lt.s32.totalorder %v688, 0
        %vm825 = vcmp.lt.s32.totalorder %v695, 0
        %vm826 = vcmp.lt.s32.totalorder %v702, 0
        %vm827 = vcmp.lt.s32.totalorder %v709, 0
        %vm828 = vcmp.lt.s32.totalorder %v716, 0
        %vm829 = vcmp.lt.s32.totalorder %v723, 0
        %vm830 = vcmp.lt.s32.totalorder %v730, 0
        %vm831 = vcmp.lt.s32.totalorder %v737, 0
        %vm832 = vcmp.lt.s32.totalorder %v744, 0
        %vm833 = vcmp.lt.s32.totalorder %v751, 0
        %vm834 = vcmp.lt.s32.totalorder %v758, 0
        %vm835 = vcmp.lt.s32.totalorder %v765, 0
        %vm836 = vcmp.lt.s32.totalorder %v772, 0
        %vm837 = vmand %vm805, %vm773
        %vm838 = vmand %vm806, %vm774
        %vm839 = vmand %vm807, %vm775
        %vm840 = vmand %vm808, %vm776
        %vm841 = vmand %vm809, %vm777
        %vm842 = vmand %vm810, %vm778
        %vm843 = vmand %vm811, %vm779
        %vm844 = vmand %vm812, %vm780
        %vm845 = vmand %vm813, %vm781
        %vm846 = vmand %vm814, %vm782
        %vm847 = vmand %vm815, %vm783
        %vm848 = vmand %vm816, %vm784
        %vm849 = vmand %vm817, %vm785
        %vm850 = vmand %vm818, %vm786
        %vm851 = vmand %vm819, %vm787
        %vm852 = vmand %vm820, %vm788
        %vm853 = vmand %vm821, %vm789
        %vm854 = vmand %vm822, %vm790
        %vm855 = vmand %vm823, %vm791
        %vm856 = vmand %vm824, %vm792
        %vm857 = vmand %vm825, %vm793
        %vm858 = vmand %vm826, %vm794
        %vm859 = vmand %vm827, %vm795
        %vm860 = vmand %vm828, %vm796
        %vm861 = vmand %vm829, %vm797
        %vm862 = vmand %vm830, %vm798
        %vm863 = vmand %vm831, %vm799
        %vm864 = vmand %vm832, %vm800
        %vm865 = vmand %vm833, %vm801
        %vm866 = vmand %vm834, %vm802
        %vm867 = vmand %vm835, %vm803
        %vm868 = vmand %vm836, %vm804
        %v869 = vadd.s32 %v555, 16
        %v870 = vadd.s32 %v562, 16
        %v871 = vadd.s32 %v569, 16
        %v872 = vadd.s32 %v576, 16
        %v873 = vadd.s32 %v583, 16
        %v874 = vadd.s32 %v590, 16
        %v875 = vadd.s32 %v597, 16
        %v876 = vadd.s32 %v604, 16
        %v877 = vadd.s32 %v611, 16
        %v878 = vadd.s32 %v618, 16
        %v879 = vadd.s32 %v625, 16
        %v880 = vadd.s32 %v632, 16
        %v881 = vadd.s32 %v639, 16
        %v882 = vadd.s32 %v646, 16
        %v883 = vadd.s32 %v653, 16
        %v884 = vadd.s32 %v660, 16
        %v885 = vadd.s32 %v667, 16
        %v886 = vadd.s32 %v674, 16
        %v887 = vadd.s32 %v681, 16
        %v888 = vadd.s32 %v688, 16
        %v889 = vadd.s32 %v695, 16
        %v890 = vadd.s32 %v702, 16
        %v891 = vadd.s32 %v709, 16
        %v892 = vadd.s32 %v716, 16
        %v893 = vadd.s32 %v723, 16
        %v894 = vadd.s32 %v730, 16
        %v895 = vadd.s32 %v737, 16
        %v896 = vadd.s32 %v744, 16
        %v897 = vadd.s32 %v751, 16
        %v898 = vadd.s32 %v758, 16
        %v899 = vadd.s32 %v765, 16
        %v900 = vadd.s32 %v772, 16
        %v901 = vsel %vm837, %v869, %v555
        %v902 = vsel %vm838, %v870, %v562
        %v903 = vsel %vm839, %v871, %v569
        %v904 = vsel %vm840, %v872, %v576
        %v905 = vsel %vm841, %v873, %v583
        %v906 = vsel %vm842, %v874, %v590
        %v907 = vsel %vm843, %v875, %v597
        %v908 = vsel %vm844, %v876, %v604
        %v909 = vsel %vm845, %v877, %v611
        %v910 = vsel %vm846, %v878, %v618
        %v911 = vsel %vm847, %v879, %v625
        %v912 = vsel %vm848, %v880, %v632
        %v913 = vsel %vm849, %v881, %v639
        %v914 = vsel %vm850, %v882, %v646
        %v915 = vsel %vm851, %v883, %v653
        %v916 = vsel %vm852, %v884, %v660
        %v917 = vsel %vm853, %v885, %v667
        %v918 = vsel %vm854, %v886, %v674
        %v919 = vsel %vm855, %v887, %v681
        %v920 = vsel %vm856, %v888, %v688
        %v921 = vsel %vm857, %v889, %v695
        %v922 = vsel %vm858, %v890, %v702
        %v923 = vsel %vm859, %v891, %v709
        %v924 = vsel %vm860, %v892, %v716
        %v925 = vsel %vm861, %v893, %v723
        %v926 = vsel %vm862, %v894, %v730
        %v927 = vsel %vm863, %v895, %v737
        %v928 = vsel %vm864, %v896, %v744
        %v929 = vsel %vm865, %v897, %v751
        %v930 = vsel %vm866, %v898, %v758
        %v931 = vsel %vm867, %v899, %v765
        %v932 = vsel %vm868, %v900, %v772
        %vm933 = vcmp.gt.s32.totalorder %v901, 0
        %vm934 = vcmp.gt.s32.totalorder %v902, 0
        %vm935 = vcmp.gt.s32.totalorder %v903, 0
        %vm936 = vcmp.gt.s32.totalorder %v904, 0
        %vm937 = vcmp.gt.s32.totalorder %v905, 0
        %vm938 = vcmp.gt.s32.totalorder %v906, 0
        %vm939 = vcmp.gt.s32.totalorder %v907, 0
        %vm940 = vcmp.gt.s32.totalorder %v908, 0
        %vm941 = vcmp.gt.s32.totalorder %v909, 0
        %vm942 = vcmp.gt.s32.totalorder %v910, 0
        %vm943 = vcmp.gt.s32.totalorder %v911, 0
        %vm944 = vcmp.gt.s32.totalorder %v912, 0
        %vm945 = vcmp.gt.s32.totalorder %v913, 0
        %vm946 = vcmp.gt.s32.totalorder %v914, 0
        %vm947 = vcmp.gt.s32.totalorder %v915, 0
        %vm948 = vcmp.gt.s32.totalorder %v916, 0
        %vm949 = vcmp.gt.s32.totalorder %v917, 0
        %vm950 = vcmp.gt.s32.totalorder %v918, 0
        %vm951 = vcmp.gt.s32.totalorder %v919, 0
        %vm952 = vcmp.gt.s32.totalorder %v920, 0
        %vm953 = vcmp.gt.s32.totalorder %v921, 0
        %vm954 = vcmp.gt.s32.totalorder %v922, 0
        %vm955 = vcmp.gt.s32.totalorder %v923, 0
        %vm956 = vcmp.gt.s32.totalorder %v924, 0
        %vm957 = vcmp.gt.s32.totalorder %v925, 0
        %vm958 = vcmp.gt.s32.totalorder %v926, 0
        %vm959 = vcmp.gt.s32.totalorder %v927, 0
        %vm960 = vcmp.gt.s32.totalorder %v928, 0
        %vm961 = vcmp.gt.s32.totalorder %v929, 0
        %vm962 = vcmp.gt.s32.totalorder %v930, 0
        %vm963 = vcmp.gt.s32.totalorder %v931, 0
        %vm964 = vcmp.gt.s32.totalorder %v932, 0
        %vm965 = vcmp.lt.s32.totalorder %v901, 15
        %vm966 = vcmp.lt.s32.totalorder %v902, 15
        %vm967 = vcmp.lt.s32.totalorder %v903, 15
        %vm968 = vcmp.lt.s32.totalorder %v904, 15
        %vm969 = vcmp.lt.s32.totalorder %v905, 15
        %vm970 = vcmp.lt.s32.totalorder %v906, 15
        %vm971 = vcmp.lt.s32.totalorder %v907, 15
        %vm972 = vcmp.lt.s32.totalorder %v908, 15
        %vm973 = vcmp.lt.s32.totalorder %v909, 15
        %vm974 = vcmp.lt.s32.totalorder %v910, 15
        %vm975 = vcmp.lt.s32.totalorder %v911, 15
        %vm976 = vcmp.lt.s32.totalorder %v912, 15
        %vm977 = vcmp.lt.s32.totalorder %v913, 15
        %vm978 = vcmp.lt.s32.totalorder %v914, 15
        %vm979 = vcmp.lt.s32.totalorder %v915, 15
        %vm980 = vcmp.lt.s32.totalorder %v916, 15
        %vm981 = vcmp.lt.s32.totalorder %v917, 15
        %vm982 = vcmp.lt.s32.totalorder %v918, 15
        %vm983 = vcmp.lt.s32.totalorder %v919, 15
        %vm984 = vcmp.lt.s32.totalorder %v920, 15
        %vm985 = vcmp.lt.s32.totalorder %v921, 15
        %vm986 = vcmp.lt.s32.totalorder %v922, 15
        %vm987 = vcmp.lt.s32.totalorder %v923, 15
        %vm988 = vcmp.lt.s32.totalorder %v924, 15
        %vm989 = vcmp.lt.s32.totalorder %v925, 15
        %vm990 = vcmp.lt.s32.totalorder %v926, 15
        %vm991 = vcmp.lt.s32.totalorder %v927, 15
        %vm992 = vcmp.lt.s32.totalorder %v928, 15
        %vm993 = vcmp.lt.s32.totalorder %v929, 15
        %vm994 = vcmp.lt.s32.totalorder %v930, 15
        %vm995 = vcmp.lt.s32.totalorder %v931, 15
        %vm996 = vcmp.lt.s32.totalorder %v932, 15
        %997 = vst [vmem:[#allocation2] sm:$0xff] 0
        %998 = vst [vmem:[#allocation2 + $0x8] sm:$0xff] 0
        %999 = vst [vmem:[#allocation2 + $0x90] sm:$0xff] 0
        %1000 = vst [vmem:[#allocation2 + $0x98] sm:$0xff] 0
        %v1001 = vld [vmem:[#allocation8] sm:$0xff]
        %v1002 = vld [vmem:[#allocation8 + $0x8] sm:$0xff]
        %v1003 = vld [vmem:[#allocation8 + $0x10] sm:$0xff]
        %v1004 = vld [vmem:[#allocation8 + $0x18] sm:$0xff]
        %v1005 = vld [vmem:[#allocation8 + $0x20] sm:$0xff]
        %v1006 = vld [vmem:[#allocation8 + $0x28] sm:$0xff]
        %v1007 = vld [vmem:[#allocation8 + $0x30] sm:$0xff]
        %v1008 = vld [vmem:[#allocation8 + $0x38] sm:$0xff]
        %v1009 = vld [vmem:[#allocation8 + $0x40] sm:$0xff]
        %v1010 = vld [vmem:[#allocation8 + $0x48] sm:$0xff]
        %v1011 = vld [vmem:[#allocation8 + $0x50] sm:$0xff]
        %v1012 = vld [vmem:[#allocation8 + $0x58] sm:$0xff]
        %v1013 = vld [vmem:[#allocation8 + $0x60] sm:$0xff]
        %v1014 = vld [vmem:[#allocation8 + $0x68] sm:$0xff]
        %v1015 = vld [vmem:[#allocation8 + $0x70] sm:$0xff]
        %v1016 = vld [vmem:[#allocation8 + $0x78] sm:$0xff]
        %v1017 = vld [vmem:[%s4] sm:$0x3]
        %v1019 = vlaneseq
        %v1020 = vshrl.u32 %v1019, 7
        %v1021 = vsub.s32 0, %v1020
        %v1022 = vrot.slane %v1017, %v1021
        %v1023 = vlaneseq
        %v1024 = vshrl.u32 %v1023, 7
        %v1025 = vsub.s32 1, %v1024
        %v1026 = vrot.slane %v1017, %v1025
        %v1061 = vunpack.c.l.b16 %v483
        %v1062 = vunpack.c.l.b16 %v484
        %v1063 = vunpack.c.l.b16 %v485
        %v1064 = vunpack.c.l.b16 %v486
        %v1065 = vunpack.c.l.b16 %v487
        %v1066 = vunpack.c.l.b16 %v488
        %v1067 = vunpack.c.l.b16 %v489
        %v1068 = vunpack.c.l.b16 %v490
        %v1069 = vunpack.c.l.b16 %v491
        %v1070 = vunpack.c.l.b16 %v492
        %v1071 = vunpack.c.l.b16 %v493
        %v1072 = vunpack.c.l.b16 %v494
        %v1073 = vunpack.c.l.b16 %v495
        %v1074 = vunpack.c.l.b16 %v496
        %v1075 = vunpack.c.l.b16 %v497
        %v1076 = vunpack.c.l.b16 %v498
        %v1077 = vunpack.c.l.b16 %v499
        %v1078 = vunpack.c.l.b16 %v500
        %v1079 = vunpack.c.l.b16 %v501
        %v1080 = vunpack.c.l.b16 %v502
        %v1081 = vunpack.c.l.b16 %v503
        %v1082 = vunpack.c.l.b16 %v504
        %v1083 = vunpack.c.l.b16 %v505
        %v1084 = vunpack.c.l.b16 %v506
        %v1085 = vunpack.c.l.b16 %v507
        %v1086 = vunpack.c.l.b16 %v508
        %v1087 = vunpack.c.l.b16 %v509
        %v1088 = vunpack.c.l.b16 %v510
        %v1089 = vunpack.c.l.b16 %v511
        %v1090 = vunpack.c.l.b16 %v512
        %v1091 = vunpack.c.l.b16 %v513
        %v1092 = vunpack.c.l.b16 %v514
        %v1093 = vpack.c.b16 %v1062, %v1061
        %v1094 = vpack.c.b16 %v1064, %v1063
        %v1095 = vpack.c.b16 %v1066, %v1065
        %v1096 = vpack.c.b16 %v1068, %v1067
        %v1097 = vpack.c.b16 %v1070, %v1069
        %v1098 = vpack.c.b16 %v1072, %v1071
        %v1099 = vpack.c.b16 %v1074, %v1073
        %v1100 = vpack.c.b16 %v1076, %v1075
        %v1101 = vpack.c.b16 %v1078, %v1077
        %v1102 = vpack.c.b16 %v1080, %v1079
        %v1103 = vpack.c.b16 %v1082, %v1081
        %v1104 = vpack.c.b16 %v1084, %v1083
        %v1105 = vpack.c.b16 %v1086, %v1085
        %v1106 = vpack.c.b16 %v1088, %v1087
        %v1107 = vpack.c.b16 %v1090, %v1089
        %v1108 = vpack.c.b16 %v1092, %v1091
        %v1141 = vunpack.c.l.b16 %v1001
        %v1142 = vunpack.c.h.b16 %v1001
        %v1143 = vunpack.c.l.b16 %v1002
        %v1144 = vunpack.c.h.b16 %v1002
        %v1145 = vunpack.c.l.b16 %v1003
        %v1146 = vunpack.c.h.b16 %v1003
        %v1147 = vunpack.c.l.b16 %v1004
        %v1148 = vunpack.c.h.b16 %v1004
        %v1149 = vunpack.c.l.b16 %v1005
        %v1150 = vunpack.c.h.b16 %v1005
        %v1151 = vunpack.c.l.b16 %v1006
        %v1152 = vunpack.c.h.b16 %v1006
        %v1153 = vunpack.c.l.b16 %v1007
        %v1154 = vunpack.c.h.b16 %v1007
        %v1155 = vunpack.c.l.b16 %v1008
        %v1156 = vunpack.c.h.b16 %v1008
        %v1157 = vunpack.c.l.b16 %v1009
        %v1158 = vunpack.c.h.b16 %v1009
        %v1159 = vunpack.c.l.b16 %v1010
        %v1160 = vunpack.c.h.b16 %v1010
        %v1161 = vunpack.c.l.b16 %v1011
        %v1162 = vunpack.c.h.b16 %v1011
        %v1163 = vunpack.c.l.b16 %v1012
        %v1164 = vunpack.c.h.b16 %v1012
        %v1165 = vunpack.c.l.b16 %v1013
        %v1166 = vunpack.c.h.b16 %v1013
        %v1167 = vunpack.c.l.b16 %v1014
        %v1168 = vunpack.c.h.b16 %v1014
        %v1169 = vunpack.c.l.b16 %v1015
        %v1170 = vunpack.c.h.b16 %v1015
        %v1171 = vunpack.c.l.b16 %v1016
        %v1172 = vunpack.c.h.b16 %v1016
        %v1173 = vpack.c.b16 %v1143, %v1141
        %v1174 = vpack.c.b16 %v1144, %v1142
        %v1175 = vpack.c.b16 %v1147, %v1145
        %v1176 = vpack.c.b16 %v1148, %v1146
        %v1177 = vpack.c.b16 %v1151, %v1149
        %v1178 = vpack.c.b16 %v1152, %v1150
        %v1179 = vpack.c.b16 %v1155, %v1153
        %v1180 = vpack.c.b16 %v1156, %v1154
        %v1181 = vpack.c.b16 %v1159, %v1157
        %v1182 = vpack.c.b16 %v1160, %v1158
        %v1183 = vpack.c.b16 %v1163, %v1161
        %v1184 = vpack.c.b16 %v1164, %v1162
        %v1185 = vpack.c.b16 %v1167, %v1165
        %v1186 = vpack.c.b16 %v1168, %v1166
        %v1187 = vpack.c.b16 %v1171, %v1169
        %v1188 = vpack.c.b16 %v1172, %v1170
        %1205 = vmatprep.subr.bf16.mxu0 %v1174
        %1206 = vmatpush1.bf16.msra.mxu0 %v1173
        %1207 = vmatprep.subr.bf16.mxu0 %v1176
        %1208 = vmatpush1.bf16.msra.mxu0 %v1175
        %1209 = vmatprep.subr.bf16.mxu0 %v1178
        %1210 = vmatpush1.bf16.msra.mxu0 %v1177
        %1211 = vmatprep.subr.bf16.mxu0 %v1180
        %1212 = vmatpush1.bf16.msra.mxu0 %v1179
        %1213 = vmatprep.subr.bf16.mxu0 %v1182
        %1214 = vmatpush1.bf16.msra.mxu0 %v1181
        %1215 = vmatprep.subr.bf16.mxu0 %v1184
        %1216 = vmatpush1.bf16.msra.mxu0 %v1183
        %1217 = vmatprep.subr.bf16.mxu0 %v1186
        %1218 = vmatpush1.bf16.msra.mxu0 %v1185
        %1219 = vmatprep.subr.bf16.mxu0 %v1188
        %1220 = vmatpush1.bf16.msra.mxu0 %v1187
        %1221 = vmatprep.subr.bf16.mxu0 0
        %1222 = vmatpush1.bf16.msra.mxu0 0
        %1223 = vmatprep.subr.bf16.mxu0 0
        %1224 = vmatpush1.bf16.msra.mxu0 0
        %1225 = vmatprep.subr.bf16.mxu0 0
        %1226 = vmatpush1.bf16.msra.mxu0 0
        %1227 = vmatprep.subr.bf16.mxu0 0
        %1228 = vmatpush1.bf16.msra.mxu0 0
        %1229 = vmatprep.subr.bf16.mxu0 0
        %1230 = vmatpush1.bf16.msra.mxu0 0
        %1231 = vmatprep.subr.bf16.mxu0 0
        %1232 = vmatpush1.bf16.msra.mxu0 0
        %1233 = vmatprep.subr.bf16.mxu0 0
        %1234 = vmatpush1.bf16.msra.mxu0 0
        %1235 = vmatprep.subr.bf16.mxu0 0
        %1236 = vmatpush1.bf16.msra.mxu0 0
        %1237 = vmatprep.mubr.bf16.mxu0 0
        %1238 = vmatmul.mubr.bf16.gmra.mrb[0].mxu0 %v1093
        %v1239 = vpop.f32.mrb[0].mxu0
        %v1240 = vadd.f32 %v1022, %v1239
        %v1241 = vpop.f32.mrb[0].mxu0
        %v1242 = vadd.f32 %v1026, %v1241
        %v1243 = vpop.f32.mrb[0].mxu0
        %v1244 = vadd.f32 %v1022, %v1243
        %v1245 = vpop.f32.mrb[0].mxu0
        %v1246 = vadd.f32 %v1026, %v1245
        %1247 = vmatprep.mubr.bf16.mxu0 0
        %1248 = vmatmul.mubr.bf16.gmra.mrb[0].mxu0 %v1094
        %v1249 = vpop.f32.mrb[0].mxu0
        %v1250 = vadd.f32 %v1022, %v1249
        %v1251 = vpop.f32.mrb[0].mxu0
        %v1252 = vadd.f32 %v1026, %v1251
        %v1253 = vpop.f32.mrb[0].mxu0
        %v1254 = vadd.f32 %v1022, %v1253
        %v1255 = vpop.f32.mrb[0].mxu0
        %v1256 = vadd.f32 %v1026, %v1255
        %1257 = vmatprep.mubr.bf16.mxu0 0
        %1258 = vmatmul.mubr.bf16.gmra.mrb[0].mxu0 %v1095
        %v1259 = vpop.f32.mrb[0].mxu0
        %v1260 = vadd.f32 %v1022, %v1259
        %v1261 = vpop.f32.mrb[0].mxu0
        %v1262 = vadd.f32 %v1026, %v1261
        %v1263 = vpop.f32.mrb[0].mxu0
        %v1264 = vadd.f32 %v1022, %v1263
        %v1265 = vpop.f32.mrb[0].mxu0
        %v1266 = vadd.f32 %v1026, %v1265
        %1267 = vmatprep.mubr.bf16.mxu0 0
        %1268 = vmatmul.mubr.bf16.gmra.mrb[0].mxu0 %v1096
        %v1269 = vpop.f32.mrb[0].mxu0
        %v1270 = vadd.f32 %v1022, %v1269
        %v1271 = vpop.f32.mrb[0].mxu0
        %v1272 = vadd.f32 %v1026, %v1271
        %v1273 = vpop.f32.mrb[0].mxu0
        %v1274 = vadd.f32 %v1022, %v1273
        %v1275 = vpop.f32.mrb[0].mxu0
        %v1276 = vadd.f32 %v1026, %v1275
        %1277 = vmatprep.mubr.bf16.mxu0 0
        %1278 = vmatmul.mubr.bf16.gmra.mrb[0].mxu0 %v1097
        %v1279 = vpop.f32.mrb[0].mxu0
        %v1280 = vadd.f32 %v1022, %v1279
        %v1281 = vpop.f32.mrb[0].mxu0
        %v1282 = vadd.f32 %v1026, %v1281
        %v1283 = vpop.f32.mrb[0].mxu0
        %v1284 = vadd.f32 %v1022, %v1283
        %v1285 = vpop.f32.mrb[0].mxu0
        %v1286 = vadd.f32 %v1026, %v1285
        %1287 = vmatprep.mubr.bf16.mxu0 0
        %1288 = vmatmul.mubr.bf16.gmra.mrb[0].mxu0 %v1098
        %v1289 = vpop.f32.mrb[0].mxu0
        %v1290 = vadd.f32 %v1022, %v1289
        %v1291 = vpop.f32.mrb[0].mxu0
        %v1292 = vadd.f32 %v1026, %v1291
        %v1293 = vpop.f32.mrb[0].mxu0
        %v1294 = vadd.f32 %v1022, %v1293
        %v1295 = vpop.f32.mrb[0].mxu0
        %v1296 = vadd.f32 %v1026, %v1295
        %1297 = vmatprep.mubr.bf16.mxu0 0
        %1298 = vmatmul.mubr.bf16.gmra.mrb[0].mxu0 %v1099
        %v1299 = vpop.f32.mrb[0].mxu0
        %v1300 = vadd.f32 %v1022, %v1299
        %v1301 = vpop.f32.mrb[0].mxu0
        %v1302 = vadd.f32 %v1026, %v1301
        %v1303 = vpop.f32.mrb[0].mxu0
        %v1304 = vadd.f32 %v1022, %v1303
        %v1305 = vpop.f32.mrb[0].mxu0
        %v1306 = vadd.f32 %v1026, %v1305
        %1307 = vmatprep.mubr.bf16.mxu0 0
        %1308 = vmatmul.mubr.bf16.gmra.mrb[0].mxu0 %v1100
        %v1309 = vpop.f32.mrb[0].mxu0
        %v1310 = vadd.f32 %v1022, %v1309
        %v1311 = vpop.f32.mrb[0].mxu0
        %v1312 = vadd.f32 %v1026, %v1311
        %v1313 = vpop.f32.mrb[0].mxu0
        %v1314 = vadd.f32 %v1022, %v1313
        %v1315 = vpop.f32.mrb[0].mxu0
        %v1316 = vadd.f32 %v1026, %v1315
        %1317 = vmatprep.mubr.bf16.mxu0 0
        %1318 = vmatmul.mubr.bf16.gmra.mrb[0].mxu0 %v1101
        %v1319 = vpop.f32.mrb[0].mxu0
        %v1320 = vadd.f32 %v1022, %v1319
        %v1321 = vpop.f32.mrb[0].mxu0
        %v1322 = vadd.f32 %v1026, %v1321
        %v1323 = vpop.f32.mrb[0].mxu0
        %v1324 = vadd.f32 %v1022, %v1323
        %v1325 = vpop.f32.mrb[0].mxu0
        %v1326 = vadd.f32 %v1026, %v1325
        %1327 = vmatprep.mubr.bf16.mxu0 0
        %1328 = vmatmul.mubr.bf16.gmra.mrb[0].mxu0 %v1102
        %v1329 = vpop.f32.mrb[0].mxu0
        %v1330 = vadd.f32 %v1022, %v1329
        %v1331 = vpop.f32.mrb[0].mxu0
        %v1332 = vadd.f32 %v1026, %v1331
        %v1333 = vpop.f32.mrb[0].mxu0
        %v1334 = vadd.f32 %v1022, %v1333
        %v1335 = vpop.f32.mrb[0].mxu0
        %v1336 = vadd.f32 %v1026, %v1335
        %1337 = vmatprep.mubr.bf16.mxu0 0
        %1338 = vmatmul.mubr.bf16.gmra.mrb[0].mxu0 %v1103
        %v1339 = vpop.f32.mrb[0].mxu0
        %v1340 = vadd.f32 %v1022, %v1339
        %v1341 = vpop.f32.mrb[0].mxu0
        %v1342 = vadd.f32 %v1026, %v1341
        %v1343 = vpop.f32.mrb[0].mxu0
        %v1344 = vadd.f32 %v1022, %v1343
        %v1345 = vpop.f32.mrb[0].mxu0
        %v1346 = vadd.f32 %v1026, %v1345
        %1347 = vmatprep.mubr.bf16.mxu0 0
        %1348 = vmatmul.mubr.bf16.gmra.mrb[0].mxu0 %v1104
        %v1349 = vpop.f32.mrb[0].mxu0
        %v1350 = vadd.f32 %v1022, %v1349
        %v1351 = vpop.f32.mrb[0].mxu0
        %v1352 = vadd.f32 %v1026, %v1351
        %v1353 = vpop.f32.mrb[0].mxu0
        %v1354 = vadd.f32 %v1022, %v1353
        %v1355 = vpop.f32.mrb[0].mxu0
        %v1356 = vadd.f32 %v1026, %v1355
        %1357 = vmatprep.mubr.bf16.mxu0 0
        %1358 = vmatmul.mubr.bf16.gmra.mrb[0].mxu0 %v1105
        %v1359 = vpop.f32.mrb[0].mxu0
        %v1360 = vadd.f32 %v1022, %v1359
        %v1361 = vpop.f32.mrb[0].mxu0
        %v1362 = vadd.f32 %v1026, %v1361
        %v1363 = vpop.f32.mrb[0].mxu0
        %v1364 = vadd.f32 %v1022, %v1363
        %v1365 = vpop.f32.mrb[0].mxu0
        %v1366 = vadd.f32 %v1026, %v1365
        %1367 = vmatprep.mubr.bf16.mxu0 0
        %1368 = vmatmul.mubr.bf16.gmra.mrb[0].mxu0 %v1106
        %v1369 = vpop.f32.mrb[0].mxu0
        %v1370 = vadd.f32 %v1022, %v1369
        %v1371 = vpop.f32.mrb[0].mxu0
        %v1372 = vadd.f32 %v1026, %v1371
        %v1373 = vpop.f32.mrb[0].mxu0
        %v1374 = vadd.f32 %v1022, %v1373
        %v1375 = vpop.f32.mrb[0].mxu0
        %v1376 = vadd.f32 %v1026, %v1375
        %1377 = vmatprep.mubr.bf16.mxu0 0
        %1378 = vmatmul.mubr.bf16.gmra.mrb[0].mxu0 %v1107
        %v1379 = vpop.f32.mrb[0].mxu0
        %v1380 = vadd.f32 %v1022, %v1379
        %v1381 = vpop.f32.mrb[0].mxu0
        %v1382 = vadd.f32 %v1026, %v1381
        %v1383 = vpop.f32.mrb[0].mxu0
        %v1384 = vadd.f32 %v1022, %v1383
        %v1385 = vpop.f32.mrb[0].mxu0
        %v1386 = vadd.f32 %v1026, %v1385
        %1387 = vmatprep.mubr.bf16.mxu0 0
        %1388 = vmatmul.mubr.bf16.gmra.mrb[0].mxu0 %v1108
        %v1389 = vpop.f32.mrb[0].mxu0
        %v1390 = vadd.f32 %v1022, %v1389
        %v1391 = vpop.f32.mrb[0].mxu0
        %v1392 = vadd.f32 %v1026, %v1391
        %v1393 = vpop.f32.mrb[0].mxu0
        %v1394 = vadd.f32 %v1022, %v1393
        %v1395 = vpop.f32.mrb[0].mxu0
        %v1396 = vadd.f32 %v1026, %v1395
        %1397 = vdwg.mxu0
        %v1398 = vadd.f32 %v451, %v1240
        %v1399 = vadd.f32 %v452, %v1244
        %v1400 = vadd.f32 %v453, %v1250
        %v1401 = vadd.f32 %v454, %v1254
        %v1402 = vadd.f32 %v455, %v1260
        %v1403 = vadd.f32 %v456, %v1264
        %v1404 = vadd.f32 %v457, %v1270
        %v1405 = vadd.f32 %v458, %v1274
        %v1406 = vadd.f32 %v459, %v1280
        %v1407 = vadd.f32 %v460, %v1284
        %v1408 = vadd.f32 %v461, %v1290
        %v1409 = vadd.f32 %v462, %v1294
        %v1410 = vadd.f32 %v463, %v1300
        %v1411 = vadd.f32 %v464, %v1304
        %v1412 = vadd.f32 %v465, %v1310
        %v1413 = vadd.f32 %v466, %v1314
        %v1414 = vadd.f32 %v467, %v1320
        %v1415 = vadd.f32 %v468, %v1324
        %v1416 = vadd.f32 %v469, %v1330
        %v1417 = vadd.f32 %v470, %v1334
        %v1418 = vadd.f32 %v471, %v1340
        %v1419 = vadd.f32 %v472, %v1344
        %v1420 = vadd.f32 %v473, %v1350
        %v1421 = vadd.f32 %v474, %v1354
        %v1422 = vadd.f32 %v475, %v1360
        %v1423 = vadd.f32 %v476, %v1364
        %v1424 = vadd.f32 %v477, %v1370
        %v1425 = vadd.f32 %v478, %v1374
        %v1426 = vadd.f32 %v479, %v1380
        %v1427 = vadd.f32 %v480, %v1384
        %v1428 = vadd.f32 %v481, %v1390
        %v1429 = vadd.f32 %v482, %v1394
        %v1430 = vxor.u32 %v1398, 2147483648
        %v1431 = vxor.u32 %v1399, 2147483648
        %v1432 = vxor.u32 %v1400, 2147483648
        %v1433 = vxor.u32 %v1401, 2147483648
        %v1434 = vxor.u32 %v1402, 2147483648
        %v1435 = vxor.u32 %v1403, 2147483648
        %v1436 = vxor.u32 %v1404, 2147483648
        %v1437 = vxor.u32 %v1405, 2147483648
        %v1438 = vxor.u32 %v1406, 2147483648
        %v1439 = vxor.u32 %v1407, 2147483648
        %v1440 = vxor.u32 %v1408, 2147483648
        %v1441 = vxor.u32 %v1409, 2147483648
        %v1442 = vxor.u32 %v1410, 2147483648
        %v1443 = vxor.u32 %v1411, 2147483648
        %v1444 = vxor.u32 %v1412, 2147483648
        %v1445 = vxor.u32 %v1413, 2147483648
        %v1446 = vxor.u32 %v1414, 2147483648
        %v1447 = vxor.u32 %v1415, 2147483648
        %v1448 = vxor.u32 %v1416, 2147483648
        %v1449 = vxor.u32 %v1417, 2147483648
        %v1450 = vxor.u32 %v1418, 2147483648
        %v1451 = vxor.u32 %v1419, 2147483648
        %v1452 = vxor.u32 %v1420, 2147483648
        %v1453 = vxor.u32 %v1421, 2147483648
        %v1454 = vxor.u32 %v1422, 2147483648
        %v1455 = vxor.u32 %v1423, 2147483648
        %v1456 = vxor.u32 %v1424, 2147483648
        %v1457 = vxor.u32 %v1425, 2147483648
        %v1458 = vxor.u32 %v1426, 2147483648
        %v1459 = vxor.u32 %v1427, 2147483648
        %v1460 = vxor.u32 %v1428, 2147483648
        %v1461 = vxor.u32 %v1429, 2147483648
        %v1462 = vmul.f32 %v1430, 1.442695
        %v1463 = vpow.pop %v1462
        %v1464 = vmul.f32 %v1431, 1.442695
        %v1465 = vpow.pop %v1464
        %v1466 = vmul.f32 %v1432, 1.442695
        %v1467 = vpow.pop %v1466
        %v1468 = vmul.f32 %v1433, 1.442695
        %v1469 = vpow.pop %v1468
        %v1470 = vmul.f32 %v1434, 1.442695
        %v1471 = vpow.pop %v1470
        %v1472 = vmul.f32 %v1435, 1.442695
        %v1473 = vpow.pop %v1472
        %v1474 = vmul.f32 %v1436, 1.442695
        %v1475 = vpow.pop %v1474
        %v1476 = vmul.f32 %v1437, 1.442695
        %v1477 = vpow.pop %v1476
        %v1478 = vmul.f32 %v1438, 1.442695
        %v1479 = vpow.pop %v1478
        %v1480 = vmul.f32 %v1439, 1.442695
        %v1481 = vpow.pop %v1480
        %v1482 = vmul.f32 %v1440, 1.442695
        %v1483 = vpow.pop %v1482
        %v1484 = vmul.f32 %v1441, 1.442695
        %v1485 = vpow.pop %v1484
        %v1486 = vmul.f32 %v1442, 1.442695
        %v1487 = vpow.pop %v1486
        %v1488 = vmul.f32 %v1443, 1.442695
        %v1489 = vpow.pop %v1488
        %v1490 = vmul.f32 %v1444, 1.442695
        %v1491 = vpow.pop %v1490
        %v1492 = vmul.f32 %v1445, 1.442695
        %v1493 = vpow.pop %v1492
        %v1494 = vmul.f32 %v1446, 1.442695
        %v1495 = vpow.pop %v1494
        %v1496 = vmul.f32 %v1447, 1.442695
        %v1497 = vpow.pop %v1496
        %v1498 = vmul.f32 %v1448, 1.442695
        %v1499 = vpow.pop %v1498
        %v1500 = vmul.f32 %v1449, 1.442695
        %v1501 = vpow.pop %v1500
        %v1502 = vmul.f32 %v1450, 1.442695
        %v1503 = vpow.pop %v1502
        %v1504 = vmul.f32 %v1451, 1.442695
        %v1505 = vpow.pop %v1504
        %v1506 = vmul.f32 %v1452, 1.442695
        %v1507 = vpow.pop %v1506
        %v1508 = vmul.f32 %v1453, 1.442695
        %v1509 = vpow.pop %v1508
        %v1510 = vmul.f32 %v1454, 1.442695
        %v1511 = vpow.pop %v1510
        %v1512 = vmul.f32 %v1455, 1.442695
        %v1513 = vpow.pop %v1512
        %v1514 = vmul.f32 %v1456, 1.442695
        %v1515 = vpow.pop %v1514
        %v1516 = vmul.f32 %v1457, 1.442695
        %v1517 = vpow.pop %v1516
        %v1518 = vmul.f32 %v1458, 1.442695
        %v1519 = vpow.pop %v1518
        %v1520 = vmul.f32 %v1459, 1.442695
        %v1521 = vpow.pop %v1520
        %v1522 = vmul.f32 %v1460, 1.442695
        %v1523 = vpow.pop %v1522
        %v1524 = vmul.f32 %v1461, 1.442695
        %v1525 = vpow.pop %v1524
        %v1526 = vadd.f32 %v1463, 1.0
        %v1527 = vadd.f32 %v1465, 1.0
        %v1528 = vadd.f32 %v1467, 1.0
        %v1529 = vadd.f32 %v1469, 1.0
        %v1530 = vadd.f32 %v1471, 1.0
        %v1531 = vadd.f32 %v1473, 1.0
        %v1532 = vadd.f32 %v1475, 1.0
        %v1533 = vadd.f32 %v1477, 1.0
        %v1534 = vadd.f32 %v1479, 1.0
        %v1535 = vadd.f32 %v1481, 1.0
        %v1536 = vadd.f32 %v1483, 1.0
        %v1537 = vadd.f32 %v1485, 1.0
        %v1538 = vadd.f32 %v1487, 1.0
        %v1539 = vadd.f32 %v1489, 1.0
        %v1540 = vadd.f32 %v1491, 1.0
        %v1541 = vadd.f32 %v1493, 1.0
        %v1542 = vadd.f32 %v1495, 1.0
        %v1543 = vadd.f32 %v1497, 1.0
        %v1544 = vadd.f32 %v1499, 1.0
        %v1545 = vadd.f32 %v1501, 1.0
        %v1546 = vadd.f32 %v1503, 1.0
        %v1547 = vadd.f32 %v1505, 1.0
        %v1548 = vadd.f32 %v1507, 1.0
        %v1549 = vadd.f32 %v1509, 1.0
        %v1550 = vadd.f32 %v1511, 1.0
        %v1551 = vadd.f32 %v1513, 1.0
        %v1552 = vadd.f32 %v1515, 1.0
        %v1553 = vadd.f32 %v1517, 1.0
        %v1554 = vadd.f32 %v1519, 1.0
        %v1555 = vadd.f32 %v1521, 1.0
        %v1556 = vadd.f32 %v1523, 1.0
        %v1557 = vadd.f32 %v1525, 1.0
        %v1558 = vrcp.pop %v1526
        %v1559 = vmul.f32 1.0, %v1558
        %v1560 = vrcp.pop %v1527
        %v1561 = vmul.f32 1.0, %v1560
        %v1562 = vrcp.pop %v1528
        %v1563 = vmul.f32 1.0, %v1562
        %v1564 = vrcp.pop %v1529
        %v1565 = vmul.f32 1.0, %v1564
        %v1566 = vrcp.pop %v1530
        %v1567 = vmul.f32 1.0, %v1566
        %v1568 = vrcp.pop %v1531
        %v1569 = vmul.f32 1.0, %v1568
        %v1570 = vrcp.pop %v1532
        %v1571 = vmul.f32 1.0, %v1570
        %v1572 = vrcp.pop %v1533
        %v1573 = vmul.f32 1.0, %v1572
        %v1574 = vrcp.pop %v1534
        %v1575 = vmul.f32 1.0, %v1574
        %v1576 = vrcp.pop %v1535
        %v1577 = vmul.f32 1.0, %v1576
        %v1578 = vrcp.pop %v1536
        %v1579 = vmul.f32 1.0, %v1578
        %v1580 = vrcp.pop %v1537
        %v1581 = vmul.f32 1.0, %v1580
        %v1582 = vrcp.pop %v1538
        %v1583 = vmul.f32 1.0, %v1582
        %v1584 = vrcp.pop %v1539
        %v1585 = vmul.f32 1.0, %v1584
        %v1586 = vrcp.pop %v1540
        %v1587 = vmul.f32 1.0, %v1586
        %v1588 = vrcp.pop %v1541
        %v1589 = vmul.f32 1.0, %v1588
        %v1590 = vrcp.pop %v1542
        %v1591 = vmul.f32 1.0, %v1590
        %v1592 = vrcp.pop %v1543
        %v1593 = vmul.f32 1.0, %v1592
        %v1594 = vrcp.pop %v1544
        %v1595 = vmul.f32 1.0, %v1594
        %v1596 = vrcp.pop %v1545
        %v1597 = vmul.f32 1.0, %v1596
        %v1598 = vrcp.pop %v1546
        %v1599 = vmul.f32 1.0, %v1598
        %v1600 = vrcp.pop %v1547
        %v1601 = vmul.f32 1.0, %v1600
        %v1602 = vrcp.pop %v1548
        %v1603 = vmul.f32 1.0, %v1602
        %v1604 = vrcp.pop %v1549
        %v1605 = vmul.f32 1.0, %v1604
        %v1606 = vrcp.pop %v1550
        %v1607 = vmul.f32 1.0, %v1606
        %v1608 = vrcp.pop %v1551
        %v1609 = vmul.f32 1.0, %v1608
        %v1610 = vrcp.pop %v1552
        %v1611 = vmul.f32 1.0, %v1610
        %v1612 = vrcp.pop %v1553
        %v1613 = vmul.f32 1.0, %v1612
        %v1614 = vrcp.pop %v1554
        %v1615 = vmul.f32 1.0, %v1614
        %v1616 = vrcp.pop %v1555
        %v1617 = vmul.f32 1.0, %v1616
        %v1618 = vrcp.pop %v1556
        %v1619 = vmul.f32 1.0, %v1618
        %v1620 = vrcp.pop %v1557
        %v1621 = vmul.f32 1.0, %v1620
        %v1622 = vmul.f32 %v1398, %v1559
        %v1623 = vmul.f32 %v1399, %v1561
        %v1624 = vmul.f32 %v1400, %v1563
        %v1625 = vmul.f32 %v1401, %v1565
        %v1626 = vmul.f32 %v1402, %v1567
        %v1627 = vmul.f32 %v1403, %v1569
        %v1628 = vmul.f32 %v1404, %v1571
        %v1629 = vmul.f32 %v1405, %v1573
        %v1630 = vmul.f32 %v1406, %v1575
        %v1631 = vmul.f32 %v1407, %v1577
        %v1632 = vmul.f32 %v1408, %v1579
        %v1633 = vmul.f32 %v1409, %v1581
        %v1634 = vmul.f32 %v1410, %v1583
        %v1635 = vmul.f32 %v1411, %v1585
        %v1636 = vmul.f32 %v1412, %v1587
        %v1637 = vmul.f32 %v1413, %v1589
        %v1638 = vmul.f32 %v1414, %v1591
        %v1639 = vmul.f32 %v1415, %v1593
        %v1640 = vmul.f32 %v1416, %v1595
        %v1641 = vmul.f32 %v1417, %v1597
        %v1642 = vmul.f32 %v1418, %v1599
        %v1643 = vmul.f32 %v1419, %v1601
        %v1644 = vmul.f32 %v1420, %v1603
        %v1645 = vmul.f32 %v1421, %v1605
        %v1646 = vmul.f32 %v1422, %v1607
        %v1647 = vmul.f32 %v1423, %v1609
        %v1648 = vmul.f32 %v1424, %v1611
        %v1649 = vmul.f32 %v1425, %v1613
        %v1650 = vmul.f32 %v1426, %v1615
        %v1651 = vmul.f32 %v1427, %v1617
        %v1652 = vmul.f32 %v1428, %v1619
        %v1653 = vmul.f32 %v1429, %v1621
        %v1654 = vpack.c.bf16 %v1623, %v1622
        %v1655 = vpack.c.bf16 %v1625, %v1624
        %v1656 = vpack.c.bf16 %v1627, %v1626
        %v1657 = vpack.c.bf16 %v1629, %v1628
        %v1658 = vpack.c.bf16 %v1631, %v1630
        %v1659 = vpack.c.bf16 %v1633, %v1632
        %v1660 = vpack.c.bf16 %v1635, %v1634
        %v1661 = vpack.c.bf16 %v1637, %v1636
        %v1662 = vpack.c.bf16 %v1639, %v1638
        %v1663 = vpack.c.bf16 %v1641, %v1640
        %v1664 = vpack.c.bf16 %v1643, %v1642
        %v1665 = vpack.c.bf16 %v1645, %v1644
        %v1666 = vpack.c.bf16 %v1647, %v1646
        %v1667 = vpack.c.bf16 %v1649, %v1648
        %v1668 = vpack.c.bf16 %v1651, %v1650
        %v1669 = vpack.c.bf16 %v1653, %v1652
        %1670 = vst [vmem:[#allocation2 + $0x10] sm:$0xff] %v1654
        %1671 = vst [vmem:[#allocation2 + $0x18] sm:$0xff] %v1655
        %1672 = vst [vmem:[#allocation2 + $0x20] sm:$0xff] %v1656
        %1673 = vst [vmem:[#allocation2 + $0x28] sm:$0xff] %v1657
        %1674 = vst [vmem:[#allocation2 + $0x30] sm:$0xff] %v1658
        %1675 = vst [vmem:[#allocation2 + $0x38] sm:$0xff] %v1659
        %1676 = vst [vmem:[#allocation2 + $0x40] sm:$0xff] %v1660
        %1677 = vst [vmem:[#allocation2 + $0x48] sm:$0xff] %v1661
        %1678 = vst [vmem:[#allocation2 + $0x50] sm:$0xff] %v1662
        %1679 = vst [vmem:[#allocation2 + $0x58] sm:$0xff] %v1663
        %1680 = vst [vmem:[#allocation2 + $0x60] sm:$0xff] %v1664
        %1681 = vst [vmem:[#allocation2 + $0x68] sm:$0xff] %v1665
        %1682 = vst [vmem:[#allocation2 + $0x70] sm:$0xff] %v1666
        %1683 = vst [vmem:[#allocation2 + $0x78] sm:$0xff] %v1667
        %1684 = vst [vmem:[#allocation2 + $0x80] sm:$0xff] %v1668
        %1685 = vst [vmem:[#allocation2 + $0x88] sm:$0xff] %v1669
        %v1686 = vld [vmem:[#allocation2] sm:$0x80]
        %v1687 = vld [vmem:[#allocation2 + $0x8] sm:$0xff]
        %v1688 = vld [vmem:[#allocation2 + $0x10] sm:$0xff]
        %v1689 = vld [vmem:[#allocation2 + $0x18] sm:$0xff]
        %v1690 = vld [vmem:[#allocation2 + $0x20] sm:$0xff]
        %v1691 = vld [vmem:[#allocation2 + $0x28] sm:$0xff]
        %v1692 = vld [vmem:[#allocation2 + $0x30] sm:$0xff]
        %v1693 = vld [vmem:[#allocation2 + $0x38] sm:$0xff]
        %v1694 = vld [vmem:[#allocation2 + $0x40] sm:$0xff]
        %v1695 = vld [vmem:[#allocation2 + $0x48] sm:$0xff]
        %v1696 = vld [vmem:[#allocation2 + $0x50] sm:$0xff]
        %v1697 = vld [vmem:[#allocation2 + $0x58] sm:$0xff]
        %v1698 = vld [vmem:[#allocation2 + $0x60] sm:$0xff]
        %v1699 = vld [vmem:[#allocation2 + $0x68] sm:$0xff]
        %v1700 = vld [vmem:[#allocation2 + $0x70] sm:$0xff]
        %v1701 = vld [vmem:[#allocation2 + $0x78] sm:$0xff]
        %v1702 = vld [vmem:[#allocation2 + $0x80] sm:$0xff]
        %vm1703 = vmpackc.low %vm933, %vm933
        %vm1704 = vmpackc.low %vm934, %vm934
        %vm1705 = vmpackc.low %vm935, %vm935
        %vm1706 = vmpackc.low %vm936, %vm936
        %vm1707 = vmpackc.low %vm937, %vm937
        %vm1708 = vmpackc.low %vm938, %vm938
        %vm1709 = vmpackc.low %vm939, %vm939
        %vm1710 = vmpackc.low %vm940, %vm940
        %vm1711 = vmpackc.low %vm941, %vm941
        %vm1712 = vmpackc.low %vm942, %vm942
        %vm1713 = vmpackc.low %vm943, %vm943
        %vm1714 = vmpackc.low %vm944, %vm944
        %vm1715 = vmpackc.low %vm945, %vm945
        %vm1716 = vmpackc.low %vm946, %vm946
        %vm1717 = vmpackc.low %vm947, %vm947
        %vm1718 = vmpackc.low %vm948, %vm948
        %vm1719 = vmpackc.low %vm949, %vm949
        %vm1720 = vmpackc.low %vm950, %vm950
        %vm1721 = vmpackc.low %vm951, %vm951
        %vm1722 = vmpackc.low %vm952, %vm952
        %vm1723 = vmpackc.low %vm953, %vm953
        %vm1724 = vmpackc.low %vm954, %vm954
        %vm1725 = vmpackc.low %vm955, %vm955
        %vm1726 = vmpackc.low %vm956, %vm956
        %vm1727 = vmpackc.low %vm957, %vm957
        %vm1728 = vmpackc.low %vm958, %vm958
        %vm1729 = vmpackc.low %vm959, %vm959
        %vm1730 = vmpackc.low %vm960, %vm960
        %vm1731 = vmpackc.low %vm961, %vm961
        %vm1732 = vmpackc.low %vm962, %vm962
        %vm1733 = vmpackc.low %vm963, %vm963
        %vm1734 = vmpackc.low %vm964, %vm964
        %v1735 = vsel %vm1703, 65537, 0
        %v1736 = vsel %vm1704, 65537, 0
        %v1737 = vsel %vm1705, 65537, 0
        %v1738 = vsel %vm1706, 65537, 0
        %v1739 = vsel %vm1707, 65537, 0
        %v1740 = vsel %vm1708, 65537, 0
        %v1741 = vsel %vm1709, 65537, 0
        %v1742 = vsel %vm1710, 65537, 0
        %v1743 = vsel %vm1711, 65537, 0
        %v1744 = vsel %vm1712, 65537, 0
        %v1745 = vsel %vm1713, 65537, 0
        %v1746 = vsel %vm1714, 65537, 0
        %v1747 = vsel %vm1715, 65537, 0
        %v1748 = vsel %vm1716, 65537, 0
        %v1749 = vsel %vm1717, 65537, 0
        %v1750 = vsel %vm1718, 65537, 0
        %v1751 = vsel %vm1719, 65537, 0
        %v1752 = vsel %vm1720, 65537, 0
        %v1753 = vsel %vm1721, 65537, 0
        %v1754 = vsel %vm1722, 65537, 0
        %v1755 = vsel %vm1723, 65537, 0
        %v1756 = vsel %vm1724, 65537, 0
        %v1757 = vsel %vm1725, 65537, 0
        %v1758 = vsel %vm1726, 65537, 0
        %v1759 = vsel %vm1727, 65537, 0
        %v1760 = vsel %vm1728, 65537, 0
        %v1761 = vsel %vm1729, 65537, 0
        %v1762 = vsel %vm1730, 65537, 0
        %v1763 = vsel %vm1731, 65537, 0
        %v1764 = vsel %vm1732, 65537, 0
        %v1765 = vsel %vm1733, 65537, 0
        %v1766 = vsel %vm1734, 65537, 0
        %v1767 = vunpack.c.l.b16 %v1735
        %v1768 = vunpack.c.l.b16 %v1736
        %v1769 = vunpack.c.l.b16 %v1737
        %v1770 = vunpack.c.l.b16 %v1738
        %v1771 = vunpack.c.l.b16 %v1739
        %v1772 = vunpack.c.l.b16 %v1740
        %v1773 = vunpack.c.l.b16 %v1741
        %v1774 = vunpack.c.l.b16 %v1742
        %v1775 = vunpack.c.l.b16 %v1743
        %v1776 = vunpack.c.l.b16 %v1744
        %v1777 = vunpack.c.l.b16 %v1745
        %v1778 = vunpack.c.l.b16 %v1746
        %v1779 = vunpack.c.l.b16 %v1747
        %v1780 = vunpack.c.l.b16 %v1748
        %v1781 = vunpack.c.l.b16 %v1749
        %v1782 = vunpack.c.l.b16 %v1750
        %v1783 = vunpack.c.l.b16 %v1751
        %v1784 = vunpack.c.l.b16 %v1752
        %v1785 = vunpack.c.l.b16 %v1753
        %v1786 = vunpack.c.l.b16 %v1754
        %v1787 = vunpack.c.l.b16 %v1755
        %v1788 = vunpack.c.l.b16 %v1756
        %v1789 = vunpack.c.l.b16 %v1757
        %v1790 = vunpack.c.l.b16 %v1758
        %v1791 = vunpack.c.l.b16 %v1759
        %v1792 = vunpack.c.l.b16 %v1760
        %v1793 = vunpack.c.l.b16 %v1761
        %v1794 = vunpack.c.l.b16 %v1762
        %v1795 = vunpack.c.l.b16 %v1763
        %v1796 = vunpack.c.l.b16 %v1764
        %v1797 = vunpack.c.l.b16 %v1765
        %v1798 = vunpack.c.l.b16 %v1766
        %v1799 = vpack.c.b16 %v1768, %v1767
        %v1800 = vpack.c.b16 %v1770, %v1769
        %v1801 = vpack.c.b16 %v1772, %v1771
        %v1802 = vpack.c.b16 %v1774, %v1773
        %v1803 = vpack.c.b16 %v1776, %v1775
        %v1804 = vpack.c.b16 %v1778, %v1777
        %v1805 = vpack.c.b16 %v1780, %v1779
        %v1806 = vpack.c.b16 %v1782, %v1781
        %v1807 = vpack.c.b16 %v1784, %v1783
        %v1808 = vpack.c.b16 %v1786, %v1785
        %v1809 = vpack.c.b16 %v1788, %v1787
        %v1810 = vpack.c.b16 %v1790, %v1789
        %v1811 = vpack.c.b16 %v1792, %v1791
        %v1812 = vpack.c.b16 %v1794, %v1793
        %v1813 = vpack.c.b16 %v1796, %v1795
        %v1814 = vpack.c.b16 %v1798, %v1797
        %vm1815 = vsmask.f32 7424
        %v1817 = vshll.u32 %v1799, 16
        %v1819 = vrot.slane %v1817, 1
        %v1820 = vshrl.u32 %v1799, 16
        %v1822 = vor.u32 %v1820, %v1819
        %v1824 = vshll.u32 %v1800, 16
        %v1826 = vrot.slane %v1824, 1
        %v1827 = vsel %vm1815, %v1822, %v1826
        %v1828 = vshrl.u32 %v1800, 16
        %v1830 = vor.u32 %v1828, %v1826
        %v1832 = vshll.u32 %v1801, 16
        %v1834 = vrot.slane %v1832, 1
        %v1835 = vsel %vm1815, %v1830, %v1834
        %v1836 = vshrl.u32 %v1801, 16
        %v1838 = vor.u32 %v1836, %v1834
        %v1840 = vshll.u32 %v1802, 16
        %v1842 = vrot.slane %v1840, 1
        %v1843 = vsel %vm1815, %v1838, %v1842
        %v1844 = vshrl.u32 %v1802, 16
        %v1846 = vor.u32 %v1844, %v1842
        %v1848 = vshll.u32 %v1803, 16
        %v1850 = vrot.slane %v1848, 1
        %v1851 = vsel %vm1815, %v1846, %v1850
        %v1852 = vshrl.u32 %v1803, 16
        %v1854 = vor.u32 %v1852, %v1850
        %v1856 = vshll.u32 %v1804, 16
        %v1858 = vrot.slane %v1856, 1
        %v1859 = vsel %vm1815, %v1854, %v1858
        %v1860 = vshrl.u32 %v1804, 16
        %v1862 = vor.u32 %v1860, %v1858
        %v1864 = vshll.u32 %v1805, 16
        %v1866 = vrot.slane %v1864, 1
        %v1867 = vsel %vm1815, %v1862, %v1866
        %v1868 = vshrl.u32 %v1805, 16
        %v1870 = vor.u32 %v1868, %v1866
        %v1872 = vshll.u32 %v1806, 16
        %v1874 = vrot.slane %v1872, 1
        %v1875 = vsel %vm1815, %v1870, %v1874
        %v1876 = vshrl.u32 %v1806, 16
        %v1878 = vor.u32 %v1876, %v1874
        %v1880 = vshll.u32 %v1807, 16
        %v1882 = vrot.slane %v1880, 1
        %v1883 = vsel %vm1815, %v1878, %v1882
        %v1884 = vshrl.u32 %v1807, 16
        %v1886 = vor.u32 %v1884, %v1882
        %v1888 = vshll.u32 %v1808, 16
        %v1890 = vrot.slane %v1888, 1
        %v1891 = vsel %vm1815, %v1886, %v1890
        %v1892 = vshrl.u32 %v1808, 16
        %v1894 = vor.u32 %v1892, %v1890
        %v1896 = vshll.u32 %v1809, 16
        %v1898 = vrot.slane %v1896, 1
        %v1899 = vsel %vm1815, %v1894, %v1898
        %v1900 = vshrl.u32 %v1809, 16
        %v1902 = vor.u32 %v1900, %v1898
        %v1904 = vshll.u32 %v1810, 16
        %v1906 = vrot.slane %v1904, 1
        %v1907 = vsel %vm1815, %v1902, %v1906
        %v1908 = vshrl.u32 %v1810, 16
        %v1910 = vor.u32 %v1908, %v1906
        %v1912 = vshll.u32 %v1811, 16
        %v1914 = vrot.slane %v1912, 1
        %v1915 = vsel %vm1815, %v1910, %v1914
        %v1916 = vshrl.u32 %v1811, 16
        %v1918 = vor.u32 %v1916, %v1914
        %v1920 = vshll.u32 %v1812, 16
        %v1922 = vrot.slane %v1920, 1
        %v1923 = vsel %vm1815, %v1918, %v1922
        %v1924 = vshrl.u32 %v1812, 16
        %v1926 = vor.u32 %v1924, %v1922
        %v1928 = vshll.u32 %v1813, 16
        %v1930 = vrot.slane %v1928, 1
        %v1931 = vsel %vm1815, %v1926, %v1930
        %v1932 = vshrl.u32 %v1813, 16
        %v1934 = vor.u32 %v1932, %v1930
        %v1936 = vshll.u32 %v1814, 16
        %v1938 = vrot.slane %v1936, 1
        %v1939 = vsel %vm1815, %v1934, %v1938
        %v1940 = vshrl.u32 %v1814, 16
        %v1942 = vor.u32 %v1940, %v1938
        %vm1943 = vcmp.ne.s16.totalorder %v1819, 0
        %vm1944 = vcmp.ne.s16.totalorder %v1827, 0
        %vm1945 = vcmp.ne.s16.totalorder %v1835, 0
        %vm1946 = vcmp.ne.s16.totalorder %v1843, 0
        %vm1947 = vcmp.ne.s16.totalorder %v1851, 0
        %vm1948 = vcmp.ne.s16.totalorder %v1859, 0
        %vm1949 = vcmp.ne.s16.totalorder %v1867, 0
        %vm1950 = vcmp.ne.s16.totalorder %v1875, 0
        %vm1951 = vcmp.ne.s16.totalorder %v1883, 0
        %vm1952 = vcmp.ne.s16.totalorder %v1891, 0
        %vm1953 = vcmp.ne.s16.totalorder %v1899, 0
        %vm1954 = vcmp.ne.s16.totalorder %v1907, 0
        %vm1955 = vcmp.ne.s16.totalorder %v1915, 0
        %vm1956 = vcmp.ne.s16.totalorder %v1923, 0
        %vm1957 = vcmp.ne.s16.totalorder %v1931, 0
        %vm1958 = vcmp.ne.s16.totalorder %v1939, 0
        %vm1959 = vcmp.ne.s16.totalorder %v1942, 0
        %v1960 = vsel %vm1943, %v1686, 0
        %v1961 = vsel %vm1944, %v1687, 0
        %v1962 = vsel %vm1945, %v1688, 0
        %v1963 = vsel %vm1946, %v1689, 0
        %v1964 = vsel %vm1947, %v1690, 0
        %v1965 = vsel %vm1948, %v1691, 0
        %v1966 = vsel %vm1949, %v1692, 0
        %v1967 = vsel %vm1950, %v1693, 0
        %v1968 = vsel %vm1951, %v1694, 0
        %v1969 = vsel %vm1952, %v1695, 0
        %v1970 = vsel %vm1953, %v1696, 0
        %v1971 = vsel %vm1954, %v1697, 0
        %v1972 = vsel %vm1955, %v1698, 0
        %v1973 = vsel %vm1956, %v1699, 0
        %v1974 = vsel %vm1957, %v1700, 0
        %v1975 = vsel %vm1958, %v1701, 0
        %v1976 = vsel %vm1959, %v1702, 0
        %v1977 = vld [vmem:[#allocation2 + $0x88] sm:$0x1]
        %vm1978 = vmpackc.low %vm965, %vm965
        %vm1979 = vmpackc.low %vm966, %vm966
        %vm1980 = vmpackc.low %vm967, %vm967
        %vm1981 = vmpackc.low %vm968, %vm968
        %vm1982 = vmpackc.low %vm969, %vm969
        %vm1983 = vmpackc.low %vm970, %vm970
        %vm1984 = vmpackc.low %vm971, %vm971
        %vm1985 = vmpackc.low %vm972, %vm972
        %vm1986 = vmpackc.low %vm973, %vm973
        %vm1987 = vmpackc.low %vm974, %vm974
        %vm1988 = vmpackc.low %vm975, %vm975
        %vm1989 = vmpackc.low %vm976, %vm976
        %vm1990 = vmpackc.low %vm977, %vm977
        %vm1991 = vmpackc.low %vm978, %vm978
        %vm1992 = vmpackc.low %vm979, %vm979
        %vm1993 = vmpackc.low %vm980, %vm980
        %vm1994 = vmpackc.low %vm981, %vm981
        %vm1995 = vmpackc.low %vm982, %vm982
        %vm1996 = vmpackc.low %vm983, %vm983
        %vm1997 = vmpackc.low %vm984, %vm984
        %vm1998 = vmpackc.low %vm985, %vm985
        %vm1999 = vmpackc.low %vm986, %vm986
        %vm2000 = vmpackc.low %vm987, %vm987
        %vm2001 = vmpackc.low %vm988, %vm988
        %vm2002 = vmpackc.low %vm989, %vm989
        %vm2003 = vmpackc.low %vm990, %vm990
        %vm2004 = vmpackc.low %vm991, %vm991
        %vm2005 = vmpackc.low %vm992, %vm992
        %vm2006 = vmpackc.low %vm993, %vm993
        %vm2007 = vmpackc.low %vm994, %vm994
        %vm2008 = vmpackc.low %vm995, %vm995
        %vm2009 = vmpackc.low %vm996, %vm996
        %v2010 = vsel %vm1978, 65537, 0
        %v2011 = vsel %vm1979, 65537, 0
        %v2012 = vsel %vm1980, 65537, 0
        %v2013 = vsel %vm1981, 65537, 0
        %v2014 = vsel %vm1982, 65537, 0
        %v2015 = vsel %vm1983, 65537, 0
        %v2016 = vsel %vm1984, 65537, 0
        %v2017 = vsel %vm1985, 65537, 0
        %v2018 = vsel %vm1986, 65537, 0
        %v2019 = vsel %vm1987, 65537, 0
        %v2020 = vsel %vm1988, 65537, 0
        %v2021 = vsel %vm1989, 65537, 0
        %v2022 = vsel %vm1990, 65537, 0
        %v2023 = vsel %vm1991, 65537, 0
        %v2024 = vsel %vm1992, 65537, 0
        %v2025 = vsel %vm1993, 65537, 0
        %v2026 = vsel %vm1994, 65537, 0
        %v2027 = vsel %vm1995, 65537, 0
        %v2028 = vsel %vm1996, 65537, 0
        %v2029 = vsel %vm1997, 65537, 0
        %v2030 = vsel %vm1998, 65537, 0
        %v2031 = vsel %vm1999, 65537, 0
        %v2032 = vsel %vm2000, 65537, 0
        %v2033 = vsel %vm2001, 65537, 0
        %v2034 = vsel %vm2002, 65537, 0
        %v2035 = vsel %vm2003, 65537, 0
        %v2036 = vsel %vm2004, 65537, 0
        %v2037 = vsel %vm2005, 65537, 0
        %v2038 = vsel %vm2006, 65537, 0
        %v2039 = vsel %vm2007, 65537, 0
        %v2040 = vsel %vm2008, 65537, 0
        %v2041 = vsel %vm2009, 65537, 0
        %v2042 = vunpack.c.l.b16 %v2010
        %v2043 = vunpack.c.l.b16 %v2011
        %v2044 = vunpack.c.l.b16 %v2012
        %v2045 = vunpack.c.l.b16 %v2013
        %v2046 = vunpack.c.l.b16 %v2014
        %v2047 = vunpack.c.l.b16 %v2015
        %v2048 = vunpack.c.l.b16 %v2016
        %v2049 = vunpack.c.l.b16 %v2017
        %v2050 = vunpack.c.l.b16 %v2018
        %v2051 = vunpack.c.l.b16 %v2019
        %v2052 = vunpack.c.l.b16 %v2020
        %v2053 = vunpack.c.l.b16 %v2021
        %v2054 = vunpack.c.l.b16 %v2022
        %v2055 = vunpack.c.l.b16 %v2023
        %v2056 = vunpack.c.l.b16 %v2024
        %v2057 = vunpack.c.l.b16 %v2025
        %v2058 = vunpack.c.l.b16 %v2026
        %v2059 = vunpack.c.l.b16 %v2027
        %v2060 = vunpack.c.l.b16 %v2028
        %v2061 = vunpack.c.l.b16 %v2029
        %v2062 = vunpack.c.l.b16 %v2030
        %v2063 = vunpack.c.l.b16 %v2031
        %v2064 = vunpack.c.l.b16 %v2032
        %v2065 = vunpack.c.l.b16 %v2033
        %v2066 = vunpack.c.l.b16 %v2034
        %v2067 = vunpack.c.l.b16 %v2035
        %v2068 = vunpack.c.l.b16 %v2036
        %v2069 = vunpack.c.l.b16 %v2037
        %v2070 = vunpack.c.l.b16 %v2038
        %v2071 = vunpack.c.l.b16 %v2039
        %v2072 = vunpack.c.l.b16 %v2040
        %v2073 = vunpack.c.l.b16 %v2041
        %v2074 = vpack.c.b16 %v2043, %v2042
        %v2075 = vpack.c.b16 %v2045, %v2044
        %v2076 = vpack.c.b16 %v2047, %v2046
        %v2077 = vpack.c.b16 %v2049, %v2048
        %v2078 = vpack.c.b16 %v2051, %v2050
        %v2079 = vpack.c.b16 %v2053, %v2052
        %v2080 = vpack.c.b16 %v2055, %v2054
        %v2081 = vpack.c.b16 %v2057, %v2056
        %v2082 = vpack.c.b16 %v2059, %v2058
        %v2083 = vpack.c.b16 %v2061, %v2060
        %v2084 = vpack.c.b16 %v2063, %v2062
        %v2085 = vpack.c.b16 %v2065, %v2064
        %v2086 = vpack.c.b16 %v2067, %v2066
        %v2087 = vpack.c.b16 %v2069, %v2068
        %v2088 = vpack.c.b16 %v2071, %v2070
        %v2089 = vpack.c.b16 %v2073, %v2072
        %vm2090 = vsmask.f32 256
        %v2092 = vshrl.u32 %v2074, 16
        %v2094 = vrot.slane %v2092, 7
        %v2095 = vshll.u32 %v2074, 16
        %v2097 = vor.u32 %v2094, %v2095
        %v2099 = vshrl.u32 %v2075, 16
        %v2101 = vrot.slane %v2099, 7
        %v2102 = vshll.u32 %v2075, 16
        %v2104 = vor.u32 %v2101, %v2102
        %v2105 = vsel %vm2090, %v2094, %v2104
        %v2107 = vshrl.u32 %v2076, 16
        %v2109 = vrot.slane %v2107, 7
        %v2110 = vshll.u32 %v2076, 16
        %v2112 = vor.u32 %v2109, %v2110
        %v2113 = vsel %vm2090, %v2101, %v2112
        %v2115 = vshrl.u32 %v2077, 16
        %v2117 = vrot.slane %v2115, 7
        %v2118 = vshll.u32 %v2077, 16
        %v2120 = vor.u32 %v2117, %v2118
        %v2121 = vsel %vm2090, %v2109, %v2120
        %v2123 = vshrl.u32 %v2078, 16
        %v2125 = vrot.slane %v2123, 7
        %v2126 = vshll.u32 %v2078, 16
        %v2128 = vor.u32 %v2125, %v2126
        %v2129 = vsel %vm2090, %v2117, %v2128
        %v2131 = vshrl.u32 %v2079, 16
        %v2133 = vrot.slane %v2131, 7
        %v2134 = vshll.u32 %v2079, 16
        %v2136 = vor.u32 %v2133, %v2134
        %v2137 = vsel %vm2090, %v2125, %v2136
        %v2139 = vshrl.u32 %v2080, 16
        %v2141 = vrot.slane %v2139, 7
        %v2142 = vshll.u32 %v2080, 16
        %v2144 = vor.u32 %v2141, %v2142
        %v2145 = vsel %vm2090, %v2133, %v2144
        %v2147 = vshrl.u32 %v2081, 16
        %v2149 = vrot.slane %v2147, 7
        %v2150 = vshll.u32 %v2081, 16
        %v2152 = vor.u32 %v2149, %v2150
        %v2153 = vsel %vm2090, %v2141, %v2152
        %v2155 = vshrl.u32 %v2082, 16
        %v2157 = vrot.slane %v2155, 7
        %v2158 = vshll.u32 %v2082, 16
        %v2160 = vor.u32 %v2157, %v2158
        %v2161 = vsel %vm2090, %v2149, %v2160
        %v2163 = vshrl.u32 %v2083, 16
        %v2165 = vrot.slane %v2163, 7
        %v2166 = vshll.u32 %v2083, 16
        %v2168 = vor.u32 %v2165, %v2166
        %v2169 = vsel %vm2090, %v2157, %v2168
        %v2171 = vshrl.u32 %v2084, 16
        %v2173 = vrot.slane %v2171, 7
        %v2174 = vshll.u32 %v2084, 16
        %v2176 = vor.u32 %v2173, %v2174
        %v2177 = vsel %vm2090, %v2165, %v2176
        %v2179 = vshrl.u32 %v2085, 16
        %v2181 = vrot.slane %v2179, 7
        %v2182 = vshll.u32 %v2085, 16
        %v2184 = vor.u32 %v2181, %v2182
        %v2185 = vsel %vm2090, %v2173, %v2184
        %v2187 = vshrl.u32 %v2086, 16
        %v2189 = vrot.slane %v2187, 7
        %v2190 = vshll.u32 %v2086, 16
        %v2192 = vor.u32 %v2189, %v2190
        %v2193 = vsel %vm2090, %v2181, %v2192
        %v2195 = vshrl.u32 %v2087, 16
        %v2197 = vrot.slane %v2195, 7
        %v2198 = vshll.u32 %v2087, 16
        %v2200 = vor.u32 %v2197, %v2198
        %v2201 = vsel %vm2090, %v2189, %v2200
        %v2203 = vshrl.u32 %v2088, 16
        %v2205 = vrot.slane %v2203, 7
        %v2206 = vshll.u32 %v2088, 16
        %v2208 = vor.u32 %v2205, %v2206
        %v2209 = vsel %vm2090, %v2197, %v2208
        %v2211 = vshrl.u32 %v2089, 16
        %v2213 = vrot.slane %v2211, 7
        %v2214 = vshll.u32 %v2089, 16
        %v2216 = vor.u32 %v2213, %v2214
        %v2217 = vsel %vm2090, %v2205, %v2216
        %vm2218 = vcmp.ne.s16.totalorder %v2097, 0
        %vm2219 = vcmp.ne.s16.totalorder %v2105, 0
        %vm2220 = vcmp.ne.s16.totalorder %v2113, 0
        %vm2221 = vcmp.ne.s16.totalorder %v2121, 0
        %vm2222 = vcmp.ne.s16.totalorder %v2129, 0
        %vm2223 = vcmp.ne.s16.totalorder %v2137, 0
        %vm2224 = vcmp.ne.s16.totalorder %v2145, 0
        %vm2225 = vcmp.ne.s16.totalorder %v2153, 0
        %vm2226 = vcmp.ne.s16.totalorder %v2161, 0
        %vm2227 = vcmp.ne.s16.totalorder %v2169, 0
        %vm2228 = vcmp.ne.s16.totalorder %v2177, 0
        %vm2229 = vcmp.ne.s16.totalorder %v2185, 0
        %vm2230 = vcmp.ne.s16.totalorder %v2193, 0
        %vm2231 = vcmp.ne.s16.totalorder %v2201, 0
        %vm2232 = vcmp.ne.s16.totalorder %v2209, 0
        %vm2233 = vcmp.ne.s16.totalorder %v2217, 0
        %vm2234 = vcmp.ne.s16.totalorder %v2213, 0
        %v2235 = vsel %vm2218, %v1687, 0
        %v2236 = vsel %vm2219, %v1688, 0
        %v2237 = vsel %vm2220, %v1689, 0
        %v2238 = vsel %vm2221, %v1690, 0
        %v2239 = vsel %vm2222, %v1691, 0
        %v2240 = vsel %vm2223, %v1692, 0
        %v2241 = vsel %vm2224, %v1693, 0
        %v2242 = vsel %vm2225, %v1694, 0
        %v2243 = vsel %vm2226, %v1695, 0
        %v2244 = vsel %vm2227, %v1696, 0
        %v2245 = vsel %vm2228, %v1697, 0
        %v2246 = vsel %vm2229, %v1698, 0
        %v2247 = vsel %vm2230, %v1699, 0
        %v2248 = vsel %vm2231, %v1700, 0
        %v2249 = vsel %vm2232, %v1701, 0
        %v2250 = vsel %vm2233, %v1702, 0
        %v2251 = vsel %vm2234, %v1977, 0
        %v2252 = vld [vmem:[#allocation2 + $0x8] sm:$0x80]
        %v2253 = vld [vmem:[#allocation2 + $0x88] sm:$0xff]
        %v2254 = vsel %vm1943, %v2252, 0
        %v2255 = vsel %vm1944, %v1688, 0
        %v2256 = vsel %vm1945, %v1689, 0
        %v2257 = vsel %vm1946, %v1690, 0
        %v2258 = vsel %vm1947, %v1691, 0
        %v2259 = vsel %vm1948, %v1692, 0
        %v2260 = vsel %vm1949, %v1693, 0
        %v2261 = vsel %vm1950, %v1694, 0
        %v2262 = vsel %vm1951, %v1695, 0
        %v2263 = vsel %vm1952, %v1696, 0
        %v2264 = vsel %vm1953, %v1697, 0
        %v2265 = vsel %vm1954, %v1698, 0
        %v2266 = vsel %vm1955, %v1699, 0
        %v2267 = vsel %vm1956, %v1700, 0
        %v2268 = vsel %vm1957, %v1701, 0
        %v2269 = vsel %vm1958, %v1702, 0
        %v2270 = vsel %vm1959, %v2253, 0
        %v2271 = vld [vmem:[#allocation2 + $0x90] sm:$0x1]
        %v2272 = vsel %vm2218, %v1688, 0
        %v2273 = vsel %vm2219, %v1689, 0
        %v2274 = vsel %vm2220, %v1690, 0
        %v2275 = vsel %vm2221, %v1691, 0
        %v2276 = vsel %vm2222, %v1692, 0
        %v2277 = vsel %vm2223, %v1693, 0
        %v2278 = vsel %vm2224, %v1694, 0
        %v2279 = vsel %vm2225, %v1695, 0
        %v2280 = vsel %vm2226, %v1696, 0
        %v2281 = vsel %vm2227, %v1697, 0
        %v2282 = vsel %vm2228, %v1698, 0
        %v2283 = vsel %vm2229, %v1699, 0
        %v2284 = vsel %vm2230, %v1700, 0
        %v2285 = vsel %vm2231, %v1701, 0
        %v2286 = vsel %vm2232, %v1702, 0
        %v2287 = vsel %vm2233, %v2253, 0
        %v2288 = vsel %vm2234, %v2271, 0
        %v2289 = vld [vmem:[#allocation2 + $0x10] sm:$0x80]
        %v2290 = vld [vmem:[#allocation2 + $0x90] sm:$0xff]
        %v2291 = vsel %vm1943, %v2289, 0
        %v2292 = vsel %vm1944, %v1689, 0
        %v2293 = vsel %vm1945, %v1690, 0
        %v2294 = vsel %vm1946, %v1691, 0
        %v2295 = vsel %vm1947, %v1692, 0
        %v2296 = vsel %vm1948, %v1693, 0
        %v2297 = vsel %vm1949, %v1694, 0
        %v2298 = vsel %vm1950, %v1695, 0
        %v2299 = vsel %vm1951, %v1696, 0
        %v2300 = vsel %vm1952, %v1697, 0
        %v2301 = vsel %vm1953, %v1698, 0
        %v2302 = vsel %vm1954, %v1699, 0
        %v2303 = vsel %vm1955, %v1700, 0
        %v2304 = vsel %vm1956, %v1701, 0
        %v2305 = vsel %vm1957, %v1702, 0
        %v2306 = vsel %vm1958, %v2253, 0
        %v2307 = vsel %vm1959, %v2290, 0
        %v2308 = vld [vmem:[#allocation2 + $0x18] sm:$0xff]
        %v2309 = vld [vmem:[#allocation2 + $0x20] sm:$0xff]
        %v2310 = vld [vmem:[#allocation2 + $0x28] sm:$0xff]
        %v2311 = vld [vmem:[#allocation2 + $0x30] sm:$0xff]
        %v2312 = vld [vmem:[#allocation2 + $0x38] sm:$0xff]
        %v2313 = vld [vmem:[#allocation2 + $0x40] sm:$0xff]
        %v2314 = vld [vmem:[#allocation2 + $0x48] sm:$0xff]
        %v2315 = vld [vmem:[#allocation2 + $0x50] sm:$0xff]
        %v2316 = vld [vmem:[#allocation2 + $0x58] sm:$0xff]
        %v2317 = vld [vmem:[#allocation2 + $0x60] sm:$0xff]
        %v2318 = vld [vmem:[#allocation2 + $0x68] sm:$0xff]
        %v2319 = vld [vmem:[#allocation2 + $0x70] sm:$0xff]
        %v2320 = vld [vmem:[#allocation2 + $0x78] sm:$0xff]
        %v2321 = vld [vmem:[#allocation2 + $0x80] sm:$0xff]
        %v2322 = vld [vmem:[#allocation2 + $0x88] sm:$0xff]
        %v2323 = vld [vmem:[#allocation2 + $0x90] sm:$0xff]
        %v2324 = vld [vmem:[#allocation2 + $0x98] sm:$0x1]
        %v2325 = vsel %vm2218, %v2308, 0
        %v2326 = vsel %vm2219, %v2309, 0
        %v2327 = vsel %vm2220, %v2310, 0
        %v2328 = vsel %vm2221, %v2311, 0
        %v2329 = vsel %vm2222, %v2312, 0
        %v2330 = vsel %vm2223, %v2313, 0
        %v2331 = vsel %vm2224, %v2314, 0
        %v2332 = vsel %vm2225, %v2315, 0
        %v2333 = vsel %vm2226, %v2316, 0
        %v2334 = vsel %vm2227, %v2317, 0
        %v2335 = vsel %vm2228, %v2318, 0
        %v2336 = vsel %vm2229, %v2319, 0
        %v2337 = vsel %vm2230, %v2320, 0
        %v2338 = vsel %vm2231, %v2321, 0
        %v2339 = vsel %vm2232, %v2322, 0
        %v2340 = vsel %vm2233, %v2323, 0
        %v2341 = vsel %vm2234, %v2324, 0
        %v2343 = vshll.u32 %v1687, 16
        %v2345 = vrot.slane %v2343, 1
        %v2346 = vshrl.u32 %v1687, 16
        %v2348 = vor.u32 %v2346, %v2345
        %v2350 = vshll.u32 %v1688, 16
        %v2352 = vrot.slane %v2350, 1
        %v2353 = vsel %vm1815, %v2348, %v2352
        %v2354 = vshrl.u32 %v1688, 16
        %v2356 = vor.u32 %v2354, %v2352
        %v2358 = vshll.u32 %v1689, 16
        %v2360 = vrot.slane %v2358, 1
        %v2361 = vsel %vm1815, %v2356, %v2360
        %v2362 = vshrl.u32 %v1689, 16
        %v2364 = vor.u32 %v2362, %v2360
        %v2366 = vshll.u32 %v1690, 16
        %v2368 = vrot.slane %v2366, 1
        %v2369 = vsel %vm1815, %v2364, %v2368
        %v2370 = vshrl.u32 %v1690, 16
        %v2372 = vor.u32 %v2370, %v2368
        %v2374 = vshll.u32 %v1691, 16
        %v2376 = vrot.slane %v2374, 1
        %v2377 = vsel %vm1815, %v2372, %v2376
        %v2378 = vshrl.u32 %v1691, 16
        %v2380 = vor.u32 %v2378, %v2376
        %v2382 = vshll.u32 %v1692, 16
        %v2384 = vrot.slane %v2382, 1
        %v2385 = vsel %vm1815, %v2380, %v2384
        %v2386 = vshrl.u32 %v1692, 16
        %v2388 = vor.u32 %v2386, %v2384
        %v2390 = vshll.u32 %v1693, 16
        %v2392 = vrot.slane %v2390, 1
        %v2393 = vsel %vm1815, %v2388, %v2392
        %v2394 = vshrl.u32 %v1693, 16
        %v2396 = vor.u32 %v2394, %v2392
        %v2398 = vshll.u32 %v1694, 16
        %v2400 = vrot.slane %v2398, 1
        %v2401 = vsel %vm1815, %v2396, %v2400
        %v2402 = vshrl.u32 %v1694, 16
        %v2404 = vor.u32 %v2402, %v2400
        %v2406 = vshll.u32 %v1695, 16
        %v2408 = vrot.slane %v2406, 1
        %v2409 = vsel %vm1815, %v2404, %v2408
        %v2410 = vshrl.u32 %v1695, 16
        %v2412 = vor.u32 %v2410, %v2408
        %v2414 = vshll.u32 %v1696, 16
        %v2416 = vrot.slane %v2414, 1
        %v2417 = vsel %vm1815, %v2412, %v2416
        %v2418 = vshrl.u32 %v1696, 16
        %v2420 = vor.u32 %v2418, %v2416
        %v2422 = vshll.u32 %v1697, 16
        %v2424 = vrot.slane %v2422, 1
        %v2425 = vsel %vm1815, %v2420, %v2424
        %v2426 = vshrl.u32 %v1697, 16
        %v2428 = vor.u32 %v2426, %v2424
        %v2430 = vshll.u32 %v1698, 16
        %v2432 = vrot.slane %v2430, 1
        %v2433 = vsel %vm1815, %v2428, %v2432
        %v2434 = vshrl.u32 %v1698, 16
        %v2436 = vor.u32 %v2434, %v2432
        %v2438 = vshll.u32 %v1699, 16
        %v2440 = vrot.slane %v2438, 1
        %v2441 = vsel %vm1815, %v2436, %v2440
        %v2442 = vshrl.u32 %v1699, 16
        %v2444 = vor.u32 %v2442, %v2440
        %v2446 = vshll.u32 %v1700, 16
        %v2448 = vrot.slane %v2446, 1
        %v2449 = vsel %vm1815, %v2444, %v2448
        %v2450 = vshrl.u32 %v1700, 16
        %v2452 = vor.u32 %v2450, %v2448
        %v2454 = vshll.u32 %v1701, 16
        %v2456 = vrot.slane %v2454, 1
        %v2457 = vsel %vm1815, %v2452, %v2456
        %v2458 = vshrl.u32 %v1701, 16
        %v2460 = vor.u32 %v2458, %v2456
        %v2462 = vshll.u32 %v1702, 16
        %v2464 = vrot.slane %v2462, 1
        %v2465 = vsel %vm1815, %v2460, %v2464
        %v2466 = vshrl.u32 %v1702, 16
        %v2468 = vor.u32 %v2466, %v2464
        %v2469 = vld [vmem:[#allocation9] sm:$0xf]
        %v2470 = vld [vmem:[#allocation9 + $0x4] sm:$0xf]
        %v2471 = vld [vmem:[#allocation9 + $0x8] sm:$0xf]
        %v2472 = vld [vmem:[#allocation9 + $0xc] sm:$0xf]
        %v2473 = vld [vmem:[#allocation9 + $0x10] sm:$0xf]
        %v2474 = vld [vmem:[#allocation9 + $0x14] sm:$0xf]
        %v2475 = vld [vmem:[#allocation9 + $0x18] sm:$0xf]
        %v2476 = vld [vmem:[#allocation9 + $0x1c] sm:$0xf]
        %v2477 = vld [vmem:[#allocation9 + $0x20] sm:$0xf]
        %v2478 = vld [vmem:[#allocation9 + $0x24] sm:$0xf]
        %v2479 = vld [vmem:[#allocation9 + $0x28] sm:$0xf]
        %v2480 = vld [vmem:[#allocation9 + $0x2c] sm:$0xf]
        %v2481 = vld [vmem:[#allocation9 + $0x30] sm:$0xf]
        %v2482 = vld [vmem:[#allocation9 + $0x34] sm:$0xf]
        %v2483 = vld [vmem:[#allocation9 + $0x38] sm:$0xf]
        %v2484 = vld [vmem:[#allocation9 + $0x3c] sm:$0xf]
        %v2485 = vld [vmem:[#allocation9 + $0x40] sm:$0xf]
        %v2486 = vld [vmem:[#allocation9 + $0x44] sm:$0xf]
        %v2487 = vld [vmem:[#allocation9 + $0x48] sm:$0xf]
        %v2488 = vld [vmem:[#allocation9 + $0x4c] sm:$0xf]
        %v2489 = vld [vmem:[#allocation9 + $0x50] sm:$0xf]
        %v2490 = vld [vmem:[#allocation9 + $0x54] sm:$0xf]
        %v2491 = vld [vmem:[#allocation9 + $0x58] sm:$0xf]
        %v2492 = vld [vmem:[#allocation9 + $0x5c] sm:$0xf]
        %v2493 = vld [vmem:[#allocation9 + $0x60] sm:$0xf]
        %v2494 = vld [vmem:[#allocation9 + $0x64] sm:$0xf]
        %v2495 = vld [vmem:[#allocation9 + $0x68] sm:$0xf]
        %v2496 = vld [vmem:[#allocation9 + $0x6c] sm:$0xf]
        %v2497 = vld [vmem:[#allocation9 + $0x70] sm:$0xf]
        %v2498 = vld [vmem:[#allocation9 + $0x74] sm:$0xf]
        %v2499 = vld [vmem:[#allocation9 + $0x78] sm:$0xf]
        %v2500 = vld [vmem:[#allocation9 + $0x7c] sm:$0xf]
        %vm2518 = vcmask 1040384
        %v2519 = vrot.slane %v2254, 7
        %v2520 = vrot.slane %v2255, 7
        %v2521 = vsel %vm2518, %v2519, %v2520
        %v2522 = vrot.slane %v2256, 7
        %v2523 = vsel %vm2518, %v2520, %v2522
        %v2524 = vrot.slane %v2257, 7
        %v2525 = vsel %vm2518, %v2522, %v2524
        %v2526 = vrot.slane %v2258, 7
        %v2527 = vsel %vm2518, %v2524, %v2526
        %v2528 = vrot.slane %v2259, 7
        %v2529 = vsel %vm2518, %v2526, %v2528
        %v2530 = vrot.slane %v2260, 7
        %v2531 = vsel %vm2518, %v2528, %v2530
        %v2532 = vrot.slane %v2261, 7
        %v2533 = vsel %vm2518, %v2530, %v2532
        %v2534 = vrot.slane %v2262, 7
        %v2535 = vsel %vm2518, %v2532, %v2534
        %v2536 = vrot.slane %v2263, 7
        %v2537 = vsel %vm2518, %v2534, %v2536
        %v2538 = vrot.slane %v2264, 7
        %v2539 = vsel %vm2518, %v2536, %v2538
        %v2540 = vrot.slane %v2265, 7
        %v2541 = vsel %vm2518, %v2538, %v2540
        %v2542 = vrot.slane %v2266, 7
        %v2543 = vsel %vm2518, %v2540, %v2542
        %v2544 = vrot.slane %v2267, 7
        %v2545 = vsel %vm2518, %v2542, %v2544
        %v2546 = vrot.slane %v2268, 7
        %v2547 = vsel %vm2518, %v2544, %v2546
        %v2548 = vrot.slane %v2269, 7
        %v2549 = vsel %vm2518, %v2546, %v2548
        %v2550 = vrot.slane %v2270, 7
        %v2551 = vsel %vm2518, %v2548, %v2550
        %v2552 = vld [vmem:[#allocation9 + $0x80] sm:$0xf]
        %v2553 = vld [vmem:[#allocation9 + $0x84] sm:$0xf]
        %v2554 = vld [vmem:[#allocation9 + $0x88] sm:$0xf]
        %v2555 = vld [vmem:[#allocation9 + $0x8c] sm:$0xf]
        %v2556 = vld [vmem:[#allocation9 + $0x90] sm:$0xf]
        %v2557 = vld [vmem:[#allocation9 + $0x94] sm:$0xf]
        %v2558 = vld [vmem:[#allocation9 + $0x98] sm:$0xf]
        %v2559 = vld [vmem:[#allocation9 + $0x9c] sm:$0xf]
        %v2560 = vld [vmem:[#allocation9 + $0xa0] sm:$0xf]
        %v2561 = vld [vmem:[#allocation9 + $0xa4] sm:$0xf]
        %v2562 = vld [vmem:[#allocation9 + $0xa8] sm:$0xf]
        %v2563 = vld [vmem:[#allocation9 + $0xac] sm:$0xf]
        %v2564 = vld [vmem:[#allocation9 + $0xb0] sm:$0xf]
        %v2565 = vld [vmem:[#allocation9 + $0xb4] sm:$0xf]
        %v2566 = vld [vmem:[#allocation9 + $0xb8] sm:$0xf]
        %v2567 = vld [vmem:[#allocation9 + $0xbc] sm:$0xf]
        %v2568 = vld [vmem:[#allocation9 + $0xc0] sm:$0xf]
        %v2569 = vld [vmem:[#allocation9 + $0xc4] sm:$0xf]
        %v2570 = vld [vmem:[#allocation9 + $0xc8] sm:$0xf]
        %v2571 = vld [vmem:[#allocation9 + $0xcc] sm:$0xf]
        %v2572 = vld [vmem:[#allocation9 + $0xd0] sm:$0xf]
        %v2573 = vld [vmem:[#allocation9 + $0xd4] sm:$0xf]
        %v2574 = vld [vmem:[#allocation9 + $0xd8] sm:$0xf]
        %v2575 = vld [vmem:[#allocation9 + $0xdc] sm:$0xf]
        %v2576 = vld [vmem:[#allocation9 + $0xe0] sm:$0xf]
        %v2577 = vld [vmem:[#allocation9 + $0xe4] sm:$0xf]
        %v2578 = vld [vmem:[#allocation9 + $0xe8] sm:$0xf]
        %v2579 = vld [vmem:[#allocation9 + $0xec] sm:$0xf]
        %v2580 = vld [vmem:[#allocation9 + $0xf0] sm:$0xf]
        %v2581 = vld [vmem:[#allocation9 + $0xf4] sm:$0xf]
        %v2582 = vld [vmem:[#allocation9 + $0xf8] sm:$0xf]
        %v2583 = vld [vmem:[#allocation9 + $0xfc] sm:$0xf]
        %v2585 = vshrl.u32 %v2235, 16
        %v2587 = vshll.u32 %v2235, 16
        %v2589 = vrot.slane %v2587, 1
        %v2590 = vor.u32 %v2585, %v2589
        %v2592 = vshll.u32 %v2236, 16
        %v2594 = vrot.slane %v2592, 1
        %v2595 = vsel %vm1815, %v2590, %v2594
        %v2597 = vshrl.u32 %v2521, 16
        %v2599 = vshll.u32 %v2521, 16
        %v2601 = vrot.slane %v2599, 1
        %v2602 = vor.u32 %v2597, %v2601
        %v2604 = vshll.u32 %v2523, 16
        %v2606 = vrot.slane %v2604, 1
        %v2607 = vsel %vm1815, %v2602, %v2606
        %v2608 = vshrl.u32 %v2236, 16
        %v2610 = vor.u32 %v2608, %v2594
        %v2612 = vshll.u32 %v2237, 16
        %v2614 = vrot.slane %v2612, 1
        %v2615 = vsel %vm1815, %v2610, %v2614
        %v2616 = vshrl.u32 %v2523, 16
        %v2618 = vor.u32 %v2616, %v2606
        %v2620 = vshll.u32 %v2525, 16
        %v2622 = vrot.slane %v2620, 1
        %v2623 = vsel %vm1815, %v2618, %v2622
        %v2624 = vshrl.u32 %v2237, 16
        %v2626 = vor.u32 %v2624, %v2614
        %v2628 = vshll.u32 %v2238, 16
        %v2630 = vrot.slane %v2628, 1
        %v2631 = vsel %vm1815, %v2626, %v2630
        %v2632 = vshrl.u32 %v2525, 16
        %v2634 = vor.u32 %v2632, %v2622
        %v2636 = vshll.u32 %v2527, 16
        %v2638 = vrot.slane %v2636, 1
        %v2639 = vsel %vm1815, %v2634, %v2638
        %v2640 = vshrl.u32 %v2238, 16
        %v2642 = vor.u32 %v2640, %v2630
        %v2644 = vshll.u32 %v2239, 16
        %v2646 = vrot.slane %v2644, 1
        %v2647 = vsel %vm1815, %v2642, %v2646
        %v2648 = vshrl.u32 %v2527, 16
        %v2650 = vor.u32 %v2648, %v2638
        %v2652 = vshll.u32 %v2529, 16
        %v2654 = vrot.slane %v2652, 1
        %v2655 = vsel %vm1815, %v2650, %v2654
        %v2656 = vshrl.u32 %v2239, 16
        %v2658 = vor.u32 %v2656, %v2646
        %v2660 = vshll.u32 %v2240, 16
        %v2662 = vrot.slane %v2660, 1
        %v2663 = vsel %vm1815, %v2658, %v2662
        %v2664 = vshrl.u32 %v2529, 16
        %v2666 = vor.u32 %v2664, %v2654
        %v2668 = vshll.u32 %v2531, 16
        %v2670 = vrot.slane %v2668, 1
        %v2671 = vsel %vm1815, %v2666, %v2670
        %v2672 = vshrl.u32 %v2240, 16
        %v2674 = vor.u32 %v2672, %v2662
        %v2676 = vshll.u32 %v2241, 16
        %v2678 = vrot.slane %v2676, 1
        %v2679 = vsel %vm1815, %v2674, %v2678
        %v2680 = vshrl.u32 %v2531, 16
        %v2682 = vor.u32 %v2680, %v2670
        %v2684 = vshll.u32 %v2533, 16
        %v2686 = vrot.slane %v2684, 1
        %v2687 = vsel %vm1815, %v2682, %v2686
        %v2688 = vshrl.u32 %v2241, 16
        %v2690 = vor.u32 %v2688, %v2678
        %v2692 = vshll.u32 %v2242, 16
        %v2694 = vrot.slane %v2692, 1
        %v2695 = vsel %vm1815, %v2690, %v2694
        %v2696 = vshrl.u32 %v2533, 16
        %v2698 = vor.u32 %v2696, %v2686
        %v2700 = vshll.u32 %v2535, 16
        %v2702 = vrot.slane %v2700, 1
        %v2703 = vsel %vm1815, %v2698, %v2702
        %v2704 = vshrl.u32 %v2242, 16
        %v2706 = vor.u32 %v2704, %v2694
        %v2708 = vshll.u32 %v2243, 16
        %v2710 = vrot.slane %v2708, 1
        %v2711 = vsel %vm1815, %v2706, %v2710
        %v2712 = vshrl.u32 %v2535, 16
        %v2714 = vor.u32 %v2712, %v2702
        %v2716 = vshll.u32 %v2537, 16
        %v2718 = vrot.slane %v2716, 1
        %v2719 = vsel %vm1815, %v2714, %v2718
        %v2720 = vshrl.u32 %v2243, 16
        %v2722 = vor.u32 %v2720, %v2710
        %v2724 = vshll.u32 %v2244, 16
        %v2726 = vrot.slane %v2724, 1
        %v2727 = vsel %vm1815, %v2722, %v2726
        %v2728 = vshrl.u32 %v2537, 16
        %v2730 = vor.u32 %v2728, %v2718
        %v2732 = vshll.u32 %v2539, 16
        %v2734 = vrot.slane %v2732, 1
        %v2735 = vsel %vm1815, %v2730, %v2734
        %v2736 = vshrl.u32 %v2244, 16
        %v2738 = vor.u32 %v2736, %v2726
        %v2740 = vshll.u32 %v2245, 16
        %v2742 = vrot.slane %v2740, 1
        %v2743 = vsel %vm1815, %v2738, %v2742
        %v2744 = vshrl.u32 %v2539, 16
        %v2746 = vor.u32 %v2744, %v2734
        %v2748 = vshll.u32 %v2541, 16
        %v2750 = vrot.slane %v2748, 1
        %v2751 = vsel %vm1815, %v2746, %v2750
        %v2752 = vshrl.u32 %v2245, 16
        %v2754 = vor.u32 %v2752, %v2742
        %v2756 = vshll.u32 %v2246, 16
        %v2758 = vrot.slane %v2756, 1
        %v2759 = vsel %vm1815, %v2754, %v2758
        %v2760 = vshrl.u32 %v2541, 16
        %v2762 = vor.u32 %v2760, %v2750
        %v2764 = vshll.u32 %v2543, 16
        %v2766 = vrot.slane %v2764, 1
        %v2767 = vsel %vm1815, %v2762, %v2766
        %v2768 = vshrl.u32 %v2246, 16
        %v2770 = vor.u32 %v2768, %v2758
        %v2772 = vshll.u32 %v2247, 16
        %v2774 = vrot.slane %v2772, 1
        %v2775 = vsel %vm1815, %v2770, %v2774
        %v2776 = vshrl.u32 %v2543, 16
        %v2778 = vor.u32 %v2776, %v2766
        %v2780 = vshll.u32 %v2545, 16
        %v2782 = vrot.slane %v2780, 1
        %v2783 = vsel %vm1815, %v2778, %v2782
        %v2784 = vshrl.u32 %v2247, 16
        %v2786 = vor.u32 %v2784, %v2774
        %v2788 = vshll.u32 %v2248, 16
        %v2790 = vrot.slane %v2788, 1
        %v2791 = vsel %vm1815, %v2786, %v2790
        %v2792 = vshrl.u32 %v2545, 16
        %v2794 = vor.u32 %v2792, %v2782
        %v2796 = vshll.u32 %v2547, 16
        %v2798 = vrot.slane %v2796, 1
        %v2799 = vsel %vm1815, %v2794, %v2798
        %v2800 = vshrl.u32 %v2248, 16
        %v2802 = vor.u32 %v2800, %v2790
        %v2804 = vshll.u32 %v2249, 16
        %v2806 = vrot.slane %v2804, 1
        %v2807 = vsel %vm1815, %v2802, %v2806
        %v2808 = vshrl.u32 %v2547, 16
        %v2810 = vor.u32 %v2808, %v2798
        %v2812 = vshll.u32 %v2549, 16
        %v2814 = vrot.slane %v2812, 1
        %v2815 = vsel %vm1815, %v2810, %v2814
        %v2816 = vshrl.u32 %v2249, 16
        %v2818 = vor.u32 %v2816, %v2806
        %v2820 = vshll.u32 %v2250, 16
        %v2822 = vrot.slane %v2820, 1
        %v2823 = vsel %vm1815, %v2818, %v2822
        %v2824 = vshrl.u32 %v2549, 16
        %v2826 = vor.u32 %v2824, %v2814
        %v2828 = vshll.u32 %v2551, 16
        %v2830 = vrot.slane %v2828, 1
        %v2831 = vsel %vm1815, %v2826, %v2830
        %v2832 = vshrl.u32 %v2250, 16
        %v2834 = vor.u32 %v2832, %v2822
        %v2836 = vshll.u32 %v2251, 16
        %v2838 = vrot.slane %v2836, 1
        %v2839 = vsel %vm1815, %v2834, %v2838
        %v2840 = vshrl.u32 %v2551, 16
        %v2842 = vor.u32 %v2840, %v2830
        %v2844 = vshll.u32 %v2550, 16
        %v2846 = vrot.slane %v2844, 1
        %v2847 = vsel %vm1815, %v2842, %v2846
        %v2912 = vunpack.c.l.b16 %v2552
        %v2913 = vunpack.c.l.b16 %v2553
        %v2914 = vunpack.c.l.b16 %v2554
        %v2915 = vunpack.c.l.b16 %v2555
        %v2916 = vunpack.c.l.b16 %v2556
        %v2917 = vunpack.c.l.b16 %v2557
        %v2918 = vunpack.c.l.b16 %v2558
        %v2919 = vunpack.c.l.b16 %v2559
        %v2920 = vunpack.c.l.b16 %v2560
        %v2921 = vunpack.c.l.b16 %v2561
        %v2922 = vunpack.c.l.b16 %v2562
        %v2923 = vunpack.c.l.b16 %v2563
        %v2924 = vunpack.c.l.b16 %v2564
        %v2925 = vunpack.c.l.b16 %v2565
        %v2926 = vunpack.c.l.b16 %v2566
        %v2927 = vunpack.c.l.b16 %v2567
        %v2928 = vunpack.c.l.b16 %v2568
        %v2929 = vunpack.c.l.b16 %v2569
        %v2930 = vunpack.c.l.b16 %v2570
        %v2931 = vunpack.c.l.b16 %v2571
        %v2932 = vunpack.c.l.b16 %v2572
        %v2933 = vunpack.c.l.b16 %v2573
        %v2934 = vunpack.c.l.b16 %v2574
        %v2935 = vunpack.c.l.b16 %v2575
        %v2936 = vunpack.c.l.b16 %v2576
        %v2937 = vunpack.c.l.b16 %v2577
        %v2938 = vunpack.c.l.b16 %v2578
        %v2939 = vunpack.c.l.b16 %v2579
        %v2940 = vunpack.c.l.b16 %v2580
        %v2941 = vunpack.c.l.b16 %v2581
        %v2942 = vunpack.c.l.b16 %v2582
        %v2943 = vunpack.c.l.b16 %v2583
        %v2944 = vpack.c.b16 %v2913, %v2912
        %v2945 = vpack.c.b16 %v2915, %v2914
        %v2946 = vpack.c.b16 %v2917, %v2916
        %v2947 = vpack.c.b16 %v2919, %v2918
        %v2948 = vpack.c.b16 %v2921, %v2920
        %v2949 = vpack.c.b16 %v2923, %v2922
        %v2950 = vpack.c.b16 %v2925, %v2924
        %v2951 = vpack.c.b16 %v2927, %v2926
        %v2952 = vpack.c.b16 %v2929, %v2928
        %v2953 = vpack.c.b16 %v2931, %v2930
        %v2954 = vpack.c.b16 %v2933, %v2932
        %v2955 = vpack.c.b16 %v2935, %v2934
        %v2956 = vpack.c.b16 %v2937, %v2936
        %v2957 = vpack.c.b16 %v2939, %v2938
        %v2958 = vpack.c.b16 %v2941, %v2940
        %v2959 = vpack.c.b16 %v2943, %v2942
        %2976 = vmatprep.subr.bf16.mxu0 0
        %2977 = vmatpush1.bf16.msra.mxu0 %v2944
        %2978 = vmatprep.subr.bf16.mxu0 0
        %2979 = vmatpush1.bf16.msra.mxu0 %v2945
        %2980 = vmatprep.subr.bf16.mxu0 0
        %2981 = vmatpush1.bf16.msra.mxu0 %v2946
        %2982 = vmatprep.subr.bf16.mxu0 0
        %2983 = vmatpush1.bf16.msra.mxu0 %v2947
        %2984 = vmatprep.subr.bf16.mxu0 0
        %2985 = vmatpush1.bf16.msra.mxu0 %v2948
        %2986 = vmatprep.subr.bf16.mxu0 0
        %2987 = vmatpush1.bf16.msra.mxu0 %v2949
        %2988 = vmatprep.subr.bf16.mxu0 0
        %2989 = vmatpush1.bf16.msra.mxu0 %v2950
        %2990 = vmatprep.subr.bf16.mxu0 0
        %2991 = vmatpush1.bf16.msra.mxu0 %v2951
        %2992 = vmatprep.subr.bf16.mxu0 0
        %2993 = vmatpush1.bf16.msra.mxu0 %v2952
        %2994 = vmatprep.subr.bf16.mxu0 0
        %2995 = vmatpush1.bf16.msra.mxu0 %v2953
        %2996 = vmatprep.subr.bf16.mxu0 0
        %2997 = vmatpush1.bf16.msra.mxu0 %v2954
        %2998 = vmatprep.subr.bf16.mxu0 0
        %2999 = vmatpush1.bf16.msra.mxu0 %v2955
        %3000 = vmatprep.subr.bf16.mxu0 0
        %3001 = vmatpush1.bf16.msra.mxu0 %v2956
        %3002 = vmatprep.subr.bf16.mxu0 0
        %3003 = vmatpush1.bf16.msra.mxu0 %v2957
        %3004 = vmatprep.subr.bf16.mxu0 0
        %3005 = vmatpush1.bf16.msra.mxu0 %v2958
        %3006 = vmatprep.subr.bf16.mxu0 0
        %3007 = vmatpush1.bf16.msra.mxu0 %v2959
        %3008 = vmatprep.mubr.bf16.mxu0 %v2607
        %3009 = vmatmul.mubr.bf16.gmra.mrb[0].mxu0 %v2595
        %v3010 = vpop.f32.mrb[0].mxu0
        %v3011 = vadd.f32 0.0, %v3010
        %v3012 = vpop.f32.mrb[0].mxu0
        %v3013 = vpop.f32.mrb[0].mxu0
        %v3014 = vadd.f32 0.0, %v3013
        %v3015 = vpop.f32.mrb[0].mxu0
        %3016 = vmatprep.mubr.bf16.mxu0 %v2623
        %3017 = vmatmul.mubr.bf16.gmra.mrb[0].mxu0 %v2615
        %v3018 = vpop.f32.mrb[0].mxu0
        %v3019 = vadd.f32 0.0, %v3018
        %v3020 = vpop.f32.mrb[0].mxu0
        %v3021 = vpop.f32.mrb[0].mxu0
        %v3022 = vadd.f32 0.0, %v3021
        %v3023 = vpop.f32.mrb[0].mxu0
        %3024 = vmatprep.mubr.bf16.mxu0 %v2639
        %3025 = vmatmul.mubr.bf16.gmra.mrb[0].mxu0 %v2631
        %v3026 = vpop.f32.mrb[0].mxu0
        %v3027 = vadd.f32 0.0, %v3026
        %v3028 = vpop.f32.mrb[0].mxu0
        %v3029 = vpop.f32.mrb[0].mxu0
        %v3030 = vadd.f32 0.0, %v3029
        %v3031 = vpop.f32.mrb[0].mxu0
        %3032 = vmatprep.mubr.bf16.mxu0 %v2655
        %3033 = vmatmul.mubr.bf16.gmra.mrb[0].mxu0 %v2647
        %v3034 = vpop.f32.mrb[0].mxu0
        %v3035 = vadd.f32 0.0, %v3034
        %v3036 = vpop.f32.mrb[0].mxu0
        %v3037 = vpop.f32.mrb[0].mxu0
        %v3038 = vadd.f32 0.0, %v3037
        %v3039 = vpop.f32.mrb[0].mxu0
        %3040 = vmatprep.mubr.bf16.mxu0 %v2671
        %3041 = vmatmul.mubr.bf16.gmra.mrb[0].mxu0 %v2663
        %v3042 = vpop.f32.mrb[0].mxu0
        %v3043 = vadd.f32 0.0, %v3042
        %v3044 = vpop.f32.mrb[0].mxu0
        %v3045 = vpop.f32.mrb[0].mxu0
        %v3046 = vadd.f32 0.0, %v3045
        %v3047 = vpop.f32.mrb[0].mxu0
        %3048 = vmatprep.mubr.bf16.mxu0 %v2687
        %3049 = vmatmul.mubr.bf16.gmra.mrb[0].mxu0 %v2679
        %v3050 = vpop.f32.mrb[0].mxu0
        %v3051 = vadd.f32 0.0, %v3050
        %v3052 = vpop.f32.mrb[0].mxu0
        %v3053 = vpop.f32.mrb[0].mxu0
        %v3054 = vadd.f32 0.0, %v3053
        %v3055 = vpop.f32.mrb[0].mxu0
        %3056 = vmatprep.mubr.bf16.mxu0 %v2703
        %3057 = vmatmul.mubr.bf16.gmra.mrb[0].mxu0 %v2695
        %v3058 = vpop.f32.mrb[0].mxu0
        %v3059 = vadd.f32 0.0, %v3058
        %v3060 = vpop.f32.mrb[0].mxu0
        %v3061 = vpop.f32.mrb[0].mxu0
        %v3062 = vadd.f32 0.0, %v3061
        %v3063 = vpop.f32.mrb[0].mxu0
        %3064 = vmatprep.mubr.bf16.mxu0 %v2719
        %3065 = vmatmul.mubr.bf16.gmra.mrb[0].mxu0 %v2711
        %v3066 = vpop.f32.mrb[0].mxu0
        %v3067 = vadd.f32 0.0, %v3066
        %v3068 = vpop.f32.mrb[0].mxu0
        %v3069 = vpop.f32.mrb[0].mxu0
        %v3070 = vadd.f32 0.0, %v3069
        %v3071 = vpop.f32.mrb[0].mxu0
        %3072 = vmatprep.mubr.bf16.mxu0 %v2735
        %3073 = vmatmul.mubr.bf16.gmra.mrb[0].mxu0 %v2727
        %v3074 = vpop.f32.mrb[0].mxu0
        %v3075 = vadd.f32 0.0, %v3074
        %v3076 = vpop.f32.mrb[0].mxu0
        %v3077 = vpop.f32.mrb[0].mxu0
        %v3078 = vadd.f32 0.0, %v3077
        %v3079 = vpop.f32.mrb[0].mxu0
        %3080 = vmatprep.mubr.bf16.mxu0 %v2751
        %3081 = vmatmul.mubr.bf16.gmra.mrb[0].mxu0 %v2743
        %v3082 = vpop.f32.mrb[0].mxu0
        %v3083 = vadd.f32 0.0, %v3082
        %v3084 = vpop.f32.mrb[0].mxu0
        %v3085 = vpop.f32.mrb[0].mxu0
        %v3086 = vadd.f32 0.0, %v3085
        %v3087 = vpop.f32.mrb[0].mxu0
        %3088 = vmatprep.mubr.bf16.mxu0 %v2767
        %3089 = vmatmul.mubr.bf16.gmra.mrb[0].mxu0 %v2759
        %v3090 = vpop.f32.mrb[0].mxu0
        %v3091 = vadd.f32 0.0, %v3090
        %v3092 = vpop.f32.mrb[0].mxu0
        %v3093 = vpop.f32.mrb[0].mxu0
        %v3094 = vadd.f32 0.0, %v3093
        %v3095 = vpop.f32.mrb[0].mxu0
        %3096 = vmatprep.mubr.bf16.mxu0 %v2783
        %3097 = vmatmul.mubr.bf16.gmra.mrb[0].mxu0 %v2775
        %v3098 = vpop.f32.mrb[0].mxu0
        %v3099 = vadd.f32 0.0, %v3098
        %v3100 = vpop.f32.mrb[0].mxu0
        %v3101 = vpop.f32.mrb[0].mxu0
        %v3102 = vadd.f32 0.0, %v3101
        %v3103 = vpop.f32.mrb[0].mxu0
        %3104 = vmatprep.mubr.bf16.mxu0 %v2799
        %3105 = vmatmul.mubr.bf16.gmra.mrb[0].mxu0 %v2791
        %v3106 = vpop.f32.mrb[0].mxu0
        %v3107 = vadd.f32 0.0, %v3106
        %v3108 = vpop.f32.mrb[0].mxu0
        %v3109 = vpop.f32.mrb[0].mxu0
        %v3110 = vadd.f32 0.0, %v3109
        %v3111 = vpop.f32.mrb[0].mxu0
        %3112 = vmatprep.mubr.bf16.mxu0 %v2815
        %3113 = vmatmul.mubr.bf16.gmra.mrb[0].mxu0 %v2807
        %v3114 = vpop.f32.mrb[0].mxu0
        %v3115 = vadd.f32 0.0, %v3114
        %v3116 = vpop.f32.mrb[0].mxu0
        %v3117 = vpop.f32.mrb[0].mxu0
        %v3118 = vadd.f32 0.0, %v3117
        %v3119 = vpop.f32.mrb[0].mxu0
        %3120 = vmatprep.mubr.bf16.mxu0 %v2831
        %3121 = vmatmul.mubr.bf16.gmra.mrb[0].mxu0 %v2823
        %v3122 = vpop.f32.mrb[0].mxu0
        %v3123 = vadd.f32 0.0, %v3122
        %v3124 = vpop.f32.mrb[0].mxu0
        %v3125 = vpop.f32.mrb[0].mxu0
        %v3126 = vadd.f32 0.0, %v3125
        %v3127 = vpop.f32.mrb[0].mxu0
        %3128 = vmatprep.mubr.bf16.mxu0 %v2847
        %3129 = vmatmul.mubr.bf16.gmra.mrb[0].mxu0 %v2839
        %v3130 = vpop.f32.mrb[0].mxu0
        %v3131 = vadd.f32 0.0, %v3130
        %v3132 = vpop.f32.mrb[0].mxu0
        %v3133 = vpop.f32.mrb[0].mxu0
        %v3134 = vadd.f32 0.0, %v3133
        %v3135 = vpop.f32.mrb[0].mxu0
        %3136 = vdwg.mxu0
        %v3138 = vshrl.u32 %v1960, 16
        %v3140 = vrot.slane %v3138, 7
        %v3142 = vshrl.u32 %v1961, 16
        %v3144 = vrot.slane %v3142, 7
        %v3145 = vshll.u32 %v1961, 16
        %v3147 = vor.u32 %v3144, %v3145
        %v3148 = vsel %vm2090, %v3140, %v3147
        %v3150 = vshrl.u32 %v2345, 16
        %v3152 = vrot.slane %v3150, 7
        %v3154 = vshrl.u32 %v2353, 16
        %v3156 = vrot.slane %v3154, 7
        %v3157 = vshll.u32 %v2353, 16
        %v3159 = vor.u32 %v3156, %v3157
        %v3160 = vsel %vm2090, %v3152, %v3159
        %v3162 = vshrl.u32 %v1962, 16
        %v3164 = vrot.slane %v3162, 7
        %v3165 = vshll.u32 %v1962, 16
        %v3167 = vor.u32 %v3164, %v3165
        %v3168 = vsel %vm2090, %v3144, %v3167
        %v3170 = vshrl.u32 %v2361, 16
        %v3172 = vrot.slane %v3170, 7
        %v3173 = vshll.u32 %v2361, 16
        %v3175 = vor.u32 %v3172, %v3173
        %v3176 = vsel %vm2090, %v3156, %v3175
        %v3178 = vshrl.u32 %v1963, 16
        %v3180 = vrot.slane %v3178, 7
        %v3181 = vshll.u32 %v1963, 16
        %v3183 = vor.u32 %v3180, %v3181
        %v3184 = vsel %vm2090, %v3164, %v3183
        %v3186 = vshrl.u32 %v2369, 16
        %v3188 = vrot.slane %v3186, 7
        %v3189 = vshll.u32 %v2369, 16
        %v3191 = vor.u32 %v3188, %v3189
        %v3192 = vsel %vm2090, %v3172, %v3191
        %v3194 = vshrl.u32 %v1964, 16
        %v3196 = vrot.slane %v3194, 7
        %v3197 = vshll.u32 %v1964, 16
        %v3199 = vor.u32 %v3196, %v3197
        %v3200 = vsel %vm2090, %v3180, %v3199
        %v3202 = vshrl.u32 %v2377, 16
        %v3204 = vrot.slane %v3202, 7
        %v3205 = vshll.u32 %v2377, 16
        %v3207 = vor.u32 %v3204, %v3205
        %v3208 = vsel %vm2090, %v3188, %v3207
        %v3210 = vshrl.u32 %v1965, 16
        %v3212 = vrot.slane %v3210, 7
        %v3213 = vshll.u32 %v1965, 16
        %v3215 = vor.u32 %v3212, %v3213
        %v3216 = vsel %vm2090, %v3196, %v3215
        %v3218 = vshrl.u32 %v2385, 16
        %v3220 = vrot.slane %v3218, 7
        %v3221 = vshll.u32 %v2385, 16
        %v3223 = vor.u32 %v3220, %v3221
        %v3224 = vsel %vm2090, %v3204, %v3223
        %v3226 = vshrl.u32 %v1966, 16
        %v3228 = vrot.slane %v3226, 7
        %v3229 = vshll.u32 %v1966, 16
        %v3231 = vor.u32 %v3228, %v3229
        %v3232 = vsel %vm2090, %v3212, %v3231
        %v3234 = vshrl.u32 %v2393, 16
        %v3236 = vrot.slane %v3234, 7
        %v3237 = vshll.u32 %v2393, 16
        %v3239 = vor.u32 %v3236, %v3237
        %v3240 = vsel %vm2090, %v3220, %v3239
        %v3242 = vshrl.u32 %v1967, 16
        %v3244 = vrot.slane %v3242, 7
        %v3245 = vshll.u32 %v1967, 16
        %v3247 = vor.u32 %v3244, %v3245
        %v3248 = vsel %vm2090, %v3228, %v3247
        %v3250 = vshrl.u32 %v2401, 16
        %v3252 = vrot.slane %v3250, 7
        %v3253 = vshll.u32 %v2401, 16
        %v3255 = vor.u32 %v3252, %v3253
        %v3256 = vsel %vm2090, %v3236, %v3255
        %v3258 = vshrl.u32 %v1968, 16
        %v3260 = vrot.slane %v3258, 7
        %v3261 = vshll.u32 %v1968, 16
        %v3263 = vor.u32 %v3260, %v3261
        %v3264 = vsel %vm2090, %v3244, %v3263
        %v3266 = vshrl.u32 %v2409, 16
        %v3268 = vrot.slane %v3266, 7
        %v3269 = vshll.u32 %v2409, 16
        %v3271 = vor.u32 %v3268, %v3269
        %v3272 = vsel %vm2090, %v3252, %v3271
        %v3274 = vshrl.u32 %v1969, 16
        %v3276 = vrot.slane %v3274, 7
        %v3277 = vshll.u32 %v1969, 16
        %v3279 = vor.u32 %v3276, %v3277
        %v3280 = vsel %vm2090, %v3260, %v3279
        %v3282 = vshrl.u32 %v2417, 16
        %v3284 = vrot.slane %v3282, 7
        %v3285 = vshll.u32 %v2417, 16
        %v3287 = vor.u32 %v3284, %v3285
        %v3288 = vsel %vm2090, %v3268, %v3287
        %v3290 = vshrl.u32 %v1970, 16
        %v3292 = vrot.slane %v3290, 7
        %v3293 = vshll.u32 %v1970, 16
        %v3295 = vor.u32 %v3292, %v3293
        %v3296 = vsel %vm2090, %v3276, %v3295
        %v3298 = vshrl.u32 %v2425, 16
        %v3300 = vrot.slane %v3298, 7
        %v3301 = vshll.u32 %v2425, 16
        %v3303 = vor.u32 %v3300, %v3301
        %v3304 = vsel %vm2090, %v3284, %v3303
        %v3306 = vshrl.u32 %v1971, 16
        %v3308 = vrot.slane %v3306, 7
        %v3309 = vshll.u32 %v1971, 16
        %v3311 = vor.u32 %v3308, %v3309
        %v3312 = vsel %vm2090, %v3292, %v3311
        %v3314 = vshrl.u32 %v2433, 16
        %v3316 = vrot.slane %v3314, 7
        %v3317 = vshll.u32 %v2433, 16
        %v3319 = vor.u32 %v3316, %v3317
        %v3320 = vsel %vm2090, %v3300, %v3319
        %v3322 = vshrl.u32 %v1972, 16
        %v3324 = vrot.slane %v3322, 7
        %v3325 = vshll.u32 %v1972, 16
        %v3327 = vor.u32 %v3324, %v3325
        %v3328 = vsel %vm2090, %v3308, %v3327
        %v3330 = vshrl.u32 %v2441, 16
        %v3332 = vrot.slane %v3330, 7
        %v3333 = vshll.u32 %v2441, 16
        %v3335 = vor.u32 %v3332, %v3333
        %v3336 = vsel %vm2090, %v3316, %v3335
        %v3338 = vshrl.u32 %v1973, 16
        %v3340 = vrot.slane %v3338, 7
        %v3341 = vshll.u32 %v1973, 16
        %v3343 = vor.u32 %v3340, %v3341
        %v3344 = vsel %vm2090, %v3324, %v3343
        %v3346 = vshrl.u32 %v2449, 16
        %v3348 = vrot.slane %v3346, 7
        %v3349 = vshll.u32 %v2449, 16
        %v3351 = vor.u32 %v3348, %v3349
        %v3352 = vsel %vm2090, %v3332, %v3351
        %v3354 = vshrl.u32 %v1974, 16
        %v3356 = vrot.slane %v3354, 7
        %v3357 = vshll.u32 %v1974, 16
        %v3359 = vor.u32 %v3356, %v3357
        %v3360 = vsel %vm2090, %v3340, %v3359
        %v3362 = vshrl.u32 %v2457, 16
        %v3364 = vrot.slane %v3362, 7
        %v3365 = vshll.u32 %v2457, 16
        %v3367 = vor.u32 %v3364, %v3365
        %v3368 = vsel %vm2090, %v3348, %v3367
        %v3370 = vshrl.u32 %v1975, 16
        %v3372 = vrot.slane %v3370, 7
        %v3373 = vshll.u32 %v1975, 16
        %v3375 = vor.u32 %v3372, %v3373
        %v3376 = vsel %vm2090, %v3356, %v3375
        %v3378 = vshrl.u32 %v2465, 16
        %v3380 = vrot.slane %v3378, 7
        %v3381 = vshll.u32 %v2465, 16
        %v3383 = vor.u32 %v3380, %v3381
        %v3384 = vsel %vm2090, %v3364, %v3383
        %v3386 = vshrl.u32 %v1976, 16
        %v3388 = vrot.slane %v3386, 7
        %v3389 = vshll.u32 %v1976, 16
        %v3391 = vor.u32 %v3388, %v3389
        %v3392 = vsel %vm2090, %v3372, %v3391
        %v3394 = vshrl.u32 %v2468, 16
        %v3396 = vrot.slane %v3394, 7
        %v3397 = vshll.u32 %v2468, 16
        %v3399 = vor.u32 %v3396, %v3397
        %v3400 = vsel %vm2090, %v3380, %v3399
        %v3465 = vunpack.c.l.b16 %v2469
        %v3466 = vunpack.c.l.b16 %v2470
        %v3467 = vunpack.c.l.b16 %v2471
        %v3468 = vunpack.c.l.b16 %v2472
        %v3469 = vunpack.c.l.b16 %v2473
        %v3470 = vunpack.c.l.b16 %v2474
        %v3471 = vunpack.c.l.b16 %v2475
        %v3472 = vunpack.c.l.b16 %v2476
        %v3473 = vunpack.c.l.b16 %v2477
        %v3474 = vunpack.c.l.b16 %v2478
        %v3475 = vunpack.c.l.b16 %v2479
        %v3476 = vunpack.c.l.b16 %v2480
        %v3477 = vunpack.c.l.b16 %v2481
        %v3478 = vunpack.c.l.b16 %v2482
        %v3479 = vunpack.c.l.b16 %v2483
        %v3480 = vunpack.c.l.b16 %v2484
        %v3481 = vunpack.c.l.b16 %v2485
        %v3482 = vunpack.c.l.b16 %v2486
        %v3483 = vunpack.c.l.b16 %v2487
        %v3484 = vunpack.c.l.b16 %v2488
        %v3485 = vunpack.c.l.b16 %v2489
        %v3486 = vunpack.c.l.b16 %v2490
        %v3487 = vunpack.c.l.b16 %v2491
        %v3488 = vunpack.c.l.b16 %v2492
        %v3489 = vunpack.c.l.b16 %v2493
        %v3490 = vunpack.c.l.b16 %v2494
        %v3491 = vunpack.c.l.b16 %v2495
        %v3492 = vunpack.c.l.b16 %v2496
        %v3493 = vunpack.c.l.b16 %v2497
        %v3494 = vunpack.c.l.b16 %v2498
        %v3495 = vunpack.c.l.b16 %v2499
        %v3496 = vunpack.c.l.b16 %v2500
        %v3497 = vpack.c.b16 %v3466, %v3465
        %v3498 = vpack.c.b16 %v3468, %v3467
        %v3499 = vpack.c.b16 %v3470, %v3469
        %v3500 = vpack.c.b16 %v3472, %v3471
        %v3501 = vpack.c.b16 %v3474, %v3473
        %v3502 = vpack.c.b16 %v3476, %v3475
        %v3503 = vpack.c.b16 %v3478, %v3477
        %v3504 = vpack.c.b16 %v3480, %v3479
        %v3505 = vpack.c.b16 %v3482, %v3481
        %v3506 = vpack.c.b16 %v3484, %v3483
        %v3507 = vpack.c.b16 %v3486, %v3485
        %v3508 = vpack.c.b16 %v3488, %v3487
        %v3509 = vpack.c.b16 %v3490, %v3489
        %v3510 = vpack.c.b16 %v3492, %v3491
        %v3511 = vpack.c.b16 %v3494, %v3493
        %v3512 = vpack.c.b16 %v3496, %v3495
        %3529 = vmatprep.subr.bf16.mxu0 0
        %3530 = vmatpush1.bf16.msra.mxu0 %v3497
        %3531 = vmatprep.subr.bf16.mxu0 0
        %3532 = vmatpush1.bf16.msra.mxu0 %v3498
        %3533 = vmatprep.subr.bf16.mxu0 0
        %3534 = vmatpush1.bf16.msra.mxu0 %v3499
        %3535 = vmatprep.subr.bf16.mxu0 0
        %3536 = vmatpush1.bf16.msra.mxu0 %v3500
        %3537 = vmatprep.subr.bf16.mxu0 0
        %3538 = vmatpush1.bf16.msra.mxu0 %v3501
        %3539 = vmatprep.subr.bf16.mxu0 0
        %3540 = vmatpush1.bf16.msra.mxu0 %v3502
        %3541 = vmatprep.subr.bf16.mxu0 0
        %3542 = vmatpush1.bf16.msra.mxu0 %v3503
        %3543 = vmatprep.subr.bf16.mxu0 0
        %3544 = vmatpush1.bf16.msra.mxu0 %v3504
        %3545 = vmatprep.subr.bf16.mxu0 0
        %3546 = vmatpush1.bf16.msra.mxu0 %v3505
        %3547 = vmatprep.subr.bf16.mxu0 0
        %3548 = vmatpush1.bf16.msra.mxu0 %v3506
        %3549 = vmatprep.subr.bf16.mxu0 0
        %3550 = vmatpush1.bf16.msra.mxu0 %v3507
        %3551 = vmatprep.subr.bf16.mxu0 0
        %3552 = vmatpush1.bf16.msra.mxu0 %v3508
        %3553 = vmatprep.subr.bf16.mxu0 0
        %3554 = vmatpush1.bf16.msra.mxu0 %v3509
        %3555 = vmatprep.subr.bf16.mxu0 0
        %3556 = vmatpush1.bf16.msra.mxu0 %v3510
        %3557 = vmatprep.subr.bf16.mxu0 0
        %3558 = vmatpush1.bf16.msra.mxu0 %v3511
        %3559 = vmatprep.subr.bf16.mxu0 0
        %3560 = vmatpush1.bf16.msra.mxu0 %v3512
        %3561 = vmatprep.mubr.bf16.mxu0 %v3160
        %3562 = vmatmul.mubr.bf16.gmra.mrb[0].mxu0 %v3148
        %v3563 = vpop.f32.mrb[0].mxu0
        %v3564 = vadd.f32 %v3011, %v3563
        %v3565 = vpop.f32.mrb[0].mxu0
        %v3566 = vpop.f32.mrb[0].mxu0
        %v3567 = vadd.f32 %v3014, %v3566
        %v3568 = vpop.f32.mrb[0].mxu0
        %3569 = vmatprep.mubr.bf16.mxu0 %v3176
        %3570 = vmatmul.mubr.bf16.gmra.mrb[0].mxu0 %v3168
        %v3571 = vpop.f32.mrb[0].mxu0
        %v3572 = vadd.f32 %v3019, %v3571
        %v3573 = vpop.f32.mrb[0].mxu0
        %v3574 = vpop.f32.mrb[0].mxu0
        %v3575 = vadd.f32 %v3022, %v3574
        %v3576 = vpop.f32.mrb[0].mxu0
        %3577 = vmatprep.mubr.bf16.mxu0 %v3192
        %3578 = vmatmul.mubr.bf16.gmra.mrb[0].mxu0 %v3184
        %v3579 = vpop.f32.mrb[0].mxu0
        %v3580 = vadd.f32 %v3027, %v3579
        %v3581 = vpop.f32.mrb[0].mxu0
        %v3582 = vpop.f32.mrb[0].mxu0
        %v3583 = vadd.f32 %v3030, %v3582
        %v3584 = vpop.f32.mrb[0].mxu0
        %3585 = vmatprep.mubr.bf16.mxu0 %v3208
        %3586 = vmatmul.mubr.bf16.gmra.mrb[0].mxu0 %v3200
        %v3587 = vpop.f32.mrb[0].mxu0
        %v3588 = vadd.f32 %v3035, %v3587
        %v3589 = vpop.f32.mrb[0].mxu0
        %v3590 = vpop.f32.mrb[0].mxu0
        %v3591 = vadd.f32 %v3038, %v3590
        %v3592 = vpop.f32.mrb[0].mxu0
        %3593 = vmatprep.mubr.bf16.mxu0 %v3224
        %3594 = vmatmul.mubr.bf16.gmra.mrb[0].mxu0 %v3216
        %v3595 = vpop.f32.mrb[0].mxu0
        %v3596 = vadd.f32 %v3043, %v3595
        %v3597 = vpop.f32.mrb[0].mxu0
        %v3598 = vpop.f32.mrb[0].mxu0
        %v3599 = vadd.f32 %v3046, %v3598
        %v3600 = vpop.f32.mrb[0].mxu0
        %3601 = vmatprep.mubr.bf16.mxu0 %v3240
        %3602 = vmatmul.mubr.bf16.gmra.mrb[0].mxu0 %v3232
        %v3603 = vpop.f32.mrb[0].mxu0
        %v3604 = vadd.f32 %v3051, %v3603
        %v3605 = vpop.f32.mrb[0].mxu0
        %v3606 = vpop.f32.mrb[0].mxu0
        %v3607 = vadd.f32 %v3054, %v3606
        %v3608 = vpop.f32.mrb[0].mxu0
        %3609 = vmatprep.mubr.bf16.mxu0 %v3256
        %3610 = vmatmul.mubr.bf16.gmra.mrb[0].mxu0 %v3248
        %v3611 = vpop.f32.mrb[0].mxu0
        %v3612 = vadd.f32 %v3059, %v3611
        %v3613 = vpop.f32.mrb[0].mxu0
        %v3614 = vpop.f32.mrb[0].mxu0
        %v3615 = vadd.f32 %v3062, %v3614
        %v3616 = vpop.f32.mrb[0].mxu0
        %3617 = vmatprep.mubr.bf16.mxu0 %v3272
        %3618 = vmatmul.mubr.bf16.gmra.mrb[0].mxu0 %v3264
        %v3619 = vpop.f32.mrb[0].mxu0
        %v3620 = vadd.f32 %v3067, %v3619
        %v3621 = vpop.f32.mrb[0].mxu0
        %v3622 = vpop.f32.mrb[0].mxu0
        %v3623 = vadd.f32 %v3070, %v3622
        %v3624 = vpop.f32.mrb[0].mxu0
        %3625 = vmatprep.mubr.bf16.mxu0 %v3288
        %3626 = vmatmul.mubr.bf16.gmra.mrb[0].mxu0 %v3280
        %v3627 = vpop.f32.mrb[0].mxu0
        %v3628 = vadd.f32 %v3075, %v3627
        %v3629 = vpop.f32.mrb[0].mxu0
        %v3630 = vpop.f32.mrb[0].mxu0
        %v3631 = vadd.f32 %v3078, %v3630
        %v3632 = vpop.f32.mrb[0].mxu0
        %3633 = vmatprep.mubr.bf16.mxu0 %v3304
        %3634 = vmatmul.mubr.bf16.gmra.mrb[0].mxu0 %v3296
        %v3635 = vpop.f32.mrb[0].mxu0
        %v3636 = vadd.f32 %v3083, %v3635
        %v3637 = vpop.f32.mrb[0].mxu0
        %v3638 = vpop.f32.mrb[0].mxu0
        %v3639 = vadd.f32 %v3086, %v3638
        %v3640 = vpop.f32.mrb[0].mxu0
        %3641 = vmatprep.mubr.bf16.mxu0 %v3320
        %3642 = vmatmul.mubr.bf16.gmra.mrb[0].mxu0 %v3312
        %v3643 = vpop.f32.mrb[0].mxu0
        %v3644 = vadd.f32 %v3091, %v3643
        %v3645 = vpop.f32.mrb[0].mxu0
        %v3646 = vpop.f32.mrb[0].mxu0
        %v3647 = vadd.f32 %v3094, %v3646
        %v3648 = vpop.f32.mrb[0].mxu0
        %3649 = vmatprep.mubr.bf16.mxu0 %v3336
        %3650 = vmatmul.mubr.bf16.gmra.mrb[0].mxu0 %v3328
        %v3651 = vpop.f32.mrb[0].mxu0
        %v3652 = vadd.f32 %v3099, %v3651
        %v3653 = vpop.f32.mrb[0].mxu0
        %v3654 = vpop.f32.mrb[0].mxu0
        %v3655 = vadd.f32 %v3102, %v3654
        %v3656 = vpop.f32.mrb[0].mxu0
        %3657 = vmatprep.mubr.bf16.mxu0 %v3352
        %3658 = vmatmul.mubr.bf16.gmra.mrb[0].mxu0 %v3344
        %v3659 = vpop.f32.mrb[0].mxu0
        %v3660 = vadd.f32 %v3107, %v3659
        %v3661 = vpop.f32.mrb[0].mxu0
        %v3662 = vpop.f32.mrb[0].mxu0
        %v3663 = vadd.f32 %v3110, %v3662
        %v3664 = vpop.f32.mrb[0].mxu0
        %3665 = vmatprep.mubr.bf16.mxu0 %v3368
        %3666 = vmatmul.mubr.bf16.gmra.mrb[0].mxu0 %v3360
        %v3667 = vpop.f32.mrb[0].mxu0
        %v3668 = vadd.f32 %v3115, %v3667
        %v3669 = vpop.f32.mrb[0].mxu0
        %v3670 = vpop.f32.mrb[0].mxu0
        %v3671 = vadd.f32 %v3118, %v3670
        %v3672 = vpop.f32.mrb[0].mxu0
        %3673 = vmatprep.mubr.bf16.mxu0 %v3384
        %3674 = vmatmul.mubr.bf16.gmra.mrb[0].mxu0 %v3376
        %v3675 = vpop.f32.mrb[0].mxu0
        %v3676 = vadd.f32 %v3123, %v3675
        %v3677 = vpop.f32.mrb[0].mxu0
        %v3678 = vpop.f32.mrb[0].mxu0
        %v3679 = vadd.f32 %v3126, %v3678
        %v3680 = vpop.f32.mrb[0].mxu0
        %3681 = vmatprep.mubr.bf16.mxu0 %v3400
        %3682 = vmatmul.mubr.bf16.gmra.mrb[0].mxu0 %v3392
        %v3683 = vpop.f32.mrb[0].mxu0
        %v3684 = vadd.f32 %v3131, %v3683
        %v3685 = vpop.f32.mrb[0].mxu0
        %v3686 = vpop.f32.mrb[0].mxu0
        %v3687 = vadd.f32 %v3134, %v3686
        %v3688 = vpop.f32.mrb[0].mxu0
        %3689 = vdwg.mxu0
        %v3691 = vshrl.u32 %v2272, 16
        %v3693 = vshll.u32 %v2272, 16
        %v3695 = vrot.slane %v3693, 1
        %v3696 = vor.u32 %v3691, %v3695
        %v3698 = vshll.u32 %v2273, 16
        %v3700 = vrot.slane %v3698, 1
        %v3701 = vsel %vm1815, %v3696, %v3700
        %v3702 = vshrl.u32 %v2273, 16
        %v3704 = vor.u32 %v3702, %v3700
        %v3706 = vshll.u32 %v2274, 16
        %v3708 = vrot.slane %v3706, 1
        %v3709 = vsel %vm1815, %v3704, %v3708
        %v3710 = vshrl.u32 %v2274, 16
        %v3712 = vor.u32 %v3710, %v3708
        %v3714 = vshll.u32 %v2275, 16
        %v3716 = vrot.slane %v3714, 1
        %v3717 = vsel %vm1815, %v3712, %v3716
        %v3718 = vshrl.u32 %v2275, 16
        %v3720 = vor.u32 %v3718, %v3716
        %v3722 = vshll.u32 %v2276, 16
        %v3724 = vrot.slane %v3722, 1
        %v3725 = vsel %vm1815, %v3720, %v3724
        %v3726 = vshrl.u32 %v2276, 16
        %v3728 = vor.u32 %v3726, %v3724
        %v3730 = vshll.u32 %v2277, 16
        %v3732 = vrot.slane %v3730, 1
        %v3733 = vsel %vm1815, %v3728, %v3732
        %v3734 = vshrl.u32 %v2277, 16
        %v3736 = vor.u32 %v3734, %v3732
        %v3738 = vshll.u32 %v2278, 16
        %v3740 = vrot.slane %v3738, 1
        %v3741 = vsel %vm1815, %v3736, %v3740
        %v3742 = vshrl.u32 %v2278, 16
        %v3744 = vor.u32 %v3742, %v3740
        %v3746 = vshll.u32 %v2279, 16
        %v3748 = vrot.slane %v3746, 1
        %v3749 = vsel %vm1815, %v3744, %v3748
        %v3750 = vshrl.u32 %v2279, 16
        %v3752 = vor.u32 %v3750, %v3748
        %v3754 = vshll.u32 %v2280, 16
        %v3756 = vrot.slane %v3754, 1
        %v3757 = vsel %vm1815, %v3752, %v3756
        %v3758 = vshrl.u32 %v2280, 16
        %v3760 = vor.u32 %v3758, %v3756
        %v3762 = vshll.u32 %v2281, 16
        %v3764 = vrot.slane %v3762, 1
        %v3765 = vsel %vm1815, %v3760, %v3764
        %v3766 = vshrl.u32 %v2281, 16
        %v3768 = vor.u32 %v3766, %v3764
        %v3770 = vshll.u32 %v2282, 16
        %v3772 = vrot.slane %v3770, 1
        %v3773 = vsel %vm1815, %v3768, %v3772
        %v3774 = vshrl.u32 %v2282, 16
        %v3776 = vor.u32 %v3774, %v3772
        %v3778 = vshll.u32 %v2283, 16
        %v3780 = vrot.slane %v3778, 1
        %v3781 = vsel %vm1815, %v3776, %v3780
        %v3782 = vshrl.u32 %v2283, 16
        %v3784 = vor.u32 %v3782, %v3780
        %v3786 = vshll.u32 %v2284, 16
        %v3788 = vrot.slane %v3786, 1
        %v3789 = vsel %vm1815, %v3784, %v3788
        %v3790 = vshrl.u32 %v2284, 16
        %v3792 = vor.u32 %v3790, %v3788
        %v3794 = vshll.u32 %v2285, 16
        %v3796 = vrot.slane %v3794, 1
        %v3797 = vsel %vm1815, %v3792, %v3796
        %v3798 = vshrl.u32 %v2285, 16
        %v3800 = vor.u32 %v3798, %v3796
        %v3802 = vshll.u32 %v2286, 16
        %v3804 = vrot.slane %v3802, 1
        %v3805 = vsel %vm1815, %v3800, %v3804
        %v3806 = vshrl.u32 %v2286, 16
        %v3808 = vor.u32 %v3806, %v3804
        %v3810 = vshll.u32 %v2287, 16
        %v3812 = vrot.slane %v3810, 1
        %v3813 = vsel %vm1815, %v3808, %v3812
        %v3814 = vshrl.u32 %v2287, 16
        %v3816 = vor.u32 %v3814, %v3812
        %v3818 = vshll.u32 %v2288, 16
        %v3820 = vrot.slane %v3818, 1
        %v3821 = vsel %vm1815, %v3816, %v3820
        %v3838 = vld [vmem:[#allocation9 + $0x100] sm:$0xf]
        %v3839 = vld [vmem:[#allocation9 + $0x104] sm:$0xf]
        %v3840 = vld [vmem:[#allocation9 + $0x108] sm:$0xf]
        %v3841 = vld [vmem:[#allocation9 + $0x10c] sm:$0xf]
        %v3842 = vld [vmem:[#allocation9 + $0x110] sm:$0xf]
        %v3843 = vld [vmem:[#allocation9 + $0x114] sm:$0xf]
        %v3844 = vld [vmem:[#allocation9 + $0x118] sm:$0xf]
        %v3845 = vld [vmem:[#allocation9 + $0x11c] sm:$0xf]
        %v3846 = vld [vmem:[#allocation9 + $0x120] sm:$0xf]
        %v3847 = vld [vmem:[#allocation9 + $0x124] sm:$0xf]
        %v3848 = vld [vmem:[#allocation9 + $0x128] sm:$0xf]
        %v3849 = vld [vmem:[#allocation9 + $0x12c] sm:$0xf]
        %v3850 = vld [vmem:[#allocation9 + $0x130] sm:$0xf]
        %v3851 = vld [vmem:[#allocation9 + $0x134] sm:$0xf]
        %v3852 = vld [vmem:[#allocation9 + $0x138] sm:$0xf]
        %v3853 = vld [vmem:[#allocation9 + $0x13c] sm:$0xf]
        %v3854 = vld [vmem:[#allocation9 + $0x140] sm:$0xf]
        %v3855 = vld [vmem:[#allocation9 + $0x144] sm:$0xf]
        %v3856 = vld [vmem:[#allocation9 + $0x148] sm:$0xf]
        %v3857 = vld [vmem:[#allocation9 + $0x14c] sm:$0xf]
        %v3858 = vld [vmem:[#allocation9 + $0x150] sm:$0xf]
        %v3859 = vld [vmem:[#allocation9 + $0x154] sm:$0xf]
        %v3860 = vld [vmem:[#allocation9 + $0x158] sm:$0xf]
        %v3861 = vld [vmem:[#allocation9 + $0x15c] sm:$0xf]
        %v3862 = vld [vmem:[#allocation9 + $0x160] sm:$0xf]
        %v3863 = vld [vmem:[#allocation9 + $0x164] sm:$0xf]
        %v3864 = vld [vmem:[#allocation9 + $0x168] sm:$0xf]
        %v3865 = vld [vmem:[#allocation9 + $0x16c] sm:$0xf]
        %v3866 = vld [vmem:[#allocation9 + $0x170] sm:$0xf]
        %v3867 = vld [vmem:[#allocation9 + $0x174] sm:$0xf]
        %v3868 = vld [vmem:[#allocation9 + $0x178] sm:$0xf]
        %v3869 = vld [vmem:[#allocation9 + $0x17c] sm:$0xf]
        %v3902 = vunpack.c.l.b16 %v3838
        %v3903 = vunpack.c.l.b16 %v3839
        %v3904 = vunpack.c.l.b16 %v3840
        %v3905 = vunpack.c.l.b16 %v3841
        %v3906 = vunpack.c.l.b16 %v3842
        %v3907 = vunpack.c.l.b16 %v3843
        %v3908 = vunpack.c.l.b16 %v3844
        %v3909 = vunpack.c.l.b16 %v3845
        %v3910 = vunpack.c.l.b16 %v3846
        %v3911 = vunpack.c.l.b16 %v3847
        %v3912 = vunpack.c.l.b16 %v3848
        %v3913 = vunpack.c.l.b16 %v3849
        %v3914 = vunpack.c.l.b16 %v3850
        %v3915 = vunpack.c.l.b16 %v3851
        %v3916 = vunpack.c.l.b16 %v3852
        %v3917 = vunpack.c.l.b16 %v3853
        %v3918 = vunpack.c.l.b16 %v3854
        %v3919 = vunpack.c.l.b16 %v3855
        %v3920 = vunpack.c.l.b16 %v3856
        %v3921 = vunpack.c.l.b16 %v3857
        %v3922 = vunpack.c.l.b16 %v3858
        %v3923 = vunpack.c.l.b16 %v3859
        %v3924 = vunpack.c.l.b16 %v3860
        %v3925 = vunpack.c.l.b16 %v3861
        %v3926 = vunpack.c.l.b16 %v3862
        %v3927 = vunpack.c.l.b16 %v3863
        %v3928 = vunpack.c.l.b16 %v3864
        %v3929 = vunpack.c.l.b16 %v3865
        %v3930 = vunpack.c.l.b16 %v3866
        %v3931 = vunpack.c.l.b16 %v3867
        %v3932 = vunpack.c.l.b16 %v3868
        %v3933 = vunpack.c.l.b16 %v3869
        %v3934 = vpack.c.b16 %v3903, %v3902
        %v3935 = vpack.c.b16 %v3905, %v3904
        %v3936 = vpack.c.b16 %v3907, %v3906
        %v3937 = vpack.c.b16 %v3909, %v3908
        %v3938 = vpack.c.b16 %v3911, %v3910
        %v3939 = vpack.c.b16 %v3913, %v3912
        %v3940 = vpack.c.b16 %v3915, %v3914
        %v3941 = vpack.c.b16 %v3917, %v3916
        %v3942 = vpack.c.b16 %v3919, %v3918
        %v3943 = vpack.c.b16 %v3921, %v3920
        %v3944 = vpack.c.b16 %v3923, %v3922
        %v3945 = vpack.c.b16 %v3925, %v3924
        %v3946 = vpack.c.b16 %v3927, %v3926
        %v3947 = vpack.c.b16 %v3929, %v3928
        %v3948 = vpack.c.b16 %v3931, %v3930
        %v3949 = vpack.c.b16 %v3933, %v3932
        %3966 = vmatprep.subr.bf16.mxu0 0
        %3967 = vmatpush1.bf16.msra.mxu0 %v3934
        %3968 = vmatprep.subr.bf16.mxu0 0
        %3969 = vmatpush1.bf16.msra.mxu0 %v3935
        %3970 = vmatprep.subr.bf16.mxu0 0
        %3971 = vmatpush1.bf16.msra.mxu0 %v3936
        %3972 = vmatprep.subr.bf16.mxu0 0
        %3973 = vmatpush1.bf16.msra.mxu0 %v3937
        %3974 = vmatprep.subr.bf16.mxu0 0
        %3975 = vmatpush1.bf16.msra.mxu0 %v3938
        %3976 = vmatprep.subr.bf16.mxu0 0
        %3977 = vmatpush1.bf16.msra.mxu0 %v3939
        %3978 = vmatprep.subr.bf16.mxu0 0
        %3979 = vmatpush1.bf16.msra.mxu0 %v3940
        %3980 = vmatprep.subr.bf16.mxu0 0
        %3981 = vmatpush1.bf16.msra.mxu0 %v3941
        %3982 = vmatprep.subr.bf16.mxu0 0
        %3983 = vmatpush1.bf16.msra.mxu0 %v3942
        %3984 = vmatprep.subr.bf16.mxu0 0
        %3985 = vmatpush1.bf16.msra.mxu0 %v3943
        %3986 = vmatprep.subr.bf16.mxu0 0
        %3987 = vmatpush1.bf16.msra.mxu0 %v3944
        %3988 = vmatprep.subr.bf16.mxu0 0
        %3989 = vmatpush1.bf16.msra.mxu0 %v3945
        %3990 = vmatprep.subr.bf16.mxu0 0
        %3991 = vmatpush1.bf16.msra.mxu0 %v3946
        %3992 = vmatprep.subr.bf16.mxu0 0
        %3993 = vmatpush1.bf16.msra.mxu0 %v3947
        %3994 = vmatprep.subr.bf16.mxu0 0
        %3995 = vmatpush1.bf16.msra.mxu0 %v3948
        %3996 = vmatprep.subr.bf16.mxu0 0
        %3997 = vmatpush1.bf16.msra.mxu0 %v3949
        %3998 = vmatprep.mubr.bf16.mxu0 %v3701
        %3999 = vmatmul.mubr.bf16.gmra.mrb[0].mxu0 %v1654
        %v4000 = vpop.f32.mrb[0].mxu0
        %v4001 = vadd.f32 0.0, %v4000
        %v4002 = vpop.f32.mrb[0].mxu0
        %v4003 = vpop.f32.mrb[0].mxu0
        %v4004 = vadd.f32 0.0, %v4003
        %v4005 = vpop.f32.mrb[0].mxu0
        %4006 = vmatprep.mubr.bf16.mxu0 %v3709
        %4007 = vmatmul.mubr.bf16.gmra.mrb[0].mxu0 %v1655
        %v4008 = vpop.f32.mrb[0].mxu0
        %v4009 = vadd.f32 0.0, %v4008
        %v4010 = vpop.f32.mrb[0].mxu0
        %v4011 = vpop.f32.mrb[0].mxu0
        %v4012 = vadd.f32 0.0, %v4011
        %v4013 = vpop.f32.mrb[0].mxu0
        %4014 = vmatprep.mubr.bf16.mxu0 %v3717
        %4015 = vmatmul.mubr.bf16.gmra.mrb[0].mxu0 %v1656
        %v4016 = vpop.f32.mrb[0].mxu0
        %v4017 = vadd.f32 0.0, %v4016
        %v4018 = vpop.f32.mrb[0].mxu0
        %v4019 = vpop.f32.mrb[0].mxu0
        %v4020 = vadd.f32 0.0, %v4019
        %v4021 = vpop.f32.mrb[0].mxu0
        %4022 = vmatprep.mubr.bf16.mxu0 %v3725
        %4023 = vmatmul.mubr.bf16.gmra.mrb[0].mxu0 %v1657
        %v4024 = vpop.f32.mrb[0].mxu0
        %v4025 = vadd.f32 0.0, %v4024
        %v4026 = vpop.f32.mrb[0].mxu0
        %v4027 = vpop.f32.mrb[0].mxu0
        %v4028 = vadd.f32 0.0, %v4027
        %v4029 = vpop.f32.mrb[0].mxu0
        %4030 = vmatprep.mubr.bf16.mxu0 %v3733
        %4031 = vmatmul.mubr.bf16.gmra.mrb[0].mxu0 %v1658
        %v4032 = vpop.f32.mrb[0].mxu0
        %v4033 = vadd.f32 0.0, %v4032
        %v4034 = vpop.f32.mrb[0].mxu0
        %v4035 = vpop.f32.mrb[0].mxu0
        %v4036 = vadd.f32 0.0, %v4035
        %v4037 = vpop.f32.mrb[0].mxu0
        %4038 = vmatprep.mubr.bf16.mxu0 %v3741
        %4039 = vmatmul.mubr.bf16.gmra.mrb[0].mxu0 %v1659
        %v4040 = vpop.f32.mrb[0].mxu0
        %v4041 = vadd.f32 0.0, %v4040
        %v4042 = vpop.f32.mrb[0].mxu0
        %v4043 = vpop.f32.mrb[0].mxu0
        %v4044 = vadd.f32 0.0, %v4043
        %v4045 = vpop.f32.mrb[0].mxu0
        %4046 = vmatprep.mubr.bf16.mxu0 %v3749
        %4047 = vmatmul.mubr.bf16.gmra.mrb[0].mxu0 %v1660
        %v4048 = vpop.f32.mrb[0].mxu0
        %v4049 = vadd.f32 0.0, %v4048
        %v4050 = vpop.f32.mrb[0].mxu0
        %v4051 = vpop.f32.mrb[0].mxu0
        %v4052 = vadd.f32 0.0, %v4051
        %v4053 = vpop.f32.mrb[0].mxu0
        %4054 = vmatprep.mubr.bf16.mxu0 %v3757
        %4055 = vmatmul.mubr.bf16.gmra.mrb[0].mxu0 %v1661
        %v4056 = vpop.f32.mrb[0].mxu0
        %v4057 = vadd.f32 0.0, %v4056
        %v4058 = vpop.f32.mrb[0].mxu0
        %v4059 = vpop.f32.mrb[0].mxu0
        %v4060 = vadd.f32 0.0, %v4059
        %v4061 = vpop.f32.mrb[0].mxu0
        %4062 = vmatprep.mubr.bf16.mxu0 %v3765
        %4063 = vmatmul.mubr.bf16.gmra.mrb[0].mxu0 %v1662
        %v4064 = vpop.f32.mrb[0].mxu0
        %v4065 = vadd.f32 0.0, %v4064
        %v4066 = vpop.f32.mrb[0].mxu0
        %v4067 = vpop.f32.mrb[0].mxu0
        %v4068 = vadd.f32 0.0, %v4067
        %v4069 = vpop.f32.mrb[0].mxu0
        %4070 = vmatprep.mubr.bf16.mxu0 %v3773
        %4071 = vmatmul.mubr.bf16.gmra.mrb[0].mxu0 %v1663
        %v4072 = vpop.f32.mrb[0].mxu0
        %v4073 = vadd.f32 0.0, %v4072
        %v4074 = vpop.f32.mrb[0].mxu0
        %v4075 = vpop.f32.mrb[0].mxu0
        %v4076 = vadd.f32 0.0, %v4075
        %v4077 = vpop.f32.mrb[0].mxu0
        %4078 = vmatprep.mubr.bf16.mxu0 %v3781
        %4079 = vmatmul.mubr.bf16.gmra.mrb[0].mxu0 %v1664
        %v4080 = vpop.f32.mrb[0].mxu0
        %v4081 = vadd.f32 0.0, %v4080
        %v4082 = vpop.f32.mrb[0].mxu0
        %v4083 = vpop.f32.mrb[0].mxu0
        %v4084 = vadd.f32 0.0, %v4083
        %v4085 = vpop.f32.mrb[0].mxu0
        %4086 = vmatprep.mubr.bf16.mxu0 %v3789
        %4087 = vmatmul.mubr.bf16.gmra.mrb[0].mxu0 %v1665
        %v4088 = vpop.f32.mrb[0].mxu0
        %v4089 = vadd.f32 0.0, %v4088
        %v4090 = vpop.f32.mrb[0].mxu0
        %v4091 = vpop.f32.mrb[0].mxu0
        %v4092 = vadd.f32 0.0, %v4091
        %v4093 = vpop.f32.mrb[0].mxu0
        %4094 = vmatprep.mubr.bf16.mxu0 %v3797
        %4095 = vmatmul.mubr.bf16.gmra.mrb[0].mxu0 %v1666
        %v4096 = vpop.f32.mrb[0].mxu0
        %v4097 = vadd.f32 0.0, %v4096
        %v4098 = vpop.f32.mrb[0].mxu0
        %v4099 = vpop.f32.mrb[0].mxu0
        %v4100 = vadd.f32 0.0, %v4099
        %v4101 = vpop.f32.mrb[0].mxu0
        %4102 = vmatprep.mubr.bf16.mxu0 %v3805
        %4103 = vmatmul.mubr.bf16.gmra.mrb[0].mxu0 %v1667
        %v4104 = vpop.f32.mrb[0].mxu0
        %v4105 = vadd.f32 0.0, %v4104
        %v4106 = vpop.f32.mrb[0].mxu0
        %v4107 = vpop.f32.mrb[0].mxu0
        %v4108 = vadd.f32 0.0, %v4107
        %v4109 = vpop.f32.mrb[0].mxu0
        %4110 = vmatprep.mubr.bf16.mxu0 %v3813
        %4111 = vmatmul.mubr.bf16.gmra.mrb[0].mxu0 %v1668
        %v4112 = vpop.f32.mrb[0].mxu0
        %v4113 = vadd.f32 0.0, %v4112
        %v4114 = vpop.f32.mrb[0].mxu0
        %v4115 = vpop.f32.mrb[0].mxu0
        %v4116 = vadd.f32 0.0, %v4115
        %v4117 = vpop.f32.mrb[0].mxu0
        %4118 = vmatprep.mubr.bf16.mxu0 %v3821
        %4119 = vmatmul.mubr.bf16.gmra.mrb[0].mxu0 %v1669
        %v4120 = vpop.f32.mrb[0].mxu0
        %v4121 = vadd.f32 0.0, %v4120
        %v4122 = vpop.f32.mrb[0].mxu0
        %v4123 = vpop.f32.mrb[0].mxu0
        %v4124 = vadd.f32 0.0, %v4123
        %v4125 = vpop.f32.mrb[0].mxu0
        %4126 = vdwg.mxu0
        %v4127 = vadd.f32 %v3564, %v4001
        %v4128 = vadd.f32 %v3567, %v4004
        %v4129 = vadd.f32 %v3572, %v4009
        %v4130 = vadd.f32 %v3575, %v4012
        %v4131 = vadd.f32 %v3580, %v4017
        %v4132 = vadd.f32 %v3583, %v4020
        %v4133 = vadd.f32 %v3588, %v4025
        %v4134 = vadd.f32 %v3591, %v4028
        %v4135 = vadd.f32 %v3596, %v4033
        %v4136 = vadd.f32 %v3599, %v4036
        %v4137 = vadd.f32 %v3604, %v4041
        %v4138 = vadd.f32 %v3607, %v4044
        %v4139 = vadd.f32 %v3612, %v4049
        %v4140 = vadd.f32 %v3615, %v4052
        %v4141 = vadd.f32 %v3620, %v4057
        %v4142 = vadd.f32 %v3623, %v4060
        %v4143 = vadd.f32 %v3628, %v4065
        %v4144 = vadd.f32 %v3631, %v4068
        %v4145 = vadd.f32 %v3636, %v4073
        %v4146 = vadd.f32 %v3639, %v4076
        %v4147 = vadd.f32 %v3644, %v4081
        %v4148 = vadd.f32 %v3647, %v4084
        %v4149 = vadd.f32 %v3652, %v4089
        %v4150 = vadd.f32 %v3655, %v4092
        %v4151 = vadd.f32 %v3660, %v4097
        %v4152 = vadd.f32 %v3663, %v4100
        %v4153 = vadd.f32 %v3668, %v4105
        %v4154 = vadd.f32 %v3671, %v4108
        %v4155 = vadd.f32 %v3676, %v4113
        %v4156 = vadd.f32 %v3679, %v4116
        %v4157 = vadd.f32 %v3684, %v4121
        %v4158 = vadd.f32 %v3687, %v4124
        %v4160 = vshll.u32 %v2253, 16
        %v4162 = vrot.slane %v4160, 1
        %v4163 = vsel %vm1815, %v2468, %v4162
        %v4164 = vshrl.u32 %v2253, 16
        %v4166 = vor.u32 %v4164, %v4162
        %v4168 = vshll.u32 %v2290, 16
        %v4170 = vrot.slane %v4168, 1
        %v4171 = vsel %vm1815, %v4166, %v4170
        %v4172 = vshrl.u32 %v2290, 16
        %v4174 = vor.u32 %v4172, %v4170
        %v4175 = vld [vmem:[#allocation9 + $0x180] sm:$0xf]
        %v4176 = vld [vmem:[#allocation9 + $0x184] sm:$0xf]
        %v4177 = vld [vmem:[#allocation9 + $0x188] sm:$0xf]
        %v4178 = vld [vmem:[#allocation9 + $0x18c] sm:$0xf]
        %v4179 = vld [vmem:[#allocation9 + $0x190] sm:$0xf]
        %v4180 = vld [vmem:[#allocation9 + $0x194] sm:$0xf]
        %v4181 = vld [vmem:[#allocation9 + $0x198] sm:$0xf]
        %v4182 = vld [vmem:[#allocation9 + $0x19c] sm:$0xf]
        %v4183 = vld [vmem:[#allocation9 + $0x1a0] sm:$0xf]
        %v4184 = vld [vmem:[#allocation9 + $0x1a4] sm:$0xf]
        %v4185 = vld [vmem:[#allocation9 + $0x1a8] sm:$0xf]
        %v4186 = vld [vmem:[#allocation9 + $0x1ac] sm:$0xf]
        %v4187 = vld [vmem:[#allocation9 + $0x1b0] sm:$0xf]
        %v4188 = vld [vmem:[#allocation9 + $0x1b4] sm:$0xf]
        %v4189 = vld [vmem:[#allocation9 + $0x1b8] sm:$0xf]
        %v4190 = vld [vmem:[#allocation9 + $0x1bc] sm:$0xf]
        %v4191 = vld [vmem:[#allocation9 + $0x1c0] sm:$0xf]
        %v4192 = vld [vmem:[#allocation9 + $0x1c4] sm:$0xf]
        %v4193 = vld [vmem:[#allocation9 + $0x1c8] sm:$0xf]
        %v4194 = vld [vmem:[#allocation9 + $0x1cc] sm:$0xf]
        %v4195 = vld [vmem:[#allocation9 + $0x1d0] sm:$0xf]
        %v4196 = vld [vmem:[#allocation9 + $0x1d4] sm:$0xf]
        %v4197 = vld [vmem:[#allocation9 + $0x1d8] sm:$0xf]
        %v4198 = vld [vmem:[#allocation9 + $0x1dc] sm:$0xf]
        %v4199 = vld [vmem:[#allocation9 + $0x1e0] sm:$0xf]
        %v4200 = vld [vmem:[#allocation9 + $0x1e4] sm:$0xf]
        %v4201 = vld [vmem:[#allocation9 + $0x1e8] sm:$0xf]
        %v4202 = vld [vmem:[#allocation9 + $0x1ec] sm:$0xf]
        %v4203 = vld [vmem:[#allocation9 + $0x1f0] sm:$0xf]
        %v4204 = vld [vmem:[#allocation9 + $0x1f4] sm:$0xf]
        %v4205 = vld [vmem:[#allocation9 + $0x1f8] sm:$0xf]
        %v4206 = vld [vmem:[#allocation9 + $0x1fc] sm:$0xf]
        %v4208 = vshrl.u32 %v2291, 16
        %v4210 = vrot.slane %v4208, 7
        %v4212 = vshrl.u32 %v2292, 16
        %v4214 = vrot.slane %v4212, 7
        %v4215 = vshll.u32 %v2292, 16
        %v4217 = vor.u32 %v4214, %v4215
        %v4218 = vsel %vm2090, %v4210, %v4217
        %v4220 = vshrl.u32 %v2360, 16
        %v4222 = vrot.slane %v4220, 7
        %v4223 = vsel %vm2090, %v4222, %v3191
        %v4225 = vshrl.u32 %v2293, 16
        %v4227 = vrot.slane %v4225, 7
        %v4228 = vshll.u32 %v2293, 16
        %v4230 = vor.u32 %v4227, %v4228
        %v4231 = vsel %vm2090, %v4214, %v4230
        %v4233 = vshrl.u32 %v2294, 16
        %v4235 = vrot.slane %v4233, 7
        %v4236 = vshll.u32 %v2294, 16
        %v4238 = vor.u32 %v4235, %v4236
        %v4239 = vsel %vm2090, %v4227, %v4238
        %v4241 = vshrl.u32 %v2295, 16
        %v4243 = vrot.slane %v4241, 7
        %v4244 = vshll.u32 %v2295, 16
        %v4246 = vor.u32 %v4243, %v4244
        %v4247 = vsel %vm2090, %v4235, %v4246
        %v4249 = vshrl.u32 %v2296, 16
        %v4251 = vrot.slane %v4249, 7
        %v4252 = vshll.u32 %v2296, 16
        %v4254 = vor.u32 %v4251, %v4252
        %v4255 = vsel %vm2090, %v4243, %v4254
        %v4257 = vshrl.u32 %v2297, 16
        %v4259 = vrot.slane %v4257, 7
        %v4260 = vshll.u32 %v2297, 16
        %v4262 = vor.u32 %v4259, %v4260
        %v4263 = vsel %vm2090, %v4251, %v4262
        %v4265 = vshrl.u32 %v2298, 16
        %v4267 = vrot.slane %v4265, 7
        %v4268 = vshll.u32 %v2298, 16
        %v4270 = vor.u32 %v4267, %v4268
        %v4271 = vsel %vm2090, %v4259, %v4270
        %v4273 = vshrl.u32 %v2299, 16
        %v4275 = vrot.slane %v4273, 7
        %v4276 = vshll.u32 %v2299, 16
        %v4278 = vor.u32 %v4275, %v4276
        %v4279 = vsel %vm2090, %v4267, %v4278
        %v4281 = vshrl.u32 %v2300, 16
        %v4283 = vrot.slane %v4281, 7
        %v4284 = vshll.u32 %v2300, 16
        %v4286 = vor.u32 %v4283, %v4284
        %v4287 = vsel %vm2090, %v4275, %v4286
        %v4289 = vshrl.u32 %v2301, 16
        %v4291 = vrot.slane %v4289, 7
        %v4292 = vshll.u32 %v2301, 16
        %v4294 = vor.u32 %v4291, %v4292
        %v4295 = vsel %vm2090, %v4283, %v4294
        %v4297 = vshrl.u32 %v2302, 16
        %v4299 = vrot.slane %v4297, 7
        %v4300 = vshll.u32 %v2302, 16
        %v4302 = vor.u32 %v4299, %v4300
        %v4303 = vsel %vm2090, %v4291, %v4302
        %v4305 = vshrl.u32 %v2303, 16
        %v4307 = vrot.slane %v4305, 7
        %v4308 = vshll.u32 %v2303, 16
        %v4310 = vor.u32 %v4307, %v4308
        %v4311 = vsel %vm2090, %v4299, %v4310
        %v4313 = vshrl.u32 %v2304, 16
        %v4315 = vrot.slane %v4313, 7
        %v4316 = vshll.u32 %v2304, 16
        %v4318 = vor.u32 %v4315, %v4316
        %v4319 = vsel %vm2090, %v4307, %v4318
        %v4321 = vshrl.u32 %v2305, 16
        %v4323 = vrot.slane %v4321, 7
        %v4324 = vshll.u32 %v2305, 16
        %v4326 = vor.u32 %v4323, %v4324
        %v4327 = vsel %vm2090, %v4315, %v4326
        %v4329 = vshrl.u32 %v4163, 16
        %v4331 = vrot.slane %v4329, 7
        %v4332 = vshll.u32 %v4163, 16
        %v4334 = vor.u32 %v4331, %v4332
        %v4335 = vsel %vm2090, %v3380, %v4334
        %v4337 = vshrl.u32 %v2306, 16
        %v4339 = vrot.slane %v4337, 7
        %v4340 = vshll.u32 %v2306, 16
        %v4342 = vor.u32 %v4339, %v4340
        %v4343 = vsel %vm2090, %v4323, %v4342
        %v4345 = vshrl.u32 %v4171, 16
        %v4347 = vrot.slane %v4345, 7
        %v4348 = vshll.u32 %v4171, 16
        %v4350 = vor.u32 %v4347, %v4348
        %v4351 = vsel %vm2090, %v4331, %v4350
        %v4353 = vshrl.u32 %v2307, 16
        %v4355 = vrot.slane %v4353, 7
        %v4356 = vshll.u32 %v2307, 16
        %v4358 = vor.u32 %v4355, %v4356
        %v4359 = vsel %vm2090, %v4339, %v4358
        %v4361 = vshrl.u32 %v4174, 16
        %v4363 = vrot.slane %v4361, 7
        %v4364 = vshll.u32 %v4174, 16
        %v4366 = vor.u32 %v4363, %v4364
        %v4367 = vsel %vm2090, %v4347, %v4366
        %v4420 = vunpack.c.l.b16 %v4175
        %v4421 = vunpack.c.l.b16 %v4176
        %v4422 = vunpack.c.l.b16 %v4177
        %v4423 = vunpack.c.l.b16 %v4178
        %v4424 = vunpack.c.l.b16 %v4179
        %v4425 = vunpack.c.l.b16 %v4180
        %v4426 = vunpack.c.l.b16 %v4181
        %v4427 = vunpack.c.l.b16 %v4182
        %v4428 = vunpack.c.l.b16 %v4183
        %v4429 = vunpack.c.l.b16 %v4184
        %v4430 = vunpack.c.l.b16 %v4185
        %v4431 = vunpack.c.l.b16 %v4186
        %v4432 = vunpack.c.l.b16 %v4187
        %v4433 = vunpack.c.l.b16 %v4188
        %v4434 = vunpack.c.l.b16 %v4189
        %v4435 = vunpack.c.l.b16 %v4190
        %v4436 = vunpack.c.l.b16 %v4191
        %v4437 = vunpack.c.l.b16 %v4192
        %v4438 = vunpack.c.l.b16 %v4193
        %v4439 = vunpack.c.l.b16 %v4194
        %v4440 = vunpack.c.l.b16 %v4195
        %v4441 = vunpack.c.l.b16 %v4196
        %v4442 = vunpack.c.l.b16 %v4197
        %v4443 = vunpack.c.l.b16 %v4198
        %v4444 = vunpack.c.l.b16 %v4199
        %v4445 = vunpack.c.l.b16 %v4200
        %v4446 = vunpack.c.l.b16 %v4201
        %v4447 = vunpack.c.l.b16 %v4202
        %v4448 = vunpack.c.l.b16 %v4203
        %v4449 = vunpack.c.l.b16 %v4204
        %v4450 = vunpack.c.l.b16 %v4205
        %v4451 = vunpack.c.l.b16 %v4206
        %v4452 = vpack.c.b16 %v4421, %v4420
        %v4453 = vpack.c.b16 %v4423, %v4422
        %v4454 = vpack.c.b16 %v4425, %v4424
        %v4455 = vpack.c.b16 %v4427, %v4426
        %v4456 = vpack.c.b16 %v4429, %v4428
        %v4457 = vpack.c.b16 %v4431, %v4430
        %v4458 = vpack.c.b16 %v4433, %v4432
        %v4459 = vpack.c.b16 %v4435, %v4434
        %v4460 = vpack.c.b16 %v4437, %v4436
        %v4461 = vpack.c.b16 %v4439, %v4438
        %v4462 = vpack.c.b16 %v4441, %v4440
        %v4463 = vpack.c.b16 %v4443, %v4442
        %v4464 = vpack.c.b16 %v4445, %v4444
        %v4465 = vpack.c.b16 %v4447, %v4446
        %v4466 = vpack.c.b16 %v4449, %v4448
        %v4467 = vpack.c.b16 %v4451, %v4450
        %4484 = vmatprep.subr.bf16.mxu0 0
        %4485 = vmatpush1.bf16.msra.mxu0 %v4452
        %4486 = vmatprep.subr.bf16.mxu0 0
        %4487 = vmatpush1.bf16.msra.mxu0 %v4453
        %4488 = vmatprep.subr.bf16.mxu0 0
        %4489 = vmatpush1.bf16.msra.mxu0 %v4454
        %4490 = vmatprep.subr.bf16.mxu0 0
        %4491 = vmatpush1.bf16.msra.mxu0 %v4455
        %4492 = vmatprep.subr.bf16.mxu0 0
        %4493 = vmatpush1.bf16.msra.mxu0 %v4456
        %4494 = vmatprep.subr.bf16.mxu0 0
        %4495 = vmatpush1.bf16.msra.mxu0 %v4457
        %4496 = vmatprep.subr.bf16.mxu0 0
        %4497 = vmatpush1.bf16.msra.mxu0 %v4458
        %4498 = vmatprep.subr.bf16.mxu0 0
        %4499 = vmatpush1.bf16.msra.mxu0 %v4459
        %4500 = vmatprep.subr.bf16.mxu0 0
        %4501 = vmatpush1.bf16.msra.mxu0 %v4460
        %4502 = vmatprep.subr.bf16.mxu0 0
        %4503 = vmatpush1.bf16.msra.mxu0 %v4461
        %4504 = vmatprep.subr.bf16.mxu0 0
        %4505 = vmatpush1.bf16.msra.mxu0 %v4462
        %4506 = vmatprep.subr.bf16.mxu0 0
        %4507 = vmatpush1.bf16.msra.mxu0 %v4463
        %4508 = vmatprep.subr.bf16.mxu0 0
        %4509 = vmatpush1.bf16.msra.mxu0 %v4464
        %4510 = vmatprep.subr.bf16.mxu0 0
        %4511 = vmatpush1.bf16.msra.mxu0 %v4465
        %4512 = vmatprep.subr.bf16.mxu0 0
        %4513 = vmatpush1.bf16.msra.mxu0 %v4466
        %4514 = vmatprep.subr.bf16.mxu0 0
        %4515 = vmatpush1.bf16.msra.mxu0 %v4467
        %4516 = vmatprep.mubr.bf16.mxu0 %v4223
        %4517 = vmatmul.mubr.bf16.gmra.mrb[0].mxu0 %v4218
        %v4518 = vpop.f32.mrb[0].mxu0
        %v4519 = vadd.f32 0.0, %v4518
        %v4520 = vpop.f32.mrb[0].mxu0
        %v4521 = vpop.f32.mrb[0].mxu0
        %v4522 = vadd.f32 0.0, %v4521
        %v4523 = vpop.f32.mrb[0].mxu0
        %4524 = vmatprep.mubr.bf16.mxu0 %v3208
        %4525 = vmatmul.mubr.bf16.gmra.mrb[0].mxu0 %v4231
        %v4526 = vpop.f32.mrb[0].mxu0
        %v4527 = vadd.f32 0.0, %v4526
        %v4528 = vpop.f32.mrb[0].mxu0
        %v4529 = vpop.f32.mrb[0].mxu0
        %v4530 = vadd.f32 0.0, %v4529
        %v4531 = vpop.f32.mrb[0].mxu0
        %4532 = vmatprep.mubr.bf16.mxu0 %v3224
        %4533 = vmatmul.mubr.bf16.gmra.mrb[0].mxu0 %v4239
        %v4534 = vpop.f32.mrb[0].mxu0
        %v4535 = vadd.f32 0.0, %v4534
        %v4536 = vpop.f32.mrb[0].mxu0
        %v4537 = vpop.f32.mrb[0].mxu0
        %v4538 = vadd.f32 0.0, %v4537
        %v4539 = vpop.f32.mrb[0].mxu0
        %4540 = vmatprep.mubr.bf16.mxu0 %v3240
        %4541 = vmatmul.mubr.bf16.gmra.mrb[0].mxu0 %v4247
        %v4542 = vpop.f32.mrb[0].mxu0
        %v4543 = vadd.f32 0.0, %v4542
        %v4544 = vpop.f32.mrb[0].mxu0
        %v4545 = vpop.f32.mrb[0].mxu0
        %v4546 = vadd.f32 0.0, %v4545
        %v4547 = vpop.f32.mrb[0].mxu0
        %4548 = vmatprep.mubr.bf16.mxu0 %v3256
        %4549 = vmatmul.mubr.bf16.gmra.mrb[0].mxu0 %v4255
        %v4550 = vpop.f32.mrb[0].mxu0
        %v4551 = vadd.f32 0.0, %v4550
        %v4552 = vpop.f32.mrb[0].mxu0
        %v4553 = vpop.f32.mrb[0].mxu0
        %v4554 = vadd.f32 0.0, %v4553
        %v4555 = vpop.f32.mrb[0].mxu0
        %4556 = vmatprep.mubr.bf16.mxu0 %v3272
        %4557 = vmatmul.mubr.bf16.gmra.mrb[0].mxu0 %v4263
        %v4558 = vpop.f32.mrb[0].mxu0
        %v4559 = vadd.f32 0.0, %v4558
        %v4560 = vpop.f32.mrb[0].mxu0
        %v4561 = vpop.f32.mrb[0].mxu0
        %v4562 = vadd.f32 0.0, %v4561
        %v4563 = vpop.f32.mrb[0].mxu0
        %4564 = vmatprep.mubr.bf16.mxu0 %v3288
        %4565 = vmatmul.mubr.bf16.gmra.mrb[0].mxu0 %v4271
        %v4566 = vpop.f32.mrb[0].mxu0
        %v4567 = vadd.f32 0.0, %v4566
        %v4568 = vpop.f32.mrb[0].mxu0
        %v4569 = vpop.f32.mrb[0].mxu0
        %v4570 = vadd.f32 0.0, %v4569
        %v4571 = vpop.f32.mrb[0].mxu0
        %4572 = vmatprep.mubr.bf16.mxu0 %v3304
        %4573 = vmatmul.mubr.bf16.gmra.mrb[0].mxu0 %v4279
        %v4574 = vpop.f32.mrb[0].mxu0
        %v4575 = vadd.f32 0.0, %v4574
        %v4576 = vpop.f32.mrb[0].mxu0
        %v4577 = vpop.f32.mrb[0].mxu0
        %v4578 = vadd.f32 0.0, %v4577
        %v4579 = vpop.f32.mrb[0].mxu0
        %4580 = vmatprep.mubr.bf16.mxu0 %v3320
        %4581 = vmatmul.mubr.bf16.gmra.mrb[0].mxu0 %v4287
        %v4582 = vpop.f32.mrb[0].mxu0
        %v4583 = vadd.f32 0.0, %v4582
        %v4584 = vpop.f32.mrb[0].mxu0
        %v4585 = vpop.f32.mrb[0].mxu0
        %v4586 = vadd.f32 0.0, %v4585
        %v4587 = vpop.f32.mrb[0].mxu0
        %4588 = vmatprep.mubr.bf16.mxu0 %v3336
        %4589 = vmatmul.mubr.bf16.gmra.mrb[0].mxu0 %v4295
        %v4590 = vpop.f32.mrb[0].mxu0
        %v4591 = vadd.f32 0.0, %v4590
        %v4592 = vpop.f32.mrb[0].mxu0
        %v4593 = vpop.f32.mrb[0].mxu0
        %v4594 = vadd.f32 0.0, %v4593
        %v4595 = vpop.f32.mrb[0].mxu0
        %4596 = vmatprep.mubr.bf16.mxu0 %v3352
        %4597 = vmatmul.mubr.bf16.gmra.mrb[0].mxu0 %v4303
        %v4598 = vpop.f32.mrb[0].mxu0
        %v4599 = vadd.f32 0.0, %v4598
        %v4600 = vpop.f32.mrb[0].mxu0
        %v4601 = vpop.f32.mrb[0].mxu0
        %v4602 = vadd.f32 0.0, %v4601
        %v4603 = vpop.f32.mrb[0].mxu0
        %4604 = vmatprep.mubr.bf16.mxu0 %v3368
        %4605 = vmatmul.mubr.bf16.gmra.mrb[0].mxu0 %v4311
        %v4606 = vpop.f32.mrb[0].mxu0
        %v4607 = vadd.f32 0.0, %v4606
        %v4608 = vpop.f32.mrb[0].mxu0
        %v4609 = vpop.f32.mrb[0].mxu0
        %v4610 = vadd.f32 0.0, %v4609
        %v4611 = vpop.f32.mrb[0].mxu0
        %4612 = vmatprep.mubr.bf16.mxu0 %v3384
        %4613 = vmatmul.mubr.bf16.gmra.mrb[0].mxu0 %v4319
        %v4614 = vpop.f32.mrb[0].mxu0
        %v4615 = vadd.f32 0.0, %v4614
        %v4616 = vpop.f32.mrb[0].mxu0
        %v4617 = vpop.f32.mrb[0].mxu0
        %v4618 = vadd.f32 0.0, %v4617
        %v4619 = vpop.f32.mrb[0].mxu0
        %4620 = vmatprep.mubr.bf16.mxu0 %v4335
        %4621 = vmatmul.mubr.bf16.gmra.mrb[0].mxu0 %v4327
        %v4622 = vpop.f32.mrb[0].mxu0
        %v4623 = vadd.f32 0.0, %v4622
        %v4624 = vpop.f32.mrb[0].mxu0
        %v4625 = vpop.f32.mrb[0].mxu0
        %v4626 = vadd.f32 0.0, %v4625
        %v4627 = vpop.f32.mrb[0].mxu0
        %4628 = vmatprep.mubr.bf16.mxu0 %v4351
        %4629 = vmatmul.mubr.bf16.gmra.mrb[0].mxu0 %v4343
        %v4630 = vpop.f32.mrb[0].mxu0
        %v4631 = vadd.f32 0.0, %v4630
        %v4632 = vpop.f32.mrb[0].mxu0
        %v4633 = vpop.f32.mrb[0].mxu0
        %v4634 = vadd.f32 0.0, %v4633
        %v4635 = vpop.f32.mrb[0].mxu0
        %4636 = vmatprep.mubr.bf16.mxu0 %v4367
        %4637 = vmatmul.mubr.bf16.gmra.mrb[0].mxu0 %v4359
        %v4638 = vpop.f32.mrb[0].mxu0
        %v4639 = vadd.f32 0.0, %v4638
        %v4640 = vpop.f32.mrb[0].mxu0
        %v4641 = vpop.f32.mrb[0].mxu0
        %v4642 = vadd.f32 0.0, %v4641
        %v4643 = vpop.f32.mrb[0].mxu0
        %4644 = vdwg.mxu0
        %v4645 = vadd.f32 %v4127, %v4519
        %v4646 = vadd.f32 %v4128, %v4522
        %v4647 = vadd.f32 %v4129, %v4527
        %v4648 = vadd.f32 %v4130, %v4530
        %v4649 = vadd.f32 %v4131, %v4535
        %v4650 = vadd.f32 %v4132, %v4538
        %v4651 = vadd.f32 %v4133, %v4543
        %v4652 = vadd.f32 %v4134, %v4546
        %v4653 = vadd.f32 %v4135, %v4551
        %v4654 = vadd.f32 %v4136, %v4554
        %v4655 = vadd.f32 %v4137, %v4559
        %v4656 = vadd.f32 %v4138, %v4562
        %v4657 = vadd.f32 %v4139, %v4567
        %v4658 = vadd.f32 %v4140, %v4570
        %v4659 = vadd.f32 %v4141, %v4575
        %v4660 = vadd.f32 %v4142, %v4578
        %v4661 = vadd.f32 %v4143, %v4583
        %v4662 = vadd.f32 %v4144, %v4586
        %v4663 = vadd.f32 %v4145, %v4591
        %v4664 = vadd.f32 %v4146, %v4594
        %v4665 = vadd.f32 %v4147, %v4599
        %v4666 = vadd.f32 %v4148, %v4602
        %v4667 = vadd.f32 %v4149, %v4607
        %v4668 = vadd.f32 %v4150, %v4610
        %v4669 = vadd.f32 %v4151, %v4615
        %v4670 = vadd.f32 %v4152, %v4618
        %v4671 = vadd.f32 %v4153, %v4623
        %v4672 = vadd.f32 %v4154, %v4626
        %v4673 = vadd.f32 %v4155, %v4631
        %v4674 = vadd.f32 %v4156, %v4634
        %v4675 = vadd.f32 %v4157, %v4639
        %v4676 = vadd.f32 %v4158, %v4642
        %v4677 = vld [vmem:[#allocation9 + $0x200] sm:$0xf]
        %v4678 = vld [vmem:[#allocation9 + $0x204] sm:$0xf]
        %v4679 = vld [vmem:[#allocation9 + $0x208] sm:$0xf]
        %v4680 = vld [vmem:[#allocation9 + $0x20c] sm:$0xf]
        %v4681 = vld [vmem:[#allocation9 + $0x210] sm:$0xf]
        %v4682 = vld [vmem:[#allocation9 + $0x214] sm:$0xf]
        %v4683 = vld [vmem:[#allocation9 + $0x218] sm:$0xf]
        %v4684 = vld [vmem:[#allocation9 + $0x21c] sm:$0xf]
        %v4685 = vld [vmem:[#allocation9 + $0x220] sm:$0xf]
        %v4686 = vld [vmem:[#allocation9 + $0x224] sm:$0xf]
        %v4687 = vld [vmem:[#allocation9 + $0x228] sm:$0xf]
        %v4688 = vld [vmem:[#allocation9 + $0x22c] sm:$0xf]
        %v4689 = vld [vmem:[#allocation9 + $0x230] sm:$0xf]
        %v4690 = vld [vmem:[#allocation9 + $0x234] sm:$0xf]
        %v4691 = vld [vmem:[#allocation9 + $0x238] sm:$0xf]
        %v4692 = vld [vmem:[#allocation9 + $0x23c] sm:$0xf]
        %v4694 = vshrl.u32 %v2325, 16
        %v4696 = vshll.u32 %v2325, 16
        %v4698 = vrot.slane %v4696, 1
        %v4699 = vor.u32 %v4694, %v4698
        %v4701 = vshll.u32 %v2326, 16
        %v4703 = vrot.slane %v4701, 1
        %v4704 = vsel %vm1815, %v4699, %v4703
        %v4705 = vshrl.u32 %v2326, 16
        %v4707 = vor.u32 %v4705, %v4703
        %v4709 = vshll.u32 %v2327, 16
        %v4711 = vrot.slane %v4709, 1
        %v4712 = vsel %vm1815, %v4707, %v4711
        %v4713 = vshrl.u32 %v2327, 16
        %v4715 = vor.u32 %v4713, %v4711
        %v4717 = vshll.u32 %v2328, 16
        %v4719 = vrot.slane %v4717, 1
        %v4720 = vsel %vm1815, %v4715, %v4719
        %v4721 = vshrl.u32 %v2328, 16
        %v4723 = vor.u32 %v4721, %v4719
        %v4725 = vshll.u32 %v2329, 16
        %v4727 = vrot.slane %v4725, 1
        %v4728 = vsel %vm1815, %v4723, %v4727
        %v4729 = vshrl.u32 %v2329, 16
        %v4731 = vor.u32 %v4729, %v4727
        %v4733 = vshll.u32 %v2330, 16
        %v4735 = vrot.slane %v4733, 1
        %v4736 = vsel %vm1815, %v4731, %v4735
        %v4737 = vshrl.u32 %v2330, 16
        %v4739 = vor.u32 %v4737, %v4735
        %v4741 = vshll.u32 %v2331, 16
        %v4743 = vrot.slane %v4741, 1
        %v4744 = vsel %vm1815, %v4739, %v4743
        %v4745 = vshrl.u32 %v2331, 16
        %v4747 = vor.u32 %v4745, %v4743
        %v4749 = vshll.u32 %v2332, 16
        %v4751 = vrot.slane %v4749, 1
        %v4752 = vsel %vm1815, %v4747, %v4751
        %v4753 = vshrl.u32 %v2332, 16
        %v4755 = vor.u32 %v4753, %v4751
        %v4757 = vshll.u32 %v2333, 16
        %v4759 = vrot.slane %v4757, 1
        %v4760 = vsel %vm1815, %v4755, %v4759
        %v4761 = vshrl.u32 %v2333, 16
        %v4763 = vor.u32 %v4761, %v4759
        %v4765 = vshll.u32 %v2334, 16
        %v4767 = vrot.slane %v4765, 1
        %v4768 = vsel %vm1815, %v4763, %v4767
        %v4769 = vshrl.u32 %v2334, 16
        %v4771 = vor.u32 %v4769, %v4767
        %v4773 = vshll.u32 %v2335, 16
        %v4775 = vrot.slane %v4773, 1
        %v4776 = vsel %vm1815, %v4771, %v4775
        %v4777 = vshrl.u32 %v2335, 16
        %v4779 = vor.u32 %v4777, %v4775
        %v4781 = vshll.u32 %v2336, 16
        %v4783 = vrot.slane %v4781, 1
        %v4784 = vsel %vm1815, %v4779, %v4783
        %v4785 = vshrl.u32 %v2336, 16
        %v4787 = vor.u32 %v4785, %v4783
        %v4789 = vshll.u32 %v2337, 16
        %v4791 = vrot.slane %v4789, 1
        %v4792 = vsel %vm1815, %v4787, %v4791
        %v4793 = vshrl.u32 %v2337, 16
        %v4795 = vor.u32 %v4793, %v4791
        %v4797 = vshll.u32 %v2338, 16
        %v4799 = vrot.slane %v4797, 1
        %v4800 = vsel %vm1815, %v4795, %v4799
        %v4801 = vshrl.u32 %v2338, 16
        %v4803 = vor.u32 %v4801, %v4799
        %v4805 = vshll.u32 %v2339, 16
        %v4807 = vrot.slane %v4805, 1
        %v4808 = vsel %vm1815, %v4803, %v4807
        %v4809 = vshrl.u32 %v2339, 16
        %v4811 = vor.u32 %v4809, %v4807
        %v4813 = vshll.u32 %v2340, 16
        %v4815 = vrot.slane %v4813, 1
        %v4816 = vsel %vm1815, %v4811, %v4815
        %v4817 = vshrl.u32 %v2340, 16
        %v4819 = vor.u32 %v4817, %v4815
        %v4821 = vshll.u32 %v2341, 16
        %v4823 = vrot.slane %v4821, 1
        %v4824 = vsel %vm1815, %v4819, %v4823
        %v4857 = vunpack.c.l.b16 %v4677
        %v4858 = vunpack.c.l.b16 %v4678
        %v4859 = vunpack.c.l.b16 %v4679
        %v4860 = vunpack.c.l.b16 %v4680
        %v4861 = vunpack.c.l.b16 %v4681
        %v4862 = vunpack.c.l.b16 %v4682
        %v4863 = vunpack.c.l.b16 %v4683
        %v4864 = vunpack.c.l.b16 %v4684
        %v4865 = vunpack.c.l.b16 %v4685
        %v4866 = vunpack.c.l.b16 %v4686
        %v4867 = vunpack.c.l.b16 %v4687
        %v4868 = vunpack.c.l.b16 %v4688
        %v4869 = vunpack.c.l.b16 %v4689
        %v4870 = vunpack.c.l.b16 %v4690
        %v4871 = vunpack.c.l.b16 %v4691
        %v4872 = vunpack.c.l.b16 %v4692
        %v4873 = vpack.c.b16 %v4858, %v4857
        %v4874 = vpack.c.b16 %v4860, %v4859
        %v4875 = vpack.c.b16 %v4862, %v4861
        %v4876 = vpack.c.b16 %v4864, %v4863
        %v4877 = vpack.c.b16 %v4866, %v4865
        %v4878 = vpack.c.b16 %v4868, %v4867
        %v4879 = vpack.c.b16 %v4870, %v4869
        %v4880 = vpack.c.b16 %v4872, %v4871
        %4889 = vmatprep.subr.bf16.mxu0 0
        %4890 = vmatpush1.bf16.msra.mxu0 %v4873
        %4891 = vmatprep.subr.bf16.mxu0 0
        %4892 = vmatpush1.bf16.msra.mxu0 %v4874
        %4893 = vmatprep.subr.bf16.mxu0 0
        %4894 = vmatpush1.bf16.msra.mxu0 %v4875
        %4895 = vmatprep.subr.bf16.mxu0 0
        %4896 = vmatpush1.bf16.msra.mxu0 %v4876
        %4897 = vmatprep.subr.bf16.mxu0 0
        %4898 = vmatpush1.bf16.msra.mxu0 %v4877
        %4899 = vmatprep.subr.bf16.mxu0 0
        %4900 = vmatpush1.bf16.msra.mxu0 %v4878
        %4901 = vmatprep.subr.bf16.mxu0 0
        %4902 = vmatpush1.bf16.msra.mxu0 %v4879
        %4903 = vmatprep.subr.bf16.mxu0 0
        %4904 = vmatpush1.bf16.msra.mxu0 %v4880
        %4905 = vmatprep.subr.bf16.mxu0 0
        %4906 = vmatpush1.bf16.msra.mxu0 0
        %4907 = vmatprep.subr.bf16.mxu0 0
        %4908 = vmatpush1.bf16.msra.mxu0 0
        %4909 = vmatprep.subr.bf16.mxu0 0
        %4910 = vmatpush1.bf16.msra.mxu0 0
        %4911 = vmatprep.subr.bf16.mxu0 0
        %4912 = vmatpush1.bf16.msra.mxu0 0
        %4913 = vmatprep.subr.bf16.mxu0 0
        %4914 = vmatpush1.bf16.msra.mxu0 0
        %4915 = vmatprep.subr.bf16.mxu0 0
        %4916 = vmatpush1.bf16.msra.mxu0 0
        %4917 = vmatprep.subr.bf16.mxu0 0
        %4918 = vmatpush1.bf16.msra.mxu0 0
        %4919 = vmatprep.subr.bf16.mxu0 0
        %4920 = vmatpush1.bf16.msra.mxu0 0
        %4921 = vmatprep.mubr.bf16.mxu0 0
        %4922 = vmatmul.mubr.bf16.gmra.mrb[0].mxu0 %v4704
        %v4923 = vpop.f32.mrb[0].mxu0
        %v4924 = vadd.f32 0.0, %v4923
        %v4925 = vpop.f32.mrb[0].mxu0
        %v4926 = vpop.f32.mrb[0].mxu0
        %v4927 = vadd.f32 0.0, %v4926
        %v4928 = vpop.f32.mrb[0].mxu0
        %4929 = vmatprep.mubr.bf16.mxu0 0
        %4930 = vmatmul.mubr.bf16.gmra.mrb[0].mxu0 %v4712
        %v4931 = vpop.f32.mrb[0].mxu0
        %v4932 = vadd.f32 0.0, %v4931
        %v4933 = vpop.f32.mrb[0].mxu0
        %v4934 = vpop.f32.mrb[0].mxu0
        %v4935 = vadd.f32 0.0, %v4934
        %v4936 = vpop.f32.mrb[0].mxu0
        %4937 = vmatprep.mubr.bf16.mxu0 0
        %4938 = vmatmul.mubr.bf16.gmra.mrb[0].mxu0 %v4720
        %v4939 = vpop.f32.mrb[0].mxu0
        %v4940 = vadd.f32 0.0, %v4939
        %v4941 = vpop.f32.mrb[0].mxu0
        %v4942 = vpop.f32.mrb[0].mxu0
        %v4943 = vadd.f32 0.0, %v4942
        %v4944 = vpop.f32.mrb[0].mxu0
        %4945 = vmatprep.mubr.bf16.mxu0 0
        %4946 = vmatmul.mubr.bf16.gmra.mrb[0].mxu0 %v4728
        %v4947 = vpop.f32.mrb[0].mxu0
        %v4948 = vadd.f32 0.0, %v4947
        %v4949 = vpop.f32.mrb[0].mxu0
        %v4950 = vpop.f32.mrb[0].mxu0
        %v4951 = vadd.f32 0.0, %v4950
        %v4952 = vpop.f32.mrb[0].mxu0
        %4953 = vmatprep.mubr.bf16.mxu0 0
        %4954 = vmatmul.mubr.bf16.gmra.mrb[0].mxu0 %v4736
        %v4955 = vpop.f32.mrb[0].mxu0
        %v4956 = vadd.f32 0.0, %v4955
        %v4957 = vpop.f32.mrb[0].mxu0
        %v4958 = vpop.f32.mrb[0].mxu0
        %v4959 = vadd.f32 0.0, %v4958
        %v4960 = vpop.f32.mrb[0].mxu0
        %4961 = vmatprep.mubr.bf16.mxu0 0
        %4962 = vmatmul.mubr.bf16.gmra.mrb[0].mxu0 %v4744
        %v4963 = vpop.f32.mrb[0].mxu0
        %v4964 = vadd.f32 0.0, %v4963
        %v4965 = vpop.f32.mrb[0].mxu0
        %v4966 = vpop.f32.mrb[0].mxu0
        %v4967 = vadd.f32 0.0, %v4966
        %v4968 = vpop.f32.mrb[0].mxu0
        %4969 = vmatprep.mubr.bf16.mxu0 0
        %4970 = vmatmul.mubr.bf16.gmra.mrb[0].mxu0 %v4752
        %v4971 = vpop.f32.mrb[0].mxu0
        %v4972 = vadd.f32 0.0, %v4971
        %v4973 = vpop.f32.mrb[0].mxu0
        %v4974 = vpop.f32.mrb[0].mxu0
        %v4975 = vadd.f32 0.0, %v4974
        %v4976 = vpop.f32.mrb[0].mxu0
        %4977 = vmatprep.mubr.bf16.mxu0 0
        %4978 = vmatmul.mubr.bf16.gmra.mrb[0].mxu0 %v4760
        %v4979 = vpop.f32.mrb[0].mxu0
        %v4980 = vadd.f32 0.0, %v4979
        %v4981 = vpop.f32.mrb[0].mxu0
        %v4982 = vpop.f32.mrb[0].mxu0
        %v4983 = vadd.f32 0.0, %v4982
        %v4984 = vpop.f32.mrb[0].mxu0
        %4985 = vmatprep.mubr.bf16.mxu0 0
        %4986 = vmatmul.mubr.bf16.gmra.mrb[0].mxu0 %v4768
        %v4987 = vpop.f32.mrb[0].mxu0
        %v4988 = vadd.f32 0.0, %v4987
        %v4989 = vpop.f32.mrb[0].mxu0
        %v4990 = vpop.f32.mrb[0].mxu0
        %v4991 = vadd.f32 0.0, %v4990
        %v4992 = vpop.f32.mrb[0].mxu0
        %4993 = vmatprep.mubr.bf16.mxu0 0
        %4994 = vmatmul.mubr.bf16.gmra.mrb[0].mxu0 %v4776
        %v4995 = vpop.f32.mrb[0].mxu0
        %v4996 = vadd.f32 0.0, %v4995
        %v4997 = vpop.f32.mrb[0].mxu0
        %v4998 = vpop.f32.mrb[0].mxu0
        %v4999 = vadd.f32 0.0, %v4998
        %v5000 = vpop.f32.mrb[0].mxu0
        %5001 = vmatprep.mubr.bf16.mxu0 0
        %5002 = vmatmul.mubr.bf16.gmra.mrb[0].mxu0 %v4784
        %v5003 = vpop.f32.mrb[0].mxu0
        %v5004 = vadd.f32 0.0, %v5003
        %v5005 = vpop.f32.mrb[0].mxu0
        %v5006 = vpop.f32.mrb[0].mxu0
        %v5007 = vadd.f32 0.0, %v5006
        %v5008 = vpop.f32.mrb[0].mxu0
        %5009 = vmatprep.mubr.bf16.mxu0 0
        %5010 = vmatmul.mubr.bf16.gmra.mrb[0].mxu0 %v4792
        %v5011 = vpop.f32.mrb[0].mxu0
        %v5012 = vadd.f32 0.0, %v5011
        %v5013 = vpop.f32.mrb[0].mxu0
        %v5014 = vpop.f32.mrb[0].mxu0
        %v5015 = vadd.f32 0.0, %v5014
        %v5016 = vpop.f32.mrb[0].mxu0
        %5017 = vmatprep.mubr.bf16.mxu0 0
        %5018 = vmatmul.mubr.bf16.gmra.mrb[0].mxu0 %v4800
        %v5019 = vpop.f32.mrb[0].mxu0
        %v5020 = vadd.f32 0.0, %v5019
        %v5021 = vpop.f32.mrb[0].mxu0
        %v5022 = vpop.f32.mrb[0].mxu0
        %v5023 = vadd.f32 0.0, %v5022
        %v5024 = vpop.f32.mrb[0].mxu0
        %5025 = vmatprep.mubr.bf16.mxu0 0
        %5026 = vmatmul.mubr.bf16.gmra.mrb[0].mxu0 %v4808
        %v5027 = vpop.f32.mrb[0].mxu0
        %v5028 = vadd.f32 0.0, %v5027
        %v5029 = vpop.f32.mrb[0].mxu0
        %v5030 = vpop.f32.mrb[0].mxu0
        %v5031 = vadd.f32 0.0, %v5030
        %v5032 = vpop.f32.mrb[0].mxu0
        %5033 = vmatprep.mubr.bf16.mxu0 0
        %5034 = vmatmul.mubr.bf16.gmra.mrb[0].mxu0 %v4816
        %v5035 = vpop.f32.mrb[0].mxu0
        %v5036 = vadd.f32 0.0, %v5035
        %v5037 = vpop.f32.mrb[0].mxu0
        %v5038 = vpop.f32.mrb[0].mxu0
        %v5039 = vadd.f32 0.0, %v5038
        %v5040 = vpop.f32.mrb[0].mxu0
        %5041 = vmatprep.mubr.bf16.mxu0 0
        %5042 = vmatmul.mubr.bf16.gmra.mrb[0].mxu0 %v4824
        %v5043 = vpop.f32.mrb[0].mxu0
        %v5044 = vadd.f32 0.0, %v5043
        %v5045 = vpop.f32.mrb[0].mxu0
        %v5046 = vpop.f32.mrb[0].mxu0
        %v5047 = vadd.f32 0.0, %v5046
        %v5048 = vpop.f32.mrb[0].mxu0
        %5049 = vdwg.mxu0
        %v5050 = vadd.f32 %v4645, %v4924
        %v5051 = vadd.f32 %v4646, %v4927
        %v5052 = vadd.f32 %v4647, %v4932
        %v5053 = vadd.f32 %v4648, %v4935
        %v5054 = vadd.f32 %v4649, %v4940
        %v5055 = vadd.f32 %v4650, %v4943
        %v5056 = vadd.f32 %v4651, %v4948
        %v5057 = vadd.f32 %v4652, %v4951
        %v5058 = vadd.f32 %v4653, %v4956
        %v5059 = vadd.f32 %v4654, %v4959
        %v5060 = vadd.f32 %v4655, %v4964
        %v5061 = vadd.f32 %v4656, %v4967
        %v5062 = vadd.f32 %v4657, %v4972
        %v5063 = vadd.f32 %v4658, %v4975
        %v5064 = vadd.f32 %v4659, %v4980
        %v5065 = vadd.f32 %v4660, %v4983
        %v5066 = vadd.f32 %v4661, %v4988
        %v5067 = vadd.f32 %v4662, %v4991
        %v5068 = vadd.f32 %v4663, %v4996
        %v5069 = vadd.f32 %v4664, %v4999
        %v5070 = vadd.f32 %v4665, %v5004
        %v5071 = vadd.f32 %v4666, %v5007
        %v5072 = vadd.f32 %v4667, %v5012
        %v5073 = vadd.f32 %v4668, %v5015
        %v5074 = vadd.f32 %v4669, %v5020
        %v5075 = vadd.f32 %v4670, %v5023
        %v5076 = vadd.f32 %v4671, %v5028
        %v5077 = vadd.f32 %v4672, %v5031
        %v5078 = vadd.f32 %v4673, %v5036
        %v5079 = vadd.f32 %v4674, %v5039
        %v5080 = vadd.f32 %v4675, %v5044
        %v5081 = vadd.f32 %v4676, %v5047
        %v5082 = vld [vmem:[%s6] sm:$0x1]
        %v5084 = vlaneseq
        %v5085 = vshrl.u32 %v5084, 7
        %v5086 = vsub.s32 0, %v5085
        %v5087 = vrot.slane %v5082, %v5086
        %v5089 = vadd.f32 %v5050, %v5087
        %v5090 = vadd.f32 %v5051, %v5087
        %v5091 = vadd.f32 %v5052, %v5087
        %v5092 = vadd.f32 %v5053, %v5087
        %v5093 = vadd.f32 %v5054, %v5087
        %v5094 = vadd.f32 %v5055, %v5087
        %v5095 = vadd.f32 %v5056, %v5087
        %v5096 = vadd.f32 %v5057, %v5087
        %v5097 = vadd.f32 %v5058, %v5087
        %v5098 = vadd.f32 %v5059, %v5087
        %v5099 = vadd.f32 %v5060, %v5087
        %v5100 = vadd.f32 %v5061, %v5087
        %v5101 = vadd.f32 %v5062, %v5087
        %v5102 = vadd.f32 %v5063, %v5087
        %v5103 = vadd.f32 %v5064, %v5087
        %v5104 = vadd.f32 %v5065, %v5087
        %v5105 = vadd.f32 %v5066, %v5087
        %v5106 = vadd.f32 %v5067, %v5087
        %v5107 = vadd.f32 %v5068, %v5087
        %v5108 = vadd.f32 %v5069, %v5087
        %v5109 = vadd.f32 %v5070, %v5087
        %v5110 = vadd.f32 %v5071, %v5087
        %v5111 = vadd.f32 %v5072, %v5087
        %v5112 = vadd.f32 %v5073, %v5087
        %v5113 = vadd.f32 %v5074, %v5087
        %v5114 = vadd.f32 %v5075, %v5087
        %v5115 = vadd.f32 %v5076, %v5087
        %v5116 = vadd.f32 %v5077, %v5087
        %v5117 = vadd.f32 %v5078, %v5087
        %v5118 = vadd.f32 %v5079, %v5087
        %v5119 = vadd.f32 %v5080, %v5087
        %v5120 = vadd.f32 %v5081, %v5087
        %v5122 = vlaneseq
        %v5123 = vshrl.u32 %v5122, 7
        %v5124 = vsub.s32 0, %v5123
        %v5125 = vrot.slane %v515, %v5124
        %v5127 = vadd.f32 %v5089, %v5125
        %v5128 = vadd.f32 %v5090, %v5125
        %v5129 = vadd.f32 %v5091, %v5125
        %v5130 = vadd.f32 %v5092, %v5125
        %v5131 = vadd.f32 %v5093, %v5125
        %v5132 = vadd.f32 %v5094, %v5125
        %v5133 = vadd.f32 %v5095, %v5125
        %v5134 = vadd.f32 %v5096, %v5125
        %v5135 = vadd.f32 %v5097, %v5125
        %v5136 = vadd.f32 %v5098, %v5125
        %v5137 = vadd.f32 %v5099, %v5125
        %v5138 = vadd.f32 %v5100, %v5125
        %v5139 = vadd.f32 %v5101, %v5125
        %v5140 = vadd.f32 %v5102, %v5125
        %v5141 = vadd.f32 %v5103, %v5125
        %v5142 = vadd.f32 %v5104, %v5125
        %v5143 = vadd.f32 %v5105, %v5125
        %v5144 = vadd.f32 %v5106, %v5125
        %v5145 = vadd.f32 %v5107, %v5125
        %v5146 = vadd.f32 %v5108, %v5125
        %v5147 = vadd.f32 %v5109, %v5125
        %v5148 = vadd.f32 %v5110, %v5125
        %v5149 = vadd.f32 %v5111, %v5125
        %v5150 = vadd.f32 %v5112, %v5125
        %v5151 = vadd.f32 %v5113, %v5125
        %v5152 = vadd.f32 %v5114, %v5125
        %v5153 = vadd.f32 %v5115, %v5125
        %v5154 = vadd.f32 %v5116, %v5125
        %v5155 = vadd.f32 %v5117, %v5125
        %v5156 = vadd.f32 %v5118, %v5125
        %v5157 = vadd.f32 %v5119, %v5125
        %v5158 = vadd.f32 %v5120, %v5125
        %v5159 = vadd.f32 %v5127, %v1242
        %v5160 = vadd.f32 %v5128, %v1246
        %v5161 = vadd.f32 %v5129, %v1252
        %v5162 = vadd.f32 %v5130, %v1256
        %v5163 = vadd.f32 %v5131, %v1262
        %v5164 = vadd.f32 %v5132, %v1266
        %v5165 = vadd.f32 %v5133, %v1272
        %v5166 = vadd.f32 %v5134, %v1276
        %v5167 = vadd.f32 %v5135, %v1282
        %v5168 = vadd.f32 %v5136, %v1286
        %v5169 = vadd.f32 %v5137, %v1292
        %v5170 = vadd.f32 %v5138, %v1296
        %v5171 = vadd.f32 %v5139, %v1302
        %v5172 = vadd.f32 %v5140, %v1306
        %v5173 = vadd.f32 %v5141, %v1312
        %v5174 = vadd.f32 %v5142, %v1316
        %v5175 = vadd.f32 %v5143, %v1322
        %v5176 = vadd.f32 %v5144, %v1326
        %v5177 = vadd.f32 %v5145, %v1332
        %v5178 = vadd.f32 %v5146, %v1336
        %v5179 = vadd.f32 %v5147, %v1342
        %v5180 = vadd.f32 %v5148, %v1346
        %v5181 = vadd.f32 %v5149, %v1352
        %v5182 = vadd.f32 %v5150, %v1356
        %v5183 = vadd.f32 %v5151, %v1362
        %v5184 = vadd.f32 %v5152, %v1366
        %v5185 = vadd.f32 %v5153, %v1372
        %v5186 = vadd.f32 %v5154, %v1376
        %v5187 = vadd.f32 %v5155, %v1382
        %v5188 = vadd.f32 %v5156, %v1386
        %v5189 = vadd.f32 %v5157, %v1392
        %v5190 = vadd.f32 %v5158, %v1396
        %v5191 = vxor.u32 %v5159, 2147483648
        %v5192 = vxor.u32 %v5160, 2147483648
        %v5193 = vxor.u32 %v5161, 2147483648
        %v5194 = vxor.u32 %v5162, 2147483648
        %v5195 = vxor.u32 %v5163, 2147483648
        %v5196 = vxor.u32 %v5164, 2147483648
        %v5197 = vxor.u32 %v5165, 2147483648
        %v5198 = vxor.u32 %v5166, 2147483648
        %v5199 = vxor.u32 %v5167, 2147483648
        %v5200 = vxor.u32 %v5168, 2147483648
        %v5201 = vxor.u32 %v5169, 2147483648
        %v5202 = vxor.u32 %v5170, 2147483648
        %v5203 = vxor.u32 %v5171, 2147483648
        %v5204 = vxor.u32 %v5172, 2147483648
        %v5205 = vxor.u32 %v5173, 2147483648
        %v5206 = vxor.u32 %v5174, 2147483648
        %v5207 = vxor.u32 %v5175, 2147483648
        %v5208 = vxor.u32 %v5176, 2147483648
        %v5209 = vxor.u32 %v5177, 2147483648
        %v5210 = vxor.u32 %v5178, 2147483648
        %v5211 = vxor.u32 %v5179, 2147483648
        %v5212 = vxor.u32 %v5180, 2147483648
        %v5213 = vxor.u32 %v5181, 2147483648
        %v5214 = vxor.u32 %v5182, 2147483648
        %v5215 = vxor.u32 %v5183, 2147483648
        %v5216 = vxor.u32 %v5184, 2147483648
        %v5217 = vxor.u32 %v5185, 2147483648
        %v5218 = vxor.u32 %v5186, 2147483648
        %v5219 = vxor.u32 %v5187, 2147483648
        %v5220 = vxor.u32 %v5188, 2147483648
        %v5221 = vxor.u32 %v5189, 2147483648
        %v5222 = vxor.u32 %v5190, 2147483648
        %v5223 = vmul.f32 %v5191, 1.442695
        %v5224 = vpow.pop %v5223
        %v5225 = vmul.f32 %v5192, 1.442695
        %v5226 = vpow.pop %v5225
        %v5227 = vmul.f32 %v5193, 1.442695
        %v5228 = vpow.pop %v5227
        %v5229 = vmul.f32 %v5194, 1.442695
        %v5230 = vpow.pop %v5229
        %v5231 = vmul.f32 %v5195, 1.442695
        %v5232 = vpow.pop %v5231
        %v5233 = vmul.f32 %v5196, 1.442695
        %v5234 = vpow.pop %v5233
        %v5235 = vmul.f32 %v5197, 1.442695
        %v5236 = vpow.pop %v5235
        %v5237 = vmul.f32 %v5198, 1.442695
        %v5238 = vpow.pop %v5237
        %v5239 = vmul.f32 %v5199, 1.442695
        %v5240 = vpow.pop %v5239
        %v5241 = vmul.f32 %v5200, 1.442695
        %v5242 = vpow.pop %v5241
        %v5243 = vmul.f32 %v5201, 1.442695
        %v5244 = vpow.pop %v5243
        %v5245 = vmul.f32 %v5202, 1.442695
        %v5246 = vpow.pop %v5245
        %v5247 = vmul.f32 %v5203, 1.442695
        %v5248 = vpow.pop %v5247
        %v5249 = vmul.f32 %v5204, 1.442695
        %v5250 = vpow.pop %v5249
        %v5251 = vmul.f32 %v5205, 1.442695
        %v5252 = vpow.pop %v5251
        %v5253 = vmul.f32 %v5206, 1.442695
        %v5254 = vpow.pop %v5253
        %v5255 = vmul.f32 %v5207, 1.442695
        %v5256 = vpow.pop %v5255
        %v5257 = vmul.f32 %v5208, 1.442695
        %v5258 = vpow.pop %v5257
        %v5259 = vmul.f32 %v5209, 1.442695
        %v5260 = vpow.pop %v5259
        %v5261 = vmul.f32 %v5210, 1.442695
        %v5262 = vpow.pop %v5261
        %v5263 = vmul.f32 %v5211, 1.442695
        %v5264 = vpow.pop %v5263
        %v5265 = vmul.f32 %v5212, 1.442695
        %v5266 = vpow.pop %v5265
        %v5267 = vmul.f32 %v5213, 1.442695
        %v5268 = vpow.pop %v5267
        %v5269 = vmul.f32 %v5214, 1.442695
        %v5270 = vpow.pop %v5269
        %v5271 = vmul.f32 %v5215, 1.442695
        %v5272 = vpow.pop %v5271
        %v5273 = vmul.f32 %v5216, 1.442695
        %v5274 = vpow.pop %v5273
        %v5275 = vmul.f32 %v5217, 1.442695
        %v5276 = vpow.pop %v5275
        %v5277 = vmul.f32 %v5218, 1.442695
        %v5278 = vpow.pop %v5277
        %v5279 = vmul.f32 %v5219, 1.442695
        %v5280 = vpow.pop %v5279
        %v5281 = vmul.f32 %v5220, 1.442695
        %v5282 = vpow.pop %v5281
        %v5283 = vmul.f32 %v5221, 1.442695
        %v5284 = vpow.pop %v5283
        %v5285 = vmul.f32 %v5222, 1.442695
        %v5286 = vpow.pop %v5285
        %v5287 = vadd.f32 %v5224, 1.0
        %v5288 = vadd.f32 %v5226, 1.0
        %v5289 = vadd.f32 %v5228, 1.0
        %v5290 = vadd.f32 %v5230, 1.0
        %v5291 = vadd.f32 %v5232, 1.0
        %v5292 = vadd.f32 %v5234, 1.0
        %v5293 = vadd.f32 %v5236, 1.0
        %v5294 = vadd.f32 %v5238, 1.0
        %v5295 = vadd.f32 %v5240, 1.0
        %v5296 = vadd.f32 %v5242, 1.0
        %v5297 = vadd.f32 %v5244, 1.0
        %v5298 = vadd.f32 %v5246, 1.0
        %v5299 = vadd.f32 %v5248, 1.0
        %v5300 = vadd.f32 %v5250, 1.0
        %v5301 = vadd.f32 %v5252, 1.0
        %v5302 = vadd.f32 %v5254, 1.0
        %v5303 = vadd.f32 %v5256, 1.0
        %v5304 = vadd.f32 %v5258, 1.0
        %v5305 = vadd.f32 %v5260, 1.0
        %v5306 = vadd.f32 %v5262, 1.0
        %v5307 = vadd.f32 %v5264, 1.0
        %v5308 = vadd.f32 %v5266, 1.0
        %v5309 = vadd.f32 %v5268, 1.0
        %v5310 = vadd.f32 %v5270, 1.0
        %v5311 = vadd.f32 %v5272, 1.0
        %v5312 = vadd.f32 %v5274, 1.0
        %v5313 = vadd.f32 %v5276, 1.0
        %v5314 = vadd.f32 %v5278, 1.0
        %v5315 = vadd.f32 %v5280, 1.0
        %v5316 = vadd.f32 %v5282, 1.0
        %v5317 = vadd.f32 %v5284, 1.0
        %v5318 = vadd.f32 %v5286, 1.0
        %v5319 = vrcp.pop %v5287
        %v5320 = vmul.f32 1.0, %v5319
        %v5321 = vrcp.pop %v5288
        %v5322 = vmul.f32 1.0, %v5321
        %v5323 = vrcp.pop %v5289
        %v5324 = vmul.f32 1.0, %v5323
        %v5325 = vrcp.pop %v5290
        %v5326 = vmul.f32 1.0, %v5325
        %v5327 = vrcp.pop %v5291
        %v5328 = vmul.f32 1.0, %v5327
        %v5329 = vrcp.pop %v5292
        %v5330 = vmul.f32 1.0, %v5329
        %v5331 = vrcp.pop %v5293
        %v5332 = vmul.f32 1.0, %v5331
        %v5333 = vrcp.pop %v5294
        %v5334 = vmul.f32 1.0, %v5333
        %v5335 = vrcp.pop %v5295
        %v5336 = vmul.f32 1.0, %v5335
        %v5337 = vrcp.pop %v5296
        %v5338 = vmul.f32 1.0, %v5337
        %v5339 = vrcp.pop %v5297
        %v5340 = vmul.f32 1.0, %v5339
        %v5341 = vrcp.pop %v5298
        %v5342 = vmul.f32 1.0, %v5341
        %v5343 = vrcp.pop %v5299
        %v5344 = vmul.f32 1.0, %v5343
        %v5345 = vrcp.pop %v5300
        %v5346 = vmul.f32 1.0, %v5345
        %v5347 = vrcp.pop %v5301
        %v5348 = vmul.f32 1.0, %v5347
        %v5349 = vrcp.pop %v5302
        %v5350 = vmul.f32 1.0, %v5349
        %v5351 = vrcp.pop %v5303
        %v5352 = vmul.f32 1.0, %v5351
        %v5353 = vrcp.pop %v5304
        %v5354 = vmul.f32 1.0, %v5353
        %v5355 = vrcp.pop %v5305
        %v5356 = vmul.f32 1.0, %v5355
        %v5357 = vrcp.pop %v5306
        %v5358 = vmul.f32 1.0, %v5357
        %v5359 = vrcp.pop %v5307
        %v5360 = vmul.f32 1.0, %v5359
        %v5361 = vrcp.pop %v5308
        %v5362 = vmul.f32 1.0, %v5361
        %v5363 = vrcp.pop %v5309
        %v5364 = vmul.f32 1.0, %v5363
        %v5365 = vrcp.pop %v5310
        %v5366 = vmul.f32 1.0, %v5365
        %v5367 = vrcp.pop %v5311
        %v5368 = vmul.f32 1.0, %v5367
        %v5369 = vrcp.pop %v5312
        %v5370 = vmul.f32 1.0, %v5369
        %v5371 = vrcp.pop %v5313
        %v5372 = vmul.f32 1.0, %v5371
        %v5373 = vrcp.pop %v5314
        %v5374 = vmul.f32 1.0, %v5373
        %v5375 = vrcp.pop %v5315
        %v5376 = vmul.f32 1.0, %v5375
        %v5377 = vrcp.pop %v5316
        %v5378 = vmul.f32 1.0, %v5377
        %v5379 = vrcp.pop %v5317
        %v5380 = vmul.f32 1.0, %v5379
        %v5381 = vrcp.pop %v5318
        %v5382 = vmul.f32 1.0, %v5381
        %v5383 = vmul.f32 %v5159, %v5320
        %v5384 = vmul.f32 %v5160, %v5322
        %v5385 = vmul.f32 %v5161, %v5324
        %v5386 = vmul.f32 %v5162, %v5326
        %v5387 = vmul.f32 %v5163, %v5328
        %v5388 = vmul.f32 %v5164, %v5330
        %v5389 = vmul.f32 %v5165, %v5332
        %v5390 = vmul.f32 %v5166, %v5334
        %v5391 = vmul.f32 %v5167, %v5336
        %v5392 = vmul.f32 %v5168, %v5338
        %v5393 = vmul.f32 %v5169, %v5340
        %v5394 = vmul.f32 %v5170, %v5342
        %v5395 = vmul.f32 %v5171, %v5344
        %v5396 = vmul.f32 %v5172, %v5346
        %v5397 = vmul.f32 %v5173, %v5348
        %v5398 = vmul.f32 %v5174, %v5350
        %v5399 = vmul.f32 %v5175, %v5352
        %v5400 = vmul.f32 %v5176, %v5354
        %v5401 = vmul.f32 %v5177, %v5356
        %v5402 = vmul.f32 %v5178, %v5358
        %v5403 = vmul.f32 %v5179, %v5360
        %v5404 = vmul.f32 %v5180, %v5362
        %v5405 = vmul.f32 %v5181, %v5364
        %v5406 = vmul.f32 %v5182, %v5366
        %v5407 = vmul.f32 %v5183, %v5368
        %v5408 = vmul.f32 %v5184, %v5370
        %v5409 = vmul.f32 %v5185, %v5372
        %v5410 = vmul.f32 %v5186, %v5374
        %v5411 = vmul.f32 %v5187, %v5376
        %v5412 = vmul.f32 %v5188, %v5378
        %v5413 = vmul.f32 %v5189, %v5380
        %v5414 = vmul.f32 %v5190, %v5382
        %v5415 = vpack.c.bf16 %v5384, %v5383
        %v5416 = vpack.c.bf16 %v5386, %v5385
        %v5417 = vpack.c.bf16 %v5388, %v5387
        %v5418 = vpack.c.bf16 %v5390, %v5389
        %v5419 = vpack.c.bf16 %v5392, %v5391
        %v5420 = vpack.c.bf16 %v5394, %v5393
        %v5421 = vpack.c.bf16 %v5396, %v5395
        %v5422 = vpack.c.bf16 %v5398, %v5397
        %v5423 = vpack.c.bf16 %v5400, %v5399
        %v5424 = vpack.c.bf16 %v5402, %v5401
        %v5425 = vpack.c.bf16 %v5404, %v5403
        %v5426 = vpack.c.bf16 %v5406, %v5405
        %v5427 = vpack.c.bf16 %v5408, %v5407
        %v5428 = vpack.c.bf16 %v5410, %v5409
        %v5429 = vpack.c.bf16 %v5412, %v5411
        %v5430 = vpack.c.bf16 %v5414, %v5413
        %5431 = vst [vmem:[#allocation2 + $0x10] sm:$0xff] %v5415
        %5432 = vst [vmem:[#allocation2 + $0x18] sm:$0xff] %v5416
        %5433 = vst [vmem:[#allocation2 + $0x20] sm:$0xff] %v5417
        %5434 = vst [vmem:[#allocation2 + $0x28] sm:$0xff] %v5418
        %5435 = vst [vmem:[#allocation2 + $0x30] sm:$0xff] %v5419
        %5436 = vst [vmem:[#allocation2 + $0x38] sm:$0xff] %v5420
        %5437 = vst [vmem:[#allocation2 + $0x40] sm:$0xff] %v5421
        %5438 = vst [vmem:[#allocation2 + $0x48] sm:$0xff] %v5422
        %5439 = vst [vmem:[#allocation2 + $0x50] sm:$0xff] %v5423
        %5440 = vst [vmem:[#allocation2 + $0x58] sm:$0xff] %v5424
        %5441 = vst [vmem:[#allocation2 + $0x60] sm:$0xff] %v5425
        %5442 = vst [vmem:[#allocation2 + $0x68] sm:$0xff] %v5426
        %5443 = vst [vmem:[#allocation2 + $0x70] sm:$0xff] %v5427
        %5444 = vst [vmem:[#allocation2 + $0x78] sm:$0xff] %v5428
        %5445 = vst [vmem:[#allocation2 + $0x80] sm:$0xff] %v5429
        %5446 = vst [vmem:[#allocation2 + $0x88] sm:$0xff] %v5430
        %v5447 = vld [vmem:[#allocation2] sm:$0x80]
        %v5448 = vld [vmem:[#allocation2 + $0x8] sm:$0xff]
        %v5449 = vld [vmem:[#allocation2 + $0x10] sm:$0xff]
        %v5450 = vld [vmem:[#allocation2 + $0x18] sm:$0xff]
        %v5451 = vld [vmem:[#allocation2 + $0x20] sm:$0xff]
        %v5452 = vld [vmem:[#allocation2 + $0x28] sm:$0xff]
        %v5453 = vld [vmem:[#allocation2 + $0x30] sm:$0xff]
        %v5454 = vld [vmem:[#allocation2 + $0x38] sm:$0xff]
        %v5455 = vld [vmem:[#allocation2 + $0x40] sm:$0xff]
        %v5456 = vld [vmem:[#allocation2 + $0x48] sm:$0xff]
        %v5457 = vld [vmem:[#allocation2 + $0x50] sm:$0xff]
        %v5458 = vld [vmem:[#allocation2 + $0x58] sm:$0xff]
        %v5459 = vld [vmem:[#allocation2 + $0x60] sm:$0xff]
        %v5460 = vld [vmem:[#allocation2 + $0x68] sm:$0xff]
        %v5461 = vld [vmem:[#allocation2 + $0x70] sm:$0xff]
        %v5462 = vld [vmem:[#allocation2 + $0x78] sm:$0xff]
        %v5463 = vld [vmem:[#allocation2 + $0x80] sm:$0xff]
        %v5464 = vsel %vm1943, %v5447, 0
        %v5465 = vsel %vm1944, %v5448, 0
        %v5466 = vsel %vm1945, %v5449, 0
        %v5467 = vsel %vm1946, %v5450, 0
        %v5468 = vsel %vm1947, %v5451, 0
        %v5469 = vsel %vm1948, %v5452, 0
        %v5470 = vsel %vm1949, %v5453, 0
        %v5471 = vsel %vm1950, %v5454, 0
        %v5472 = vsel %vm1951, %v5455, 0
        %v5473 = vsel %vm1952, %v5456, 0
        %v5474 = vsel %vm1953, %v5457, 0
        %v5475 = vsel %vm1954, %v5458, 0
        %v5476 = vsel %vm1955, %v5459, 0
        %v5477 = vsel %vm1956, %v5460, 0
        %v5478 = vsel %vm1957, %v5461, 0
        %v5479 = vsel %vm1958, %v5462, 0
        %v5480 = vsel %vm1959, %v5463, 0
        %v5481 = vld [vmem:[#allocation2 + $0x88] sm:$0x1]
        %v5482 = vsel %vm2218, %v5448, 0
        %v5483 = vsel %vm2219, %v5449, 0
        %v5484 = vsel %vm2220, %v5450, 0
        %v5485 = vsel %vm2221, %v5451, 0
        %v5486 = vsel %vm2222, %v5452, 0
        %v5487 = vsel %vm2223, %v5453, 0
        %v5488 = vsel %vm2224, %v5454, 0
        %v5489 = vsel %vm2225, %v5455, 0
        %v5490 = vsel %vm2226, %v5456, 0
        %v5491 = vsel %vm2227, %v5457, 0
        %v5492 = vsel %vm2228, %v5458, 0
        %v5493 = vsel %vm2229, %v5459, 0
        %v5494 = vsel %vm2230, %v5460, 0
        %v5495 = vsel %vm2231, %v5461, 0
        %v5496 = vsel %vm2232, %v5462, 0
        %v5497 = vsel %vm2233, %v5463, 0
        %v5498 = vsel %vm2234, %v5481, 0
        %v5499 = vld [vmem:[#allocation2 + $0x8] sm:$0x80]
        %v5500 = vld [vmem:[#allocation2 + $0x88] sm:$0xff]
        %v5501 = vsel %vm1943, %v5499, 0
        %v5502 = vsel %vm1944, %v5449, 0
        %v5503 = vsel %vm1945, %v5450, 0
        %v5504 = vsel %vm1946, %v5451, 0
        %v5505 = vsel %vm1947, %v5452, 0
        %v5506 = vsel %vm1948, %v5453, 0
        %v5507 = vsel %vm1949, %v5454, 0
        %v5508 = vsel %vm1950, %v5455, 0
        %v5509 = vsel %vm1951, %v5456, 0
        %v5510 = vsel %vm1952, %v5457, 0
        %v5511 = vsel %vm1953, %v5458, 0
        %v5512 = vsel %vm1954, %v5459, 0
        %v5513 = vsel %vm1955, %v5460, 0
        %v5514 = vsel %vm1956, %v5461, 0
        %v5515 = vsel %vm1957, %v5462, 0
        %v5516 = vsel %vm1958, %v5463, 0
        %v5517 = vsel %vm1959, %v5500, 0
        %v5518 = vld [vmem:[#allocation2 + $0x90] sm:$0x1]
        %v5519 = vsel %vm2218, %v5449, 0
        %v5520 = vsel %vm2219, %v5450, 0
        %v5521 = vsel %vm2220, %v5451, 0
        %v5522 = vsel %vm2221, %v5452, 0
        %v5523 = vsel %vm2222, %v5453, 0
        %v5524 = vsel %vm2223, %v5454, 0
        %v5525 = vsel %vm2224, %v5455, 0
        %v5526 = vsel %vm2225, %v5456, 0
        %v5527 = vsel %vm2226, %v5457, 0
        %v5528 = vsel %vm2227, %v5458, 0
        %v5529 = vsel %vm2228, %v5459, 0
        %v5530 = vsel %vm2229, %v5460, 0
        %v5531 = vsel %vm2230, %v5461, 0
        %v5532 = vsel %vm2231, %v5462, 0
        %v5533 = vsel %vm2232, %v5463, 0
        %v5534 = vsel %vm2233, %v5500, 0
        %v5535 = vsel %vm2234, %v5518, 0
        %v5536 = vld [vmem:[#allocation2 + $0x10] sm:$0x80]
        %v5537 = vld [vmem:[#allocation2 + $0x90] sm:$0xff]
        %v5538 = vsel %vm1943, %v5536, 0
        %v5539 = vsel %vm1944, %v5450, 0
        %v5540 = vsel %vm1945, %v5451, 0
        %v5541 = vsel %vm1946, %v5452, 0
        %v5542 = vsel %vm1947, %v5453, 0
        %v5543 = vsel %vm1948, %v5454, 0
        %v5544 = vsel %vm1949, %v5455, 0
        %v5545 = vsel %vm1950, %v5456, 0
        %v5546 = vsel %vm1951, %v5457, 0
        %v5547 = vsel %vm1952, %v5458, 0
        %v5548 = vsel %vm1953, %v5459, 0
        %v5549 = vsel %vm1954, %v5460, 0
        %v5550 = vsel %vm1955, %v5461, 0
        %v5551 = vsel %vm1956, %v5462, 0
        %v5552 = vsel %vm1957, %v5463, 0
        %v5553 = vsel %vm1958, %v5500, 0
        %v5554 = vsel %vm1959, %v5537, 0
        %v5555 = vld [vmem:[#allocation2 + $0x18] sm:$0xff]
        %v5556 = vld [vmem:[#allocation2 + $0x20] sm:$0xff]
        %v5557 = vld [vmem:[#allocation2 + $0x28] sm:$0xff]
        %v5558 = vld [vmem:[#allocation2 + $0x30] sm:$0xff]
        %v5559 = vld [vmem:[#allocation2 + $0x38] sm:$0xff]
        %v5560 = vld [vmem:[#allocation2 + $0x40] sm:$0xff]
        %v5561 = vld [vmem:[#allocation2 + $0x48] sm:$0xff]
        %v5562 = vld [vmem:[#allocation2 + $0x50] sm:$0xff]
        %v5563 = vld [vmem:[#allocation2 + $0x58] sm:$0xff]
        %v5564 = vld [vmem:[#allocation2 + $0x60] sm:$0xff]
        %v5565 = vld [vmem:[#allocation2 + $0x68] sm:$0xff]
        %v5566 = vld [vmem:[#allocation2 + $0x70] sm:$0xff]
        %v5567 = vld [vmem:[#allocation2 + $0x78] sm:$0xff]
        %v5568 = vld [vmem:[#allocation2 + $0x80] sm:$0xff]
        %v5569 = vld [vmem:[#allocation2 + $0x88] sm:$0xff]
        %v5570 = vld [vmem:[#allocation2 + $0x90] sm:$0xff]
        %v5571 = vld [vmem:[#allocation2 + $0x98] sm:$0x1]
        %v5572 = vsel %vm2218, %v5555, 0
        %v5573 = vsel %vm2219, %v5556, 0
        %v5574 = vsel %vm2220, %v5557, 0
        %v5575 = vsel %vm2221, %v5558, 0
        %v5576 = vsel %vm2222, %v5559, 0
        %v5577 = vsel %vm2223, %v5560, 0
        %v5578 = vsel %vm2224, %v5561, 0
        %v5579 = vsel %vm2225, %v5562, 0
        %v5580 = vsel %vm2226, %v5563, 0
        %v5581 = vsel %vm2227, %v5564, 0
        %v5582 = vsel %vm2228, %v5565, 0
        %v5583 = vsel %vm2229, %v5566, 0
        %v5584 = vsel %vm2230, %v5567, 0
        %v5585 = vsel %vm2231, %v5568, 0
        %v5586 = vsel %vm2232, %v5569, 0
        %v5587 = vsel %vm2233, %v5570, 0
        %v5588 = vsel %vm2234, %v5571, 0
        %v5590 = vshll.u32 %v5448, 16
        %v5592 = vrot.slane %v5590, 1
        %v5593 = vshrl.u32 %v5448, 16
        %v5595 = vor.u32 %v5593, %v5592
        %v5597 = vshll.u32 %v5449, 16
        %v5599 = vrot.slane %v5597, 1
        %v5600 = vsel %vm1815, %v5595, %v5599
        %v5601 = vshrl.u32 %v5449, 16
        %v5603 = vor.u32 %v5601, %v5599
        %v5605 = vshll.u32 %v5450, 16
        %v5607 = vrot.slane %v5605, 1
        %v5608 = vsel %vm1815, %v5603, %v5607
        %v5609 = vshrl.u32 %v5450, 16
        %v5611 = vor.u32 %v5609, %v5607
        %v5613 = vshll.u32 %v5451, 16
        %v5615 = vrot.slane %v5613, 1
        %v5616 = vsel %vm1815, %v5611, %v5615
        %v5617 = vshrl.u32 %v5451, 16
        %v5619 = vor.u32 %v5617, %v5615
        %v5621 = vshll.u32 %v5452, 16
        %v5623 = vrot.slane %v5621, 1
        %v5624 = vsel %vm1815, %v5619, %v5623
        %v5625 = vshrl.u32 %v5452, 16
        %v5627 = vor.u32 %v5625, %v5623
        %v5629 = vshll.u32 %v5453, 16
        %v5631 = vrot.slane %v5629, 1
        %v5632 = vsel %vm1815, %v5627, %v5631
        %v5633 = vshrl.u32 %v5453, 16
        %v5635 = vor.u32 %v5633, %v5631
        %v5637 = vshll.u32 %v5454, 16
        %v5639 = vrot.slane %v5637, 1
        %v5640 = vsel %vm1815, %v5635, %v5639
        %v5641 = vshrl.u32 %v5454, 16
        %v5643 = vor.u32 %v5641, %v5639
        %v5645 = vshll.u32 %v5455, 16
        %v5647 = vrot.slane %v5645, 1
        %v5648 = vsel %vm1815, %v5643, %v5647
        %v5649 = vshrl.u32 %v5455, 16
        %v5651 = vor.u32 %v5649, %v5647
        %v5653 = vshll.u32 %v5456, 16
        %v5655 = vrot.slane %v5653, 1
        %v5656 = vsel %vm1815, %v5651, %v5655
        %v5657 = vshrl.u32 %v5456, 16
        %v5659 = vor.u32 %v5657, %v5655
        %v5661 = vshll.u32 %v5457, 16
        %v5663 = vrot.slane %v5661, 1
        %v5664 = vsel %vm1815, %v5659, %v5663
        %v5665 = vshrl.u32 %v5457, 16
        %v5667 = vor.u32 %v5665, %v5663
        %v5669 = vshll.u32 %v5458, 16
        %v5671 = vrot.slane %v5669, 1
        %v5672 = vsel %vm1815, %v5667, %v5671
        %v5673 = vshrl.u32 %v5458, 16
        %v5675 = vor.u32 %v5673, %v5671
        %v5677 = vshll.u32 %v5459, 16
        %v5679 = vrot.slane %v5677, 1
        %v5680 = vsel %vm1815, %v5675, %v5679
        %v5681 = vshrl.u32 %v5459, 16
        %v5683 = vor.u32 %v5681, %v5679
        %v5685 = vshll.u32 %v5460, 16
        %v5687 = vrot.slane %v5685, 1
        %v5688 = vsel %vm1815, %v5683, %v5687
        %v5689 = vshrl.u32 %v5460, 16
        %v5691 = vor.u32 %v5689, %v5687
        %v5693 = vshll.u32 %v5461, 16
        %v5695 = vrot.slane %v5693, 1
        %v5696 = vsel %vm1815, %v5691, %v5695
        %v5697 = vshrl.u32 %v5461, 16
        %v5699 = vor.u32 %v5697, %v5695
        %v5701 = vshll.u32 %v5462, 16
        %v5703 = vrot.slane %v5701, 1
        %v5704 = vsel %vm1815, %v5699, %v5703
        %v5705 = vshrl.u32 %v5462, 16
        %v5707 = vor.u32 %v5705, %v5703
        %v5709 = vshll.u32 %v5463, 16
        %v5711 = vrot.slane %v5709, 1
        %v5712 = vsel %vm1815, %v5707, %v5711
        %v5713 = vshrl.u32 %v5463, 16
        %v5715 = vor.u32 %v5713, %v5711
        %v5716 = vld [vmem:[#allocation11] sm:$0xf]
        %v5717 = vld [vmem:[#allocation11 + $0x4] sm:$0xf]
        %v5718 = vld [vmem:[#allocation11 + $0x8] sm:$0xf]
        %v5719 = vld [vmem:[#allocation11 + $0xc] sm:$0xf]
        %v5720 = vld [vmem:[#allocation11 + $0x10] sm:$0xf]
        %v5721 = vld [vmem:[#allocation11 + $0x14] sm:$0xf]
        %v5722 = vld [vmem:[#allocation11 + $0x18] sm:$0xf]
        %v5723 = vld [vmem:[#allocation11 + $0x1c] sm:$0xf]
        %v5724 = vld [vmem:[#allocation11 + $0x20] sm:$0xf]
        %v5725 = vld [vmem:[#allocation11 + $0x24] sm:$0xf]
        %v5726 = vld [vmem:[#allocation11 + $0x28] sm:$0xf]
        %v5727 = vld [vmem:[#allocation11 + $0x2c] sm:$0xf]
        %v5728 = vld [vmem:[#allocation11 + $0x30] sm:$0xf]
        %v5729 = vld [vmem:[#allocation11 + $0x34] sm:$0xf]
        %v5730 = vld [vmem:[#allocation11 + $0x38] sm:$0xf]
        %v5731 = vld [vmem:[#allocation11 + $0x3c] sm:$0xf]
        %v5732 = vld [vmem:[#allocation11 + $0x40] sm:$0xf]
        %v5733 = vld [vmem:[#allocation11 + $0x44] sm:$0xf]
        %v5734 = vld [vmem:[#allocation11 + $0x48] sm:$0xf]
        %v5735 = vld [vmem:[#allocation11 + $0x4c] sm:$0xf]
        %v5736 = vld [vmem:[#allocation11 + $0x50] sm:$0xf]
        %v5737 = vld [vmem:[#allocation11 + $0x54] sm:$0xf]
        %v5738 = vld [vmem:[#allocation11 + $0x58] sm:$0xf]
        %v5739 = vld [vmem:[#allocation11 + $0x5c] sm:$0xf]
        %v5740 = vld [vmem:[#allocation11 + $0x60] sm:$0xf]
        %v5741 = vld [vmem:[#allocation11 + $0x64] sm:$0xf]
        %v5742 = vld [vmem:[#allocation11 + $0x68] sm:$0xf]
        %v5743 = vld [vmem:[#allocation11 + $0x6c] sm:$0xf]
        %v5744 = vld [vmem:[#allocation11 + $0x70] sm:$0xf]
        %v5745 = vld [vmem:[#allocation11 + $0x74] sm:$0xf]
        %v5746 = vld [vmem:[#allocation11 + $0x78] sm:$0xf]
        %v5747 = vld [vmem:[#allocation11 + $0x7c] sm:$0xf]
        %v5765 = vrot.slane %v5501, 7
        %v5766 = vrot.slane %v5502, 7
        %v5767 = vsel %vm2518, %v5765, %v5766
        %v5768 = vrot.slane %v5503, 7
        %v5769 = vsel %vm2518, %v5766, %v5768
        %v5770 = vrot.slane %v5504, 7
        %v5771 = vsel %vm2518, %v5768, %v5770
        %v5772 = vrot.slane %v5505, 7
        %v5773 = vsel %vm2518, %v5770, %v5772
        %v5774 = vrot.slane %v5506, 7
        %v5775 = vsel %vm2518, %v5772, %v5774
        %v5776 = vrot.slane %v5507, 7
        %v5777 = vsel %vm2518, %v5774, %v5776
        %v5778 = vrot.slane %v5508, 7
        %v5779 = vsel %vm2518, %v5776, %v5778
        %v5780 = vrot.slane %v5509, 7
        %v5781 = vsel %vm2518, %v5778, %v5780
        %v5782 = vrot.slane %v5510, 7
        %v5783 = vsel %vm2518, %v5780, %v5782
        %v5784 = vrot.slane %v5511, 7
        %v5785 = vsel %vm2518, %v5782, %v5784
        %v5786 = vrot.slane %v5512, 7
        %v5787 = vsel %vm2518, %v5784, %v5786
        %v5788 = vrot.slane %v5513, 7
        %v5789 = vsel %vm2518, %v5786, %v5788
        %v5790 = vrot.slane %v5514, 7
        %v5791 = vsel %vm2518, %v5788, %v5790
        %v5792 = vrot.slane %v5515, 7
        %v5793 = vsel %vm2518, %v5790, %v5792
        %v5794 = vrot.slane %v5516, 7
        %v5795 = vsel %vm2518, %v5792, %v5794
        %v5796 = vrot.slane %v5517, 7
        %v5797 = vsel %vm2518, %v5794, %v5796
        %v5798 = vld [vmem:[#allocation11 + $0x80] sm:$0xf]
        %v5799 = vld [vmem:[#allocation11 + $0x84] sm:$0xf]
        %v5800 = vld [vmem:[#allocation11 + $0x88] sm:$0xf]
        %v5801 = vld [vmem:[#allocation11 + $0x8c] sm:$0xf]
        %v5802 = vld [vmem:[#allocation11 + $0x90] sm:$0xf]
        %v5803 = vld [vmem:[#allocation11 + $0x94] sm:$0xf]
        %v5804 = vld [vmem:[#allocation11 + $0x98] sm:$0xf]
        %v5805 = vld [vmem:[#allocation11 + $0x9c] sm:$0xf]
        %v5806 = vld [vmem:[#allocation11 + $0xa0] sm:$0xf]
        %v5807 = vld [vmem:[#allocation11 + $0xa4] sm:$0xf]
        %v5808 = vld [vmem:[#allocation11 + $0xa8] sm:$0xf]
        %v5809 = vld [vmem:[#allocation11 + $0xac] sm:$0xf]
        %v5810 = vld [vmem:[#allocation11 + $0xb0] sm:$0xf]
        %v5811 = vld [vmem:[#allocation11 + $0xb4] sm:$0xf]
        %v5812 = vld [vmem:[#allocation11 + $0xb8] sm:$0xf]
        %v5813 = vld [vmem:[#allocation11 + $0xbc] sm:$0xf]
        %v5814 = vld [vmem:[#allocation11 + $0xc0] sm:$0xf]
        %v5815 = vld [vmem:[#allocation11 + $0xc4] sm:$0xf]
        %v5816 = vld [vmem:[#allocation11 + $0xc8] sm:$0xf]
        %v5817 = vld [vmem:[#allocation11 + $0xcc] sm:$0xf]
        %v5818 = vld [vmem:[#allocation11 + $0xd0] sm:$0xf]
        %v5819 = vld [vmem:[#allocation11 + $0xd4] sm:$0xf]
        %v5820 = vld [vmem:[#allocation11 + $0xd8] sm:$0xf]
        %v5821 = vld [vmem:[#allocation11 + $0xdc] sm:$0xf]
        %v5822 = vld [vmem:[#allocation11 + $0xe0] sm:$0xf]
        %v5823 = vld [vmem:[#allocation11 + $0xe4] sm:$0xf]
        %v5824 = vld [vmem:[#allocation11 + $0xe8] sm:$0xf]
        %v5825 = vld [vmem:[#allocation11 + $0xec] sm:$0xf]
        %v5826 = vld [vmem:[#allocation11 + $0xf0] sm:$0xf]
        %v5827 = vld [vmem:[#allocation11 + $0xf4] sm:$0xf]
        %v5828 = vld [vmem:[#allocation11 + $0xf8] sm:$0xf]
        %v5829 = vld [vmem:[#allocation11 + $0xfc] sm:$0xf]
        %v5831 = vshrl.u32 %v5482, 16
        %v5833 = vshll.u32 %v5482, 16
        %v5835 = vrot.slane %v5833, 1
        %v5836 = vor.u32 %v5831, %v5835
        %v5838 = vshll.u32 %v5483, 16
        %v5840 = vrot.slane %v5838, 1
        %v5841 = vsel %vm1815, %v5836, %v5840
        %v5843 = vshrl.u32 %v5767, 16
        %v5845 = vshll.u32 %v5767, 16
        %v5847 = vrot.slane %v5845, 1
        %v5848 = vor.u32 %v5843, %v5847
        %v5850 = vshll.u32 %v5769, 16
        %v5852 = vrot.slane %v5850, 1
        %v5853 = vsel %vm1815, %v5848, %v5852
        %v5854 = vshrl.u32 %v5483, 16
        %v5856 = vor.u32 %v5854, %v5840
        %v5858 = vshll.u32 %v5484, 16
        %v5860 = vrot.slane %v5858, 1
        %v5861 = vsel %vm1815, %v5856, %v5860
        %v5862 = vshrl.u32 %v5769, 16
        %v5864 = vor.u32 %v5862, %v5852
        %v5866 = vshll.u32 %v5771, 16
        %v5868 = vrot.slane %v5866, 1
        %v5869 = vsel %vm1815, %v5864, %v5868
        %v5870 = vshrl.u32 %v5484, 16
        %v5872 = vor.u32 %v5870, %v5860
        %v5874 = vshll.u32 %v5485, 16
        %v5876 = vrot.slane %v5874, 1
        %v5877 = vsel %vm1815, %v5872, %v5876
        %v5878 = vshrl.u32 %v5771, 16
        %v5880 = vor.u32 %v5878, %v5868
        %v5882 = vshll.u32 %v5773, 16
        %v5884 = vrot.slane %v5882, 1
        %v5885 = vsel %vm1815, %v5880, %v5884
        %v5886 = vshrl.u32 %v5485, 16
        %v5888 = vor.u32 %v5886, %v5876
        %v5890 = vshll.u32 %v5486, 16
        %v5892 = vrot.slane %v5890, 1
        %v5893 = vsel %vm1815, %v5888, %v5892
        %v5894 = vshrl.u32 %v5773, 16
        %v5896 = vor.u32 %v5894, %v5884
        %v5898 = vshll.u32 %v5775, 16
        %v5900 = vrot.slane %v5898, 1
        %v5901 = vsel %vm1815, %v5896, %v5900
        %v5902 = vshrl.u32 %v5486, 16
        %v5904 = vor.u32 %v5902, %v5892
        %v5906 = vshll.u32 %v5487, 16
        %v5908 = vrot.slane %v5906, 1
        %v5909 = vsel %vm1815, %v5904, %v5908
        %v5910 = vshrl.u32 %v5775, 16
        %v5912 = vor.u32 %v5910, %v5900
        %v5914 = vshll.u32 %v5777, 16
        %v5916 = vrot.slane %v5914, 1
        %v5917 = vsel %vm1815, %v5912, %v5916
        %v5918 = vshrl.u32 %v5487, 16
        %v5920 = vor.u32 %v5918, %v5908
        %v5922 = vshll.u32 %v5488, 16
        %v5924 = vrot.slane %v5922, 1
        %v5925 = vsel %vm1815, %v5920, %v5924
        %v5926 = vshrl.u32 %v5777, 16
        %v5928 = vor.u32 %v5926, %v5916
        %v5930 = vshll.u32 %v5779, 16
        %v5932 = vrot.slane %v5930, 1
        %v5933 = vsel %vm1815, %v5928, %v5932
        %v5934 = vshrl.u32 %v5488, 16
        %v5936 = vor.u32 %v5934, %v5924
        %v5938 = vshll.u32 %v5489, 16
        %v5940 = vrot.slane %v5938, 1
        %v5941 = vsel %vm1815, %v5936, %v5940
        %v5942 = vshrl.u32 %v5779, 16
        %v5944 = vor.u32 %v5942, %v5932
        %v5946 = vshll.u32 %v5781, 16
        %v5948 = vrot.slane %v5946, 1
        %v5949 = vsel %vm1815, %v5944, %v5948
        %v5950 = vshrl.u32 %v5489, 16
        %v5952 = vor.u32 %v5950, %v5940
        %v5954 = vshll.u32 %v5490, 16
        %v5956 = vrot.slane %v5954, 1
        %v5957 = vsel %vm1815, %v5952, %v5956
        %v5958 = vshrl.u32 %v5781, 16
        %v5960 = vor.u32 %v5958, %v5948
        %v5962 = vshll.u32 %v5783, 16
        %v5964 = vrot.slane %v5962, 1
        %v5965 = vsel %vm1815, %v5960, %v5964
        %v5966 = vshrl.u32 %v5490, 16
        %v5968 = vor.u32 %v5966, %v5956
        %v5970 = vshll.u32 %v5491, 16
        %v5972 = vrot.slane %v5970, 1
        %v5973 = vsel %vm1815, %v5968, %v5972
        %v5974 = vshrl.u32 %v5783, 16
        %v5976 = vor.u32 %v5974, %v5964
        %v5978 = vshll.u32 %v5785, 16
        %v5980 = vrot.slane %v5978, 1
        %v5981 = vsel %vm1815, %v5976, %v5980
        %v5982 = vshrl.u32 %v5491, 16
        %v5984 = vor.u32 %v5982, %v5972
        %v5986 = vshll.u32 %v5492, 16
        %v5988 = vrot.slane %v5986, 1
        %v5989 = vsel %vm1815, %v5984, %v5988
        %v5990 = vshrl.u32 %v5785, 16
        %v5992 = vor.u32 %v5990, %v5980
        %v5994 = vshll.u32 %v5787, 16
        %v5996 = vrot.slane %v5994, 1
        %v5997 = vsel %vm1815, %v5992, %v5996
        %v5998 = vshrl.u32 %v5492, 16
        %v6000 = vor.u32 %v5998, %v5988
        %v6002 = vshll.u32 %v5493, 16
        %v6004 = vrot.slane %v6002, 1
        %v6005 = vsel %vm1815, %v6000, %v6004
        %v6006 = vshrl.u32 %v5787, 16
        %v6008 = vor.u32 %v6006, %v5996
        %v6010 = vshll.u32 %v5789, 16
        %v6012 = vrot.slane %v6010, 1
        %v6013 = vsel %vm1815, %v6008, %v6012
        %v6014 = vshrl.u32 %v5493, 16
        %v6016 = vor.u32 %v6014, %v6004
        %v6018 = vshll.u32 %v5494, 16
        %v6020 = vrot.slane %v6018, 1
        %v6021 = vsel %vm1815, %v6016, %v6020
        %v6022 = vshrl.u32 %v5789, 16
        %v6024 = vor.u32 %v6022, %v6012
        %v6026 = vshll.u32 %v5791, 16
        %v6028 = vrot.slane %v6026, 1
        %v6029 = vsel %vm1815, %v6024, %v6028
        %v6030 = vshrl.u32 %v5494, 16
        %v6032 = vor.u32 %v6030, %v6020
        %v6034 = vshll.u32 %v5495, 16
        %v6036 = vrot.slane %v6034, 1
        %v6037 = vsel %vm1815, %v6032, %v6036
        %v6038 = vshrl.u32 %v5791, 16
        %v6040 = vor.u32 %v6038, %v6028
        %v6042 = vshll.u32 %v5793, 16
        %v6044 = vrot.slane %v6042, 1
        %v6045 = vsel %vm1815, %v6040, %v6044
        %v6046 = vshrl.u32 %v5495, 16
        %v6048 = vor.u32 %v6046, %v6036
        %v6050 = vshll.u32 %v5496, 16
        %v6052 = vrot.slane %v6050, 1
        %v6053 = vsel %vm1815, %v6048, %v6052
        %v6054 = vshrl.u32 %v5793, 16
        %v6056 = vor.u32 %v6054, %v6044
        %v6058 = vshll.u32 %v5795, 16
        %v6060 = vrot.slane %v6058, 1
        %v6061 = vsel %vm1815, %v6056, %v6060
        %v6062 = vshrl.u32 %v5496, 16
        %v6064 = vor.u32 %v6062, %v6052
        %v6066 = vshll.u32 %v5497, 16
        %v6068 = vrot.slane %v6066, 1
        %v6069 = vsel %vm1815, %v6064, %v6068
        %v6070 = vshrl.u32 %v5795, 16
        %v6072 = vor.u32 %v6070, %v6060
        %v6074 = vshll.u32 %v5797, 16
        %v6076 = vrot.slane %v6074, 1
        %v6077 = vsel %vm1815, %v6072, %v6076
        %v6078 = vshrl.u32 %v5497, 16
        %v6080 = vor.u32 %v6078, %v6068
        %v6082 = vshll.u32 %v5498, 16
        %v6084 = vrot.slane %v6082, 1
        %v6085 = vsel %vm1815, %v6080, %v6084
        %v6086 = vshrl.u32 %v5797, 16
        %v6088 = vor.u32 %v6086, %v6076
        %v6090 = vshll.u32 %v5796, 16
        %v6092 = vrot.slane %v6090, 1
        %v6093 = vsel %vm1815, %v6088, %v6092
        %v6158 = vunpack.c.l.b16 %v5798
        %v6159 = vunpack.c.l.b16 %v5799
        %v6160 = vunpack.c.l.b16 %v5800
        %v6161 = vunpack.c.l.b16 %v5801
        %v6162 = vunpack.c.l.b16 %v5802
        %v6163 = vunpack.c.l.b16 %v5803
        %v6164 = vunpack.c.l.b16 %v5804
        %v6165 = vunpack.c.l.b16 %v5805
        %v6166 = vunpack.c.l.b16 %v5806
        %v6167 = vunpack.c.l.b16 %v5807
        %v6168 = vunpack.c.l.b16 %v5808
        %v6169 = vunpack.c.l.b16 %v5809
        %v6170 = vunpack.c.l.b16 %v5810
        %v6171 = vunpack.c.l.b16 %v5811
        %v6172 = vunpack.c.l.b16 %v5812
        %v6173 = vunpack.c.l.b16 %v5813
        %v6174 = vunpack.c.l.b16 %v5814
        %v6175 = vunpack.c.l.b16 %v5815
        %v6176 = vunpack.c.l.b16 %v5816
        %v6177 = vunpack.c.l.b16 %v5817
        %v6178 = vunpack.c.l.b16 %v5818
        %v6179 = vunpack.c.l.b16 %v5819
        %v6180 = vunpack.c.l.b16 %v5820
        %v6181 = vunpack.c.l.b16 %v5821
        %v6182 = vunpack.c.l.b16 %v5822
        %v6183 = vunpack.c.l.b16 %v5823
        %v6184 = vunpack.c.l.b16 %v5824
        %v6185 = vunpack.c.l.b16 %v5825
        %v6186 = vunpack.c.l.b16 %v5826
        %v6187 = vunpack.c.l.b16 %v5827
        %v6188 = vunpack.c.l.b16 %v5828
        %v6189 = vunpack.c.l.b16 %v5829
        %v6190 = vpack.c.b16 %v6159, %v6158
        %v6191 = vpack.c.b16 %v6161, %v6160
        %v6192 = vpack.c.b16 %v6163, %v6162
        %v6193 = vpack.c.b16 %v6165, %v6164
        %v6194 = vpack.c.b16 %v6167, %v6166
        %v6195 = vpack.c.b16 %v6169, %v6168
        %v6196 = vpack.c.b16 %v6171, %v6170
        %v6197 = vpack.c.b16 %v6173, %v6172
        %v6198 = vpack.c.b16 %v6175, %v6174
        %v6199 = vpack.c.b16 %v6177, %v6176
        %v6200 = vpack.c.b16 %v6179, %v6178
        %v6201 = vpack.c.b16 %v6181, %v6180
        %v6202 = vpack.c.b16 %v6183, %v6182
        %v6203 = vpack.c.b16 %v6185, %v6184
        %v6204 = vpack.c.b16 %v6187, %v6186
        %v6205 = vpack.c.b16 %v6189, %v6188
        %6222 = vmatprep.subr.bf16.mxu0 0
        %6223 = vmatpush1.bf16.msra.mxu0 %v6190
        %6224 = vmatprep.subr.bf16.mxu0 0
        %6225 = vmatpush1.bf16.msra.mxu0 %v6191
        %6226 = vmatprep.subr.bf16.mxu0 0
        %6227 = vmatpush1.bf16.msra.mxu0 %v6192
        %6228 = vmatprep.subr.bf16.mxu0 0
        %6229 = vmatpush1.bf16.msra.mxu0 %v6193
        %6230 = vmatprep.subr.bf16.mxu0 0
        %6231 = vmatpush1.bf16.msra.mxu0 %v6194
        %6232 = vmatprep.subr.bf16.mxu0 0
        %6233 = vmatpush1.bf16.msra.mxu0 %v6195
        %6234 = vmatprep.subr.bf16.mxu0 0
        %6235 = vmatpush1.bf16.msra.mxu0 %v6196
        %6236 = vmatprep.subr.bf16.mxu0 0
        %6237 = vmatpush1.bf16.msra.mxu0 %v6197
        %6238 = vmatprep.subr.bf16.mxu0 0
        %6239 = vmatpush1.bf16.msra.mxu0 %v6198
        %6240 = vmatprep.subr.bf16.mxu0 0
        %6241 = vmatpush1.bf16.msra.mxu0 %v6199
        %6242 = vmatprep.subr.bf16.mxu0 0
        %6243 = vmatpush1.bf16.msra.mxu0 %v6200
        %6244 = vmatprep.subr.bf16.mxu0 0
        %6245 = vmatpush1.bf16.msra.mxu0 %v6201
        %6246 = vmatprep.subr.bf16.mxu0 0
        %6247 = vmatpush1.bf16.msra.mxu0 %v6202
        %6248 = vmatprep.subr.bf16.mxu0 0
        %6249 = vmatpush1.bf16.msra.mxu0 %v6203
        %6250 = vmatprep.subr.bf16.mxu0 0
        %6251 = vmatpush1.bf16.msra.mxu0 %v6204
        %6252 = vmatprep.subr.bf16.mxu0 0
        %6253 = vmatpush1.bf16.msra.mxu0 %v6205
        %6254 = vmatprep.mubr.bf16.mxu0 %v5853
        %6255 = vmatmul.mubr.bf16.gmra.mrb[0].mxu0 %v5841
        %v6256 = vpop.f32.mrb[0].mxu0
        %v6257 = vadd.f32 0.0, %v6256
        %v6258 = vpop.f32.mrb[0].mxu0
        %v6259 = vpop.f32.mrb[0].mxu0
        %v6260 = vadd.f32 0.0, %v6259
        %v6261 = vpop.f32.mrb[0].mxu0
        %6262 = vmatprep.mubr.bf16.mxu0 %v5869
        %6263 = vmatmul.mubr.bf16.gmra.mrb[0].mxu0 %v5861
        %v6264 = vpop.f32.mrb[0].mxu0
        %v6265 = vadd.f32 0.0, %v6264
        %v6266 = vpop.f32.mrb[0].mxu0
        %v6267 = vpop.f32.mrb[0].mxu0
        %v6268 = vadd.f32 0.0, %v6267
        %v6269 = vpop.f32.mrb[0].mxu0
        %6270 = vmatprep.mubr.bf16.mxu0 %v5885
        %6271 = vmatmul.mubr.bf16.gmra.mrb[0].mxu0 %v5877
        %v6272 = vpop.f32.mrb[0].mxu0
        %v6273 = vadd.f32 0.0, %v6272
        %v6274 = vpop.f32.mrb[0].mxu0
        %v6275 = vpop.f32.mrb[0].mxu0
        %v6276 = vadd.f32 0.0, %v6275
        %v6277 = vpop.f32.mrb[0].mxu0
        %6278 = vmatprep.mubr.bf16.mxu0 %v5901
        %6279 = vmatmul.mubr.bf16.gmra.mrb[0].mxu0 %v5893
        %v6280 = vpop.f32.mrb[0].mxu0
        %v6281 = vadd.f32 0.0, %v6280
        %v6282 = vpop.f32.mrb[0].mxu0
        %v6283 = vpop.f32.mrb[0].mxu0
        %v6284 = vadd.f32 0.0, %v6283
        %v6285 = vpop.f32.mrb[0].mxu0
        %6286 = vmatprep.mubr.bf16.mxu0 %v5917
        %6287 = vmatmul.mubr.bf16.gmra.mrb[0].mxu0 %v5909
        %v6288 = vpop.f32.mrb[0].mxu0
        %v6289 = vadd.f32 0.0, %v6288
        %v6290 = vpop.f32.mrb[0].mxu0
        %v6291 = vpop.f32.mrb[0].mxu0
        %v6292 = vadd.f32 0.0, %v6291
        %v6293 = vpop.f32.mrb[0].mxu0
        %6294 = vmatprep.mubr.bf16.mxu0 %v5933
        %6295 = vmatmul.mubr.bf16.gmra.mrb[0].mxu0 %v5925
        %v6296 = vpop.f32.mrb[0].mxu0
        %v6297 = vadd.f32 0.0, %v6296
        %v6298 = vpop.f32.mrb[0].mxu0
        %v6299 = vpop.f32.mrb[0].mxu0
        %v6300 = vadd.f32 0.0, %v6299
        %v6301 = vpop.f32.mrb[0].mxu0
        %6302 = vmatprep.mubr.bf16.mxu0 %v5949
        %6303 = vmatmul.mubr.bf16.gmra.mrb[0].mxu0 %v5941
        %v6304 = vpop.f32.mrb[0].mxu0
        %v6305 = vadd.f32 0.0, %v6304
        %v6306 = vpop.f32.mrb[0].mxu0
        %v6307 = vpop.f32.mrb[0].mxu0
        %v6308 = vadd.f32 0.0, %v6307
        %v6309 = vpop.f32.mrb[0].mxu0
        %6310 = vmatprep.mubr.bf16.mxu0 %v5965
        %6311 = vmatmul.mubr.bf16.gmra.mrb[0].mxu0 %v5957
        %v6312 = vpop.f32.mrb[0].mxu0
        %v6313 = vadd.f32 0.0, %v6312
        %v6314 = vpop.f32.mrb[0].mxu0
        %v6315 = vpop.f32.mrb[0].mxu0
        %v6316 = vadd.f32 0.0, %v6315
        %v6317 = vpop.f32.mrb[0].mxu0
        %6318 = vmatprep.mubr.bf16.mxu0 %v5981
        %6319 = vmatmul.mubr.bf16.gmra.mrb[0].mxu0 %v5973
        %v6320 = vpop.f32.mrb[0].mxu0
        %v6321 = vadd.f32 0.0, %v6320
        %v6322 = vpop.f32.mrb[0].mxu0
        %v6323 = vpop.f32.mrb[0].mxu0
        %v6324 = vadd.f32 0.0, %v6323
        %v6325 = vpop.f32.mrb[0].mxu0
        %6326 = vmatprep.mubr.bf16.mxu0 %v5997
        %6327 = vmatmul.mubr.bf16.gmra.mrb[0].mxu0 %v5989
        %v6328 = vpop.f32.mrb[0].mxu0
        %v6329 = vadd.f32 0.0, %v6328
        %v6330 = vpop.f32.mrb[0].mxu0
        %v6331 = vpop.f32.mrb[0].mxu0
        %v6332 = vadd.f32 0.0, %v6331
        %v6333 = vpop.f32.mrb[0].mxu0
        %6334 = vmatprep.mubr.bf16.mxu0 %v6013
        %6335 = vmatmul.mubr.bf16.gmra.mrb[0].mxu0 %v6005
        %v6336 = vpop.f32.mrb[0].mxu0
        %v6337 = vadd.f32 0.0, %v6336
        %v6338 = vpop.f32.mrb[0].mxu0
        %v6339 = vpop.f32.mrb[0].mxu0
        %v6340 = vadd.f32 0.0, %v6339
        %v6341 = vpop.f32.mrb[0].mxu0
        %6342 = vmatprep.mubr.bf16.mxu0 %v6029
        %6343 = vmatmul.mubr.bf16.gmra.mrb[0].mxu0 %v6021
        %v6344 = vpop.f32.mrb[0].mxu0
        %v6345 = vadd.f32 0.0, %v6344
        %v6346 = vpop.f32.mrb[0].mxu0
        %v6347 = vpop.f32.mrb[0].mxu0
        %v6348 = vadd.f32 0.0, %v6347
        %v6349 = vpop.f32.mrb[0].mxu0
        %6350 = vmatprep.mubr.bf16.mxu0 %v6045
        %6351 = vmatmul.mubr.bf16.gmra.mrb[0].mxu0 %v6037
        %v6352 = vpop.f32.mrb[0].mxu0
        %v6353 = vadd.f32 0.0, %v6352
        %v6354 = vpop.f32.mrb[0].mxu0
        %v6355 = vpop.f32.mrb[0].mxu0
        %v6356 = vadd.f32 0.0, %v6355
        %v6357 = vpop.f32.mrb[0].mxu0
        %6358 = vmatprep.mubr.bf16.mxu0 %v6061
        %6359 = vmatmul.mubr.bf16.gmra.mrb[0].mxu0 %v6053
        %v6360 = vpop.f32.mrb[0].mxu0
        %v6361 = vadd.f32 0.0, %v6360
        %v6362 = vpop.f32.mrb[0].mxu0
        %v6363 = vpop.f32.mrb[0].mxu0
        %v6364 = vadd.f32 0.0, %v6363
        %v6365 = vpop.f32.mrb[0].mxu0
        %6366 = vmatprep.mubr.bf16.mxu0 %v6077
        %6367 = vmatmul.mubr.bf16.gmra.mrb[0].mxu0 %v6069
        %v6368 = vpop.f32.mrb[0].mxu0
        %v6369 = vadd.f32 0.0, %v6368
        %v6370 = vpop.f32.mrb[0].mxu0
        %v6371 = vpop.f32.mrb[0].mxu0
        %v6372 = vadd.f32 0.0, %v6371
        %v6373 = vpop.f32.mrb[0].mxu0
        %6374 = vmatprep.mubr.bf16.mxu0 %v6093
        %6375 = vmatmul.mubr.bf16.gmra.mrb[0].mxu0 %v6085
        %v6376 = vpop.f32.mrb[0].mxu0
        %v6377 = vadd.f32 0.0, %v6376
        %v6378 = vpop.f32.mrb[0].mxu0
        %v6379 = vpop.f32.mrb[0].mxu0
        %v6380 = vadd.f32 0.0, %v6379
        %v6381 = vpop.f32.mrb[0].mxu0
        %6382 = vdwg.mxu0
        %v6384 = vshrl.u32 %v5464, 16
        %v6386 = vrot.slane %v6384, 7
        %v6388 = vshrl.u32 %v5465, 16
        %v6390 = vrot.slane %v6388, 7
        %v6391 = vshll.u32 %v5465, 16
        %v6393 = vor.u32 %v6390, %v6391
        %v6394 = vsel %vm2090, %v6386, %v6393
        %v6396 = vshrl.u32 %v5592, 16
        %v6398 = vrot.slane %v6396, 7
        %v6400 = vshrl.u32 %v5600, 16
        %v6402 = vrot.slane %v6400, 7
        %v6403 = vshll.u32 %v5600, 16
        %v6405 = vor.u32 %v6402, %v6403
        %v6406 = vsel %vm2090, %v6398, %v6405
        %v6408 = vshrl.u32 %v5466, 16
        %v6410 = vrot.slane %v6408, 7
        %v6411 = vshll.u32 %v5466, 16
        %v6413 = vor.u32 %v6410, %v6411
        %v6414 = vsel %vm2090, %v6390, %v6413
        %v6416 = vshrl.u32 %v5608, 16
        %v6418 = vrot.slane %v6416, 7
        %v6419 = vshll.u32 %v5608, 16
        %v6421 = vor.u32 %v6418, %v6419
        %v6422 = vsel %vm2090, %v6402, %v6421
        %v6424 = vshrl.u32 %v5467, 16
        %v6426 = vrot.slane %v6424, 7
        %v6427 = vshll.u32 %v5467, 16
        %v6429 = vor.u32 %v6426, %v6427
        %v6430 = vsel %vm2090, %v6410, %v6429
        %v6432 = vshrl.u32 %v5616, 16
        %v6434 = vrot.slane %v6432, 7
        %v6435 = vshll.u32 %v5616, 16
        %v6437 = vor.u32 %v6434, %v6435
        %v6438 = vsel %vm2090, %v6418, %v6437
        %v6440 = vshrl.u32 %v5468, 16
        %v6442 = vrot.slane %v6440, 7
        %v6443 = vshll.u32 %v5468, 16
        %v6445 = vor.u32 %v6442, %v6443
        %v6446 = vsel %vm2090, %v6426, %v6445
        %v6448 = vshrl.u32 %v5624, 16
        %v6450 = vrot.slane %v6448, 7
        %v6451 = vshll.u32 %v5624, 16
        %v6453 = vor.u32 %v6450, %v6451
        %v6454 = vsel %vm2090, %v6434, %v6453
        %v6456 = vshrl.u32 %v5469, 16
        %v6458 = vrot.slane %v6456, 7
        %v6459 = vshll.u32 %v5469, 16
        %v6461 = vor.u32 %v6458, %v6459
        %v6462 = vsel %vm2090, %v6442, %v6461
        %v6464 = vshrl.u32 %v5632, 16
        %v6466 = vrot.slane %v6464, 7
        %v6467 = vshll.u32 %v5632, 16
        %v6469 = vor.u32 %v6466, %v6467
        %v6470 = vsel %vm2090, %v6450, %v6469
        %v6472 = vshrl.u32 %v5470, 16
        %v6474 = vrot.slane %v6472, 7
        %v6475 = vshll.u32 %v5470, 16
        %v6477 = vor.u32 %v6474, %v6475
        %v6478 = vsel %vm2090, %v6458, %v6477
        %v6480 = vshrl.u32 %v5640, 16
        %v6482 = vrot.slane %v6480, 7
        %v6483 = vshll.u32 %v5640, 16
        %v6485 = vor.u32 %v6482, %v6483
        %v6486 = vsel %vm2090, %v6466, %v6485
        %v6488 = vshrl.u32 %v5471, 16
        %v6490 = vrot.slane %v6488, 7
        %v6491 = vshll.u32 %v5471, 16
        %v6493 = vor.u32 %v6490, %v6491
        %v6494 = vsel %vm2090, %v6474, %v6493
        %v6496 = vshrl.u32 %v5648, 16
        %v6498 = vrot.slane %v6496, 7
        %v6499 = vshll.u32 %v5648, 16
        %v6501 = vor.u32 %v6498, %v6499
        %v6502 = vsel %vm2090, %v6482, %v6501
        %v6504 = vshrl.u32 %v5472, 16
        %v6506 = vrot.slane %v6504, 7
        %v6507 = vshll.u32 %v5472, 16
        %v6509 = vor.u32 %v6506, %v6507
        %v6510 = vsel %vm2090, %v6490, %v6509
        %v6512 = vshrl.u32 %v5656, 16
        %v6514 = vrot.slane %v6512, 7
        %v6515 = vshll.u32 %v5656, 16
        %v6517 = vor.u32 %v6514, %v6515
        %v6518 = vsel %vm2090, %v6498, %v6517
        %v6520 = vshrl.u32 %v5473, 16
        %v6522 = vrot.slane %v6520, 7
        %v6523 = vshll.u32 %v5473, 16
        %v6525 = vor.u32 %v6522, %v6523
        %v6526 = vsel %vm2090, %v6506, %v6525
        %v6528 = vshrl.u32 %v5664, 16
        %v6530 = vrot.slane %v6528, 7
        %v6531 = vshll.u32 %v5664, 16
        %v6533 = vor.u32 %v6530, %v6531
        %v6534 = vsel %vm2090, %v6514, %v6533
        %v6536 = vshrl.u32 %v5474, 16
        %v6538 = vrot.slane %v6536, 7
        %v6539 = vshll.u32 %v5474, 16
        %v6541 = vor.u32 %v6538, %v6539
        %v6542 = vsel %vm2090, %v6522, %v6541
        %v6544 = vshrl.u32 %v5672, 16
        %v6546 = vrot.slane %v6544, 7
        %v6547 = vshll.u32 %v5672, 16
        %v6549 = vor.u32 %v6546, %v6547
        %v6550 = vsel %vm2090, %v6530, %v6549
        %v6552 = vshrl.u32 %v5475, 16
        %v6554 = vrot.slane %v6552, 7
        %v6555 = vshll.u32 %v5475, 16
        %v6557 = vor.u32 %v6554, %v6555
        %v6558 = vsel %vm2090, %v6538, %v6557
        %v6560 = vshrl.u32 %v5680, 16
        %v6562 = vrot.slane %v6560, 7
        %v6563 = vshll.u32 %v5680, 16
        %v6565 = vor.u32 %v6562, %v6563
        %v6566 = vsel %vm2090, %v6546, %v6565
        %v6568 = vshrl.u32 %v5476, 16
        %v6570 = vrot.slane %v6568, 7
        %v6571 = vshll.u32 %v5476, 16
        %v6573 = vor.u32 %v6570, %v6571
        %v6574 = vsel %vm2090, %v6554, %v6573
        %v6576 = vshrl.u32 %v5688, 16
        %v6578 = vrot.slane %v6576, 7
        %v6579 = vshll.u32 %v5688, 16
        %v6581 = vor.u32 %v6578, %v6579
        %v6582 = vsel %vm2090, %v6562, %v6581
        %v6584 = vshrl.u32 %v5477, 16
        %v6586 = vrot.slane %v6584, 7
        %v6587 = vshll.u32 %v5477, 16
        %v6589 = vor.u32 %v6586, %v6587
        %v6590 = vsel %vm2090, %v6570, %v6589
        %v6592 = vshrl.u32 %v5696, 16
        %v6594 = vrot.slane %v6592, 7
        %v6595 = vshll.u32 %v5696, 16
        %v6597 = vor.u32 %v6594, %v6595
        %v6598 = vsel %vm2090, %v6578, %v6597
        %v6600 = vshrl.u32 %v5478, 16
        %v6602 = vrot.slane %v6600, 7
        %v6603 = vshll.u32 %v5478, 16
        %v6605 = vor.u32 %v6602, %v6603
        %v6606 = vsel %vm2090, %v6586, %v6605
        %v6608 = vshrl.u32 %v5704, 16
        %v6610 = vrot.slane %v6608, 7
        %v6611 = vshll.u32 %v5704, 16
        %v6613 = vor.u32 %v6610, %v6611
        %v6614 = vsel %vm2090, %v6594, %v6613
        %v6616 = vshrl.u32 %v5479, 16
        %v6618 = vrot.slane %v6616, 7
        %v6619 = vshll.u32 %v5479, 16
        %v6621 = vor.u32 %v6618, %v6619
        %v6622 = vsel %vm2090, %v6602, %v6621
        %v6624 = vshrl.u32 %v5712, 16
        %v6626 = vrot.slane %v6624, 7
        %v6627 = vshll.u32 %v5712, 16
        %v6629 = vor.u32 %v6626, %v6627
        %v6630 = vsel %vm2090, %v6610, %v6629
        %v6632 = vshrl.u32 %v5480, 16
        %v6634 = vrot.slane %v6632, 7
        %v6635 = vshll.u32 %v5480, 16
        %v6637 = vor.u32 %v6634, %v6635
        %v6638 = vsel %vm2090, %v6618, %v6637
        %v6640 = vshrl.u32 %v5715, 16
        %v6642 = vrot.slane %v6640, 7
        %v6643 = vshll.u32 %v5715, 16
        %v6645 = vor.u32 %v6642, %v6643
        %v6646 = vsel %vm2090, %v6626, %v6645
        %v6711 = vunpack.c.l.b16 %v5716
        %v6712 = vunpack.c.l.b16 %v5717
        %v6713 = vunpack.c.l.b16 %v5718
        %v6714 = vunpack.c.l.b16 %v5719
        %v6715 = vunpack.c.l.b16 %v5720
        %v6716 = vunpack.c.l.b16 %v5721
        %v6717 = vunpack.c.l.b16 %v5722
        %v6718 = vunpack.c.l.b16 %v5723
        %v6719 = vunpack.c.l.b16 %v5724
        %v6720 = vunpack.c.l.b16 %v5725
        %v6721 = vunpack.c.l.b16 %v5726
        %v6722 = vunpack.c.l.b16 %v5727
        %v6723 = vunpack.c.l.b16 %v5728
        %v6724 = vunpack.c.l.b16 %v5729
        %v6725 = vunpack.c.l.b16 %v5730
        %v6726 = vunpack.c.l.b16 %v5731
        %v6727 = vunpack.c.l.b16 %v5732
        %v6728 = vunpack.c.l.b16 %v5733
        %v6729 = vunpack.c.l.b16 %v5734
        %v6730 = vunpack.c.l.b16 %v5735
        %v6731 = vunpack.c.l.b16 %v5736
        %v6732 = vunpack.c.l.b16 %v5737
        %v6733 = vunpack.c.l.b16 %v5738
        %v6734 = vunpack.c.l.b16 %v5739
        %v6735 = vunpack.c.l.b16 %v5740
        %v6736 = vunpack.c.l.b16 %v5741
        %v6737 = vunpack.c.l.b16 %v5742
        %v6738 = vunpack.c.l.b16 %v5743
        %v6739 = vunpack.c.l.b16 %v5744
        %v6740 = vunpack.c.l.b16 %v5745
        %v6741 = vunpack.c.l.b16 %v5746
        %v6742 = vunpack.c.l.b16 %v5747
        %v6743 = vpack.c.b16 %v6712, %v6711
        %v6744 = vpack.c.b16 %v6714, %v6713
        %v6745 = vpack.c.b16 %v6716, %v6715
        %v6746 = vpack.c.b16 %v6718, %v6717
        %v6747 = vpack.c.b16 %v6720, %v6719
        %v6748 = vpack.c.b16 %v6722, %v6721
        %v6749 = vpack.c.b16 %v6724, %v6723
        %v6750 = vpack.c.b16 %v6726, %v6725
        %v6751 = vpack.c.b16 %v6728, %v6727
        %v6752 = vpack.c.b16 %v6730, %v6729
        %v6753 = vpack.c.b16 %v6732, %v6731
        %v6754 = vpack.c.b16 %v6734, %v6733
        %v6755 = vpack.c.b16 %v6736, %v6735
        %v6756 = vpack.c.b16 %v6738, %v6737
        %v6757 = vpack.c.b16 %v6740, %v6739
        %v6758 = vpack.c.b16 %v6742, %v6741
        %6775 = vmatprep.subr.bf16.mxu0 0
        %6776 = vmatpush1.bf16.msra.mxu0 %v6743
        %6777 = vmatprep.subr.bf16.mxu0 0
        %6778 = vmatpush1.bf16.msra.mxu0 %v6744
        %6779 = vmatprep.subr.bf16.mxu0 0
        %6780 = vmatpush1.bf16.msra.mxu0 %v6745
        %6781 = vmatprep.subr.bf16.mxu0 0
        %6782 = vmatpush1.bf16.msra.mxu0 %v6746
        %6783 = vmatprep.subr.bf16.mxu0 0
        %6784 = vmatpush1.bf16.msra.mxu0 %v6747
        %6785 = vmatprep.subr.bf16.mxu0 0
        %6786 = vmatpush1.bf16.msra.mxu0 %v6748
        %6787 = vmatprep.subr.bf16.mxu0 0
        %6788 = vmatpush1.bf16.msra.mxu0 %v6749
        %6789 = vmatprep.subr.bf16.mxu0 0
        %6790 = vmatpush1.bf16.msra.mxu0 %v6750
        %6791 = vmatprep.subr.bf16.mxu0 0
        %6792 = vmatpush1.bf16.msra.mxu0 %v6751
        %6793 = vmatprep.subr.bf16.mxu0 0
        %6794 = vmatpush1.bf16.msra.mxu0 %v6752
        %6795 = vmatprep.subr.bf16.mxu0 0
        %6796 = vmatpush1.bf16.msra.mxu0 %v6753
        %6797 = vmatprep.subr.bf16.mxu0 0
        %6798 = vmatpush1.bf16.msra.mxu0 %v6754
        %6799 = vmatprep.subr.bf16.mxu0 0
        %6800 = vmatpush1.bf16.msra.mxu0 %v6755
        %6801 = vmatprep.subr.bf16.mxu0 0
        %6802 = vmatpush1.bf16.msra.mxu0 %v6756
        %6803 = vmatprep.subr.bf16.mxu0 0
        %6804 = vmatpush1.bf16.msra.mxu0 %v6757
        %6805 = vmatprep.subr.bf16.mxu0 0
        %6806 = vmatpush1.bf16.msra.mxu0 %v6758
        %6807 = vmatprep.mubr.bf16.mxu0 %v6406
        %6808 = vmatmul.mubr.bf16.gmra.mrb[0].mxu0 %v6394
        %v6809 = vpop.f32.mrb[0].mxu0
        %v6810 = vadd.f32 %v6257, %v6809
        %v6811 = vpop.f32.mrb[0].mxu0
        %v6812 = vpop.f32.mrb[0].mxu0
        %v6813 = vadd.f32 %v6260, %v6812
        %v6814 = vpop.f32.mrb[0].mxu0
        %6815 = vmatprep.mubr.bf16.mxu0 %v6422
        %6816 = vmatmul.mubr.bf16.gmra.mrb[0].mxu0 %v6414
        %v6817 = vpop.f32.mrb[0].mxu0
        %v6818 = vadd.f32 %v6265, %v6817
        %v6819 = vpop.f32.mrb[0].mxu0
        %v6820 = vpop.f32.mrb[0].mxu0
        %v6821 = vadd.f32 %v6268, %v6820
        %v6822 = vpop.f32.mrb[0].mxu0
        %6823 = vmatprep.mubr.bf16.mxu0 %v6438
        %6824 = vmatmul.mubr.bf16.gmra.mrb[0].mxu0 %v6430
        %v6825 = vpop.f32.mrb[0].mxu0
        %v6826 = vadd.f32 %v6273, %v6825
        %v6827 = vpop.f32.mrb[0].mxu0
        %v6828 = vpop.f32.mrb[0].mxu0
        %v6829 = vadd.f32 %v6276, %v6828
        %v6830 = vpop.f32.mrb[0].mxu0
        %6831 = vmatprep.mubr.bf16.mxu0 %v6454
        %6832 = vmatmul.mubr.bf16.gmra.mrb[0].mxu0 %v6446
        %v6833 = vpop.f32.mrb[0].mxu0
        %v6834 = vadd.f32 %v6281, %v6833
        %v6835 = vpop.f32.mrb[0].mxu0
        %v6836 = vpop.f32.mrb[0].mxu0
        %v6837 = vadd.f32 %v6284, %v6836
        %v6838 = vpop.f32.mrb[0].mxu0
        %6839 = vmatprep.mubr.bf16.mxu0 %v6470
        %6840 = vmatmul.mubr.bf16.gmra.mrb[0].mxu0 %v6462
        %v6841 = vpop.f32.mrb[0].mxu0
        %v6842 = vadd.f32 %v6289, %v6841
        %v6843 = vpop.f32.mrb[0].mxu0
        %v6844 = vpop.f32.mrb[0].mxu0
        %v6845 = vadd.f32 %v6292, %v6844
        %v6846 = vpop.f32.mrb[0].mxu0
        %6847 = vmatprep.mubr.bf16.mxu0 %v6486
        %6848 = vmatmul.mubr.bf16.gmra.mrb[0].mxu0 %v6478
        %v6849 = vpop.f32.mrb[0].mxu0
        %v6850 = vadd.f32 %v6297, %v6849
        %v6851 = vpop.f32.mrb[0].mxu0
        %v6852 = vpop.f32.mrb[0].mxu0
        %v6853 = vadd.f32 %v6300, %v6852
        %v6854 = vpop.f32.mrb[0].mxu0
        %6855 = vmatprep.mubr.bf16.mxu0 %v6502
        %6856 = vmatmul.mubr.bf16.gmra.mrb[0].mxu0 %v6494
        %v6857 = vpop.f32.mrb[0].mxu0
        %v6858 = vadd.f32 %v6305, %v6857
        %v6859 = vpop.f32.mrb[0].mxu0
        %v6860 = vpop.f32.mrb[0].mxu0
        %v6861 = vadd.f32 %v6308, %v6860
        %v6862 = vpop.f32.mrb[0].mxu0
        %6863 = vmatprep.mubr.bf16.mxu0 %v6518
        %6864 = vmatmul.mubr.bf16.gmra.mrb[0].mxu0 %v6510
        %v6865 = vpop.f32.mrb[0].mxu0
        %v6866 = vadd.f32 %v6313, %v6865
        %v6867 = vpop.f32.mrb[0].mxu0
        %v6868 = vpop.f32.mrb[0].mxu0
        %v6869 = vadd.f32 %v6316, %v6868
        %v6870 = vpop.f32.mrb[0].mxu0
        %6871 = vmatprep.mubr.bf16.mxu0 %v6534
        %6872 = vmatmul.mubr.bf16.gmra.mrb[0].mxu0 %v6526
        %v6873 = vpop.f32.mrb[0].mxu0
        %v6874 = vadd.f32 %v6321, %v6873
        %v6875 = vpop.f32.mrb[0].mxu0
        %v6876 = vpop.f32.mrb[0].mxu0
        %v6877 = vadd.f32 %v6324, %v6876
        %v6878 = vpop.f32.mrb[0].mxu0
        %6879 = vmatprep.mubr.bf16.mxu0 %v6550
        %6880 = vmatmul.mubr.bf16.gmra.mrb[0].mxu0 %v6542
        %v6881 = vpop.f32.mrb[0].mxu0
        %v6882 = vadd.f32 %v6329, %v6881
        %v6883 = vpop.f32.mrb[0].mxu0
        %v6884 = vpop.f32.mrb[0].mxu0
        %v6885 = vadd.f32 %v6332, %v6884
        %v6886 = vpop.f32.mrb[0].mxu0
        %6887 = vmatprep.mubr.bf16.mxu0 %v6566
        %6888 = vmatmul.mubr.bf16.gmra.mrb[0].mxu0 %v6558
        %v6889 = vpop.f32.mrb[0].mxu0
        %v6890 = vadd.f32 %v6337, %v6889
        %v6891 = vpop.f32.mrb[0].mxu0
        %v6892 = vpop.f32.mrb[0].mxu0
        %v6893 = vadd.f32 %v6340, %v6892
        %v6894 = vpop.f32.mrb[0].mxu0
        %6895 = vmatprep.mubr.bf16.mxu0 %v6582
        %6896 = vmatmul.mubr.bf16.gmra.mrb[0].mxu0 %v6574
        %v6897 = vpop.f32.mrb[0].mxu0
        %v6898 = vadd.f32 %v6345, %v6897
        %v6899 = vpop.f32.mrb[0].mxu0
        %v6900 = vpop.f32.mrb[0].mxu0
        %v6901 = vadd.f32 %v6348, %v6900
        %v6902 = vpop.f32.mrb[0].mxu0
        %6903 = vmatprep.mubr.bf16.mxu0 %v6598
        %6904 = vmatmul.mubr.bf16.gmra.mrb[0].mxu0 %v6590
        %v6905 = vpop.f32.mrb[0].mxu0
        %v6906 = vadd.f32 %v6353, %v6905
        %v6907 = vpop.f32.mrb[0].mxu0
        %v6908 = vpop.f32.mrb[0].mxu0
        %v6909 = vadd.f32 %v6356, %v6908
        %v6910 = vpop.f32.mrb[0].mxu0
        %6911 = vmatprep.mubr.bf16.mxu0 %v6614
        %6912 = vmatmul.mubr.bf16.gmra.mrb[0].mxu0 %v6606
        %v6913 = vpop.f32.mrb[0].mxu0
        %v6914 = vadd.f32 %v6361, %v6913
        %v6915 = vpop.f32.mrb[0].mxu0
        %v6916 = vpop.f32.mrb[0].mxu0
        %v6917 = vadd.f32 %v6364, %v6916
        %v6918 = vpop.f32.mrb[0].mxu0
        %6919 = vmatprep.mubr.bf16.mxu0 %v6630
        %6920 = vmatmul.mubr.bf16.gmra.mrb[0].mxu0 %v6622
        %v6921 = vpop.f32.mrb[0].mxu0
        %v6922 = vadd.f32 %v6369, %v6921
        %v6923 = vpop.f32.mrb[0].mxu0
        %v6924 = vpop.f32.mrb[0].mxu0
        %v6925 = vadd.f32 %v6372, %v6924
        %v6926 = vpop.f32.mrb[0].mxu0
        %6927 = vmatprep.mubr.bf16.mxu0 %v6646
        %6928 = vmatmul.mubr.bf16.gmra.mrb[0].mxu0 %v6638
        %v6929 = vpop.f32.mrb[0].mxu0
        %v6930 = vadd.f32 %v6377, %v6929
        %v6931 = vpop.f32.mrb[0].mxu0
        %v6932 = vpop.f32.mrb[0].mxu0
        %v6933 = vadd.f32 %v6380, %v6932
        %v6934 = vpop.f32.mrb[0].mxu0
        %6935 = vdwg.mxu0
        %v6937 = vshrl.u32 %v5519, 16
        %v6939 = vshll.u32 %v5519, 16
        %v6941 = vrot.slane %v6939, 1
        %v6942 = vor.u32 %v6937, %v6941
        %v6944 = vshll.u32 %v5520, 16
        %v6946 = vrot.slane %v6944, 1
        %v6947 = vsel %vm1815, %v6942, %v6946
        %v6948 = vshrl.u32 %v5520, 16
        %v6950 = vor.u32 %v6948, %v6946
        %v6952 = vshll.u32 %v5521, 16
        %v6954 = vrot.slane %v6952, 1
        %v6955 = vsel %vm1815, %v6950, %v6954
        %v6956 = vshrl.u32 %v5521, 16
        %v6958 = vor.u32 %v6956, %v6954
        %v6960 = vshll.u32 %v5522, 16
        %v6962 = vrot.slane %v6960, 1
        %v6963 = vsel %vm1815, %v6958, %v6962
        %v6964 = vshrl.u32 %v5522, 16
        %v6966 = vor.u32 %v6964, %v6962
        %v6968 = vshll.u32 %v5523, 16
        %v6970 = vrot.slane %v6968, 1
        %v6971 = vsel %vm1815, %v6966, %v6970
        %v6972 = vshrl.u32 %v5523, 16
        %v6974 = vor.u32 %v6972, %v6970
        %v6976 = vshll.u32 %v5524, 16
        %v6978 = vrot.slane %v6976, 1
        %v6979 = vsel %vm1815, %v6974, %v6978
        %v6980 = vshrl.u32 %v5524, 16
        %v6982 = vor.u32 %v6980, %v6978
        %v6984 = vshll.u32 %v5525, 16
        %v6986 = vrot.slane %v6984, 1
        %v6987 = vsel %vm1815, %v6982, %v6986
        %v6988 = vshrl.u32 %v5525, 16
        %v6990 = vor.u32 %v6988, %v6986
        %v6992 = vshll.u32 %v5526, 16
        %v6994 = vrot.slane %v6992, 1
        %v6995 = vsel %vm1815, %v6990, %v6994
        %v6996 = vshrl.u32 %v5526, 16
        %v6998 = vor.u32 %v6996, %v6994
        %v7000 = vshll.u32 %v5527, 16
        %v7002 = vrot.slane %v7000, 1
        %v7003 = vsel %vm1815, %v6998, %v7002
        %v7004 = vshrl.u32 %v5527, 16
        %v7006 = vor.u32 %v7004, %v7002
        %v7008 = vshll.u32 %v5528, 16
        %v7010 = vrot.slane %v7008, 1
        %v7011 = vsel %vm1815, %v7006, %v7010
        %v7012 = vshrl.u32 %v5528, 16
        %v7014 = vor.u32 %v7012, %v7010
        %v7016 = vshll.u32 %v5529, 16
        %v7018 = vrot.slane %v7016, 1
        %v7019 = vsel %vm1815, %v7014, %v7018
        %v7020 = vshrl.u32 %v5529, 16
        %v7022 = vor.u32 %v7020, %v7018
        %v7024 = vshll.u32 %v5530, 16
        %v7026 = vrot.slane %v7024, 1
        %v7027 = vsel %vm1815, %v7022, %v7026
        %v7028 = vshrl.u32 %v5530, 16
        %v7030 = vor.u32 %v7028, %v7026
        %v7032 = vshll.u32 %v5531, 16
        %v7034 = vrot.slane %v7032, 1
        %v7035 = vsel %vm1815, %v7030, %v7034
        %v7036 = vshrl.u32 %v5531, 16
        %v7038 = vor.u32 %v7036, %v7034
        %v7040 = vshll.u32 %v5532, 16
        %v7042 = vrot.slane %v7040, 1
        %v7043 = vsel %vm1815, %v7038, %v7042
        %v7044 = vshrl.u32 %v5532, 16
        %v7046 = vor.u32 %v7044, %v7042
        %v7048 = vshll.u32 %v5533, 16
        %v7050 = vrot.slane %v7048, 1
        %v7051 = vsel %vm1815, %v7046, %v7050
        %v7052 = vshrl.u32 %v5533, 16
        %v7054 = vor.u32 %v7052, %v7050
        %v7056 = vshll.u32 %v5534, 16
        %v7058 = vrot.slane %v7056, 1
        %v7059 = vsel %vm1815, %v7054, %v7058
        %v7060 = vshrl.u32 %v5534, 16
        %v7062 = vor.u32 %v7060, %v7058
        %v7064 = vshll.u32 %v5535, 16
        %v7066 = vrot.slane %v7064, 1
        %v7067 = vsel %vm1815, %v7062, %v7066
        %v7084 = vld [vmem:[#allocation11 + $0x100] sm:$0xf]
        %v7085 = vld [vmem:[#allocation11 + $0x104] sm:$0xf]
        %v7086 = vld [vmem:[#allocation11 + $0x108] sm:$0xf]
        %v7087 = vld [vmem:[#allocation11 + $0x10c] sm:$0xf]
        %v7088 = vld [vmem:[#allocation11 + $0x110] sm:$0xf]
        %v7089 = vld [vmem:[#allocation11 + $0x114] sm:$0xf]
        %v7090 = vld [vmem:[#allocation11 + $0x118] sm:$0xf]
        %v7091 = vld [vmem:[#allocation11 + $0x11c] sm:$0xf]
        %v7092 = vld [vmem:[#allocation11 + $0x120] sm:$0xf]
        %v7093 = vld [vmem:[#allocation11 + $0x124] sm:$0xf]
        %v7094 = vld [vmem:[#allocation11 + $0x128] sm:$0xf]
        %v7095 = vld [vmem:[#allocation11 + $0x12c] sm:$0xf]
        %v7096 = vld [vmem:[#allocation11 + $0x130] sm:$0xf]
        %v7097 = vld [vmem:[#allocation11 + $0x134] sm:$0xf]
        %v7098 = vld [vmem:[#allocation11 + $0x138] sm:$0xf]
        %v7099 = vld [vmem:[#allocation11 + $0x13c] sm:$0xf]
        %v7100 = vld [vmem:[#allocation11 + $0x140] sm:$0xf]
        %v7101 = vld [vmem:[#allocation11 + $0x144] sm:$0xf]
        %v7102 = vld [vmem:[#allocation11 + $0x148] sm:$0xf]
        %v7103 = vld [vmem:[#allocation11 + $0x14c] sm:$0xf]
        %v7104 = vld [vmem:[#allocation11 + $0x150] sm:$0xf]
        %v7105 = vld [vmem:[#allocation11 + $0x154] sm:$0xf]
        %v7106 = vld [vmem:[#allocation11 + $0x158] sm:$0xf]
        %v7107 = vld [vmem:[#allocation11 + $0x15c] sm:$0xf]
        %v7108 = vld [vmem:[#allocation11 + $0x160] sm:$0xf]
        %v7109 = vld [vmem:[#allocation11 + $0x164] sm:$0xf]
        %v7110 = vld [vmem:[#allocation11 + $0x168] sm:$0xf]
        %v7111 = vld [vmem:[#allocation11 + $0x16c] sm:$0xf]
        %v7112 = vld [vmem:[#allocation11 + $0x170] sm:$0xf]
        %v7113 = vld [vmem:[#allocation11 + $0x174] sm:$0xf]
        %v7114 = vld [vmem:[#allocation11 + $0x178] sm:$0xf]
        %v7115 = vld [vmem:[#allocation11 + $0x17c] sm:$0xf]
        %v7148 = vunpack.c.l.b16 %v7084
        %v7149 = vunpack.c.l.b16 %v7085
        %v7150 = vunpack.c.l.b16 %v7086
        %v7151 = vunpack.c.l.b16 %v7087
        %v7152 = vunpack.c.l.b16 %v7088
        %v7153 = vunpack.c.l.b16 %v7089
        %v7154 = vunpack.c.l.b16 %v7090
        %v7155 = vunpack.c.l.b16 %v7091
        %v7156 = vunpack.c.l.b16 %v7092
        %v7157 = vunpack.c.l.b16 %v7093
        %v7158 = vunpack.c.l.b16 %v7094
        %v7159 = vunpack.c.l.b16 %v7095
        %v7160 = vunpack.c.l.b16 %v7096
        %v7161 = vunpack.c.l.b16 %v7097
        %v7162 = vunpack.c.l.b16 %v7098
        %v7163 = vunpack.c.l.b16 %v7099
        %v7164 = vunpack.c.l.b16 %v7100
        %v7165 = vunpack.c.l.b16 %v7101
        %v7166 = vunpack.c.l.b16 %v7102
        %v7167 = vunpack.c.l.b16 %v7103
        %v7168 = vunpack.c.l.b16 %v7104
        %v7169 = vunpack.c.l.b16 %v7105
        %v7170 = vunpack.c.l.b16 %v7106
        %v7171 = vunpack.c.l.b16 %v7107
        %v7172 = vunpack.c.l.b16 %v7108
        %v7173 = vunpack.c.l.b16 %v7109
        %v7174 = vunpack.c.l.b16 %v7110
        %v7175 = vunpack.c.l.b16 %v7111
        %v7176 = vunpack.c.l.b16 %v7112
        %v7177 = vunpack.c.l.b16 %v7113
        %v7178 = vunpack.c.l.b16 %v7114
        %v7179 = vunpack.c.l.b16 %v7115
        %v7180 = vpack.c.b16 %v7149, %v7148
        %v7181 = vpack.c.b16 %v7151, %v7150
        %v7182 = vpack.c.b16 %v7153, %v7152
        %v7183 = vpack.c.b16 %v7155, %v7154
        %v7184 = vpack.c.b16 %v7157, %v7156
        %v7185 = vpack.c.b16 %v7159, %v7158
        %v7186 = vpack.c.b16 %v7161, %v7160
        %v7187 = vpack.c.b16 %v7163, %v7162
        %v7188 = vpack.c.b16 %v7165, %v7164
        %v7189 = vpack.c.b16 %v7167, %v7166
        %v7190 = vpack.c.b16 %v7169, %v7168
        %v7191 = vpack.c.b16 %v7171, %v7170
        %v7192 = vpack.c.b16 %v7173, %v7172
        %v7193 = vpack.c.b16 %v7175, %v7174
        %v7194 = vpack.c.b16 %v7177, %v7176
        %v7195 = vpack.c.b16 %v7179, %v7178
        %7212 = vmatprep.subr.bf16.mxu0 0
        %7213 = vmatpush1.bf16.msra.mxu0 %v7180
        %7214 = vmatprep.subr.bf16.mxu0 0
        %7215 = vmatpush1.bf16.msra.mxu0 %v7181
        %7216 = vmatprep.subr.bf16.mxu0 0
        %7217 = vmatpush1.bf16.msra.mxu0 %v7182
        %7218 = vmatprep.subr.bf16.mxu0 0
        %7219 = vmatpush1.bf16.msra.mxu0 %v7183
        %7220 = vmatprep.subr.bf16.mxu0 0
        %7221 = vmatpush1.bf16.msra.mxu0 %v7184
        %7222 = vmatprep.subr.bf16.mxu0 0
        %7223 = vmatpush1.bf16.msra.mxu0 %v7185
        %7224 = vmatprep.subr.bf16.mxu0 0
        %7225 = vmatpush1.bf16.msra.mxu0 %v7186
        %7226 = vmatprep.subr.bf16.mxu0 0
        %7227 = vmatpush1.bf16.msra.mxu0 %v7187
        %7228 = vmatprep.subr.bf16.mxu0 0
        %7229 = vmatpush1.bf16.msra.mxu0 %v7188
        %7230 = vmatprep.subr.bf16.mxu0 0
        %7231 = vmatpush1.bf16.msra.mxu0 %v7189
        %7232 = vmatprep.subr.bf16.mxu0 0
        %7233 = vmatpush1.bf16.msra.mxu0 %v7190
        %7234 = vmatprep.subr.bf16.mxu0 0
        %7235 = vmatpush1.bf16.msra.mxu0 %v7191
        %7236 = vmatprep.subr.bf16.mxu0 0
        %7237 = vmatpush1.bf16.msra.mxu0 %v7192
        %7238 = vmatprep.subr.bf16.mxu0 0
        %7239 = vmatpush1.bf16.msra.mxu0 %v7193
        %7240 = vmatprep.subr.bf16.mxu0 0
        %7241 = vmatpush1.bf16.msra.mxu0 %v7194
        %7242 = vmatprep.subr.bf16.mxu0 0
        %7243 = vmatpush1.bf16.msra.mxu0 %v7195
        %7244 = vmatprep.mubr.bf16.mxu0 %v6947
        %7245 = vmatmul.mubr.bf16.gmra.mrb[0].mxu0 %v5415
        %v7246 = vpop.f32.mrb[0].mxu0
        %v7247 = vadd.f32 0.0, %v7246
        %v7248 = vpop.f32.mrb[0].mxu0
        %v7249 = vpop.f32.mrb[0].mxu0
        %v7250 = vadd.f32 0.0, %v7249
        %v7251 = vpop.f32.mrb[0].mxu0
        %7252 = vmatprep.mubr.bf16.mxu0 %v6955
        %7253 = vmatmul.mubr.bf16.gmra.mrb[0].mxu0 %v5416
        %v7254 = vpop.f32.mrb[0].mxu0
        %v7255 = vadd.f32 0.0, %v7254
        %v7256 = vpop.f32.mrb[0].mxu0
        %v7257 = vpop.f32.mrb[0].mxu0
        %v7258 = vadd.f32 0.0, %v7257
        %v7259 = vpop.f32.mrb[0].mxu0
        %7260 = vmatprep.mubr.bf16.mxu0 %v6963
        %7261 = vmatmul.mubr.bf16.gmra.mrb[0].mxu0 %v5417
        %v7262 = vpop.f32.mrb[0].mxu0
        %v7263 = vadd.f32 0.0, %v7262
        %v7264 = vpop.f32.mrb[0].mxu0
        %v7265 = vpop.f32.mrb[0].mxu0
        %v7266 = vadd.f32 0.0, %v7265
        %v7267 = vpop.f32.mrb[0].mxu0
        %7268 = vmatprep.mubr.bf16.mxu0 %v6971
        %7269 = vmatmul.mubr.bf16.gmra.mrb[0].mxu0 %v5418
        %v7270 = vpop.f32.mrb[0].mxu0
        %v7271 = vadd.f32 0.0, %v7270
        %v7272 = vpop.f32.mrb[0].mxu0
        %v7273 = vpop.f32.mrb[0].mxu0
        %v7274 = vadd.f32 0.0, %v7273
        %v7275 = vpop.f32.mrb[0].mxu0
        %7276 = vmatprep.mubr.bf16.mxu0 %v6979
        %7277 = vmatmul.mubr.bf16.gmra.mrb[0].mxu0 %v5419
        %v7278 = vpop.f32.mrb[0].mxu0
        %v7279 = vadd.f32 0.0, %v7278
        %v7280 = vpop.f32.mrb[0].mxu0
        %v7281 = vpop.f32.mrb[0].mxu0
        %v7282 = vadd.f32 0.0, %v7281
        %v7283 = vpop.f32.mrb[0].mxu0
        %7284 = vmatprep.mubr.bf16.mxu0 %v6987
        %7285 = vmatmul.mubr.bf16.gmra.mrb[0].mxu0 %v5420
        %v7286 = vpop.f32.mrb[0].mxu0
        %v7287 = vadd.f32 0.0, %v7286
        %v7288 = vpop.f32.mrb[0].mxu0
        %v7289 = vpop.f32.mrb[0].mxu0
        %v7290 = vadd.f32 0.0, %v7289
        %v7291 = vpop.f32.mrb[0].mxu0
        %7292 = vmatprep.mubr.bf16.mxu0 %v6995
        %7293 = vmatmul.mubr.bf16.gmra.mrb[0].mxu0 %v5421
        %v7294 = vpop.f32.mrb[0].mxu0
        %v7295 = vadd.f32 0.0, %v7294
        %v7296 = vpop.f32.mrb[0].mxu0
        %v7297 = vpop.f32.mrb[0].mxu0
        %v7298 = vadd.f32 0.0, %v7297
        %v7299 = vpop.f32.mrb[0].mxu0
        %7300 = vmatprep.mubr.bf16.mxu0 %v7003
        %7301 = vmatmul.mubr.bf16.gmra.mrb[0].mxu0 %v5422
        %v7302 = vpop.f32.mrb[0].mxu0
        %v7303 = vadd.f32 0.0, %v7302
        %v7304 = vpop.f32.mrb[0].mxu0
        %v7305 = vpop.f32.mrb[0].mxu0
        %v7306 = vadd.f32 0.0, %v7305
        %v7307 = vpop.f32.mrb[0].mxu0
        %7308 = vmatprep.mubr.bf16.mxu0 %v7011
        %7309 = vmatmul.mubr.bf16.gmra.mrb[0].mxu0 %v5423
        %v7310 = vpop.f32.mrb[0].mxu0
        %v7311 = vadd.f32 0.0, %v7310
        %v7312 = vpop.f32.mrb[0].mxu0
        %v7313 = vpop.f32.mrb[0].mxu0
        %v7314 = vadd.f32 0.0, %v7313
        %v7315 = vpop.f32.mrb[0].mxu0
        %7316 = vmatprep.mubr.bf16.mxu0 %v7019
        %7317 = vmatmul.mubr.bf16.gmra.mrb[0].mxu0 %v5424
        %v7318 = vpop.f32.mrb[0].mxu0
        %v7319 = vadd.f32 0.0, %v7318
        %v7320 = vpop.f32.mrb[0].mxu0
        %v7321 = vpop.f32.mrb[0].mxu0
        %v7322 = vadd.f32 0.0, %v7321
        %v7323 = vpop.f32.mrb[0].mxu0
        %7324 = vmatprep.mubr.bf16.mxu0 %v7027
        %7325 = vmatmul.mubr.bf16.gmra.mrb[0].mxu0 %v5425
        %v7326 = vpop.f32.mrb[0].mxu0
        %v7327 = vadd.f32 0.0, %v7326
        %v7328 = vpop.f32.mrb[0].mxu0
        %v7329 = vpop.f32.mrb[0].mxu0
        %v7330 = vadd.f32 0.0, %v7329
        %v7331 = vpop.f32.mrb[0].mxu0
        %7332 = vmatprep.mubr.bf16.mxu0 %v7035
        %7333 = vmatmul.mubr.bf16.gmra.mrb[0].mxu0 %v5426
        %v7334 = vpop.f32.mrb[0].mxu0
        %v7335 = vadd.f32 0.0, %v7334
        %v7336 = vpop.f32.mrb[0].mxu0
        %v7337 = vpop.f32.mrb[0].mxu0
        %v7338 = vadd.f32 0.0, %v7337
        %v7339 = vpop.f32.mrb[0].mxu0
        %7340 = vmatprep.mubr.bf16.mxu0 %v7043
        %7341 = vmatmul.mubr.bf16.gmra.mrb[0].mxu0 %v5427
        %v7342 = vpop.f32.mrb[0].mxu0
        %v7343 = vadd.f32 0.0, %v7342
        %v7344 = vpop.f32.mrb[0].mxu0
        %v7345 = vpop.f32.mrb[0].mxu0
        %v7346 = vadd.f32 0.0, %v7345
        %v7347 = vpop.f32.mrb[0].mxu0
        %7348 = vmatprep.mubr.bf16.mxu0 %v7051
        %7349 = vmatmul.mubr.bf16.gmra.mrb[0].mxu0 %v5428
        %v7350 = vpop.f32.mrb[0].mxu0
        %v7351 = vadd.f32 0.0, %v7350
        %v7352 = vpop.f32.mrb[0].mxu0
        %v7353 = vpop.f32.mrb[0].mxu0
        %v7354 = vadd.f32 0.0, %v7353
        %v7355 = vpop.f32.mrb[0].mxu0
        %7356 = vmatprep.mubr.bf16.mxu0 %v7059
        %7357 = vmatmul.mubr.bf16.gmra.mrb[0].mxu0 %v5429
        %v7358 = vpop.f32.mrb[0].mxu0
        %v7359 = vadd.f32 0.0, %v7358
        %v7360 = vpop.f32.mrb[0].mxu0
        %v7361 = vpop.f32.mrb[0].mxu0
        %v7362 = vadd.f32 0.0, %v7361
        %v7363 = vpop.f32.mrb[0].mxu0
        %7364 = vmatprep.mubr.bf16.mxu0 %v7067
        %7365 = vmatmul.mubr.bf16.gmra.mrb[0].mxu0 %v5430
        %v7366 = vpop.f32.mrb[0].mxu0
        %v7367 = vadd.f32 0.0, %v7366
        %v7368 = vpop.f32.mrb[0].mxu0
        %v7369 = vpop.f32.mrb[0].mxu0
        %v7370 = vadd.f32 0.0, %v7369
        %v7371 = vpop.f32.mrb[0].mxu0
        %7372 = vdwg.mxu0
        %v7373 = vadd.f32 %v6810, %v7247
        %v7374 = vadd.f32 %v6813, %v7250
        %v7375 = vadd.f32 %v6818, %v7255
        %v7376 = vadd.f32 %v6821, %v7258
        %v7377 = vadd.f32 %v6826, %v7263
        %v7378 = vadd.f32 %v6829, %v7266
        %v7379 = vadd.f32 %v6834, %v7271
        %v7380 = vadd.f32 %v6837, %v7274
        %v7381 = vadd.f32 %v6842, %v7279
        %v7382 = vadd.f32 %v6845, %v7282
        %v7383 = vadd.f32 %v6850, %v7287
        %v7384 = vadd.f32 %v6853, %v7290
        %v7385 = vadd.f32 %v6858, %v7295
        %v7386 = vadd.f32 %v6861, %v7298
        %v7387 = vadd.f32 %v6866, %v7303
        %v7388 = vadd.f32 %v6869, %v7306
        %v7389 = vadd.f32 %v6874, %v7311
        %v7390 = vadd.f32 %v6877, %v7314
        %v7391 = vadd.f32 %v6882, %v7319
        %v7392 = vadd.f32 %v6885, %v7322
        %v7393 = vadd.f32 %v6890, %v7327
        %v7394 = vadd.f32 %v6893, %v7330
        %v7395 = vadd.f32 %v6898, %v7335
        %v7396 = vadd.f32 %v6901, %v7338
        %v7397 = vadd.f32 %v6906, %v7343
        %v7398 = vadd.f32 %v6909, %v7346
        %v7399 = vadd.f32 %v6914, %v7351
        %v7400 = vadd.f32 %v6917, %v7354
        %v7401 = vadd.f32 %v6922, %v7359
        %v7402 = vadd.f32 %v6925, %v7362
        %v7403 = vadd.f32 %v6930, %v7367
        %v7404 = vadd.f32 %v6933, %v7370
        %v7406 = vshll.u32 %v5500, 16
        %v7408 = vrot.slane %v7406, 1
        %v7409 = vsel %vm1815, %v5715, %v7408
        %v7410 = vshrl.u32 %v5500, 16
        %v7412 = vor.u32 %v7410, %v7408
        %v7414 = vshll.u32 %v5537, 16
        %v7416 = vrot.slane %v7414, 1
        %v7417 = vsel %vm1815, %v7412, %v7416
        %v7418 = vshrl.u32 %v5537, 16
        %v7420 = vor.u32 %v7418, %v7416
        %v7421 = vld [vmem:[#allocation11 + $0x180] sm:$0xf]
        %v7422 = vld [vmem:[#allocation11 + $0x184] sm:$0xf]
        %v7423 = vld [vmem:[#allocation11 + $0x188] sm:$0xf]
        %v7424 = vld [vmem:[#allocation11 + $0x18c] sm:$0xf]
        %v7425 = vld [vmem:[#allocation11 + $0x190] sm:$0xf]
        %v7426 = vld [vmem:[#allocation11 + $0x194] sm:$0xf]
        %v7427 = vld [vmem:[#allocation11 + $0x198] sm:$0xf]
        %v7428 = vld [vmem:[#allocation11 + $0x19c] sm:$0xf]
        %v7429 = vld [vmem:[#allocation11 + $0x1a0] sm:$0xf]
        %v7430 = vld [vmem:[#allocation11 + $0x1a4] sm:$0xf]
        %v7431 = vld [vmem:[#allocation11 + $0x1a8] sm:$0xf]
        %v7432 = vld [vmem:[#allocation11 + $0x1ac] sm:$0xf]
        %v7433 = vld [vmem:[#allocation11 + $0x1b0] sm:$0xf]
        %v7434 = vld [vmem:[#allocation11 + $0x1b4] sm:$0xf]
        %v7435 = vld [vmem:[#allocation11 + $0x1b8] sm:$0xf]
        %v7436 = vld [vmem:[#allocation11 + $0x1bc] sm:$0xf]
        %v7437 = vld [vmem:[#allocation11 + $0x1c0] sm:$0xf]
        %v7438 = vld [vmem:[#allocation11 + $0x1c4] sm:$0xf]
        %v7439 = vld [vmem:[#allocation11 + $0x1c8] sm:$0xf]
        %v7440 = vld [vmem:[#allocation11 + $0x1cc] sm:$0xf]
        %v7441 = vld [vmem:[#allocation11 + $0x1d0] sm:$0xf]
        %v7442 = vld [vmem:[#allocation11 + $0x1d4] sm:$0xf]
        %v7443 = vld [vmem:[#allocation11 + $0x1d8] sm:$0xf]
        %v7444 = vld [vmem:[#allocation11 + $0x1dc] sm:$0xf]
        %v7445 = vld [vmem:[#allocation11 + $0x1e0] sm:$0xf]
        %v7446 = vld [vmem:[#allocation11 + $0x1e4] sm:$0xf]
        %v7447 = vld [vmem:[#allocation11 + $0x1e8] sm:$0xf]
        %v7448 = vld [vmem:[#allocation11 + $0x1ec] sm:$0xf]
        %v7449 = vld [vmem:[#allocation11 + $0x1f0] sm:$0xf]
        %v7450 = vld [vmem:[#allocation11 + $0x1f4] sm:$0xf]
        %v7451 = vld [vmem:[#allocation11 + $0x1f8] sm:$0xf]
        %v7452 = vld [vmem:[#allocation11 + $0x1fc] sm:$0xf]
        %v7454 = vshrl.u32 %v5538, 16
        %v7456 = vrot.slane %v7454, 7
        %v7458 = vshrl.u32 %v5539, 16
        %v7460 = vrot.slane %v7458, 7
        %v7461 = vshll.u32 %v5539, 16
        %v7463 = vor.u32 %v7460, %v7461
        %v7464 = vsel %vm2090, %v7456, %v7463
        %v7466 = vshrl.u32 %v5607, 16
        %v7468 = vrot.slane %v7466, 7
        %v7469 = vsel %vm2090, %v7468, %v6437
        %v7471 = vshrl.u32 %v5540, 16
        %v7473 = vrot.slane %v7471, 7
        %v7474 = vshll.u32 %v5540, 16
        %v7476 = vor.u32 %v7473, %v7474
        %v7477 = vsel %vm2090, %v7460, %v7476
        %v7479 = vshrl.u32 %v5541, 16
        %v7481 = vrot.slane %v7479, 7
        %v7482 = vshll.u32 %v5541, 16
        %v7484 = vor.u32 %v7481, %v7482
        %v7485 = vsel %vm2090, %v7473, %v7484
        %v7487 = vshrl.u32 %v5542, 16
        %v7489 = vrot.slane %v7487, 7
        %v7490 = vshll.u32 %v5542, 16
        %v7492 = vor.u32 %v7489, %v7490
        %v7493 = vsel %vm2090, %v7481, %v7492
        %v7495 = vshrl.u32 %v5543, 16
        %v7497 = vrot.slane %v7495, 7
        %v7498 = vshll.u32 %v5543, 16
        %v7500 = vor.u32 %v7497, %v7498
        %v7501 = vsel %vm2090, %v7489, %v7500
        %v7503 = vshrl.u32 %v5544, 16
        %v7505 = vrot.slane %v7503, 7
        %v7506 = vshll.u32 %v5544, 16
        %v7508 = vor.u32 %v7505, %v7506
        %v7509 = vsel %vm2090, %v7497, %v7508
        %v7511 = vshrl.u32 %v5545, 16
        %v7513 = vrot.slane %v7511, 7
        %v7514 = vshll.u32 %v5545, 16
        %v7516 = vor.u32 %v7513, %v7514
        %v7517 = vsel %vm2090, %v7505, %v7516
        %v7519 = vshrl.u32 %v5546, 16
        %v7521 = vrot.slane %v7519, 7
        %v7522 = vshll.u32 %v5546, 16
        %v7524 = vor.u32 %v7521, %v7522
        %v7525 = vsel %vm2090, %v7513, %v7524
        %v7527 = vshrl.u32 %v5547, 16
        %v7529 = vrot.slane %v7527, 7
        %v7530 = vshll.u32 %v5547, 16
        %v7532 = vor.u32 %v7529, %v7530
        %v7533 = vsel %vm2090, %v7521, %v7532
        %v7535 = vshrl.u32 %v5548, 16
        %v7537 = vrot.slane %v7535, 7
        %v7538 = vshll.u32 %v5548, 16
        %v7540 = vor.u32 %v7537, %v7538
        %v7541 = vsel %vm2090, %v7529, %v7540
        %v7543 = vshrl.u32 %v5549, 16
        %v7545 = vrot.slane %v7543, 7
        %v7546 = vshll.u32 %v5549, 16
        %v7548 = vor.u32 %v7545, %v7546
        %v7549 = vsel %vm2090, %v7537, %v7548
        %v7551 = vshrl.u32 %v5550, 16
        %v7553 = vrot.slane %v7551, 7
        %v7554 = vshll.u32 %v5550, 16
        %v7556 = vor.u32 %v7553, %v7554
        %v7557 = vsel %vm2090, %v7545, %v7556
        %v7559 = vshrl.u32 %v5551, 16
        %v7561 = vrot.slane %v7559, 7
        %v7562 = vshll.u32 %v5551, 16
        %v7564 = vor.u32 %v7561, %v7562
        %v7565 = vsel %vm2090, %v7553, %v7564
        %v7567 = vshrl.u32 %v5552, 16
        %v7569 = vrot.slane %v7567, 7
        %v7570 = vshll.u32 %v5552, 16
        %v7572 = vor.u32 %v7569, %v7570
        %v7573 = vsel %vm2090, %v7561, %v7572
        %v7575 = vshrl.u32 %v7409, 16
        %v7577 = vrot.slane %v7575, 7
        %v7578 = vshll.u32 %v7409, 16
        %v7580 = vor.u32 %v7577, %v7578
        %v7581 = vsel %vm2090, %v6626, %v7580
        %v7583 = vshrl.u32 %v5553, 16
        %v7585 = vrot.slane %v7583, 7
        %v7586 = vshll.u32 %v5553, 16
        %v7588 = vor.u32 %v7585, %v7586
        %v7589 = vsel %vm2090, %v7569, %v7588
        %v7591 = vshrl.u32 %v7417, 16
        %v7593 = vrot.slane %v7591, 7
        %v7594 = vshll.u32 %v7417, 16
        %v7596 = vor.u32 %v7593, %v7594
        %v7597 = vsel %vm2090, %v7577, %v7596
        %v7599 = vshrl.u32 %v5554, 16
        %v7601 = vrot.slane %v7599, 7
        %v7602 = vshll.u32 %v5554, 16
        %v7604 = vor.u32 %v7601, %v7602
        %v7605 = vsel %vm2090, %v7585, %v7604
        %v7607 = vshrl.u32 %v7420, 16
        %v7609 = vrot.slane %v7607, 7
        %v7610 = vshll.u32 %v7420, 16
        %v7612 = vor.u32 %v7609, %v7610
        %v7613 = vsel %vm2090, %v7593, %v7612
        %v7666 = vunpack.c.l.b16 %v7421
        %v7667 = vunpack.c.l.b16 %v7422
        %v7668 = vunpack.c.l.b16 %v7423
        %v7669 = vunpack.c.l.b16 %v7424
        %v7670 = vunpack.c.l.b16 %v7425
        %v7671 = vunpack.c.l.b16 %v7426
        %v7672 = vunpack.c.l.b16 %v7427
        %v7673 = vunpack.c.l.b16 %v7428
        %v7674 = vunpack.c.l.b16 %v7429
        %v7675 = vunpack.c.l.b16 %v7430
        %v7676 = vunpack.c.l.b16 %v7431
        %v7677 = vunpack.c.l.b16 %v7432
        %v7678 = vunpack.c.l.b16 %v7433
        %v7679 = vunpack.c.l.b16 %v7434
        %v7680 = vunpack.c.l.b16 %v7435
        %v7681 = vunpack.c.l.b16 %v7436
        %v7682 = vunpack.c.l.b16 %v7437
        %v7683 = vunpack.c.l.b16 %v7438
        %v7684 = vunpack.c.l.b16 %v7439
        %v7685 = vunpack.c.l.b16 %v7440
        %v7686 = vunpack.c.l.b16 %v7441
        %v7687 = vunpack.c.l.b16 %v7442
        %v7688 = vunpack.c.l.b16 %v7443
        %v7689 = vunpack.c.l.b16 %v7444
        %v7690 = vunpack.c.l.b16 %v7445
        %v7691 = vunpack.c.l.b16 %v7446
        %v7692 = vunpack.c.l.b16 %v7447
        %v7693 = vunpack.c.l.b16 %v7448
        %v7694 = vunpack.c.l.b16 %v7449
        %v7695 = vunpack.c.l.b16 %v7450
        %v7696 = vunpack.c.l.b16 %v7451
        %v7697 = vunpack.c.l.b16 %v7452
        %v7698 = vpack.c.b16 %v7667, %v7666
        %v7699 = vpack.c.b16 %v7669, %v7668
        %v7700 = vpack.c.b16 %v7671, %v7670
        %v7701 = vpack.c.b16 %v7673, %v7672
        %v7702 = vpack.c.b16 %v7675, %v7674
        %v7703 = vpack.c.b16 %v7677, %v7676
        %v7704 = vpack.c.b16 %v7679, %v7678
        %v7705 = vpack.c.b16 %v7681, %v7680
        %v7706 = vpack.c.b16 %v7683, %v7682
        %v7707 = vpack.c.b16 %v7685, %v7684
        %v7708 = vpack.c.b16 %v7687, %v7686
        %v7709 = vpack.c.b16 %v7689, %v7688
        %v7710 = vpack.c.b16 %v7691, %v7690
        %v7711 = vpack.c.b16 %v7693, %v7692
        %v7712 = vpack.c.b16 %v7695, %v7694
        %v7713 = vpack.c.b16 %v7697, %v7696
        %7730 = vmatprep.subr.bf16.mxu0 0
        %7731 = vmatpush1.bf16.msra.mxu0 %v7698
        %7732 = vmatprep.subr.bf16.mxu0 0
        %7733 = vmatpush1.bf16.msra.mxu0 %v7699
        %7734 = vmatprep.subr.bf16.mxu0 0
        %7735 = vmatpush1.bf16.msra.mxu0 %v7700
        %7736 = vmatprep.subr.bf16.mxu0 0
        %7737 = vmatpush1.bf16.msra.mxu0 %v7701
        %7738 = vmatprep.subr.bf16.mxu0 0
        %7739 = vmatpush1.bf16.msra.mxu0 %v7702
        %7740 = vmatprep.subr.bf16.mxu0 0
        %7741 = vmatpush1.bf16.msra.mxu0 %v7703
        %7742 = vmatprep.subr.bf16.mxu0 0
        %7743 = vmatpush1.bf16.msra.mxu0 %v7704
        %7744 = vmatprep.subr.bf16.mxu0 0
        %7745 = vmatpush1.bf16.msra.mxu0 %v7705
        %7746 = vmatprep.subr.bf16.mxu0 0
        %7747 = vmatpush1.bf16.msra.mxu0 %v7706
        %7748 = vmatprep.subr.bf16.mxu0 0
        %7749 = vmatpush1.bf16.msra.mxu0 %v7707
        %7750 = vmatprep.subr.bf16.mxu0 0
        %7751 = vmatpush1.bf16.msra.mxu0 %v7708
        %7752 = vmatprep.subr.bf16.mxu0 0
        %7753 = vmatpush1.bf16.msra.mxu0 %v7709
        %7754 = vmatprep.subr.bf16.mxu0 0
        %7755 = vmatpush1.bf16.msra.mxu0 %v7710
        %7756 = vmatprep.subr.bf16.mxu0 0
        %7757 = vmatpush1.bf16.msra.mxu0 %v7711
        %7758 = vmatprep.subr.bf16.mxu0 0
        %7759 = vmatpush1.bf16.msra.mxu0 %v7712
        %7760 = vmatprep.subr.bf16.mxu0 0
        %7761 = vmatpush1.bf16.msra.mxu0 %v7713
        %7762 = vmatprep.mubr.bf16.mxu0 %v7469
        %7763 = vmatmul.mubr.bf16.gmra.mrb[0].mxu0 %v7464
        %v7764 = vpop.f32.mrb[0].mxu0
        %v7765 = vadd.f32 0.0, %v7764
        %v7766 = vpop.f32.mrb[0].mxu0
        %v7767 = vpop.f32.mrb[0].mxu0
        %v7768 = vadd.f32 0.0, %v7767
        %v7769 = vpop.f32.mrb[0].mxu0
        %7770 = vmatprep.mubr.bf16.mxu0 %v6454
        %7771 = vmatmul.mubr.bf16.gmra.mrb[0].mxu0 %v7477
        %v7772 = vpop.f32.mrb[0].mxu0
        %v7773 = vadd.f32 0.0, %v7772
        %v7774 = vpop.f32.mrb[0].mxu0
        %v7775 = vpop.f32.mrb[0].mxu0
        %v7776 = vadd.f32 0.0, %v7775
        %v7777 = vpop.f32.mrb[0].mxu0
        %7778 = vmatprep.mubr.bf16.mxu0 %v6470
        %7779 = vmatmul.mubr.bf16.gmra.mrb[0].mxu0 %v7485
        %v7780 = vpop.f32.mrb[0].mxu0
        %v7781 = vadd.f32 0.0, %v7780
        %v7782 = vpop.f32.mrb[0].mxu0
        %v7783 = vpop.f32.mrb[0].mxu0
        %v7784 = vadd.f32 0.0, %v7783
        %v7785 = vpop.f32.mrb[0].mxu0
        %7786 = vmatprep.mubr.bf16.mxu0 %v6486
        %7787 = vmatmul.mubr.bf16.gmra.mrb[0].mxu0 %v7493
        %v7788 = vpop.f32.mrb[0].mxu0
        %v7789 = vadd.f32 0.0, %v7788
        %v7790 = vpop.f32.mrb[0].mxu0
        %v7791 = vpop.f32.mrb[0].mxu0
        %v7792 = vadd.f32 0.0, %v7791
        %v7793 = vpop.f32.mrb[0].mxu0
        %7794 = vmatprep.mubr.bf16.mxu0 %v6502
        %7795 = vmatmul.mubr.bf16.gmra.mrb[0].mxu0 %v7501
        %v7796 = vpop.f32.mrb[0].mxu0
        %v7797 = vadd.f32 0.0, %v7796
        %v7798 = vpop.f32.mrb[0].mxu0
        %v7799 = vpop.f32.mrb[0].mxu0
        %v7800 = vadd.f32 0.0, %v7799
        %v7801 = vpop.f32.mrb[0].mxu0
        %7802 = vmatprep.mubr.bf16.mxu0 %v6518
        %7803 = vmatmul.mubr.bf16.gmra.mrb[0].mxu0 %v7509
        %v7804 = vpop.f32.mrb[0].mxu0
        %v7805 = vadd.f32 0.0, %v7804
        %v7806 = vpop.f32.mrb[0].mxu0
        %v7807 = vpop.f32.mrb[0].mxu0
        %v7808 = vadd.f32 0.0, %v7807
        %v7809 = vpop.f32.mrb[0].mxu0
        %7810 = vmatprep.mubr.bf16.mxu0 %v6534
        %7811 = vmatmul.mubr.bf16.gmra.mrb[0].mxu0 %v7517
        %v7812 = vpop.f32.mrb[0].mxu0
        %v7813 = vadd.f32 0.0, %v7812
        %v7814 = vpop.f32.mrb[0].mxu0
        %v7815 = vpop.f32.mrb[0].mxu0
        %v7816 = vadd.f32 0.0, %v7815
        %v7817 = vpop.f32.mrb[0].mxu0
        %7818 = vmatprep.mubr.bf16.mxu0 %v6550
        %7819 = vmatmul.mubr.bf16.gmra.mrb[0].mxu0 %v7525
        %v7820 = vpop.f32.mrb[0].mxu0
        %v7821 = vadd.f32 0.0, %v7820
        %v7822 = vpop.f32.mrb[0].mxu0
        %v7823 = vpop.f32.mrb[0].mxu0
        %v7824 = vadd.f32 0.0, %v7823
        %v7825 = vpop.f32.mrb[0].mxu0
        %7826 = vmatprep.mubr.bf16.mxu0 %v6566
        %7827 = vmatmul.mubr.bf16.gmra.mrb[0].mxu0 %v7533
        %v7828 = vpop.f32.mrb[0].mxu0
        %v7829 = vadd.f32 0.0, %v7828
        %v7830 = vpop.f32.mrb[0].mxu0
        %v7831 = vpop.f32.mrb[0].mxu0
        %v7832 = vadd.f32 0.0, %v7831
        %v7833 = vpop.f32.mrb[0].mxu0
        %7834 = vmatprep.mubr.bf16.mxu0 %v6582
        %7835 = vmatmul.mubr.bf16.gmra.mrb[0].mxu0 %v7541
        %v7836 = vpop.f32.mrb[0].mxu0
        %v7837 = vadd.f32 0.0, %v7836
        %v7838 = vpop.f32.mrb[0].mxu0
        %v7839 = vpop.f32.mrb[0].mxu0
        %v7840 = vadd.f32 0.0, %v7839
        %v7841 = vpop.f32.mrb[0].mxu0
        %7842 = vmatprep.mubr.bf16.mxu0 %v6598
        %7843 = vmatmul.mubr.bf16.gmra.mrb[0].mxu0 %v7549
        %v7844 = vpop.f32.mrb[0].mxu0
        %v7845 = vadd.f32 0.0, %v7844
        %v7846 = vpop.f32.mrb[0].mxu0
        %v7847 = vpop.f32.mrb[0].mxu0
        %v7848 = vadd.f32 0.0, %v7847
        %v7849 = vpop.f32.mrb[0].mxu0
        %7850 = vmatprep.mubr.bf16.mxu0 %v6614
        %7851 = vmatmul.mubr.bf16.gmra.mrb[0].mxu0 %v7557
        %v7852 = vpop.f32.mrb[0].mxu0
        %v7853 = vadd.f32 0.0, %v7852
        %v7854 = vpop.f32.mrb[0].mxu0
        %v7855 = vpop.f32.mrb[0].mxu0
        %v7856 = vadd.f32 0.0, %v7855
        %v7857 = vpop.f32.mrb[0].mxu0
        %7858 = vmatprep.mubr.bf16.mxu0 %v6630
        %7859 = vmatmul.mubr.bf16.gmra.mrb[0].mxu0 %v7565
        %v7860 = vpop.f32.mrb[0].mxu0
        %v7861 = vadd.f32 0.0, %v7860
        %v7862 = vpop.f32.mrb[0].mxu0
        %v7863 = vpop.f32.mrb[0].mxu0
        %v7864 = vadd.f32 0.0, %v7863
        %v7865 = vpop.f32.mrb[0].mxu0
        %7866 = vmatprep.mubr.bf16.mxu0 %v7581
        %7867 = vmatmul.mubr.bf16.gmra.mrb[0].mxu0 %v7573
        %v7868 = vpop.f32.mrb[0].mxu0
        %v7869 = vadd.f32 0.0, %v7868
        %v7870 = vpop.f32.mrb[0].mxu0
        %v7871 = vpop.f32.mrb[0].mxu0
        %v7872 = vadd.f32 0.0, %v7871
        %v7873 = vpop.f32.mrb[0].mxu0
        %7874 = vmatprep.mubr.bf16.mxu0 %v7597
        %7875 = vmatmul.mubr.bf16.gmra.mrb[0].mxu0 %v7589
        %v7876 = vpop.f32.mrb[0].mxu0
        %v7877 = vadd.f32 0.0, %v7876
        %v7878 = vpop.f32.mrb[0].mxu0
        %v7879 = vpop.f32.mrb[0].mxu0
        %v7880 = vadd.f32 0.0, %v7879
        %v7881 = vpop.f32.mrb[0].mxu0
        %7882 = vmatprep.mubr.bf16.mxu0 %v7613
        %7883 = vmatmul.mubr.bf16.gmra.mrb[0].mxu0 %v7605
        %v7884 = vpop.f32.mrb[0].mxu0
        %v7885 = vadd.f32 0.0, %v7884
        %v7886 = vpop.f32.mrb[0].mxu0
        %v7887 = vpop.f32.mrb[0].mxu0
        %v7888 = vadd.f32 0.0, %v7887
        %v7889 = vpop.f32.mrb[0].mxu0
        %7890 = vdwg.mxu0
        %v7891 = vadd.f32 %v7373, %v7765
        %v7892 = vadd.f32 %v7374, %v7768
        %v7893 = vadd.f32 %v7375, %v7773
        %v7894 = vadd.f32 %v7376, %v7776
        %v7895 = vadd.f32 %v7377, %v7781
        %v7896 = vadd.f32 %v7378, %v7784
        %v7897 = vadd.f32 %v7379, %v7789
        %v7898 = vadd.f32 %v7380, %v7792
        %v7899 = vadd.f32 %v7381, %v7797
        %v7900 = vadd.f32 %v7382, %v7800
        %v7901 = vadd.f32 %v7383, %v7805
        %v7902 = vadd.f32 %v7384, %v7808
        %v7903 = vadd.f32 %v7385, %v7813
        %v7904 = vadd.f32 %v7386, %v7816
        %v7905 = vadd.f32 %v7387, %v7821
        %v7906 = vadd.f32 %v7388, %v7824
        %v7907 = vadd.f32 %v7389, %v7829
        %v7908 = vadd.f32 %v7390, %v7832
        %v7909 = vadd.f32 %v7391, %v7837
        %v7910 = vadd.f32 %v7392, %v7840
        %v7911 = vadd.f32 %v7393, %v7845
        %v7912 = vadd.f32 %v7394, %v7848
        %v7913 = vadd.f32 %v7395, %v7853
        %v7914 = vadd.f32 %v7396, %v7856
        %v7915 = vadd.f32 %v7397, %v7861
        %v7916 = vadd.f32 %v7398, %v7864
        %v7917 = vadd.f32 %v7399, %v7869
        %v7918 = vadd.f32 %v7400, %v7872
        %v7919 = vadd.f32 %v7401, %v7877
        %v7920 = vadd.f32 %v7402, %v7880
        %v7921 = vadd.f32 %v7403, %v7885
        %v7922 = vadd.f32 %v7404, %v7888
        %v7923 = vld [vmem:[#allocation11 + $0x200] sm:$0xf]
        %v7924 = vld [vmem:[#allocation11 + $0x204] sm:$0xf]
        %v7925 = vld [vmem:[#allocation11 + $0x208] sm:$0xf]
        %v7926 = vld [vmem:[#allocation11 + $0x20c] sm:$0xf]
        %v7927 = vld [vmem:[#allocation11 + $0x210] sm:$0xf]
        %v7928 = vld [vmem:[#allocation11 + $0x214] sm:$0xf]
        %v7929 = vld [vmem:[#allocation11 + $0x218] sm:$0xf]
        %v7930 = vld [vmem:[#allocation11 + $0x21c] sm:$0xf]
        %v7931 = vld [vmem:[#allocation11 + $0x220] sm:$0xf]
        %v7932 = vld [vmem:[#allocation11 + $0x224] sm:$0xf]
        %v7933 = vld [vmem:[#allocation11 + $0x228] sm:$0xf]
        %v7934 = vld [vmem:[#allocation11 + $0x22c] sm:$0xf]
        %v7935 = vld [vmem:[#allocation11 + $0x230] sm:$0xf]
        %v7936 = vld [vmem:[#allocation11 + $0x234] sm:$0xf]
        %v7937 = vld [vmem:[#allocation11 + $0x238] sm:$0xf]
        %v7938 = vld [vmem:[#allocation11 + $0x23c] sm:$0xf]
        %v7940 = vshrl.u32 %v5572, 16
        %v7942 = vshll.u32 %v5572, 16
        %v7944 = vrot.slane %v7942, 1
        %v7945 = vor.u32 %v7940, %v7944
        %v7947 = vshll.u32 %v5573, 16
        %v7949 = vrot.slane %v7947, 1
        %v7950 = vsel %vm1815, %v7945, %v7949
        %v7951 = vshrl.u32 %v5573, 16
        %v7953 = vor.u32 %v7951, %v7949
        %v7955 = vshll.u32 %v5574, 16
        %v7957 = vrot.slane %v7955, 1
        %v7958 = vsel %vm1815, %v7953, %v7957
        %v7959 = vshrl.u32 %v5574, 16
        %v7961 = vor.u32 %v7959, %v7957
        %v7963 = vshll.u32 %v5575, 16
        %v7965 = vrot.slane %v7963, 1
        %v7966 = vsel %vm1815, %v7961, %v7965
        %v7967 = vshrl.u32 %v5575, 16
        %v7969 = vor.u32 %v7967, %v7965
        %v7971 = vshll.u32 %v5576, 16
        %v7973 = vrot.slane %v7971, 1
        %v7974 = vsel %vm1815, %v7969, %v7973
        %v7975 = vshrl.u32 %v5576, 16
        %v7977 = vor.u32 %v7975, %v7973
        %v7979 = vshll.u32 %v5577, 16
        %v7981 = vrot.slane %v7979, 1
        %v7982 = vsel %vm1815, %v7977, %v7981
        %v7983 = vshrl.u32 %v5577, 16
        %v7985 = vor.u32 %v7983, %v7981
        %v7987 = vshll.u32 %v5578, 16
        %v7989 = vrot.slane %v7987, 1
        %v7990 = vsel %vm1815, %v7985, %v7989
        %v7991 = vshrl.u32 %v5578, 16
        %v7993 = vor.u32 %v7991, %v7989
        %v7995 = vshll.u32 %v5579, 16
        %v7997 = vrot.slane %v7995, 1
        %v7998 = vsel %vm1815, %v7993, %v7997
        %v7999 = vshrl.u32 %v5579, 16
        %v8001 = vor.u32 %v7999, %v7997
        %v8003 = vshll.u32 %v5580, 16
        %v8005 = vrot.slane %v8003, 1
        %v8006 = vsel %vm1815, %v8001, %v8005
        %v8007 = vshrl.u32 %v5580, 16
        %v8009 = vor.u32 %v8007, %v8005
        %v8011 = vshll.u32 %v5581, 16
        %v8013 = vrot.slane %v8011, 1
        %v8014 = vsel %vm1815, %v8009, %v8013
        %v8015 = vshrl.u32 %v5581, 16
        %v8017 = vor.u32 %v8015, %v8013
        %v8019 = vshll.u32 %v5582, 16
        %v8021 = vrot.slane %v8019, 1
        %v8022 = vsel %vm1815, %v8017, %v8021
        %v8023 = vshrl.u32 %v5582, 16
        %v8025 = vor.u32 %v8023, %v8021
        %v8027 = vshll.u32 %v5583, 16
        %v8029 = vrot.slane %v8027, 1
        %v8030 = vsel %vm1815, %v8025, %v8029
        %v8031 = vshrl.u32 %v5583, 16
        %v8033 = vor.u32 %v8031, %v8029
        %v8035 = vshll.u32 %v5584, 16
        %v8037 = vrot.slane %v8035, 1
        %v8038 = vsel %vm1815, %v8033, %v8037
        %v8039 = vshrl.u32 %v5584, 16
        %v8041 = vor.u32 %v8039, %v8037
        %v8043 = vshll.u32 %v5585, 16
        %v8045 = vrot.slane %v8043, 1
        %v8046 = vsel %vm1815, %v8041, %v8045
        %v8047 = vshrl.u32 %v5585, 16
        %v8049 = vor.u32 %v8047, %v8045
        %v8051 = vshll.u32 %v5586, 16
        %v8053 = vrot.slane %v8051, 1
        %v8054 = vsel %vm1815, %v8049, %v8053
        %v8055 = vshrl.u32 %v5586, 16
        %v8057 = vor.u32 %v8055, %v8053
        %v8059 = vshll.u32 %v5587, 16
        %v8061 = vrot.slane %v8059, 1
        %v8062 = vsel %vm1815, %v8057, %v8061
        %v8063 = vshrl.u32 %v5587, 16
        %v8065 = vor.u32 %v8063, %v8061
        %v8067 = vshll.u32 %v5588, 16
        %v8069 = vrot.slane %v8067, 1
        %v8070 = vsel %vm1815, %v8065, %v8069
        %v8103 = vunpack.c.l.b16 %v7923
        %v8104 = vunpack.c.l.b16 %v7924
        %v8105 = vunpack.c.l.b16 %v7925
        %v8106 = vunpack.c.l.b16 %v7926
        %v8107 = vunpack.c.l.b16 %v7927
        %v8108 = vunpack.c.l.b16 %v7928
        %v8109 = vunpack.c.l.b16 %v7929
        %v8110 = vunpack.c.l.b16 %v7930
        %v8111 = vunpack.c.l.b16 %v7931
        %v8112 = vunpack.c.l.b16 %v7932
        %v8113 = vunpack.c.l.b16 %v7933
        %v8114 = vunpack.c.l.b16 %v7934
        %v8115 = vunpack.c.l.b16 %v7935
        %v8116 = vunpack.c.l.b16 %v7936
        %v8117 = vunpack.c.l.b16 %v7937
        %v8118 = vunpack.c.l.b16 %v7938
        %v8119 = vpack.c.b16 %v8104, %v8103
        %v8120 = vpack.c.b16 %v8106, %v8105
        %v8121 = vpack.c.b16 %v8108, %v8107
        %v8122 = vpack.c.b16 %v8110, %v8109
        %v8123 = vpack.c.b16 %v8112, %v8111
        %v8124 = vpack.c.b16 %v8114, %v8113
        %v8125 = vpack.c.b16 %v8116, %v8115
        %v8126 = vpack.c.b16 %v8118, %v8117
        %8135 = vmatprep.subr.bf16.mxu0 0
        %8136 = vmatpush1.bf16.msra.mxu0 %v8119
        %8137 = vmatprep.subr.bf16.mxu0 0
        %8138 = vmatpush1.bf16.msra.mxu0 %v8120
        %8139 = vmatprep.subr.bf16.mxu0 0
        %8140 = vmatpush1.bf16.msra.mxu0 %v8121
        %8141 = vmatprep.subr.bf16.mxu0 0
        %8142 = vmatpush1.bf16.msra.mxu0 %v8122
        %8143 = vmatprep.subr.bf16.mxu0 0
        %8144 = vmatpush1.bf16.msra.mxu0 %v8123
        %8145 = vmatprep.subr.bf16.mxu0 0
        %8146 = vmatpush1.bf16.msra.mxu0 %v8124
        %8147 = vmatprep.subr.bf16.mxu0 0
        %8148 = vmatpush1.bf16.msra.mxu0 %v8125
        %8149 = vmatprep.subr.bf16.mxu0 0
        %8150 = vmatpush1.bf16.msra.mxu0 %v8126
        %8151 = vmatprep.subr.bf16.mxu0 0
        %8152 = vmatpush1.bf16.msra.mxu0 0
        %8153 = vmatprep.subr.bf16.mxu0 0
        %8154 = vmatpush1.bf16.msra.mxu0 0
        %8155 = vmatprep.subr.bf16.mxu0 0
        %8156 = vmatpush1.bf16.msra.mxu0 0
        %8157 = vmatprep.subr.bf16.mxu0 0
        %8158 = vmatpush1.bf16.msra.mxu0 0
        %8159 = vmatprep.subr.bf16.mxu0 0
        %8160 = vmatpush1.bf16.msra.mxu0 0
        %8161 = vmatprep.subr.bf16.mxu0 0
        %8162 = vmatpush1.bf16.msra.mxu0 0
        %8163 = vmatprep.subr.bf16.mxu0 0
        %8164 = vmatpush1.bf16.msra.mxu0 0
        %8165 = vmatprep.subr.bf16.mxu0 0
        %8166 = vmatpush1.bf16.msra.mxu0 0
        %8167 = vmatprep.mubr.bf16.mxu0 0
        %8168 = vmatmul.mubr.bf16.gmra.mrb[0].mxu0 %v7950
        %v8169 = vpop.f32.mrb[0].mxu0
        %v8170 = vadd.f32 0.0, %v8169
        %v8171 = vpop.f32.mrb[0].mxu0
        %v8172 = vpop.f32.mrb[0].mxu0
        %v8173 = vadd.f32 0.0, %v8172
        %v8174 = vpop.f32.mrb[0].mxu0
        %8175 = vmatprep.mubr.bf16.mxu0 0
        %8176 = vmatmul.mubr.bf16.gmra.mrb[0].mxu0 %v7958
        %v8177 = vpop.f32.mrb[0].mxu0
        %v8178 = vadd.f32 0.0, %v8177
        %v8179 = vpop.f32.mrb[0].mxu0
        %v8180 = vpop.f32.mrb[0].mxu0
        %v8181 = vadd.f32 0.0, %v8180
        %v8182 = vpop.f32.mrb[0].mxu0
        %8183 = vmatprep.mubr.bf16.mxu0 0
        %8184 = vmatmul.mubr.bf16.gmra.mrb[0].mxu0 %v7966
        %v8185 = vpop.f32.mrb[0].mxu0
        %v8186 = vadd.f32 0.0, %v8185
        %v8187 = vpop.f32.mrb[0].mxu0
        %v8188 = vpop.f32.mrb[0].mxu0
        %v8189 = vadd.f32 0.0, %v8188
        %v8190 = vpop.f32.mrb[0].mxu0
        %8191 = vmatprep.mubr.bf16.mxu0 0
        %8192 = vmatmul.mubr.bf16.gmra.mrb[0].mxu0 %v7974
        %v8193 = vpop.f32.mrb[0].mxu0
        %v8194 = vadd.f32 0.0, %v8193
        %v8195 = vpop.f32.mrb[0].mxu0
        %v8196 = vpop.f32.mrb[0].mxu0
        %v8197 = vadd.f32 0.0, %v8196
        %v8198 = vpop.f32.mrb[0].mxu0
        %8199 = vmatprep.mubr.bf16.mxu0 0
        %8200 = vmatmul.mubr.bf16.gmra.mrb[0].mxu0 %v7982
        %v8201 = vpop.f32.mrb[0].mxu0
        %v8202 = vadd.f32 0.0, %v8201
        %v8203 = vpop.f32.mrb[0].mxu0
        %v8204 = vpop.f32.mrb[0].mxu0
        %v8205 = vadd.f32 0.0, %v8204
        %v8206 = vpop.f32.mrb[0].mxu0
        %8207 = vmatprep.mubr.bf16.mxu0 0
        %8208 = vmatmul.mubr.bf16.gmra.mrb[0].mxu0 %v7990
        %v8209 = vpop.f32.mrb[0].mxu0
        %v8210 = vadd.f32 0.0, %v8209
        %v8211 = vpop.f32.mrb[0].mxu0
        %v8212 = vpop.f32.mrb[0].mxu0
        %v8213 = vadd.f32 0.0, %v8212
        %v8214 = vpop.f32.mrb[0].mxu0
        %8215 = vmatprep.mubr.bf16.mxu0 0
        %8216 = vmatmul.mubr.bf16.gmra.mrb[0].mxu0 %v7998
        %v8217 = vpop.f32.mrb[0].mxu0
        %v8218 = vadd.f32 0.0, %v8217
        %v8219 = vpop.f32.mrb[0].mxu0
        %v8220 = vpop.f32.mrb[0].mxu0
        %v8221 = vadd.f32 0.0, %v8220
        %v8222 = vpop.f32.mrb[0].mxu0
        %8223 = vmatprep.mubr.bf16.mxu0 0
        %8224 = vmatmul.mubr.bf16.gmra.mrb[0].mxu0 %v8006
        %v8225 = vpop.f32.mrb[0].mxu0
        %v8226 = vadd.f32 0.0, %v8225
        %v8227 = vpop.f32.mrb[0].mxu0
        %v8228 = vpop.f32.mrb[0].mxu0
        %v8229 = vadd.f32 0.0, %v8228
        %v8230 = vpop.f32.mrb[0].mxu0
        %8231 = vmatprep.mubr.bf16.mxu0 0
        %8232 = vmatmul.mubr.bf16.gmra.mrb[0].mxu0 %v8014
        %v8233 = vpop.f32.mrb[0].mxu0
        %v8234 = vadd.f32 0.0, %v8233
        %v8235 = vpop.f32.mrb[0].mxu0
        %v8236 = vpop.f32.mrb[0].mxu0
        %v8237 = vadd.f32 0.0, %v8236
        %v8238 = vpop.f32.mrb[0].mxu0
        %8239 = vmatprep.mubr.bf16.mxu0 0
        %8240 = vmatmul.mubr.bf16.gmra.mrb[0].mxu0 %v8022
        %v8241 = vpop.f32.mrb[0].mxu0
        %v8242 = vadd.f32 0.0, %v8241
        %v8243 = vpop.f32.mrb[0].mxu0
        %v8244 = vpop.f32.mrb[0].mxu0
        %v8245 = vadd.f32 0.0, %v8244
        %v8246 = vpop.f32.mrb[0].mxu0
        %8247 = vmatprep.mubr.bf16.mxu0 0
        %8248 = vmatmul.mubr.bf16.gmra.mrb[0].mxu0 %v8030
        %v8249 = vpop.f32.mrb[0].mxu0
        %v8250 = vadd.f32 0.0, %v8249
        %v8251 = vpop.f32.mrb[0].mxu0
        %v8252 = vpop.f32.mrb[0].mxu0
        %v8253 = vadd.f32 0.0, %v8252
        %v8254 = vpop.f32.mrb[0].mxu0
        %8255 = vmatprep.mubr.bf16.mxu0 0
        %8256 = vmatmul.mubr.bf16.gmra.mrb[0].mxu0 %v8038
        %v8257 = vpop.f32.mrb[0].mxu0
        %v8258 = vadd.f32 0.0, %v8257
        %v8259 = vpop.f32.mrb[0].mxu0
        %v8260 = vpop.f32.mrb[0].mxu0
        %v8261 = vadd.f32 0.0, %v8260
        %v8262 = vpop.f32.mrb[0].mxu0
        %8263 = vmatprep.mubr.bf16.mxu0 0
        %8264 = vmatmul.mubr.bf16.gmra.mrb[0].mxu0 %v8046
        %v8265 = vpop.f32.mrb[0].mxu0
        %v8266 = vadd.f32 0.0, %v8265
        %v8267 = vpop.f32.mrb[0].mxu0
        %v8268 = vpop.f32.mrb[0].mxu0
        %v8269 = vadd.f32 0.0, %v8268
        %v8270 = vpop.f32.mrb[0].mxu0
        %8271 = vmatprep.mubr.bf16.mxu0 0
        %8272 = vmatmul.mubr.bf16.gmra.mrb[0].mxu0 %v8054
        %v8273 = vpop.f32.mrb[0].mxu0
        %v8274 = vadd.f32 0.0, %v8273
        %v8275 = vpop.f32.mrb[0].mxu0
        %v8276 = vpop.f32.mrb[0].mxu0
        %v8277 = vadd.f32 0.0, %v8276
        %v8278 = vpop.f32.mrb[0].mxu0
        %8279 = vmatprep.mubr.bf16.mxu0 0
        %8280 = vmatmul.mubr.bf16.gmra.mrb[0].mxu0 %v8062
        %v8281 = vpop.f32.mrb[0].mxu0
        %v8282 = vadd.f32 0.0, %v8281
        %v8283 = vpop.f32.mrb[0].mxu0
        %v8284 = vpop.f32.mrb[0].mxu0
        %v8285 = vadd.f32 0.0, %v8284
        %v8286 = vpop.f32.mrb[0].mxu0
        %8287 = vmatprep.mubr.bf16.mxu0 0
        %8288 = vmatmul.mubr.bf16.gmra.mrb[0].mxu0 %v8070
        %v8289 = vpop.f32.mrb[0].mxu0
        %v8290 = vadd.f32 0.0, %v8289
        %v8291 = vpop.f32.mrb[0].mxu0
        %v8292 = vpop.f32.mrb[0].mxu0
        %v8293 = vadd.f32 0.0, %v8292
        %v8294 = vpop.f32.mrb[0].mxu0
        %8295 = vdwg.mxu0
        %v8296 = vadd.f32 %v7891, %v8170
        %v8297 = vadd.f32 %v7892, %v8173
        %v8298 = vadd.f32 %v7893, %v8178
        %v8299 = vadd.f32 %v7894, %v8181
        %v8300 = vadd.f32 %v7895, %v8186
        %v8301 = vadd.f32 %v7896, %v8189
        %v8302 = vadd.f32 %v7897, %v8194
        %v8303 = vadd.f32 %v7898, %v8197
        %v8304 = vadd.f32 %v7899, %v8202
        %v8305 = vadd.f32 %v7900, %v8205
        %v8306 = vadd.f32 %v7901, %v8210
        %v8307 = vadd.f32 %v7902, %v8213
        %v8308 = vadd.f32 %v7903, %v8218
        %v8309 = vadd.f32 %v7904, %v8221
        %v8310 = vadd.f32 %v7905, %v8226
        %v8311 = vadd.f32 %v7906, %v8229
        %v8312 = vadd.f32 %v7907, %v8234
        %v8313 = vadd.f32 %v7908, %v8237
        %v8314 = vadd.f32 %v7909, %v8242
        %v8315 = vadd.f32 %v7910, %v8245
        %v8316 = vadd.f32 %v7911, %v8250
        %v8317 = vadd.f32 %v7912, %v8253
        %v8318 = vadd.f32 %v7913, %v8258
        %v8319 = vadd.f32 %v7914, %v8261
        %v8320 = vadd.f32 %v7915, %v8266
        %v8321 = vadd.f32 %v7916, %v8269
        %v8322 = vadd.f32 %v7917, %v8274
        %v8323 = vadd.f32 %v7918, %v8277
        %v8324 = vadd.f32 %v7919, %v8282
        %v8325 = vadd.f32 %v7920, %v8285
        %v8326 = vadd.f32 %v7921, %v8290
        %v8327 = vadd.f32 %v7922, %v8293
        %v8328 = vld [vmem:[%s8] sm:$0x1]
        %v8330 = vlaneseq
        %v8331 = vshrl.u32 %v8330, 7
        %v8332 = vsub.s32 0, %v8331
        %v8333 = vrot.slane %v8328, %v8332
        %v8335 = vadd.f32 %v8296, %v8333
        %v8336 = vadd.f32 %v8297, %v8333
        %v8337 = vadd.f32 %v8298, %v8333
        %v8338 = vadd.f32 %v8299, %v8333
        %v8339 = vadd.f32 %v8300, %v8333
        %v8340 = vadd.f32 %v8301, %v8333
        %v8341 = vadd.f32 %v8302, %v8333
        %v8342 = vadd.f32 %v8303, %v8333
        %v8343 = vadd.f32 %v8304, %v8333
        %v8344 = vadd.f32 %v8305, %v8333
        %v8345 = vadd.f32 %v8306, %v8333
        %v8346 = vadd.f32 %v8307, %v8333
        %v8347 = vadd.f32 %v8308, %v8333
        %v8348 = vadd.f32 %v8309, %v8333
        %v8349 = vadd.f32 %v8310, %v8333
        %v8350 = vadd.f32 %v8311, %v8333
        %v8351 = vadd.f32 %v8312, %v8333
        %v8352 = vadd.f32 %v8313, %v8333
        %v8353 = vadd.f32 %v8314, %v8333
        %v8354 = vadd.f32 %v8315, %v8333
        %v8355 = vadd.f32 %v8316, %v8333
        %v8356 = vadd.f32 %v8317, %v8333
        %v8357 = vadd.f32 %v8318, %v8333
        %v8358 = vadd.f32 %v8319, %v8333
        %v8359 = vadd.f32 %v8320, %v8333
        %v8360 = vadd.f32 %v8321, %v8333
        %v8361 = vadd.f32 %v8322, %v8333
        %v8362 = vadd.f32 %v8323, %v8333
        %v8363 = vadd.f32 %v8324, %v8333
        %v8364 = vadd.f32 %v8325, %v8333
        %v8365 = vadd.f32 %v8326, %v8333
        %v8366 = vadd.f32 %v8327, %v8333
        %v8367 = vadd.f32 %v451, %v8335
        %v8368 = vadd.f32 %v452, %v8336
        %v8369 = vadd.f32 %v453, %v8337
        %v8370 = vadd.f32 %v454, %v8338
        %v8371 = vadd.f32 %v455, %v8339
        %v8372 = vadd.f32 %v456, %v8340
        %v8373 = vadd.f32 %v457, %v8341
        %v8374 = vadd.f32 %v458, %v8342
        %v8375 = vadd.f32 %v459, %v8343
        %v8376 = vadd.f32 %v460, %v8344
        %v8377 = vadd.f32 %v461, %v8345
        %v8378 = vadd.f32 %v462, %v8346
        %v8379 = vadd.f32 %v463, %v8347
        %v8380 = vadd.f32 %v464, %v8348
        %v8381 = vadd.f32 %v465, %v8349
        %v8382 = vadd.f32 %v466, %v8350
        %v8383 = vadd.f32 %v467, %v8351
        %v8384 = vadd.f32 %v468, %v8352
        %v8385 = vadd.f32 %v469, %v8353
        %v8386 = vadd.f32 %v470, %v8354
        %v8387 = vadd.f32 %v471, %v8355
        %v8388 = vadd.f32 %v472, %v8356
        %v8389 = vadd.f32 %v473, %v8357
        %v8390 = vadd.f32 %v474, %v8358
        %v8391 = vadd.f32 %v475, %v8359
        %v8392 = vadd.f32 %v476, %v8360
        %v8393 = vadd.f32 %v477, %v8361
        %v8394 = vadd.f32 %v478, %v8362
        %v8395 = vadd.f32 %v479, %v8363
        %v8396 = vadd.f32 %v480, %v8364
        %v8397 = vadd.f32 %v481, %v8365
        %v8398 = vadd.f32 %v482, %v8366
        %8399 = vst [vmem:[%s444] sm:$0xff] %v8367
        %8400 = vst [vmem:[%s444 + $0x8] sm:$0xff] %v8368
        %8401 = vst [vmem:[%s444 + $0x10] sm:$0xff] %v8369
        %8402 = vst [vmem:[%s444 + $0x18] sm:$0xff] %v8370
        %8403 = vst [vmem:[%s444 + $0x20] sm:$0xff] %v8371
        %8404 = vst [vmem:[%s444 + $0x28] sm:$0xff] %v8372
        %8405 = vst [vmem:[%s444 + $0x30] sm:$0xff] %v8373
        %8406 = vst [vmem:[%s444 + $0x38] sm:$0xff] %v8374
        %8407 = vst [vmem:[%s444 + $0x40] sm:$0xff] %v8375
        %8408 = vst [vmem:[%s444 + $0x48] sm:$0xff] %v8376
        %8409 = vst [vmem:[%s444 + $0x50] sm:$0xff] %v8377
        %8410 = vst [vmem:[%s444 + $0x58] sm:$0xff] %v8378
        %8411 = vst [vmem:[%s444 + $0x60] sm:$0xff] %v8379
        %8412 = vst [vmem:[%s444 + $0x68] sm:$0xff] %v8380
        %8413 = vst [vmem:[%s444 + $0x70] sm:$0xff] %v8381
        %8414 = vst [vmem:[%s444 + $0x78] sm:$0xff] %v8382
        %8415 = vst [vmem:[%s444 + $0x80] sm:$0xff] %v8383
        %8416 = vst [vmem:[%s444 + $0x88] sm:$0xff] %v8384
        %8417 = vst [vmem:[%s444 + $0x90] sm:$0xff] %v8385
        %8418 = vst [vmem:[%s444 + $0x98] sm:$0xff] %v8386
        %8419 = vst [vmem:[%s444 + $0xa0] sm:$0xff] %v8387
        %8420 = vst [vmem:[%s444 + $0xa8] sm:$0xff] %v8388
        %8421 = vst [vmem:[%s444 + $0xb0] sm:$0xff] %v8389
        %8422 = vst [vmem:[%s444 + $0xb8] sm:$0xff] %v8390
        %8423 = vst [vmem:[%s444 + $0xc0] sm:$0xff] %v8391
        %8424 = vst [vmem:[%s444 + $0xc8] sm:$0xff] %v8392
        %8425 = vst [vmem:[%s444 + $0xd0] sm:$0xff] %v8393
        %8426 = vst [vmem:[%s444 + $0xd8] sm:$0xff] %v8394
        %8427 = vst [vmem:[%s444 + $0xe0] sm:$0xff] %v8395
        %8428 = vst [vmem:[%s444 + $0xe8] sm:$0xff] %v8396
        %8429 = vst [vmem:[%s444 + $0xf0] sm:$0xff] %v8397
        %8430 = vst [vmem:[%s444 + $0xf8] sm:$0xff] %v8398
        %s8431 = sand.u32 %s242, 1
        %s8432 = scalar_lea.sflag [#allocation5], %s8431
        %s8433 = sand.u32 %s242, 1
        %s8434 = smul.addr %s8433, 256
        %s8435 = scalar_lea.vmem [#allocation12], %s8434
        // Predicated region
        $region77: #{tpu_custom_call.1} parent=55 // pred_check
          %p8436 = pneg %p252
        $region78: #{tpu_custom_call.1} parent=55 // pred_check_branch
          %8438 = sbr.rel (%p8436) target = $region80
        $region79: #{tpu_custom_call.1} parent=55 // pred_region
          %s8440 = ssub.s32 4096, 4096
          %8441 = vsyncadd %s8432, %s8440
          %s8442 = smul.addr %s30, 32
          %s8443 = smul.addr %s8442, 128
          %s8444 = scalar_lea.hbm %s9, %s8443
          %s8445 = sshll.u32 %s8435, 4
          %s8446 = int_to_ptr.vmem [resolvable:$true] %s8445
          %8451 = dma.vmem_to_hbm [thread:$0]  %s8446, 4096, %s8444, %s8432, 128, 128, 8
        $region80: #{tpu_custom_call.1} parent=55 // pred_fallthru
          _
      $region56: #{tpu_custom_call.1} parent=5 // pred_fallthru
        _
      %p8452 = scmp.le.s32.totalorder 2, %s25
      // Predicated region
      $region81: #{tpu_custom_call.1} parent=5 // pred_check
        %p8453 = pneg %p8452
      $region82: #{tpu_custom_call.1} parent=5 // pred_check_branch
        %8455 = sbr.rel (%p8453) target = $region84
      $region83: #{tpu_custom_call.1} parent=5 // pred_region
        %s8456 = ssub.s32 %s25, 2
        // Predicated region
        $region85: #{tpu_custom_call.1} parent=83 // pred_check
          %p8457 = pneg %p258
        $region86: #{tpu_custom_call.1} parent=83 // pred_check_branch
          %8459 = sbr.rel (%p8457) target = $region88
        $region87: #{tpu_custom_call.1} parent=83 // pred_region
          %s8460 = sand.u32 %s243, 1
          %s8461 = scalar_lea.sflag [#allocation5], %s8460
          %s8462 = sand.u32 %s243, 1
          %s8463 = smul.addr %s8462, 256
          %s8464 = scalar_lea.vmem [#allocation12], %s8463
          %8465 = dma.done %s8461, 4096
        $region88: #{tpu_custom_call.1} parent=83 // pred_fallthru
          _
      $region84: #{tpu_custom_call.1} parent=5 // pred_fallthru
        _
    $region6: #{tpu_custom_call.1} parent=1 // loop_footer
      %s29 = sadd.s32 1, %s25
    $region7: #{tpu_custom_call.1} parent=1 // loop_footer_branch
      %24 = sbr.rel target = $region3
    $region8: #{tpu_custom_call.1} parent=1 // loop_exit
      _
    %8466 = vsyncpa [#allocation4], 1
    %s8467 = scalar_lea.sflag [#allocation4], 1
    %8468 = vsyncpa %s8467, 1
    %8469 = vsyncpa [#allocation7], 1
    %s8470 = scalar_lea.sflag [#allocation7], 1
    %8471 = vsyncpa %s8470, 1
    %8472 = vsyncpa [#allocation10], 1
    %8473 = vsyncpa [#allocation5], 1
    %s8474 = scalar_lea.sflag [#allocation5], 1
    %8475 = vsyncpa %s8474, 1

</llo_original>
